<compile_context>
chip_gen: v5e
topology: v5e:2x2
jax: 0.10.0
libtpu: 0.0.40
codegen_flags: <defaults>
</compile_context>

<pallas_src>
import jax
import jax.numpy as jnp
from jax import lax
from jax.experimental import pallas as pl
from jax.experimental.pallas import tpu as pltpu

NEG_SLOPE = 0.2  # nn.LeakyReLU(0.2)


def _leaky_relu(v):
    return jnp.where(v > 0.0, v, NEG_SLOPE * v)


def _round_up(x, m):
    return -(-x // m) * m


def conv_encoder_forward(x_nchw, params, batch_block=None):
    """(mean, sigma) = ConvEncoder(x); x is NCHW like the PyTorch module."""
    N, Cin, H0, W0 = x_nchw.shape
    assert H0 % 8 == 0 and W0 % 8 == 0, "three 2x2 max-pools need H, W % 8 == 0"

    w1, b1 = params["conv1"]
    w2, b2 = params["conv2"]
    w3, b3 = params["conv3"]
    wm, bm = params["conv_mean"]
    wsg, bsg = params["conv_sigma"]
    C1, C2, C3 = w1.shape[-1], w2.shape[-1], w3.shape[-1]
    LAT = wm.shape[-1]

    # images per grid step (keep grid-step count even on v7x for 2-TC balance)
    B = batch_block if batch_block is not None else min(8, N)
    NB = _round_up(N, B)
    G = NB // B

    # pad input channels to a multiple of 8 (zero weight rows keep math identical)
    CP = _round_up(Cin, 8)
    # fused conv_mean/conv_sigma head, Cout zero-padded to a lane-dense 128 mult.
    COH = _round_up(2 * LAT, 128)

    # conv weights as (9, Cin, Cout): tap t = dy*3+dx maps to w[dy, dx]
    w1f = jnp.pad(w1, ((0, 0), (0, 0), (0, CP - Cin), (0, 0))).reshape(9, CP, C1)
    w2f = w2.reshape(9, C1, C2)
    w3f = w3.reshape(9, C2, C3)
    whf = jnp.pad(jnp.concatenate([wm, wsg], axis=-1),
                  ((0, 0), (0, 0), (0, 0), (0, COH - 2 * LAT))).reshape(9, C3, COH)
    bhf = jnp.pad(jnp.concatenate([bm, bsg], axis=-1), ((0, 0), (0, COH - 2 * LAT)))

    # NCHW -> flat channels-last (NB, H*W, CP), batch- and channel-padded
    x = jnp.transpose(x_nchw, (0, 2, 3, 1)).astype(jnp.float32)
    x = x.reshape(N, H0 * W0, Cin)
    x = jnp.pad(x, ((0, NB - N), (0, 0), (0, CP - Cin)))

    HS = [H0, H0 // 2, H0 // 4, H0 // 8]
    WS = [W0, W0 // 2, W0 // 4, W0 // 8]
    CIN = [CP, C1, C2, C3]
    COUT = [C1, C2, C3, COH]

    # scratch: one flat halo buffer per stage (rows = HW + 2W + 2) and one
    # half-size height-folded buffer per pooled stage.
    scratch_shapes = []
    for s in range(4):
        R = HS[s] * WS[s] + 2 * WS[s] + 2
        scratch_shapes.append(pltpu.VMEM((B, R, CIN[s]), jnp.float32))
    for s in range(3):
        scratch_shapes.append(
            pltpu.VMEM((B * (HS[s] // 2) * WS[s], COUT[s]), jnp.float32))

    def kernel(x_ref, w1_ref, b1_ref, w2_ref, b2_ref, w3_ref, b3_ref,
               wh_ref, bh_ref, out_ref,
               pad0, pad1, pad2, pad3, yh0, yh1, yh2):
        pads = (pad0, pad1, pad2, pad3)
        yhs = (yh0, yh1, yh2)
        wrefs = (w1_ref, w2_ref, w3_ref, wh_ref)
        brefs = (b1_ref, b2_ref, b3_ref, bh_ref)

        # zero ONLY the halo rows; interiors are fully overwritten every step
        for s in range(4):
            W, HW, Ci = WS[s], HS[s] * WS[s], CIN[s]
            z = jnp.zeros((B, W + 1, Ci), jnp.float32)
            pads[s][:, 0:W + 1, :] = z
            pads[s][:, W + 1 + HW:W + 2 * (W + 1) + HW, :] = z

        # stage-0 interior = the input block (one image-row + 1 column offset)
        pads[0][:, WS[0] + 1:WS[0] + 1 + HS[0] * WS[0], :] = x_ref[...]

        for s in range(4):
            H, W, Ci, Co = HS[s], WS[s], CIN[s], COUT[s]
            HW, BHW = H * W, B * H * W

            # flat-layout edge masks, built/broadcast once per stage
            col = lax.broadcasted_iota(jnp.int32, (BHW, Ci), 0) % W
            not_left = col != 0
            not_right = col != (W - 1)

            # 3x3 "same" conv = 9 accumulating tap matmuls on row-slices of the
            # zero-haloed flat buffer (no im2col patch build)
            acc = None
            for dy in range(3):
                for dx in range(3):
                    start = dy * W + dx
                    blk = pads[s][:, start:start + HW, :].reshape(BHW, Ci)
                    if dx == 0:
                        blk = jnp.where(not_left, blk, 0.0)
                    elif dx == 2:
                        blk = jnp.where(not_right, blk, 0.0)
                    p = jnp.dot(blk, wrefs[s][dy * 3 + dx],
                                preferred_element_type=jnp.float32)
                    acc = p if acc is None else acc + p
            y = acc + brefs[s][...]

            if s < 3:
                y = _leaky_relu(y)
                Ho, Wo = H // 2, W // 2
                # height fold: one whole-tile maximum, store the half-size map
                y = y.reshape(B * Ho, 2 * W, Co)
                yhs[s][...] = jnp.maximum(y[:, :W, :],
                                          y[:, W:, :]).reshape(B * Ho * W, Co)
                # width fold: stride-2 sublane reads, written straight into the
                # NEXT stage's halo-buffer interior (no extra feature-map copy)
                even = yhs[s][pl.ds(0, B * Ho * Wo, 2), :]
                odd = yhs[s][pl.ds(1, B * Ho * Wo, 2), :]
                Wn, HWn = WS[s + 1], HS[s + 1] * WS[s + 1]
                pads[s + 1][:, Wn + 1:Wn + 1 + HWn, :] = (
                    jnp.maximum(even, odd).reshape(B, HWn, Co))
            else:
                # fused conv_mean/conv_sigma head (no activation) + global
                # average pool -> lane-dense (B, COH) output slab
                for bb in range(B):
                    out_ref[bb:bb + 1, :] = jnp.mean(
                        y[bb * HW:(bb + 1) * HW, :], axis=0, keepdims=True)

    out = pl.pallas_call(
        kernel,
        out_shape=jax.ShapeDtypeStruct((NB, COH), jnp.float32),
        grid_spec=pltpu.PrefetchScalarGridSpec(
            num_scalar_prefetch=0,
            grid=(G,),
            in_specs=[
                pl.BlockSpec((B, H0 * W0, CP), lambda g: (g, 0, 0)),
                pl.BlockSpec((9, CP, C1), lambda g: (0, 0, 0)),
                pl.BlockSpec((1, C1), lambda g: (0, 0)),
                pl.BlockSpec((9, C1, C2), lambda g: (0, 0, 0)),
                pl.BlockSpec((1, C2), lambda g: (0, 0)),
                pl.BlockSpec((9, C2, C3), lambda g: (0, 0, 0)),
                pl.BlockSpec((1, C3), lambda g: (0, 0)),
                pl.BlockSpec((9, C3, COH), lambda g: (0, 0, 0)),
                pl.BlockSpec((1, COH), lambda g: (0, 0)),
            ],
            out_specs=pl.BlockSpec((B, COH), lambda g: (g, 0)),
            scratch_shapes=scratch_shapes,
        ),
        compiler_params=pltpu.CompilerParams(
            dimension_semantics=("parallel",),
            vmem_limit_bytes=64 * 1024 * 1024,
        ),
    )(x, w1f, b1, w2f, b2, w3f, b3, whf, bhf)

    out = out[:N]                                # drop batch padding
    return out[:, :LAT], out[:, LAT:2 * LAT]     # mean, sigma


# --------------------------------------------------------------------------
# Deterministic synthetic parameter init (PyTorch-like uniform(-1/sqrt(fan_in), .))
# Weights are stored HWIO (kh, kw, cin, cout); from PyTorch OIHW transpose (2,3,1,0).
# --------------------------------------------------------------------------
def init_conv_params(key, cin, cout):
    wk, bk = jax.random.split(key)
    bound = float(cin * 9) ** -0.5
    w = jax.random.uniform(wk, (3, 3, cin, cout), jnp.float32, -bound, bound)
    b = jax.random.uniform(bk, (1, cout), jnp.float32, -bound, bound)
    return w, b


# --------------------------------------------------------------------------
# Pure-JAX reference for correctness check
# --------------------------------------------------------------------------
def _ref_conv(x, w, b):
    y = lax.conv_general_dilated(x, w, (1, 1), "SAME",
                                 dimension_numbers=("NHWC", "HWIO", "NHWC"))
    return y + b.reshape(1, 1, 1, -1)


def _ref_lrelu(x):
    return jnp.where(x > 0, x, NEG_SLOPE * x)


def _ref_maxpool(x):
    return lax.reduce_window(x, -jnp.inf, lax.max, (1, 2, 2, 1), (1, 2, 2, 1), "VALID")


def reference_forward(x_nchw, params):
    x = jnp.transpose(x_nchw, (0, 2, 3, 1)).astype(jnp.float32)
    for name in ("conv1", "conv2", "conv3"):
        w, b = params[name]
        x = _ref_maxpool(_ref_lrelu(_ref_conv(x, w, b)))
    mean = jnp.mean(_ref_conv(x, *params["conv_mean"]), axis=(1, 2))
    sigma = jnp.mean(_ref_conv(x, *params["conv_sigma"]), axis=(1, 2))
    return mean, sigma


if __name__ == "__main__":
    key = jax.random.PRNGKey(0)
    k_x, k1, k2, k3, km, ks = jax.random.split(key, 6)

    N, Cin, H, W = 2, 4, 16, 16
    hidden_dim, latent_dim = 32, 16

    x = jax.random.normal(k_x, (N, Cin, H, W), jnp.float32)
    params = {
        "conv1": init_conv_params(k1, Cin, 32),
        "conv2": init_conv_params(k2, 32, 128),
        "conv3": init_conv_params(k3, 128, hidden_dim),
        "conv_mean": init_conv_params(km, hidden_dim, latent_dim),
        "conv_sigma": init_conv_params(ks, hidden_dim, latent_dim),
    }

    mean, sigma = jax.jit(conv_encoder_forward)(x, params)
    jax.block_until_ready((mean, sigma))

    assert mean.shape == (N, latent_dim) and sigma.shape == (N, latent_dim)
    ref_mean, ref_sigma = reference_forward(x, params)
    assert jnp.allclose(mean, ref_mean, rtol=1e-3, atol=1e-3)
    assert jnp.allclose(sigma, ref_sigma, rtol=1e-3, atol=1e-3)

    print("KERNEL_OK")
</pallas_src>

<mosaic_0001>
module attributes {stable_mosaic.version = 11 : i64} {
  func.func @kernel(%arg0: i32, %arg1: memref<2x256x8xf32, #tpu.memory_space<vmem>>, %arg2: memref<9x8x32xf32, #tpu.memory_space<vmem>>, %arg3: memref<1x32xf32, #tpu.memory_space<vmem>>, %arg4: memref<9x32x128xf32, #tpu.memory_space<vmem>>, %arg5: memref<1x128xf32, #tpu.memory_space<vmem>>, %arg6: memref<9x128x32xf32, #tpu.memory_space<vmem>>, %arg7: memref<1x32xf32, #tpu.memory_space<vmem>>, %arg8: memref<9x32x128xf32, #tpu.memory_space<vmem>>, %arg9: memref<1x128xf32, #tpu.memory_space<vmem>>, %arg10: memref<2x128xf32, #tpu.memory_space<vmem>>, %arg11: memref<2x290x8xf32, #tpu.memory_space<vmem>>, %arg12: memref<2x82x32xf32, #tpu.memory_space<vmem>>, %arg13: memref<2x26x128xf32, #tpu.memory_space<vmem>>, %arg14: memref<2x10x32xf32, #tpu.memory_space<vmem>>, %arg15: memref<256x32xf32, #tpu.memory_space<vmem>>, %arg16: memref<64x128xf32, #tpu.memory_space<vmem>>, %arg17: memref<16x32xf32, #tpu.memory_space<vmem>>) attributes {dimension_semantics = [#tpu.dimension_semantics<parallel>], iteration_bounds = array<i64: 1>, scalar_prefetch = 0 : i64, scratch_operands = 7 : i64, tpu.core_type = #tpu.core_type<tc>, window_params = [{transform_indices = @transform_0, window_bounds = array<i64: 2, 256, 8>}, {pipeline_mode = #tpu.pipeline_mode<synchronous>, transform_indices = @transform_1, window_bounds = array<i64: 9, 8, 32>}, {pipeline_mode = #tpu.pipeline_mode<synchronous>, transform_indices = @transform_2, window_bounds = array<i64: 1, 32>}, {pipeline_mode = #tpu.pipeline_mode<synchronous>, transform_indices = @transform_3, window_bounds = array<i64: 9, 32, 128>}, {pipeline_mode = #tpu.pipeline_mode<synchronous>, transform_indices = @transform_4, window_bounds = array<i64: 1, 128>}, {pipeline_mode = #tpu.pipeline_mode<synchronous>, transform_indices = @transform_5, window_bounds = array<i64: 9, 128, 32>}, {pipeline_mode = #tpu.pipeline_mode<synchronous>, transform_indices = @transform_6, window_bounds = array<i64: 1, 32>}, {pipeline_mode = #tpu.pipeline_mode<synchronous>, transform_indices = @transform_7, window_bounds = array<i64: 9, 32, 128>}, {pipeline_mode = #tpu.pipeline_mode<synchronous>, transform_indices = @transform_8, window_bounds = array<i64: 1, 128>}, {transform_indices = @transform_9, window_bounds = array<i64: 2, 128>}]} {
    %cst = arith.constant 0.000000e+00 : f32
    %0 = vector.broadcast %cst : f32 to vector<2x17x8xf32>
    %c0 = arith.constant 0 : index
    %c0_0 = arith.constant 0 : index
    %c0_1 = arith.constant 0 : index
    %1 = vector.load %arg11[%c0, %c0_0, %c0_1] : memref<2x290x8xf32, #tpu.memory_space<vmem>>, vector<2x17x8xf32>
    tpu.vector_store %arg11[%c0, %c0_0, %c0_1], %0 {strides = array<i32>} : memref<2x290x8xf32, #tpu.memory_space<vmem>>, vector<2x17x8xf32>,
    %c0_2 = arith.constant 0 : index
    %c273 = arith.constant 273 : index
    %c0_3 = arith.constant 0 : index
    %2 = vector.load %arg11[%c0_2, %c273, %c0_3] : memref<2x290x8xf32, #tpu.memory_space<vmem>>, vector<2x17x8xf32>
    tpu.vector_store %arg11[%c0_2, %c273, %c0_3], %0 {strides = array<i32>} : memref<2x290x8xf32, #tpu.memory_space<vmem>>, vector<2x17x8xf32>,
    %cst_4 = arith.constant 0.000000e+00 : f32
    %3 = vector.broadcast %cst_4 : f32 to vector<2x9x32xf32>
    %c0_5 = arith.constant 0 : index
    %c0_6 = arith.constant 0 : index
    %c0_7 = arith.constant 0 : index
    %4 = vector.load %arg12[%c0_5, %c0_6, %c0_7] : memref<2x82x32xf32, #tpu.memory_space<vmem>>, vector<2x9x32xf32>
    tpu.vector_store %arg12[%c0_5, %c0_6, %c0_7], %3 {strides = array<i32>} : memref<2x82x32xf32, #tpu.memory_space<vmem>>, vector<2x9x32xf32>,
    %c0_8 = arith.constant 0 : index
    %c73 = arith.constant 73 : index
    %c0_9 = arith.constant 0 : index
    %5 = vector.load %arg12[%c0_8, %c73, %c0_9] : memref<2x82x32xf32, #tpu.memory_space<vmem>>, vector<2x9x32xf32>
    tpu.vector_store %arg12[%c0_8, %c73, %c0_9], %3 {strides = array<i32>} : memref<2x82x32xf32, #tpu.memory_space<vmem>>, vector<2x9x32xf32>,
    %cst_10 = arith.constant 0.000000e+00 : f32
    %6 = vector.broadcast %cst_10 : f32 to vector<2x5x128xf32>
    %c0_11 = arith.constant 0 : index
    %c0_12 = arith.constant 0 : index
    %c0_13 = arith.constant 0 : index
    %7 = vector.load %arg13[%c0_11, %c0_12, %c0_13] : memref<2x26x128xf32, #tpu.memory_space<vmem>>, vector<2x5x128xf32>
    tpu.vector_store %arg13[%c0_11, %c0_12, %c0_13], %6 {strides = array<i32>} : memref<2x26x128xf32, #tpu.memory_space<vmem>>, vector<2x5x128xf32>,
    %c0_14 = arith.constant 0 : index
    %c21 = arith.constant 21 : index
    %c0_15 = arith.constant 0 : index
    %8 = vector.load %arg13[%c0_14, %c21, %c0_15] : memref<2x26x128xf32, #tpu.memory_space<vmem>>, vector<2x5x128xf32>
    tpu.vector_store %arg13[%c0_14, %c21, %c0_15], %6 {strides = array<i32>} : memref<2x26x128xf32, #tpu.memory_space<vmem>>, vector<2x5x128xf32>,
    %cst_16 = arith.constant 0.000000e+00 : f32
    %9 = vector.broadcast %cst_16 : f32 to vector<2x3x32xf32>
    %c0_17 = arith.constant 0 : index
    %c0_18 = arith.constant 0 : index
    %c0_19 = arith.constant 0 : index
    %10 = vector.load %arg14[%c0_17, %c0_18, %c0_19] : memref<2x10x32xf32, #tpu.memory_space<vmem>>, vector<2x3x32xf32>
    tpu.vector_store %arg14[%c0_17, %c0_18, %c0_19], %9 {strides = array<i32>} : memref<2x10x32xf32, #tpu.memory_space<vmem>>, vector<2x3x32xf32>,
    %c0_20 = arith.constant 0 : index
    %c7 = arith.constant 7 : index
    %c0_21 = arith.constant 0 : index
    %11 = vector.load %arg14[%c0_20, %c7, %c0_21] : memref<2x10x32xf32, #tpu.memory_space<vmem>>, vector<2x3x32xf32>
    tpu.vector_store %arg14[%c0_20, %c7, %c0_21], %9 {strides = array<i32>} : memref<2x10x32xf32, #tpu.memory_space<vmem>>, vector<2x3x32xf32>,
    %c0_22 = arith.constant 0 : index
    %c0_23 = arith.constant 0 : index
    %c0_24 = arith.constant 0 : index
    %12 = vector.load %arg1[%c0_22, %c0_23, %c0_24] : memref<2x256x8xf32, #tpu.memory_space<vmem>>, vector<2x256x8xf32>
    %c0_25 = arith.constant 0 : index
    %c17 = arith.constant 17 : index
    %c0_26 = arith.constant 0 : index
    %13 = vector.load %arg11[%c0_25, %c17, %c0_26] : memref<2x290x8xf32, #tpu.memory_space<vmem>>, vector<2x256x8xf32>
    tpu.vector_store %arg11[%c0_25, %c17, %c0_26], %12 {strides = array<i32>} : memref<2x290x8xf32, #tpu.memory_space<vmem>>, vector<2x256x8xf32>,
    %14 = tpu.iota {dimensions = array<i32: 0>} : vector<512x8xi32>
    %c16_i32 = arith.constant 16 : i32
    %c0_i32 = arith.constant 0 : i32
    %15 = arith.cmpi eq, %c16_i32, %c0_i32 : i32
    %c1_i32 = arith.constant 1 : i32
    %16 = arith.select %15, %c1_i32, %c16_i32 : i32
    %17 = vector.broadcast %16 : i32 to vector<512x8xi32>
    %18 = arith.remsi %14, %17 : vector<512x8xi32>
    %c0_i32_27 = arith.constant 0 : i32
    %19 = vector.broadcast %c0_i32_27 : i32 to vector<512x8xi32>
    %20 = arith.cmpi ne, %18, %19 : vector<512x8xi32>
    %c0_i32_28 = arith.constant 0 : i32
    %21 = vector.broadcast %c0_i32_28 : i32 to vector<512x8xi32>
    %22 = arith.cmpi slt, %18, %21 : vector<512x8xi32>
    %c0_i32_29 = arith.constant 0 : i32
    %23 = arith.cmpi slt, %16, %c0_i32_29 : i32
    %24 = vector.broadcast %23 : i1 to vector<512x8xi1>
    %25 = vector.broadcast %24 : vector<512x8xi1> to vector<512x8xi1>
    %26 = arith.xori %22, %25 : vector<512x8xi1>
    %27 = arith.andi %26, %20 : vector<512x8xi1>
    %28 = vector.broadcast %16 : i32 to vector<512x8xi32>
    %29 = arith.addi %18, %28 : vector<512x8xi32>
    %30 = arith.select %27, %29, %18 : vector<512x8xi1>, vector<512x8xi32>
    %c0_i32_30 = arith.constant 0 : i32
    %31 = vector.broadcast %c0_i32_30 : i32 to vector<512x8xi32>
    %32 = arith.cmpi ne, %30, %31 : vector<512x8xi32>
    %c15_i32 = arith.constant 15 : i32
    %33 = vector.broadcast %c15_i32 : i32 to vector<512x8xi32>
    %34 = arith.cmpi ne, %30, %33 : vector<512x8xi32>
    %c0_31 = arith.constant 0 : index
    %c0_32 = arith.constant 0 : index
    %c0_33 = arith.constant 0 : index
    %35 = vector.load %arg11[%c0_31, %c0_32, %c0_33] : memref<2x290x8xf32, #tpu.memory_space<vmem>>, vector<2x256x8xf32>
    %36 = vector.shape_cast %35 : vector<2x256x8xf32> to vector<512x8xf32>
    %cst_34 = arith.constant 0.000000e+00 : f32
    %37 = vector.broadcast %cst_34 : f32 to vector<512x8xf32>
    %38 = arith.select %32, %36, %37 : vector<512x8xi1>, vector<512x8xf32>
    %c0_35 = arith.constant 0 : index
    %c0_36 = arith.constant 0 : index
    %c0_37 = arith.constant 0 : index
    %39 = vector.load %arg2[%c0_35, %c0_36, %c0_37] : memref<9x8x32xf32, #tpu.memory_space<vmem>>, vector<1x8x32xf32>
    %40 = vector.shape_cast %39 : vector<1x8x32xf32> to vector<8x32xf32>
    %cst_38 = arith.constant dense<0.000000e+00> : vector<512x32xf32>
    %41 = tpu.matmul %38, %40, %cst_38 {dimension_numbers = #tpu.dot_dimension_numbers<[1], [0], [0], [1], [0, 0, 1, 1], [], []>} : vector<512x8xf32>, vector<8x32xf32>, vector<512x32xf32> -> vector<512x32xf32>
    %c0_39 = arith.constant 0 : index
    %c1 = arith.constant 1 : index
    %c0_40 = arith.constant 0 : index
    %42 = vector.load %arg11[%c0_39, %c1, %c0_40] : memref<2x290x8xf32, #tpu.memory_space<vmem>>, vector<2x256x8xf32>
    %43 = vector.shape_cast %42 : vector<2x256x8xf32> to vector<512x8xf32>
    %c1_41 = arith.constant 1 : index
    %c0_42 = arith.constant 0 : index
    %c0_43 = arith.constant 0 : index
    %44 = vector.load %arg2[%c1_41, %c0_42, %c0_43] : memref<9x8x32xf32, #tpu.memory_space<vmem>>, vector<1x8x32xf32>
    %45 = vector.shape_cast %44 : vector<1x8x32xf32> to vector<8x32xf32>
    %cst_44 = arith.constant dense<0.000000e+00> : vector<512x32xf32>
    %46 = tpu.matmul %43, %45, %cst_44 {dimension_numbers = #tpu.dot_dimension_numbers<[1], [0], [0], [1], [0, 0, 1, 1], [], []>} : vector<512x8xf32>, vector<8x32xf32>, vector<512x32xf32> -> vector<512x32xf32>
    %47 = arith.addf %41, %46 : vector<512x32xf32>
    %c0_45 = arith.constant 0 : index
    %c2 = arith.constant 2 : index
    %c0_46 = arith.constant 0 : index
    %48 = vector.load %arg11[%c0_45, %c2, %c0_46] : memref<2x290x8xf32, #tpu.memory_space<vmem>>, vector<2x256x8xf32>
    %49 = vector.shape_cast %48 : vector<2x256x8xf32> to vector<512x8xf32>
    %cst_47 = arith.constant 0.000000e+00 : f32
    %50 = vector.broadcast %cst_47 : f32 to vector<512x8xf32>
    %51 = arith.select %34, %49, %50 : vector<512x8xi1>, vector<512x8xf32>
    %c2_48 = arith.constant 2 : index
    %c0_49 = arith.constant 0 : index
    %c0_50 = arith.constant 0 : index
    %52 = vector.load %arg2[%c2_48, %c0_49, %c0_50] : memref<9x8x32xf32, #tpu.memory_space<vmem>>, vector<1x8x32xf32>
    %53 = vector.shape_cast %52 : vector<1x8x32xf32> to vector<8x32xf32>
    %cst_51 = arith.constant dense<0.000000e+00> : vector<512x32xf32>
    %54 = tpu.matmul %51, %53, %cst_51 {dimension_numbers = #tpu.dot_dimension_numbers<[1], [0], [0], [1], [0, 0, 1, 1], [], []>} : vector<512x8xf32>, vector<8x32xf32>, vector<512x32xf32> -> vector<512x32xf32>
    %55 = arith.addf %47, %54 : vector<512x32xf32>
    %c0_52 = arith.constant 0 : index
    %c16 = arith.constant 16 : index
    %c0_53 = arith.constant 0 : index
    %56 = vector.load %arg11[%c0_52, %c16, %c0_53] : memref<2x290x8xf32, #tpu.memory_space<vmem>>, vector<2x256x8xf32>
    %57 = vector.shape_cast %56 : vector<2x256x8xf32> to vector<512x8xf32>
    %cst_54 = arith.constant 0.000000e+00 : f32
    %58 = vector.broadcast %cst_54 : f32 to vector<512x8xf32>
    %59 = arith.select %32, %57, %58 : vector<512x8xi1>, vector<512x8xf32>
    %c3 = arith.constant 3 : index
    %c0_55 = arith.constant 0 : index
    %c0_56 = arith.constant 0 : index
    %60 = vector.load %arg2[%c3, %c0_55, %c0_56] : memref<9x8x32xf32, #tpu.memory_space<vmem>>, vector<1x8x32xf32>
    %61 = vector.shape_cast %60 : vector<1x8x32xf32> to vector<8x32xf32>
    %cst_57 = arith.constant dense<0.000000e+00> : vector<512x32xf32>
    %62 = tpu.matmul %59, %61, %cst_57 {dimension_numbers = #tpu.dot_dimension_numbers<[1], [0], [0], [1], [0, 0, 1, 1], [], []>} : vector<512x8xf32>, vector<8x32xf32>, vector<512x32xf32> -> vector<512x32xf32>
    %63 = arith.addf %55, %62 : vector<512x32xf32>
    %c0_58 = arith.constant 0 : index
    %c17_59 = arith.constant 17 : index
    %c0_60 = arith.constant 0 : index
    %64 = vector.load %arg11[%c0_58, %c17_59, %c0_60] : memref<2x290x8xf32, #tpu.memory_space<vmem>>, vector<2x256x8xf32>
    %65 = vector.shape_cast %64 : vector<2x256x8xf32> to vector<512x8xf32>
    %c4 = arith.constant 4 : index
    %c0_61 = arith.constant 0 : index
    %c0_62 = arith.constant 0 : index
    %66 = vector.load %arg2[%c4, %c0_61, %c0_62] : memref<9x8x32xf32, #tpu.memory_space<vmem>>, vector<1x8x32xf32>
    %67 = vector.shape_cast %66 : vector<1x8x32xf32> to vector<8x32xf32>
    %cst_63 = arith.constant dense<0.000000e+00> : vector<512x32xf32>
    %68 = tpu.matmul %65, %67, %cst_63 {dimension_numbers = #tpu.dot_dimension_numbers<[1], [0], [0], [1], [0, 0, 1, 1], [], []>} : vector<512x8xf32>, vector<8x32xf32>, vector<512x32xf32> -> vector<512x32xf32>
    %69 = arith.addf %63, %68 : vector<512x32xf32>
    %c0_64 = arith.constant 0 : index
    %c18 = arith.constant 18 : index
    %c0_65 = arith.constant 0 : index
    %70 = vector.load %arg11[%c0_64, %c18, %c0_65] : memref<2x290x8xf32, #tpu.memory_space<vmem>>, vector<2x256x8xf32>
    %71 = vector.shape_cast %70 : vector<2x256x8xf32> to vector<512x8xf32>
    %cst_66 = arith.constant 0.000000e+00 : f32
    %72 = vector.broadcast %cst_66 : f32 to vector<512x8xf32>
    %73 = arith.select %34, %71, %72 : vector<512x8xi1>, vector<512x8xf32>
    %c5 = arith.constant 5 : index
    %c0_67 = arith.constant 0 : index
    %c0_68 = arith.constant 0 : index
    %74 = vector.load %arg2[%c5, %c0_67, %c0_68] : memref<9x8x32xf32, #tpu.memory_space<vmem>>, vector<1x8x32xf32>
    %75 = vector.shape_cast %74 : vector<1x8x32xf32> to vector<8x32xf32>
    %cst_69 = arith.constant dense<0.000000e+00> : vector<512x32xf32>
    %76 = tpu.matmul %73, %75, %cst_69 {dimension_numbers = #tpu.dot_dimension_numbers<[1], [0], [0], [1], [0, 0, 1, 1], [], []>} : vector<512x8xf32>, vector<8x32xf32>, vector<512x32xf32> -> vector<512x32xf32>
    %77 = arith.addf %69, %76 : vector<512x32xf32>
    %c0_70 = arith.constant 0 : index
    %c32 = arith.constant 32 : index
    %c0_71 = arith.constant 0 : index
    %78 = vector.load %arg11[%c0_70, %c32, %c0_71] : memref<2x290x8xf32, #tpu.memory_space<vmem>>, vector<2x256x8xf32>
    %79 = vector.shape_cast %78 : vector<2x256x8xf32> to vector<512x8xf32>
    %cst_72 = arith.constant 0.000000e+00 : f32
    %80 = vector.broadcast %cst_72 : f32 to vector<512x8xf32>
    %81 = arith.select %32, %79, %80 : vector<512x8xi1>, vector<512x8xf32>
    %c6 = arith.constant 6 : index
    %c0_73 = arith.constant 0 : index
    %c0_74 = arith.constant 0 : index
    %82 = vector.load %arg2[%c6, %c0_73, %c0_74] : memref<9x8x32xf32, #tpu.memory_space<vmem>>, vector<1x8x32xf32>
    %83 = vector.shape_cast %82 : vector<1x8x32xf32> to vector<8x32xf32>
    %cst_75 = arith.constant dense<0.000000e+00> : vector<512x32xf32>
    %84 = tpu.matmul %81, %83, %cst_75 {dimension_numbers = #tpu.dot_dimension_numbers<[1], [0], [0], [1], [0, 0, 1, 1], [], []>} : vector<512x8xf32>, vector<8x32xf32>, vector<512x32xf32> -> vector<512x32xf32>
    %85 = arith.addf %77, %84 : vector<512x32xf32>
    %c0_76 = arith.constant 0 : index
    %c33 = arith.constant 33 : index
    %c0_77 = arith.constant 0 : index
    %86 = vector.load %arg11[%c0_76, %c33, %c0_77] : memref<2x290x8xf32, #tpu.memory_space<vmem>>, vector<2x256x8xf32>
    %87 = vector.shape_cast %86 : vector<2x256x8xf32> to vector<512x8xf32>
    %c7_78 = arith.constant 7 : index
    %c0_79 = arith.constant 0 : index
    %c0_80 = arith.constant 0 : index
    %88 = vector.load %arg2[%c7_78, %c0_79, %c0_80] : memref<9x8x32xf32, #tpu.memory_space<vmem>>, vector<1x8x32xf32>
    %89 = vector.shape_cast %88 : vector<1x8x32xf32> to vector<8x32xf32>
    %cst_81 = arith.constant dense<0.000000e+00> : vector<512x32xf32>
    %90 = tpu.matmul %87, %89, %cst_81 {dimension_numbers = #tpu.dot_dimension_numbers<[1], [0], [0], [1], [0, 0, 1, 1], [], []>} : vector<512x8xf32>, vector<8x32xf32>, vector<512x32xf32> -> vector<512x32xf32>
    %91 = arith.addf %85, %90 : vector<512x32xf32>
    %c0_82 = arith.constant 0 : index
    %c34 = arith.constant 34 : index
    %c0_83 = arith.constant 0 : index
    %92 = vector.load %arg11[%c0_82, %c34, %c0_83] : memref<2x290x8xf32, #tpu.memory_space<vmem>>, vector<2x256x8xf32>
    %93 = vector.shape_cast %92 : vector<2x256x8xf32> to vector<512x8xf32>
    %cst_84 = arith.constant 0.000000e+00 : f32
    %94 = vector.broadcast %cst_84 : f32 to vector<512x8xf32>
    %95 = arith.select %34, %93, %94 : vector<512x8xi1>, vector<512x8xf32>
    %c8 = arith.constant 8 : index
    %c0_85 = arith.constant 0 : index
    %c0_86 = arith.constant 0 : index
    %96 = vector.load %arg2[%c8, %c0_85, %c0_86] : memref<9x8x32xf32, #tpu.memory_space<vmem>>, vector<1x8x32xf32>
    %97 = vector.shape_cast %96 : vector<1x8x32xf32> to vector<8x32xf32>
    %cst_87 = arith.constant dense<0.000000e+00> : vector<512x32xf32>
    %98 = tpu.matmul %95, %97, %cst_87 {dimension_numbers = #tpu.dot_dimension_numbers<[1], [0], [0], [1], [0, 0, 1, 1], [], []>} : vector<512x8xf32>, vector<8x32xf32>, vector<512x32xf32> -> vector<512x32xf32>
    %99 = arith.addf %91, %98 : vector<512x32xf32>
    %c0_88 = arith.constant 0 : index
    %c0_89 = arith.constant 0 : index
    %100 = vector.load %arg3[%c0_88, %c0_89] : memref<1x32xf32, #tpu.memory_space<vmem>>, vector<1x32xf32>
    %101 = vector.broadcast %100 : vector<1x32xf32> to vector<512x32xf32>
    %102 = arith.addf %99, %101 : vector<512x32xf32>
    %cst_90 = arith.constant 0.000000e+00 : f32
    %103 = vector.broadcast %cst_90 : f32 to vector<512x32xf32>
    %104 = arith.cmpf ogt, %102, %103 : vector<512x32xf32>
    %cst_91 = arith.constant 2.000000e-01 : f32
    %105 = vector.broadcast %cst_91 : f32 to vector<512x32xf32>
    %106 = arith.mulf %105, %102 : vector<512x32xf32>
    %107 = arith.select %104, %102, %106 : vector<512x32xi1>, vector<512x32xf32>
    %108 = vector.shape_cast %107 : vector<512x32xf32> to vector<16x32x32xf32>
    %109 = vector.extract_strided_slice %108 {offsets = [0, 0, 0], sizes = [16, 16, 32], strides = [1, 1, 1]} : vector<16x32x32xf32> to vector<16x16x32xf32>
    %110 = vector.extract_strided_slice %108 {offsets = [0, 16, 0], sizes = [16, 16, 32], strides = [1, 1, 1]} : vector<16x32x32xf32> to vector<16x16x32xf32>
    %111 = arith.maximumf %109, %110 : vector<16x16x32xf32>
    %112 = vector.shape_cast %111 : vector<16x16x32xf32> to vector<256x32xf32>
    %c0_92 = arith.constant 0 : index
    %c0_93 = arith.constant 0 : index
    %113 = vector.load %arg15[%c0_92, %c0_93] : memref<256x32xf32, #tpu.memory_space<vmem>>, vector<256x32xf32>
    tpu.vector_store %arg15[%c0_92, %c0_93], %112 {strides = array<i32>} : memref<256x32xf32, #tpu.memory_space<vmem>>, vector<256x32xf32>,
    %c0_94 = arith.constant 0 : index
    %c0_95 = arith.constant 0 : index
    %114 = tpu.strided_load %arg15[%c0_94, %c0_95] {strides = array<i32: 2, 1>} : memref<256x32xf32, #tpu.memory_space<vmem>>, vector<128x32xf32>
    %c1_96 = arith.constant 1 : index
    %c0_97 = arith.constant 0 : index
    %115 = tpu.strided_load %arg15[%c1_96, %c0_97] {strides = array<i32: 2, 1>} : memref<256x32xf32, #tpu.memory_space<vmem>>, vector<128x32xf32>
    %116 = arith.maximumf %114, %115 : vector<128x32xf32>
    %117 = vector.shape_cast %116 : vector<128x32xf32> to vector<2x64x32xf32>
    %c0_98 = arith.constant 0 : index
    %c9 = arith.constant 9 : index
    %c0_99 = arith.constant 0 : index
    %118 = vector.load %arg12[%c0_98, %c9, %c0_99] : memref<2x82x32xf32, #tpu.memory_space<vmem>>, vector<2x64x32xf32>
    tpu.vector_store %arg12[%c0_98, %c9, %c0_99], %117 {strides = array<i32>} : memref<2x82x32xf32, #tpu.memory_space<vmem>>, vector<2x64x32xf32>,
    %119 = tpu.iota {dimensions = array<i32: 0>} : vector<128x32xi32>
    %c8_i32 = arith.constant 8 : i32
    %c0_i32_100 = arith.constant 0 : i32
    %120 = arith.cmpi eq, %c8_i32, %c0_i32_100 : i32
    %c1_i32_101 = arith.constant 1 : i32
    %121 = arith.select %120, %c1_i32_101, %c8_i32 : i32
    %122 = vector.broadcast %121 : i32 to vector<128x32xi32>
    %123 = arith.remsi %119, %122 : vector<128x32xi32>
    %c0_i32_102 = arith.constant 0 : i32
    %124 = vector.broadcast %c0_i32_102 : i32 to vector<128x32xi32>
    %125 = arith.cmpi ne, %123, %124 : vector<128x32xi32>
    %c0_i32_103 = arith.constant 0 : i32
    %126 = vector.broadcast %c0_i32_103 : i32 to vector<128x32xi32>
    %127 = arith.cmpi slt, %123, %126 : vector<128x32xi32>
    %c0_i32_104 = arith.constant 0 : i32
    %128 = arith.cmpi slt, %121, %c0_i32_104 : i32
    %129 = vector.broadcast %128 : i1 to vector<128x32xi1>
    %130 = vector.broadcast %129 : vector<128x32xi1> to vector<128x32xi1>
    %131 = arith.xori %127, %130 : vector<128x32xi1>
    %132 = arith.andi %131, %125 : vector<128x32xi1>
    %133 = vector.broadcast %121 : i32 to vector<128x32xi32>
    %134 = arith.addi %123, %133 : vector<128x32xi32>
    %135 = arith.select %132, %134, %123 : vector<128x32xi1>, vector<128x32xi32>
    %c0_i32_105 = arith.constant 0 : i32
    %136 = vector.broadcast %c0_i32_105 : i32 to vector<128x32xi32>
    %137 = arith.cmpi ne, %135, %136 : vector<128x32xi32>
    %c7_i32 = arith.constant 7 : i32
    %138 = vector.broadcast %c7_i32 : i32 to vector<128x32xi32>
    %139 = arith.cmpi ne, %135, %138 : vector<128x32xi32>
    %c0_106 = arith.constant 0 : index
    %c0_107 = arith.constant 0 : index
    %c0_108 = arith.constant 0 : index
    %140 = vector.load %arg12[%c0_106, %c0_107, %c0_108] : memref<2x82x32xf32, #tpu.memory_space<vmem>>, vector<2x64x32xf32>
    %141 = vector.shape_cast %140 : vector<2x64x32xf32> to vector<128x32xf32>
    %cst_109 = arith.constant 0.000000e+00 : f32
    %142 = vector.broadcast %cst_109 : f32 to vector<128x32xf32>
    %143 = arith.select %137, %141, %142 : vector<128x32xi1>, vector<128x32xf32>
    %c0_110 = arith.constant 0 : index
    %c0_111 = arith.constant 0 : index
    %c0_112 = arith.constant 0 : index
    %144 = vector.load %arg4[%c0_110, %c0_111, %c0_112] : memref<9x32x128xf32, #tpu.memory_space<vmem>>, vector<1x32x128xf32>
    %145 = vector.shape_cast %144 : vector<1x32x128xf32> to vector<32x128xf32>
    %cst_113 = arith.constant dense<0.000000e+00> : vector<128x128xf32>
    %146 = tpu.matmul %143, %145, %cst_113 {dimension_numbers = #tpu.dot_dimension_numbers<[1], [0], [0], [1], [0, 0, 1, 1], [], []>} : vector<128x32xf32>, vector<32x128xf32>, vector<128x128xf32> -> vector<128x128xf32>
    %c0_114 = arith.constant 0 : index
    %c1_115 = arith.constant 1 : index
    %c0_116 = arith.constant 0 : index
    %147 = vector.load %arg12[%c0_114, %c1_115, %c0_116] : memref<2x82x32xf32, #tpu.memory_space<vmem>>, vector<2x64x32xf32>
    %148 = vector.shape_cast %147 : vector<2x64x32xf32> to vector<128x32xf32>
    %c1_117 = arith.constant 1 : index
    %c0_118 = arith.constant 0 : index
    %c0_119 = arith.constant 0 : index
    %149 = vector.load %arg4[%c1_117, %c0_118, %c0_119] : memref<9x32x128xf32, #tpu.memory_space<vmem>>, vector<1x32x128xf32>
    %150 = vector.shape_cast %149 : vector<1x32x128xf32> to vector<32x128xf32>
    %cst_120 = arith.constant dense<0.000000e+00> : vector<128x128xf32>
    %151 = tpu.matmul %148, %150, %cst_120 {dimension_numbers = #tpu.dot_dimension_numbers<[1], [0], [0], [1], [0, 0, 1, 1], [], []>} : vector<128x32xf32>, vector<32x128xf32>, vector<128x128xf32> -> vector<128x128xf32>
    %152 = arith.addf %146, %151 : vector<128x128xf32>
    %c0_121 = arith.constant 0 : index
    %c2_122 = arith.constant 2 : index
    %c0_123 = arith.constant 0 : index
    %153 = vector.load %arg12[%c0_121, %c2_122, %c0_123] : memref<2x82x32xf32, #tpu.memory_space<vmem>>, vector<2x64x32xf32>
    %154 = vector.shape_cast %153 : vector<2x64x32xf32> to vector<128x32xf32>
    %cst_124 = arith.constant 0.000000e+00 : f32
    %155 = vector.broadcast %cst_124 : f32 to vector<128x32xf32>
    %156 = arith.select %139, %154, %155 : vector<128x32xi1>, vector<128x32xf32>
    %c2_125 = arith.constant 2 : index
    %c0_126 = arith.constant 0 : index
    %c0_127 = arith.constant 0 : index
    %157 = vector.load %arg4[%c2_125, %c0_126, %c0_127] : memref<9x32x128xf32, #tpu.memory_space<vmem>>, vector<1x32x128xf32>
    %158 = vector.shape_cast %157 : vector<1x32x128xf32> to vector<32x128xf32>
    %cst_128 = arith.constant dense<0.000000e+00> : vector<128x128xf32>
    %159 = tpu.matmul %156, %158, %cst_128 {dimension_numbers = #tpu.dot_dimension_numbers<[1], [0], [0], [1], [0, 0, 1, 1], [], []>} : vector<128x32xf32>, vector<32x128xf32>, vector<128x128xf32> -> vector<128x128xf32>
    %160 = arith.addf %152, %159 : vector<128x128xf32>
    %c0_129 = arith.constant 0 : index
    %c8_130 = arith.constant 8 : index
    %c0_131 = arith.constant 0 : index
    %161 = vector.load %arg12[%c0_129, %c8_130, %c0_131] : memref<2x82x32xf32, #tpu.memory_space<vmem>>, vector<2x64x32xf32>
    %162 = vector.shape_cast %161 : vector<2x64x32xf32> to vector<128x32xf32>
    %cst_132 = arith.constant 0.000000e+00 : f32
    %163 = vector.broadcast %cst_132 : f32 to vector<128x32xf32>
    %164 = arith.select %137, %162, %163 : vector<128x32xi1>, vector<128x32xf32>
    %c3_133 = arith.constant 3 : index
    %c0_134 = arith.constant 0 : index
    %c0_135 = arith.constant 0 : index
    %165 = vector.load %arg4[%c3_133, %c0_134, %c0_135] : memref<9x32x128xf32, #tpu.memory_space<vmem>>, vector<1x32x128xf32>
    %166 = vector.shape_cast %165 : vector<1x32x128xf32> to vector<32x128xf32>
    %cst_136 = arith.constant dense<0.000000e+00> : vector<128x128xf32>
    %167 = tpu.matmul %164, %166, %cst_136 {dimension_numbers = #tpu.dot_dimension_numbers<[1], [0], [0], [1], [0, 0, 1, 1], [], []>} : vector<128x32xf32>, vector<32x128xf32>, vector<128x128xf32> -> vector<128x128xf32>
    %168 = arith.addf %160, %167 : vector<128x128xf32>
    %c0_137 = arith.constant 0 : index
    %c9_138 = arith.constant 9 : index
    %c0_139 = arith.constant 0 : index
    %169 = vector.load %arg12[%c0_137, %c9_138, %c0_139] : memref<2x82x32xf32, #tpu.memory_space<vmem>>, vector<2x64x32xf32>
    %170 = vector.shape_cast %169 : vector<2x64x32xf32> to vector<128x32xf32>
    %c4_140 = arith.constant 4 : index
    %c0_141 = arith.constant 0 : index
    %c0_142 = arith.constant 0 : index
    %171 = vector.load %arg4[%c4_140, %c0_141, %c0_142] : memref<9x32x128xf32, #tpu.memory_space<vmem>>, vector<1x32x128xf32>
    %172 = vector.shape_cast %171 : vector<1x32x128xf32> to vector<32x128xf32>
    %cst_143 = arith.constant dense<0.000000e+00> : vector<128x128xf32>
    %173 = tpu.matmul %170, %172, %cst_143 {dimension_numbers = #tpu.dot_dimension_numbers<[1], [0], [0], [1], [0, 0, 1, 1], [], []>} : vector<128x32xf32>, vector<32x128xf32>, vector<128x128xf32> -> vector<128x128xf32>
    %174 = arith.addf %168, %173 : vector<128x128xf32>
    %c0_144 = arith.constant 0 : index
    %c10 = arith.constant 10 : index
    %c0_145 = arith.constant 0 : index
    %175 = vector.load %arg12[%c0_144, %c10, %c0_145] : memref<2x82x32xf32, #tpu.memory_space<vmem>>, vector<2x64x32xf32>
    %176 = vector.shape_cast %175 : vector<2x64x32xf32> to vector<128x32xf32>
    %cst_146 = arith.constant 0.000000e+00 : f32
    %177 = vector.broadcast %cst_146 : f32 to vector<128x32xf32>
    %178 = arith.select %139, %176, %177 : vector<128x32xi1>, vector<128x32xf32>
    %c5_147 = arith.constant 5 : index
    %c0_148 = arith.constant 0 : index
    %c0_149 = arith.constant 0 : index
    %179 = vector.load %arg4[%c5_147, %c0_148, %c0_149] : memref<9x32x128xf32, #tpu.memory_space<vmem>>, vector<1x32x128xf32>
    %180 = vector.shape_cast %179 : vector<1x32x128xf32> to vector<32x128xf32>
    %cst_150 = arith.constant dense<0.000000e+00> : vector<128x128xf32>
    %181 = tpu.matmul %178, %180, %cst_150 {dimension_numbers = #tpu.dot_dimension_numbers<[1], [0], [0], [1], [0, 0, 1, 1], [], []>} : vector<128x32xf32>, vector<32x128xf32>, vector<128x128xf32> -> vector<128x128xf32>
    %182 = arith.addf %174, %181 : vector<128x128xf32>
    %c0_151 = arith.constant 0 : index
    %c16_152 = arith.constant 16 : index
    %c0_153 = arith.constant 0 : index
    %183 = vector.load %arg12[%c0_151, %c16_152, %c0_153] : memref<2x82x32xf32, #tpu.memory_space<vmem>>, vector<2x64x32xf32>
    %184 = vector.shape_cast %183 : vector<2x64x32xf32> to vector<128x32xf32>
    %cst_154 = arith.constant 0.000000e+00 : f32
    %185 = vector.broadcast %cst_154 : f32 to vector<128x32xf32>
    %186 = arith.select %137, %184, %185 : vector<128x32xi1>, vector<128x32xf32>
    %c6_155 = arith.constant 6 : index
    %c0_156 = arith.constant 0 : index
    %c0_157 = arith.constant 0 : index
    %187 = vector.load %arg4[%c6_155, %c0_156, %c0_157] : memref<9x32x128xf32, #tpu.memory_space<vmem>>, vector<1x32x128xf32>
    %188 = vector.shape_cast %187 : vector<1x32x128xf32> to vector<32x128xf32>
    %cst_158 = arith.constant dense<0.000000e+00> : vector<128x128xf32>
    %189 = tpu.matmul %186, %188, %cst_158 {dimension_numbers = #tpu.dot_dimension_numbers<[1], [0], [0], [1], [0, 0, 1, 1], [], []>} : vector<128x32xf32>, vector<32x128xf32>, vector<128x128xf32> -> vector<128x128xf32>
    %190 = arith.addf %182, %189 : vector<128x128xf32>
    %c0_159 = arith.constant 0 : index
    %c17_160 = arith.constant 17 : index
    %c0_161 = arith.constant 0 : index
    %191 = vector.load %arg12[%c0_159, %c17_160, %c0_161] : memref<2x82x32xf32, #tpu.memory_space<vmem>>, vector<2x64x32xf32>
    %192 = vector.shape_cast %191 : vector<2x64x32xf32> to vector<128x32xf32>
    %c7_162 = arith.constant 7 : index
    %c0_163 = arith.constant 0 : index
    %c0_164 = arith.constant 0 : index
    %193 = vector.load %arg4[%c7_162, %c0_163, %c0_164] : memref<9x32x128xf32, #tpu.memory_space<vmem>>, vector<1x32x128xf32>
    %194 = vector.shape_cast %193 : vector<1x32x128xf32> to vector<32x128xf32>
    %cst_165 = arith.constant dense<0.000000e+00> : vector<128x128xf32>
    %195 = tpu.matmul %192, %194, %cst_165 {dimension_numbers = #tpu.dot_dimension_numbers<[1], [0], [0], [1], [0, 0, 1, 1], [], []>} : vector<128x32xf32>, vector<32x128xf32>, vector<128x128xf32> -> vector<128x128xf32>
    %196 = arith.addf %190, %195 : vector<128x128xf32>
    %c0_166 = arith.constant 0 : index
    %c18_167 = arith.constant 18 : index
    %c0_168 = arith.constant 0 : index
    %197 = vector.load %arg12[%c0_166, %c18_167, %c0_168] : memref<2x82x32xf32, #tpu.memory_space<vmem>>, vector<2x64x32xf32>
    %198 = vector.shape_cast %197 : vector<2x64x32xf32> to vector<128x32xf32>
    %cst_169 = arith.constant 0.000000e+00 : f32
    %199 = vector.broadcast %cst_169 : f32 to vector<128x32xf32>
    %200 = arith.select %139, %198, %199 : vector<128x32xi1>, vector<128x32xf32>
    %c8_170 = arith.constant 8 : index
    %c0_171 = arith.constant 0 : index
    %c0_172 = arith.constant 0 : index
    %201 = vector.load %arg4[%c8_170, %c0_171, %c0_172] : memref<9x32x128xf32, #tpu.memory_space<vmem>>, vector<1x32x128xf32>
    %202 = vector.shape_cast %201 : vector<1x32x128xf32> to vector<32x128xf32>
    %cst_173 = arith.constant dense<0.000000e+00> : vector<128x128xf32>
    %203 = tpu.matmul %200, %202, %cst_173 {dimension_numbers = #tpu.dot_dimension_numbers<[1], [0], [0], [1], [0, 0, 1, 1], [], []>} : vector<128x32xf32>, vector<32x128xf32>, vector<128x128xf32> -> vector<128x128xf32>
    %204 = arith.addf %196, %203 : vector<128x128xf32>
    %c0_174 = arith.constant 0 : index
    %c0_175 = arith.constant 0 : index
    %205 = vector.load %arg5[%c0_174, %c0_175] : memref<1x128xf32, #tpu.memory_space<vmem>>, vector<1x128xf32>
    %206 = vector.broadcast %205 : vector<1x128xf32> to vector<128x128xf32>
    %207 = arith.addf %204, %206 : vector<128x128xf32>
    %cst_176 = arith.constant 0.000000e+00 : f32
    %208 = vector.broadcast %cst_176 : f32 to vector<128x128xf32>
    %209 = arith.cmpf ogt, %207, %208 : vector<128x128xf32>
    %cst_177 = arith.constant 2.000000e-01 : f32
    %210 = vector.broadcast %cst_177 : f32 to vector<128x128xf32>
    %211 = arith.mulf %210, %207 : vector<128x128xf32>
    %212 = arith.select %209, %207, %211 : vector<128x128xi1>, vector<128x128xf32>
    %213 = vector.shape_cast %212 : vector<128x128xf32> to vector<8x16x128xf32>
    %214 = vector.extract_strided_slice %213 {offsets = [0, 0, 0], sizes = [8, 8, 128], strides = [1, 1, 1]} : vector<8x16x128xf32> to vector<8x8x128xf32>
    %215 = vector.extract_strided_slice %213 {offsets = [0, 8, 0], sizes = [8, 8, 128], strides = [1, 1, 1]} : vector<8x16x128xf32> to vector<8x8x128xf32>
    %216 = arith.maximumf %214, %215 : vector<8x8x128xf32>
    %217 = vector.shape_cast %216 : vector<8x8x128xf32> to vector<64x128xf32>
    %c0_178 = arith.constant 0 : index
    %c0_179 = arith.constant 0 : index
    %218 = vector.load %arg16[%c0_178, %c0_179] : memref<64x128xf32, #tpu.memory_space<vmem>>, vector<64x128xf32>
    tpu.vector_store %arg16[%c0_178, %c0_179], %217 {strides = array<i32>} : memref<64x128xf32, #tpu.memory_space<vmem>>, vector<64x128xf32>,
    %c0_180 = arith.constant 0 : index
    %c0_181 = arith.constant 0 : index
    %219 = tpu.strided_load %arg16[%c0_180, %c0_181] {strides = array<i32: 2, 1>} : memref<64x128xf32, #tpu.memory_space<vmem>>, vector<32x128xf32>
    %c1_182 = arith.constant 1 : index
    %c0_183 = arith.constant 0 : index
    %220 = tpu.strided_load %arg16[%c1_182, %c0_183] {strides = array<i32: 2, 1>} : memref<64x128xf32, #tpu.memory_space<vmem>>, vector<32x128xf32>
    %221 = arith.maximumf %219, %220 : vector<32x128xf32>
    %222 = vector.shape_cast %221 : vector<32x128xf32> to vector<2x16x128xf32>
    %c0_184 = arith.constant 0 : index
    %c5_185 = arith.constant 5 : index
    %c0_186 = arith.constant 0 : index
    %223 = vector.load %arg13[%c0_184, %c5_185, %c0_186] : memref<2x26x128xf32, #tpu.memory_space<vmem>>, vector<2x16x128xf32>
    tpu.vector_store %arg13[%c0_184, %c5_185, %c0_186], %222 {strides = array<i32>} : memref<2x26x128xf32, #tpu.memory_space<vmem>>, vector<2x16x128xf32>,
    %224 = tpu.iota {dimensions = array<i32: 0>} : vector<32x128xi32>
    %c4_i32 = arith.constant 4 : i32
    %c0_i32_187 = arith.constant 0 : i32
    %225 = arith.cmpi eq, %c4_i32, %c0_i32_187 : i32
    %c1_i32_188 = arith.constant 1 : i32
    %226 = arith.select %225, %c1_i32_188, %c4_i32 : i32
    %227 = vector.broadcast %226 : i32 to vector<32x128xi32>
    %228 = arith.remsi %224, %227 : vector<32x128xi32>
    %c0_i32_189 = arith.constant 0 : i32
    %229 = vector.broadcast %c0_i32_189 : i32 to vector<32x128xi32>
    %230 = arith.cmpi ne, %228, %229 : vector<32x128xi32>
    %c0_i32_190 = arith.constant 0 : i32
    %231 = vector.broadcast %c0_i32_190 : i32 to vector<32x128xi32>
    %232 = arith.cmpi slt, %228, %231 : vector<32x128xi32>
    %c0_i32_191 = arith.constant 0 : i32
    %233 = arith.cmpi slt, %226, %c0_i32_191 : i32
    %234 = vector.broadcast %233 : i1 to vector<32x128xi1>
    %235 = vector.broadcast %234 : vector<32x128xi1> to vector<32x128xi1>
    %236 = arith.xori %232, %235 : vector<32x128xi1>
    %237 = arith.andi %236, %230 : vector<32x128xi1>
    %238 = vector.broadcast %226 : i32 to vector<32x128xi32>
    %239 = arith.addi %228, %238 : vector<32x128xi32>
    %240 = arith.select %237, %239, %228 : vector<32x128xi1>, vector<32x128xi32>
    %c0_i32_192 = arith.constant 0 : i32
    %241 = vector.broadcast %c0_i32_192 : i32 to vector<32x128xi32>
    %242 = arith.cmpi ne, %240, %241 : vector<32x128xi32>
    %c3_i32 = arith.constant 3 : i32
    %243 = vector.broadcast %c3_i32 : i32 to vector<32x128xi32>
    %244 = arith.cmpi ne, %240, %243 : vector<32x128xi32>
    %c0_193 = arith.constant 0 : index
    %c0_194 = arith.constant 0 : index
    %c0_195 = arith.constant 0 : index
    %245 = vector.load %arg13[%c0_193, %c0_194, %c0_195] : memref<2x26x128xf32, #tpu.memory_space<vmem>>, vector<2x16x128xf32>
    %246 = vector.shape_cast %245 : vector<2x16x128xf32> to vector<32x128xf32>
    %cst_196 = arith.constant 0.000000e+00 : f32
    %247 = vector.broadcast %cst_196 : f32 to vector<32x128xf32>
    %248 = arith.select %242, %246, %247 : vector<32x128xi1>, vector<32x128xf32>
    %c0_197 = arith.constant 0 : index
    %c0_198 = arith.constant 0 : index
    %c0_199 = arith.constant 0 : index
    %249 = vector.load %arg6[%c0_197, %c0_198, %c0_199] : memref<9x128x32xf32, #tpu.memory_space<vmem>>, vector<1x128x32xf32>
    %250 = vector.shape_cast %249 : vector<1x128x32xf32> to vector<128x32xf32>
    %cst_200 = arith.constant dense<0.000000e+00> : vector<32x32xf32>
    %251 = tpu.matmul %248, %250, %cst_200 {dimension_numbers = #tpu.dot_dimension_numbers<[1], [0], [0], [1], [0, 0, 1, 1], [], []>} : vector<32x128xf32>, vector<128x32xf32>, vector<32x32xf32> -> vector<32x32xf32>
    %c0_201 = arith.constant 0 : index
    %c1_202 = arith.constant 1 : index
    %c0_203 = arith.constant 0 : index
    %252 = vector.load %arg13[%c0_201, %c1_202, %c0_203] : memref<2x26x128xf32, #tpu.memory_space<vmem>>, vector<2x16x128xf32>
    %253 = vector.shape_cast %252 : vector<2x16x128xf32> to vector<32x128xf32>
    %c1_204 = arith.constant 1 : index
    %c0_205 = arith.constant 0 : index
    %c0_206 = arith.constant 0 : index
    %254 = vector.load %arg6[%c1_204, %c0_205, %c0_206] : memref<9x128x32xf32, #tpu.memory_space<vmem>>, vector<1x128x32xf32>
    %255 = vector.shape_cast %254 : vector<1x128x32xf32> to vector<128x32xf32>
    %cst_207 = arith.constant dense<0.000000e+00> : vector<32x32xf32>
    %256 = tpu.matmul %253, %255, %cst_207 {dimension_numbers = #tpu.dot_dimension_numbers<[1], [0], [0], [1], [0, 0, 1, 1], [], []>} : vector<32x128xf32>, vector<128x32xf32>, vector<32x32xf32> -> vector<32x32xf32>
    %257 = arith.addf %251, %256 : vector<32x32xf32>
    %c0_208 = arith.constant 0 : index
    %c2_209 = arith.constant 2 : index
    %c0_210 = arith.constant 0 : index
    %258 = vector.load %arg13[%c0_208, %c2_209, %c0_210] : memref<2x26x128xf32, #tpu.memory_space<vmem>>, vector<2x16x128xf32>
    %259 = vector.shape_cast %258 : vector<2x16x128xf32> to vector<32x128xf32>
    %cst_211 = arith.constant 0.000000e+00 : f32
    %260 = vector.broadcast %cst_211 : f32 to vector<32x128xf32>
    %261 = arith.select %244, %259, %260 : vector<32x128xi1>, vector<32x128xf32>
    %c2_212 = arith.constant 2 : index
    %c0_213 = arith.constant 0 : index
    %c0_214 = arith.constant 0 : index
    %262 = vector.load %arg6[%c2_212, %c0_213, %c0_214] : memref<9x128x32xf32, #tpu.memory_space<vmem>>, vector<1x128x32xf32>
    %263 = vector.shape_cast %262 : vector<1x128x32xf32> to vector<128x32xf32>
    %cst_215 = arith.constant dense<0.000000e+00> : vector<32x32xf32>
    %264 = tpu.matmul %261, %263, %cst_215 {dimension_numbers = #tpu.dot_dimension_numbers<[1], [0], [0], [1], [0, 0, 1, 1], [], []>} : vector<32x128xf32>, vector<128x32xf32>, vector<32x32xf32> -> vector<32x32xf32>
    %265 = arith.addf %257, %264 : vector<32x32xf32>
    %c0_216 = arith.constant 0 : index
    %c4_217 = arith.constant 4 : index
    %c0_218 = arith.constant 0 : index
    %266 = vector.load %arg13[%c0_216, %c4_217, %c0_218] : memref<2x26x128xf32, #tpu.memory_space<vmem>>, vector<2x16x128xf32>
    %267 = vector.shape_cast %266 : vector<2x16x128xf32> to vector<32x128xf32>
    %cst_219 = arith.constant 0.000000e+00 : f32
    %268 = vector.broadcast %cst_219 : f32 to vector<32x128xf32>
    %269 = arith.select %242, %267, %268 : vector<32x128xi1>, vector<32x128xf32>
    %c3_220 = arith.constant 3 : index
    %c0_221 = arith.constant 0 : index
    %c0_222 = arith.constant 0 : index
    %270 = vector.load %arg6[%c3_220, %c0_221, %c0_222] : memref<9x128x32xf32, #tpu.memory_space<vmem>>, vector<1x128x32xf32>
    %271 = vector.shape_cast %270 : vector<1x128x32xf32> to vector<128x32xf32>
    %cst_223 = arith.constant dense<0.000000e+00> : vector<32x32xf32>
    %272 = tpu.matmul %269, %271, %cst_223 {dimension_numbers = #tpu.dot_dimension_numbers<[1], [0], [0], [1], [0, 0, 1, 1], [], []>} : vector<32x128xf32>, vector<128x32xf32>, vector<32x32xf32> -> vector<32x32xf32>
    %273 = arith.addf %265, %272 : vector<32x32xf32>
    %c0_224 = arith.constant 0 : index
    %c5_225 = arith.constant 5 : index
    %c0_226 = arith.constant 0 : index
    %274 = vector.load %arg13[%c0_224, %c5_225, %c0_226] : memref<2x26x128xf32, #tpu.memory_space<vmem>>, vector<2x16x128xf32>
    %275 = vector.shape_cast %274 : vector<2x16x128xf32> to vector<32x128xf32>
    %c4_227 = arith.constant 4 : index
    %c0_228 = arith.constant 0 : index
    %c0_229 = arith.constant 0 : index
    %276 = vector.load %arg6[%c4_227, %c0_228, %c0_229] : memref<9x128x32xf32, #tpu.memory_space<vmem>>, vector<1x128x32xf32>
    %277 = vector.shape_cast %276 : vector<1x128x32xf32> to vector<128x32xf32>
    %cst_230 = arith.constant dense<0.000000e+00> : vector<32x32xf32>
    %278 = tpu.matmul %275, %277, %cst_230 {dimension_numbers = #tpu.dot_dimension_numbers<[1], [0], [0], [1], [0, 0, 1, 1], [], []>} : vector<32x128xf32>, vector<128x32xf32>, vector<32x32xf32> -> vector<32x32xf32>
    %279 = arith.addf %273, %278 : vector<32x32xf32>
    %c0_231 = arith.constant 0 : index
    %c6_232 = arith.constant 6 : index
    %c0_233 = arith.constant 0 : index
    %280 = vector.load %arg13[%c0_231, %c6_232, %c0_233] : memref<2x26x128xf32, #tpu.memory_space<vmem>>, vector<2x16x128xf32>
    %281 = vector.shape_cast %280 : vector<2x16x128xf32> to vector<32x128xf32>
    %cst_234 = arith.constant 0.000000e+00 : f32
    %282 = vector.broadcast %cst_234 : f32 to vector<32x128xf32>
    %283 = arith.select %244, %281, %282 : vector<32x128xi1>, vector<32x128xf32>
    %c5_235 = arith.constant 5 : index
    %c0_236 = arith.constant 0 : index
    %c0_237 = arith.constant 0 : index
    %284 = vector.load %arg6[%c5_235, %c0_236, %c0_237] : memref<9x128x32xf32, #tpu.memory_space<vmem>>, vector<1x128x32xf32>
    %285 = vector.shape_cast %284 : vector<1x128x32xf32> to vector<128x32xf32>
    %cst_238 = arith.constant dense<0.000000e+00> : vector<32x32xf32>
    %286 = tpu.matmul %283, %285, %cst_238 {dimension_numbers = #tpu.dot_dimension_numbers<[1], [0], [0], [1], [0, 0, 1, 1], [], []>} : vector<32x128xf32>, vector<128x32xf32>, vector<32x32xf32> -> vector<32x32xf32>
    %287 = arith.addf %279, %286 : vector<32x32xf32>
    %c0_239 = arith.constant 0 : index
    %c8_240 = arith.constant 8 : index
    %c0_241 = arith.constant 0 : index
    %288 = vector.load %arg13[%c0_239, %c8_240, %c0_241] : memref<2x26x128xf32, #tpu.memory_space<vmem>>, vector<2x16x128xf32>
    %289 = vector.shape_cast %288 : vector<2x16x128xf32> to vector<32x128xf32>
    %cst_242 = arith.constant 0.000000e+00 : f32
    %290 = vector.broadcast %cst_242 : f32 to vector<32x128xf32>
    %291 = arith.select %242, %289, %290 : vector<32x128xi1>, vector<32x128xf32>
    %c6_243 = arith.constant 6 : index
    %c0_244 = arith.constant 0 : index
    %c0_245 = arith.constant 0 : index
    %292 = vector.load %arg6[%c6_243, %c0_244, %c0_245] : memref<9x128x32xf32, #tpu.memory_space<vmem>>, vector<1x128x32xf32>
    %293 = vector.shape_cast %292 : vector<1x128x32xf32> to vector<128x32xf32>
    %cst_246 = arith.constant dense<0.000000e+00> : vector<32x32xf32>
    %294 = tpu.matmul %291, %293, %cst_246 {dimension_numbers = #tpu.dot_dimension_numbers<[1], [0], [0], [1], [0, 0, 1, 1], [], []>} : vector<32x128xf32>, vector<128x32xf32>, vector<32x32xf32> -> vector<32x32xf32>
    %295 = arith.addf %287, %294 : vector<32x32xf32>
    %c0_247 = arith.constant 0 : index
    %c9_248 = arith.constant 9 : index
    %c0_249 = arith.constant 0 : index
    %296 = vector.load %arg13[%c0_247, %c9_248, %c0_249] : memref<2x26x128xf32, #tpu.memory_space<vmem>>, vector<2x16x128xf32>
    %297 = vector.shape_cast %296 : vector<2x16x128xf32> to vector<32x128xf32>
    %c7_250 = arith.constant 7 : index
    %c0_251 = arith.constant 0 : index
    %c0_252 = arith.constant 0 : index
    %298 = vector.load %arg6[%c7_250, %c0_251, %c0_252] : memref<9x128x32xf32, #tpu.memory_space<vmem>>, vector<1x128x32xf32>
    %299 = vector.shape_cast %298 : vector<1x128x32xf32> to vector<128x32xf32>
    %cst_253 = arith.constant dense<0.000000e+00> : vector<32x32xf32>
    %300 = tpu.matmul %297, %299, %cst_253 {dimension_numbers = #tpu.dot_dimension_numbers<[1], [0], [0], [1], [0, 0, 1, 1], [], []>} : vector<32x128xf32>, vector<128x32xf32>, vector<32x32xf32> -> vector<32x32xf32>
    %301 = arith.addf %295, %300 : vector<32x32xf32>
    %c0_254 = arith.constant 0 : index
    %c10_255 = arith.constant 10 : index
    %c0_256 = arith.constant 0 : index
    %302 = vector.load %arg13[%c0_254, %c10_255, %c0_256] : memref<2x26x128xf32, #tpu.memory_space<vmem>>, vector<2x16x128xf32>
    %303 = vector.shape_cast %302 : vector<2x16x128xf32> to vector<32x128xf32>
    %cst_257 = arith.constant 0.000000e+00 : f32
    %304 = vector.broadcast %cst_257 : f32 to vector<32x128xf32>
    %305 = arith.select %244, %303, %304 : vector<32x128xi1>, vector<32x128xf32>
    %c8_258 = arith.constant 8 : index
    %c0_259 = arith.constant 0 : index
    %c0_260 = arith.constant 0 : index
    %306 = vector.load %arg6[%c8_258, %c0_259, %c0_260] : memref<9x128x32xf32, #tpu.memory_space<vmem>>, vector<1x128x32xf32>
    %307 = vector.shape_cast %306 : vector<1x128x32xf32> to vector<128x32xf32>
    %cst_261 = arith.constant dense<0.000000e+00> : vector<32x32xf32>
    %308 = tpu.matmul %305, %307, %cst_261 {dimension_numbers = #tpu.dot_dimension_numbers<[1], [0], [0], [1], [0, 0, 1, 1], [], []>} : vector<32x128xf32>, vector<128x32xf32>, vector<32x32xf32> -> vector<32x32xf32>
    %309 = arith.addf %301, %308 : vector<32x32xf32>
    %c0_262 = arith.constant 0 : index
    %c0_263 = arith.constant 0 : index
    %310 = vector.load %arg7[%c0_262, %c0_263] : memref<1x32xf32, #tpu.memory_space<vmem>>, vector<1x32xf32>
    %311 = vector.broadcast %310 : vector<1x32xf32> to vector<32x32xf32>
    %312 = arith.addf %309, %311 : vector<32x32xf32>
    %cst_264 = arith.constant 0.000000e+00 : f32
    %313 = vector.broadcast %cst_264 : f32 to vector<32x32xf32>
    %314 = arith.cmpf ogt, %312, %313 : vector<32x32xf32>
    %cst_265 = arith.constant 2.000000e-01 : f32
    %315 = vector.broadcast %cst_265 : f32 to vector<32x32xf32>
    %316 = arith.mulf %315, %312 : vector<32x32xf32>
    %317 = arith.select %314, %312, %316 : vector<32x32xi1>, vector<32x32xf32>
    %318 = vector.shape_cast %317 : vector<32x32xf32> to vector<4x8x32xf32>
    %319 = vector.extract_strided_slice %318 {offsets = [0, 0, 0], sizes = [4, 4, 32], strides = [1, 1, 1]} : vector<4x8x32xf32> to vector<4x4x32xf32>
    %320 = vector.extract_strided_slice %318 {offsets = [0, 4, 0], sizes = [4, 4, 32], strides = [1, 1, 1]} : vector<4x8x32xf32> to vector<4x4x32xf32>
    %321 = arith.maximumf %319, %320 : vector<4x4x32xf32>
    %322 = vector.shape_cast %321 : vector<4x4x32xf32> to vector<16x32xf32>
    %c0_266 = arith.constant 0 : index
    %c0_267 = arith.constant 0 : index
    %323 = vector.load %arg17[%c0_266, %c0_267] : memref<16x32xf32, #tpu.memory_space<vmem>>, vector<16x32xf32>
    tpu.vector_store %arg17[%c0_266, %c0_267], %322 {strides = array<i32>} : memref<16x32xf32, #tpu.memory_space<vmem>>, vector<16x32xf32>,
    %c0_268 = arith.constant 0 : index
    %c0_269 = arith.constant 0 : index
    %324 = tpu.strided_load %arg17[%c0_268, %c0_269] {strides = array<i32: 2, 1>} : memref<16x32xf32, #tpu.memory_space<vmem>>, vector<8x32xf32>
    %c1_270 = arith.constant 1 : index
    %c0_271 = arith.constant 0 : index
    %325 = tpu.strided_load %arg17[%c1_270, %c0_271] {strides = array<i32: 2, 1>} : memref<16x32xf32, #tpu.memory_space<vmem>>, vector<8x32xf32>
    %326 = arith.maximumf %324, %325 : vector<8x32xf32>
    %327 = vector.shape_cast %326 : vector<8x32xf32> to vector<2x4x32xf32>
    %c0_272 = arith.constant 0 : index
    %c3_273 = arith.constant 3 : index
    %c0_274 = arith.constant 0 : index
    %328 = vector.load %arg14[%c0_272, %c3_273, %c0_274] : memref<2x10x32xf32, #tpu.memory_space<vmem>>, vector<2x4x32xf32>
    tpu.vector_store %arg14[%c0_272, %c3_273, %c0_274], %327 {strides = array<i32>} : memref<2x10x32xf32, #tpu.memory_space<vmem>>, vector<2x4x32xf32>,
    %329 = tpu.iota {dimensions = array<i32: 0>} : vector<8x32xi32>
    %c2_i32 = arith.constant 2 : i32
    %c0_i32_275 = arith.constant 0 : i32
    %330 = arith.cmpi eq, %c2_i32, %c0_i32_275 : i32
    %c1_i32_276 = arith.constant 1 : i32
    %331 = arith.select %330, %c1_i32_276, %c2_i32 : i32
    %332 = vector.broadcast %331 : i32 to vector<8x32xi32>
    %333 = arith.remsi %329, %332 : vector<8x32xi32>
    %c0_i32_277 = arith.constant 0 : i32
    %334 = vector.broadcast %c0_i32_277 : i32 to vector<8x32xi32>
    %335 = arith.cmpi ne, %333, %334 : vector<8x32xi32>
    %c0_i32_278 = arith.constant 0 : i32
    %336 = vector.broadcast %c0_i32_278 : i32 to vector<8x32xi32>
    %337 = arith.cmpi slt, %333, %336 : vector<8x32xi32>
    %c0_i32_279 = arith.constant 0 : i32
    %338 = arith.cmpi slt, %331, %c0_i32_279 : i32
    %339 = vector.broadcast %338 : i1 to vector<8x32xi1>
    %340 = vector.broadcast %339 : vector<8x32xi1> to vector<8x32xi1>
    %341 = arith.xori %337, %340 : vector<8x32xi1>
    %342 = arith.andi %341, %335 : vector<8x32xi1>
    %343 = vector.broadcast %331 : i32 to vector<8x32xi32>
    %344 = arith.addi %333, %343 : vector<8x32xi32>
    %345 = arith.select %342, %344, %333 : vector<8x32xi1>, vector<8x32xi32>
    %c0_i32_280 = arith.constant 0 : i32
    %346 = vector.broadcast %c0_i32_280 : i32 to vector<8x32xi32>
    %347 = arith.cmpi ne, %345, %346 : vector<8x32xi32>
    %c1_i32_281 = arith.constant 1 : i32
    %348 = vector.broadcast %c1_i32_281 : i32 to vector<8x32xi32>
    %349 = arith.cmpi ne, %345, %348 : vector<8x32xi32>
    %c0_282 = arith.constant 0 : index
    %c0_283 = arith.constant 0 : index
    %c0_284 = arith.constant 0 : index
    %350 = vector.load %arg14[%c0_282, %c0_283, %c0_284] : memref<2x10x32xf32, #tpu.memory_space<vmem>>, vector<2x4x32xf32>
    %351 = vector.shape_cast %350 : vector<2x4x32xf32> to vector<8x32xf32>
    %cst_285 = arith.constant 0.000000e+00 : f32
    %352 = vector.broadcast %cst_285 : f32 to vector<8x32xf32>
    %353 = arith.select %347, %351, %352 : vector<8x32xi1>, vector<8x32xf32>
    %c0_286 = arith.constant 0 : index
    %c0_287 = arith.constant 0 : index
    %c0_288 = arith.constant 0 : index
    %354 = vector.load %arg8[%c0_286, %c0_287, %c0_288] : memref<9x32x128xf32, #tpu.memory_space<vmem>>, vector<1x32x128xf32>
    %355 = vector.shape_cast %354 : vector<1x32x128xf32> to vector<32x128xf32>
    %cst_289 = arith.constant dense<0.000000e+00> : vector<8x128xf32>
    %356 = tpu.matmul %353, %355, %cst_289 {dimension_numbers = #tpu.dot_dimension_numbers<[1], [0], [0], [1], [0, 0, 1, 1], [], []>} : vector<8x32xf32>, vector<32x128xf32>, vector<8x128xf32> -> vector<8x128xf32>
    %c0_290 = arith.constant 0 : index
    %c1_291 = arith.constant 1 : index
    %c0_292 = arith.constant 0 : index
    %357 = vector.load %arg14[%c0_290, %c1_291, %c0_292] : memref<2x10x32xf32, #tpu.memory_space<vmem>>, vector<2x4x32xf32>
    %358 = vector.shape_cast %357 : vector<2x4x32xf32> to vector<8x32xf32>
    %c1_293 = arith.constant 1 : index
    %c0_294 = arith.constant 0 : index
    %c0_295 = arith.constant 0 : index
    %359 = vector.load %arg8[%c1_293, %c0_294, %c0_295] : memref<9x32x128xf32, #tpu.memory_space<vmem>>, vector<1x32x128xf32>
    %360 = vector.shape_cast %359 : vector<1x32x128xf32> to vector<32x128xf32>
    %cst_296 = arith.constant dense<0.000000e+00> : vector<8x128xf32>
    %361 = tpu.matmul %358, %360, %cst_296 {dimension_numbers = #tpu.dot_dimension_numbers<[1], [0], [0], [1], [0, 0, 1, 1], [], []>} : vector<8x32xf32>, vector<32x128xf32>, vector<8x128xf32> -> vector<8x128xf32>
    %362 = arith.addf %356, %361 : vector<8x128xf32>
    %c0_297 = arith.constant 0 : index
    %c2_298 = arith.constant 2 : index
    %c0_299 = arith.constant 0 : index
    %363 = vector.load %arg14[%c0_297, %c2_298, %c0_299] : memref<2x10x32xf32, #tpu.memory_space<vmem>>, vector<2x4x32xf32>
    %364 = vector.shape_cast %363 : vector<2x4x32xf32> to vector<8x32xf32>
    %cst_300 = arith.constant 0.000000e+00 : f32
    %365 = vector.broadcast %cst_300 : f32 to vector<8x32xf32>
    %366 = arith.select %349, %364, %365 : vector<8x32xi1>, vector<8x32xf32>
    %c2_301 = arith.constant 2 : index
    %c0_302 = arith.constant 0 : index
    %c0_303 = arith.constant 0 : index
    %367 = vector.load %arg8[%c2_301, %c0_302, %c0_303] : memref<9x32x128xf32, #tpu.memory_space<vmem>>, vector<1x32x128xf32>
    %368 = vector.shape_cast %367 : vector<1x32x128xf32> to vector<32x128xf32>
    %cst_304 = arith.constant dense<0.000000e+00> : vector<8x128xf32>
    %369 = tpu.matmul %366, %368, %cst_304 {dimension_numbers = #tpu.dot_dimension_numbers<[1], [0], [0], [1], [0, 0, 1, 1], [], []>} : vector<8x32xf32>, vector<32x128xf32>, vector<8x128xf32> -> vector<8x128xf32>
    %370 = arith.addf %362, %369 : vector<8x128xf32>
    %c0_305 = arith.constant 0 : index
    %c2_306 = arith.constant 2 : index
    %c0_307 = arith.constant 0 : index
    %371 = vector.load %arg14[%c0_305, %c2_306, %c0_307] : memref<2x10x32xf32, #tpu.memory_space<vmem>>, vector<2x4x32xf32>
    %372 = vector.shape_cast %371 : vector<2x4x32xf32> to vector<8x32xf32>
    %cst_308 = arith.constant 0.000000e+00 : f32
    %373 = vector.broadcast %cst_308 : f32 to vector<8x32xf32>
    %374 = arith.select %347, %372, %373 : vector<8x32xi1>, vector<8x32xf32>
    %c3_309 = arith.constant 3 : index
    %c0_310 = arith.constant 0 : index
    %c0_311 = arith.constant 0 : index
    %375 = vector.load %arg8[%c3_309, %c0_310, %c0_311] : memref<9x32x128xf32, #tpu.memory_space<vmem>>, vector<1x32x128xf32>
    %376 = vector.shape_cast %375 : vector<1x32x128xf32> to vector<32x128xf32>
    %cst_312 = arith.constant dense<0.000000e+00> : vector<8x128xf32>
    %377 = tpu.matmul %374, %376, %cst_312 {dimension_numbers = #tpu.dot_dimension_numbers<[1], [0], [0], [1], [0, 0, 1, 1], [], []>} : vector<8x32xf32>, vector<32x128xf32>, vector<8x128xf32> -> vector<8x128xf32>
    %378 = arith.addf %370, %377 : vector<8x128xf32>
    %c0_313 = arith.constant 0 : index
    %c3_314 = arith.constant 3 : index
    %c0_315 = arith.constant 0 : index
    %379 = vector.load %arg14[%c0_313, %c3_314, %c0_315] : memref<2x10x32xf32, #tpu.memory_space<vmem>>, vector<2x4x32xf32>
    %380 = vector.shape_cast %379 : vector<2x4x32xf32> to vector<8x32xf32>
    %c4_316 = arith.constant 4 : index
    %c0_317 = arith.constant 0 : index
    %c0_318 = arith.constant 0 : index
    %381 = vector.load %arg8[%c4_316, %c0_317, %c0_318] : memref<9x32x128xf32, #tpu.memory_space<vmem>>, vector<1x32x128xf32>
    %382 = vector.shape_cast %381 : vector<1x32x128xf32> to vector<32x128xf32>
    %cst_319 = arith.constant dense<0.000000e+00> : vector<8x128xf32>
    %383 = tpu.matmul %380, %382, %cst_319 {dimension_numbers = #tpu.dot_dimension_numbers<[1], [0], [0], [1], [0, 0, 1, 1], [], []>} : vector<8x32xf32>, vector<32x128xf32>, vector<8x128xf32> -> vector<8x128xf32>
    %384 = arith.addf %378, %383 : vector<8x128xf32>
    %c0_320 = arith.constant 0 : index
    %c4_321 = arith.constant 4 : index
    %c0_322 = arith.constant 0 : index
    %385 = vector.load %arg14[%c0_320, %c4_321, %c0_322] : memref<2x10x32xf32, #tpu.memory_space<vmem>>, vector<2x4x32xf32>
    %386 = vector.shape_cast %385 : vector<2x4x32xf32> to vector<8x32xf32>
    %cst_323 = arith.constant 0.000000e+00 : f32
    %387 = vector.broadcast %cst_323 : f32 to vector<8x32xf32>
    %388 = arith.select %349, %386, %387 : vector<8x32xi1>, vector<8x32xf32>
    %c5_324 = arith.constant 5 : index
    %c0_325 = arith.constant 0 : index
    %c0_326 = arith.constant 0 : index
    %389 = vector.load %arg8[%c5_324, %c0_325, %c0_326] : memref<9x32x128xf32, #tpu.memory_space<vmem>>, vector<1x32x128xf32>
    %390 = vector.shape_cast %389 : vector<1x32x128xf32> to vector<32x128xf32>
    %cst_327 = arith.constant dense<0.000000e+00> : vector<8x128xf32>
    %391 = tpu.matmul %388, %390, %cst_327 {dimension_numbers = #tpu.dot_dimension_numbers<[1], [0], [0], [1], [0, 0, 1, 1], [], []>} : vector<8x32xf32>, vector<32x128xf32>, vector<8x128xf32> -> vector<8x128xf32>
    %392 = arith.addf %384, %391 : vector<8x128xf32>
    %c0_328 = arith.constant 0 : index
    %c4_329 = arith.constant 4 : index
    %c0_330 = arith.constant 0 : index
    %393 = vector.load %arg14[%c0_328, %c4_329, %c0_330] : memref<2x10x32xf32, #tpu.memory_space<vmem>>, vector<2x4x32xf32>
    %394 = vector.shape_cast %393 : vector<2x4x32xf32> to vector<8x32xf32>
    %cst_331 = arith.constant 0.000000e+00 : f32
    %395 = vector.broadcast %cst_331 : f32 to vector<8x32xf32>
    %396 = arith.select %347, %394, %395 : vector<8x32xi1>, vector<8x32xf32>
    %c6_332 = arith.constant 6 : index
    %c0_333 = arith.constant 0 : index
    %c0_334 = arith.constant 0 : index
    %397 = vector.load %arg8[%c6_332, %c0_333, %c0_334] : memref<9x32x128xf32, #tpu.memory_space<vmem>>, vector<1x32x128xf32>
    %398 = vector.shape_cast %397 : vector<1x32x128xf32> to vector<32x128xf32>
    %cst_335 = arith.constant dense<0.000000e+00> : vector<8x128xf32>
    %399 = tpu.matmul %396, %398, %cst_335 {dimension_numbers = #tpu.dot_dimension_numbers<[1], [0], [0], [1], [0, 0, 1, 1], [], []>} : vector<8x32xf32>, vector<32x128xf32>, vector<8x128xf32> -> vector<8x128xf32>
    %400 = arith.addf %392, %399 : vector<8x128xf32>
    %c0_336 = arith.constant 0 : index
    %c5_337 = arith.constant 5 : index
    %c0_338 = arith.constant 0 : index
    %401 = vector.load %arg14[%c0_336, %c5_337, %c0_338] : memref<2x10x32xf32, #tpu.memory_space<vmem>>, vector<2x4x32xf32>
    %402 = vector.shape_cast %401 : vector<2x4x32xf32> to vector<8x32xf32>
    %c7_339 = arith.constant 7 : index
    %c0_340 = arith.constant 0 : index
    %c0_341 = arith.constant 0 : index
    %403 = vector.load %arg8[%c7_339, %c0_340, %c0_341] : memref<9x32x128xf32, #tpu.memory_space<vmem>>, vector<1x32x128xf32>
    %404 = vector.shape_cast %403 : vector<1x32x128xf32> to vector<32x128xf32>
    %cst_342 = arith.constant dense<0.000000e+00> : vector<8x128xf32>
    %405 = tpu.matmul %402, %404, %cst_342 {dimension_numbers = #tpu.dot_dimension_numbers<[1], [0], [0], [1], [0, 0, 1, 1], [], []>} : vector<8x32xf32>, vector<32x128xf32>, vector<8x128xf32> -> vector<8x128xf32>
    %406 = arith.addf %400, %405 : vector<8x128xf32>
    %c0_343 = arith.constant 0 : index
    %c6_344 = arith.constant 6 : index
    %c0_345 = arith.constant 0 : index
    %407 = vector.load %arg14[%c0_343, %c6_344, %c0_345] : memref<2x10x32xf32, #tpu.memory_space<vmem>>, vector<2x4x32xf32>
    %408 = vector.shape_cast %407 : vector<2x4x32xf32> to vector<8x32xf32>
    %cst_346 = arith.constant 0.000000e+00 : f32
    %409 = vector.broadcast %cst_346 : f32 to vector<8x32xf32>
    %410 = arith.select %349, %408, %409 : vector<8x32xi1>, vector<8x32xf32>
    %c8_347 = arith.constant 8 : index
    %c0_348 = arith.constant 0 : index
    %c0_349 = arith.constant 0 : index
    %411 = vector.load %arg8[%c8_347, %c0_348, %c0_349] : memref<9x32x128xf32, #tpu.memory_space<vmem>>, vector<1x32x128xf32>
    %412 = vector.shape_cast %411 : vector<1x32x128xf32> to vector<32x128xf32>
    %cst_350 = arith.constant dense<0.000000e+00> : vector<8x128xf32>
    %413 = tpu.matmul %410, %412, %cst_350 {dimension_numbers = #tpu.dot_dimension_numbers<[1], [0], [0], [1], [0, 0, 1, 1], [], []>} : vector<8x32xf32>, vector<32x128xf32>, vector<8x128xf32> -> vector<8x128xf32>
    %414 = arith.addf %406, %413 : vector<8x128xf32>
    %c0_351 = arith.constant 0 : index
    %c0_352 = arith.constant 0 : index
    %415 = vector.load %arg9[%c0_351, %c0_352] : memref<1x128xf32, #tpu.memory_space<vmem>>, vector<1x128xf32>
    %416 = vector.broadcast %415 : vector<1x128xf32> to vector<8x128xf32>
    %417 = arith.addf %414, %416 : vector<8x128xf32>
    %418 = vector.extract_strided_slice %417 {offsets = [0, 0], sizes = [4, 128], strides = [1, 1]} : vector<8x128xf32> to vector<4x128xf32>
    %cst_353 = arith.constant dense<0.000000e+00> : vector<128xf32>
    %419 = vector.multi_reduction <add>, %418, %cst_353 [0] : vector<4x128xf32> to vector<128xf32>
    %420 = vector.shape_cast %419 : vector<128xf32> to vector<1x128xf32>
    %cst_354 = arith.constant 4.000000e+00 : f32
    %421 = vector.broadcast %cst_354 : f32 to vector<1x128xf32>
    %422 = arith.divf %420, %421 : vector<1x128xf32>
    %c0_355 = arith.constant 0 : index
    %c0_356 = arith.constant 0 : index
    %423 = vector.load %arg10[%c0_355, %c0_356] : memref<2x128xf32, #tpu.memory_space<vmem>>, vector<1x128xf32>
    tpu.vector_store %arg10[%c0_355, %c0_356], %422 {strides = array<i32>} : memref<2x128xf32, #tpu.memory_space<vmem>>, vector<1x128xf32>,
    %424 = vector.extract_strided_slice %417 {offsets = [4, 0], sizes = [4, 128], strides = [1, 1]} : vector<8x128xf32> to vector<4x128xf32>
    %cst_357 = arith.constant dense<0.000000e+00> : vector<128xf32>
    %425 = vector.multi_reduction <add>, %424, %cst_357 [0] : vector<4x128xf32> to vector<128xf32>
    %426 = vector.shape_cast %425 : vector<128xf32> to vector<1x128xf32>
    %cst_358 = arith.constant 4.000000e+00 : f32
    %427 = vector.broadcast %cst_358 : f32 to vector<1x128xf32>
    %428 = arith.divf %426, %427 : vector<1x128xf32>
    %c1_359 = arith.constant 1 : index
    %c0_360 = arith.constant 0 : index
    %429 = vector.load %arg10[%c1_359, %c0_360] : memref<2x128xf32, #tpu.memory_space<vmem>>, vector<1x128xf32>
    tpu.vector_store %arg10[%c1_359, %c0_360], %428 {strides = array<i32>} : memref<2x128xf32, #tpu.memory_space<vmem>>, vector<1x128xf32>,
    return
  }
  func.func @transform_0(%arg0: i32) -> (i32, i32, i32) {
    %c0_i32 = arith.constant 0 : i32
    %c0_i32_0 = arith.constant 0 : i32
    %c0_i32_1 = arith.constant 0 : i32
    return %arg0, %c0_i32, %c0_i32_0 : i32, i32, i32
  }
  func.func @transform_1(%arg0: i32) -> (i32, i32, i32) {
    %c0_i32 = arith.constant 0 : i32
    %c0_i32_0 = arith.constant 0 : i32
    %c0_i32_1 = arith.constant 0 : i32
    %c0_i32_2 = arith.constant 0 : i32
    return %c0_i32, %c0_i32_0, %c0_i32_1 : i32, i32, i32
  }
  func.func @transform_2(%arg0: i32) -> (i32, i32) {
    %c0_i32 = arith.constant 0 : i32
    %c0_i32_0 = arith.constant 0 : i32
    %c0_i32_1 = arith.constant 0 : i32
    return %c0_i32, %c0_i32_0 : i32, i32
  }
  func.func @transform_3(%arg0: i32) -> (i32, i32, i32) {
    %c0_i32 = arith.constant 0 : i32
    %c0_i32_0 = arith.constant 0 : i32
    %c0_i32_1 = arith.constant 0 : i32
    %c0_i32_2 = arith.constant 0 : i32
    return %c0_i32, %c0_i32_0, %c0_i32_1 : i32, i32, i32
  }
  func.func @transform_4(%arg0: i32) -> (i32, i32) {
    %c0_i32 = arith.constant 0 : i32
    %c0_i32_0 = arith.constant 0 : i32
    %c0_i32_1 = arith.constant 0 : i32
    return %c0_i32, %c0_i32_0 : i32, i32
  }
  func.func @transform_5(%arg0: i32) -> (i32, i32, i32) {
    %c0_i32 = arith.constant 0 : i32
    %c0_i32_0 = arith.constant 0 : i32
    %c0_i32_1 = arith.constant 0 : i32
    %c0_i32_2 = arith.constant 0 : i32
    return %c0_i32, %c0_i32_0, %c0_i32_1 : i32, i32, i32
  }
  func.func @transform_6(%arg0: i32) -> (i32, i32) {
    %c0_i32 = arith.constant 0 : i32
    %c0_i32_0 = arith.constant 0 : i32
    %c0_i32_1 = arith.constant 0 : i32
    return %c0_i32, %c0_i32_0 : i32, i32
  }
  func.func @transform_7(%arg0: i32) -> (i32, i32, i32) {
    %c0_i32 = arith.constant 0 : i32
    %c0_i32_0 = arith.constant 0 : i32
    %c0_i32_1 = arith.constant 0 : i32
    %c0_i32_2 = arith.constant 0 : i32
    return %c0_i32, %c0_i32_0, %c0_i32_1 : i32, i32, i32
  }
  func.func @transform_8(%arg0: i32) -> (i32, i32) {
    %c0_i32 = arith.constant 0 : i32
    %c0_i32_0 = arith.constant 0 : i32
    %c0_i32_1 = arith.constant 0 : i32
    return %c0_i32, %c0_i32_0 : i32, i32
  }
  func.func @transform_9(%arg0: i32) -> (i32, i32) {
    %c0_i32 = arith.constant 0 : i32
    %c0_i32_0 = arith.constant 0 : i32
    return %arg0, %c0_i32 : i32, i32
  }
}

</mosaic_0001>

<llo_original>
// kernel: conv_encoder_forward.1
$region0: #{conv_encoder_forward.1}
  #allocation0 [shape = 'u32[]', space=smem, size = 0x4, offset = 0x4, fixed_abs, tag = 'smem constant byte address 0x4 - core index']
  #allocation1 [shape = 'u32[72,128]{1,0:T(1,128)}', space=vmem, size = 0x9000, scoped, tag = 'internal scratch']
  #allocation2 [shape = 'f32[2,290,8]{2,1,0:T(8,128)}', space=vmem, size = 0x4a000, scoped, tag = 'scratch operand']
  #allocation3 [shape = 'f32[2,82,32]{2,1,0:T(8,128)}', space=vmem, size = 0x16000, scoped, tag = 'scratch operand']
  #allocation4 [shape = 'f32[2,26,128]{2,1,0:T(8,128)}', space=vmem, size = 0x8000, scoped, tag = 'scratch operand']
  #allocation5 [shape = 'f32[2,10,32]{2,1,0:T(8,128)}', space=vmem, size = 0x4000, scoped, tag = 'scratch operand']
  #allocation6 [shape = 'f32[256,32]{1,0:T(8,128)}', space=vmem, size = 0x20000, scoped, tag = 'scratch operand']
  #allocation7 [shape = 'f32[64,128]{1,0:T(8,128)}', space=vmem, size = 0x8000, scoped, tag = 'scratch operand']
  #allocation8 [shape = 'f32[16,32]{1,0:T(8,128)}', space=vmem, size = 0x2000, scoped, tag = 'scratch operand']
  %s0 = inlined_call_operand.vmem [shape: f32[2,256,8], index: 0, kind: input, shape index: {}]
  %s1 = inlined_call_operand.vmem [shape: f32[9,8,32], index: 1, kind: input, shape index: {}]
  %s2 = inlined_call_operand.vmem [shape: f32[1,32], index: 2, kind: input, shape index: {}]
  %s3 = inlined_call_operand.vmem [shape: f32[9,32,128], index: 3, kind: input, shape index: {}]
  %s4 = inlined_call_operand.vmem [shape: f32[1,128], index: 4, kind: input, shape index: {}]
  %s5 = inlined_call_operand.vmem [shape: f32[9,128,32], index: 5, kind: input, shape index: {}]
  %s6 = inlined_call_operand.vmem [shape: f32[1,32], index: 6, kind: input, shape index: {}]
  %s7 = inlined_call_operand.vmem [shape: f32[9,32,128], index: 7, kind: input, shape index: {}]
  %s8 = inlined_call_operand.vmem [shape: f32[1,128], index: 8, kind: input, shape index: {}]
  %s9 = inlined_call_operand.vmem [shape: f32[2,128], index: 9, kind: output, shape index: {}]
  %s10 = sld [smem:[#allocation0]]
  $region46: #{conv_encoder_forward.1} parent=0
    _
  %s12 = ssub.s32 1, %s10
  %s13 = scalar_select 0, %s12, %s10
  // Predicated region
  $region2: #{conv_encoder_forward.1} parent=0 // pred_check
    _
  $region3: #{conv_encoder_forward.1} parent=0 // pred_check_branch
    %15 = sbr.rel (0) target = $region5
  $region4: #{conv_encoder_forward.1} parent=0 // pred_region
    _
  $region5: #{conv_encoder_forward.1} parent=0 // pred_fallthru
    _
  // Predicated region
  $region6: #{conv_encoder_forward.1} parent=0 // pred_check
    _
  $region7: #{conv_encoder_forward.1} parent=0 // pred_check_branch
    %17 = sbr.rel (0) target = $region9
  $region8: #{conv_encoder_forward.1} parent=0 // pred_region
    _
  $region9: #{conv_encoder_forward.1} parent=0 // pred_fallthru
    _
  // Predicated region
  $region10: #{conv_encoder_forward.1} parent=0 // pred_check
    _
  $region11: #{conv_encoder_forward.1} parent=0 // pred_check_branch
    %19 = sbr.rel (0) target = $region13
  $region12: #{conv_encoder_forward.1} parent=0 // pred_region
    _
  $region13: #{conv_encoder_forward.1} parent=0 // pred_fallthru
    _
  // Predicated region
  $region14: #{conv_encoder_forward.1} parent=0 // pred_check
    _
  $region15: #{conv_encoder_forward.1} parent=0 // pred_check_branch
    %21 = sbr.rel (0) target = $region17
  $region16: #{conv_encoder_forward.1} parent=0 // pred_region
    _
  $region17: #{conv_encoder_forward.1} parent=0 // pred_fallthru
    _
  // Predicated region
  $region18: #{conv_encoder_forward.1} parent=0 // pred_check
    _
  $region19: #{conv_encoder_forward.1} parent=0 // pred_check_branch
    %23 = sbr.rel (0) target = $region21
  $region20: #{conv_encoder_forward.1} parent=0 // pred_region
    _
  $region21: #{conv_encoder_forward.1} parent=0 // pred_fallthru
    _
  // Predicated region
  $region22: #{conv_encoder_forward.1} parent=0 // pred_check
    _
  $region23: #{conv_encoder_forward.1} parent=0 // pred_check_branch
    %25 = sbr.rel (0) target = $region25
  $region24: #{conv_encoder_forward.1} parent=0 // pred_region
    _
  $region25: #{conv_encoder_forward.1} parent=0 // pred_fallthru
    _
  // Predicated region
  $region26: #{conv_encoder_forward.1} parent=0 // pred_check
    _
  $region27: #{conv_encoder_forward.1} parent=0 // pred_check_branch
    %27 = sbr.rel (0) target = $region29
  $region28: #{conv_encoder_forward.1} parent=0 // pred_region
    _
  $region29: #{conv_encoder_forward.1} parent=0 // pred_fallthru
    _
  // Predicated region
  $region30: #{conv_encoder_forward.1} parent=0 // pred_check
    _
  $region31: #{conv_encoder_forward.1} parent=0 // pred_check_branch
    %29 = sbr.rel (0) target = $region33
  $region32: #{conv_encoder_forward.1} parent=0 // pred_region
    _
  $region33: #{conv_encoder_forward.1} parent=0 // pred_fallthru
    _
  // Predicated region
  $region34: #{conv_encoder_forward.1} parent=0 // pred_check
    _
  $region35: #{conv_encoder_forward.1} parent=0 // pred_check_branch
    %31 = sbr.rel (0) target = $region37
  $region36: #{conv_encoder_forward.1} parent=0 // pred_region
    _
  $region37: #{conv_encoder_forward.1} parent=0 // pred_fallthru
    _
  %vm32 = vcmask 64512
  %33 = vst.msk [vmem:[#allocation2] sm:$0xff] %vm32, 0.0
  %34 = vst.msk [vmem:[#allocation2 + $0x8] sm:$0xff] %vm32, 0.0
  %vm35 = vcmask 57344
  %36 = vst.msk [vmem:[#allocation2 + $0x10] sm:$0x1] %vm35, 0.0
  %37 = vst.msk [vmem:[#allocation2 + $0x128] sm:$0xff] %vm32, 0.0
  %38 = vst.msk [vmem:[#allocation2 + $0x130] sm:$0xff] %vm32, 0.0
  %39 = vst.msk [vmem:[#allocation2 + $0x138] sm:$0x1] %vm35, 0.0
  %40 = vst.msk [vmem:[#allocation2 + $0x111] sm:$0xff] %vm32, 0.0
  %41 = vst.msk [vmem:[#allocation2 + $0x119] sm:$0xff] %vm32, 0.0
  %42 = vst.msk [vmem:[#allocation2 + $0x121] sm:$0x1] %vm35, 0.0
  %43 = vst.msk [vmem:[#allocation2 + $0x239] sm:$0xff] %vm32, 0.0
  %44 = vst.msk [vmem:[#allocation2 + $0x241] sm:$0xff] %vm32, 0.0
  %45 = vst.msk [vmem:[#allocation2 + $0x249] sm:$0x1] %vm35, 0.0
  %vm46 = vcmask 261120
  %47 = vst.msk [vmem:[#allocation3] sm:$0xff] %vm46, 0.0
  %vm48 = vcmask 253952
  %49 = vst.msk [vmem:[#allocation3 + $0x8] sm:$0x1] %vm48, 0.0
  %50 = vst.msk [vmem:[#allocation3 + $0x58] sm:$0xff] %vm46, 0.0
  %51 = vst.msk [vmem:[#allocation3 + $0x60] sm:$0x1] %vm48, 0.0
  %52 = vst.msk [vmem:[#allocation3 + $0x49] sm:$0xff] %vm46, 0.0
  %53 = vst.msk [vmem:[#allocation3 + $0x51] sm:$0x1] %vm48, 0.0
  %54 = vst.msk [vmem:[#allocation3 + $0xa1] sm:$0xff] %vm46, 0.0
  %55 = vst.msk [vmem:[#allocation3 + $0xa9] sm:$0x1] %vm48, 0.0
  %56 = vst [vmem:[#allocation4] sm:$0x1f] 0.0
  %57 = vst [vmem:[#allocation4 + $0x20] sm:$0x1f] 0.0
  %58 = vst [vmem:[#allocation4 + $0x15] sm:$0x1f] 0.0
  %59 = vst [vmem:[#allocation4 + $0x35] sm:$0x1f] 0.0
  %vm60 = vcmask 256000
  %61 = vst.msk [vmem:[#allocation5] sm:$0x7] %vm60, 0.0
  %62 = vst.msk [vmem:[#allocation5 + $0x10] sm:$0x7] %vm60, 0.0
  %63 = vst.msk [vmem:[#allocation5 + $0x7] sm:$0x7] %vm60, 0.0
  %64 = vst.msk [vmem:[#allocation5 + $0x17] sm:$0x7] %vm60, 0.0
  %v65 = vld [vmem:[%s0] sm:$0xff]
  %v66 = vld [vmem:[%s0 + $0x8] sm:$0xff]
  %v67 = vld [vmem:[%s0 + $0x10] sm:$0xff]
  %v68 = vld [vmem:[%s0 + $0x18] sm:$0xff]
  %v69 = vld [vmem:[%s0 + $0x20] sm:$0xff]
  %v70 = vld [vmem:[%s0 + $0x28] sm:$0xff]
  %v71 = vld [vmem:[%s0 + $0x30] sm:$0xff]
  %v72 = vld [vmem:[%s0 + $0x38] sm:$0xff]
  %v73 = vld [vmem:[%s0 + $0x40] sm:$0xff]
  %v74 = vld [vmem:[%s0 + $0x48] sm:$0xff]
  %v75 = vld [vmem:[%s0 + $0x50] sm:$0xff]
  %v76 = vld [vmem:[%s0 + $0x58] sm:$0xff]
  %v77 = vld [vmem:[%s0 + $0x60] sm:$0xff]
  %v78 = vld [vmem:[%s0 + $0x68] sm:$0xff]
  %v79 = vld [vmem:[%s0 + $0x70] sm:$0xff]
  %v80 = vld [vmem:[%s0 + $0x78] sm:$0xff]
  %v81 = vld [vmem:[%s0 + $0x80] sm:$0xff]
  %v82 = vld [vmem:[%s0 + $0x88] sm:$0xff]
  %v83 = vld [vmem:[%s0 + $0x90] sm:$0xff]
  %v84 = vld [vmem:[%s0 + $0x98] sm:$0xff]
  %v85 = vld [vmem:[%s0 + $0xa0] sm:$0xff]
  %v86 = vld [vmem:[%s0 + $0xa8] sm:$0xff]
  %v87 = vld [vmem:[%s0 + $0xb0] sm:$0xff]
  %v88 = vld [vmem:[%s0 + $0xb8] sm:$0xff]
  %v89 = vld [vmem:[%s0 + $0xc0] sm:$0xff]
  %v90 = vld [vmem:[%s0 + $0xc8] sm:$0xff]
  %v91 = vld [vmem:[%s0 + $0xd0] sm:$0xff]
  %v92 = vld [vmem:[%s0 + $0xd8] sm:$0xff]
  %v93 = vld [vmem:[%s0 + $0xe0] sm:$0xff]
  %v94 = vld [vmem:[%s0 + $0xe8] sm:$0xff]
  %v95 = vld [vmem:[%s0 + $0xf0] sm:$0xff]
  %v96 = vld [vmem:[%s0 + $0xf8] sm:$0xff]
  %v97 = vld [vmem:[%s0 + $0x100] sm:$0xff]
  %v98 = vld [vmem:[%s0 + $0x108] sm:$0xff]
  %v99 = vld [vmem:[%s0 + $0x110] sm:$0xff]
  %v100 = vld [vmem:[%s0 + $0x118] sm:$0xff]
  %v101 = vld [vmem:[%s0 + $0x120] sm:$0xff]
  %v102 = vld [vmem:[%s0 + $0x128] sm:$0xff]
  %v103 = vld [vmem:[%s0 + $0x130] sm:$0xff]
  %v104 = vld [vmem:[%s0 + $0x138] sm:$0xff]
  %v105 = vld [vmem:[%s0 + $0x140] sm:$0xff]
  %v106 = vld [vmem:[%s0 + $0x148] sm:$0xff]
  %v107 = vld [vmem:[%s0 + $0x150] sm:$0xff]
  %v108 = vld [vmem:[%s0 + $0x158] sm:$0xff]
  %v109 = vld [vmem:[%s0 + $0x160] sm:$0xff]
  %v110 = vld [vmem:[%s0 + $0x168] sm:$0xff]
  %v111 = vld [vmem:[%s0 + $0x170] sm:$0xff]
  %v112 = vld [vmem:[%s0 + $0x178] sm:$0xff]
  %v113 = vld [vmem:[%s0 + $0x180] sm:$0xff]
  %v114 = vld [vmem:[%s0 + $0x188] sm:$0xff]
  %v115 = vld [vmem:[%s0 + $0x190] sm:$0xff]
  %v116 = vld [vmem:[%s0 + $0x198] sm:$0xff]
  %v117 = vld [vmem:[%s0 + $0x1a0] sm:$0xff]
  %v118 = vld [vmem:[%s0 + $0x1a8] sm:$0xff]
  %v119 = vld [vmem:[%s0 + $0x1b0] sm:$0xff]
  %v120 = vld [vmem:[%s0 + $0x1b8] sm:$0xff]
  %v121 = vld [vmem:[%s0 + $0x1c0] sm:$0xff]
  %v122 = vld [vmem:[%s0 + $0x1c8] sm:$0xff]
  %v123 = vld [vmem:[%s0 + $0x1d0] sm:$0xff]
  %v124 = vld [vmem:[%s0 + $0x1d8] sm:$0xff]
  %v125 = vld [vmem:[%s0 + $0x1e0] sm:$0xff]
  %v126 = vld [vmem:[%s0 + $0x1e8] sm:$0xff]
  %v127 = vld [vmem:[%s0 + $0x1f0] sm:$0xff]
  %v128 = vld [vmem:[%s0 + $0x1f8] sm:$0xff]
  %129 = vst.msk [vmem:[#allocation2 + $0x11] sm:$0xff] %vm32, %v65
  %130 = vst.msk [vmem:[#allocation2 + $0x19] sm:$0xff] %vm32, %v66
  %131 = vst.msk [vmem:[#allocation2 + $0x21] sm:$0xff] %vm32, %v67
  %132 = vst.msk [vmem:[#allocation2 + $0x29] sm:$0xff] %vm32, %v68
  %133 = vst.msk [vmem:[#allocation2 + $0x31] sm:$0xff] %vm32, %v69
  %134 = vst.msk [vmem:[#allocation2 + $0x39] sm:$0xff] %vm32, %v70
  %135 = vst.msk [vmem:[#allocation2 + $0x41] sm:$0xff] %vm32, %v71
  %136 = vst.msk [vmem:[#allocation2 + $0x49] sm:$0xff] %vm32, %v72
  %137 = vst.msk [vmem:[#allocation2 + $0x51] sm:$0xff] %vm32, %v73
  %138 = vst.msk [vmem:[#allocation2 + $0x59] sm:$0xff] %vm32, %v74
  %139 = vst.msk [vmem:[#allocation2 + $0x61] sm:$0xff] %vm32, %v75
  %140 = vst.msk [vmem:[#allocation2 + $0x69] sm:$0xff] %vm32, %v76
  %141 = vst.msk [vmem:[#allocation2 + $0x71] sm:$0xff] %vm32, %v77
  %142 = vst.msk [vmem:[#allocation2 + $0x79] sm:$0xff] %vm32, %v78
  %143 = vst.msk [vmem:[#allocation2 + $0x81] sm:$0xff] %vm32, %v79
  %144 = vst.msk [vmem:[#allocation2 + $0x89] sm:$0xff] %vm32, %v80
  %145 = vst.msk [vmem:[#allocation2 + $0x91] sm:$0xff] %vm32, %v81
  %146 = vst.msk [vmem:[#allocation2 + $0x99] sm:$0xff] %vm32, %v82
  %147 = vst.msk [vmem:[#allocation2 + $0xa1] sm:$0xff] %vm32, %v83
  %148 = vst.msk [vmem:[#allocation2 + $0xa9] sm:$0xff] %vm32, %v84
  %149 = vst.msk [vmem:[#allocation2 + $0xb1] sm:$0xff] %vm32, %v85
  %150 = vst.msk [vmem:[#allocation2 + $0xb9] sm:$0xff] %vm32, %v86
  %151 = vst.msk [vmem:[#allocation2 + $0xc1] sm:$0xff] %vm32, %v87
  %152 = vst.msk [vmem:[#allocation2 + $0xc9] sm:$0xff] %vm32, %v88
  %153 = vst.msk [vmem:[#allocation2 + $0xd1] sm:$0xff] %vm32, %v89
  %154 = vst.msk [vmem:[#allocation2 + $0xd9] sm:$0xff] %vm32, %v90
  %155 = vst.msk [vmem:[#allocation2 + $0xe1] sm:$0xff] %vm32, %v91
  %156 = vst.msk [vmem:[#allocation2 + $0xe9] sm:$0xff] %vm32, %v92
  %157 = vst.msk [vmem:[#allocation2 + $0xf1] sm:$0xff] %vm32, %v93
  %158 = vst.msk [vmem:[#allocation2 + $0xf9] sm:$0xff] %vm32, %v94
  %159 = vst.msk [vmem:[#allocation2 + $0x101] sm:$0xff] %vm32, %v95
  %160 = vst.msk [vmem:[#allocation2 + $0x109] sm:$0xff] %vm32, %v96
  %161 = vst.msk [vmem:[#allocation2 + $0x139] sm:$0xff] %vm32, %v97
  %162 = vst.msk [vmem:[#allocation2 + $0x141] sm:$0xff] %vm32, %v98
  %163 = vst.msk [vmem:[#allocation2 + $0x149] sm:$0xff] %vm32, %v99
  %164 = vst.msk [vmem:[#allocation2 + $0x151] sm:$0xff] %vm32, %v100
  %165 = vst.msk [vmem:[#allocation2 + $0x159] sm:$0xff] %vm32, %v101
  %166 = vst.msk [vmem:[#allocation2 + $0x161] sm:$0xff] %vm32, %v102
  %167 = vst.msk [vmem:[#allocation2 + $0x169] sm:$0xff] %vm32, %v103
  %168 = vst.msk [vmem:[#allocation2 + $0x171] sm:$0xff] %vm32, %v104
  %169 = vst.msk [vmem:[#allocation2 + $0x179] sm:$0xff] %vm32, %v105
  %170 = vst.msk [vmem:[#allocation2 + $0x181] sm:$0xff] %vm32, %v106
  %171 = vst.msk [vmem:[#allocation2 + $0x189] sm:$0xff] %vm32, %v107
  %172 = vst.msk [vmem:[#allocation2 + $0x191] sm:$0xff] %vm32, %v108
  %173 = vst.msk [vmem:[#allocation2 + $0x199] sm:$0xff] %vm32, %v109
  %174 = vst.msk [vmem:[#allocation2 + $0x1a1] sm:$0xff] %vm32, %v110
  %175 = vst.msk [vmem:[#allocation2 + $0x1a9] sm:$0xff] %vm32, %v111
  %176 = vst.msk [vmem:[#allocation2 + $0x1b1] sm:$0xff] %vm32, %v112
  %177 = vst.msk [vmem:[#allocation2 + $0x1b9] sm:$0xff] %vm32, %v113
  %178 = vst.msk [vmem:[#allocation2 + $0x1c1] sm:$0xff] %vm32, %v114
  %179 = vst.msk [vmem:[#allocation2 + $0x1c9] sm:$0xff] %vm32, %v115
  %180 = vst.msk [vmem:[#allocation2 + $0x1d1] sm:$0xff] %vm32, %v116
  %181 = vst.msk [vmem:[#allocation2 + $0x1d9] sm:$0xff] %vm32, %v117
  %182 = vst.msk [vmem:[#allocation2 + $0x1e1] sm:$0xff] %vm32, %v118
  %183 = vst.msk [vmem:[#allocation2 + $0x1e9] sm:$0xff] %vm32, %v119
  %184 = vst.msk [vmem:[#allocation2 + $0x1f1] sm:$0xff] %vm32, %v120
  %185 = vst.msk [vmem:[#allocation2 + $0x1f9] sm:$0xff] %vm32, %v121
  %186 = vst.msk [vmem:[#allocation2 + $0x201] sm:$0xff] %vm32, %v122
  %187 = vst.msk [vmem:[#allocation2 + $0x209] sm:$0xff] %vm32, %v123
  %188 = vst.msk [vmem:[#allocation2 + $0x211] sm:$0xff] %vm32, %v124
  %189 = vst.msk [vmem:[#allocation2 + $0x219] sm:$0xff] %vm32, %v125
  %190 = vst.msk [vmem:[#allocation2 + $0x221] sm:$0xff] %vm32, %v126
  %191 = vst.msk [vmem:[#allocation2 + $0x229] sm:$0xff] %vm32, %v127
  %192 = vst.msk [vmem:[#allocation2 + $0x231] sm:$0xff] %vm32, %v128
  %v193 = vlaneseq
  %v194 = vshrl.u32 %v193, 7
  %v195 = vadd.s32 %v194, 8
  %v196 = vadd.s32 %v194, 16
  %v197 = vadd.s32 %v194, 24
  %v198 = vadd.s32 %v194, 32
  %v199 = vadd.s32 %v194, 40
  %v200 = vadd.s32 %v194, 48
  %v201 = vadd.s32 %v194, 56
  %v202 = vadd.s32 %v194, 64
  %v203 = vadd.s32 %v194, 72
  %v204 = vadd.s32 %v194, 80
  %v205 = vadd.s32 %v194, 88
  %v206 = vadd.s32 %v194, 96
  %v207 = vadd.s32 %v194, 104
  %v208 = vadd.s32 %v194, 112
  %v209 = vadd.s32 %v194, 120
  %v210 = vadd.s32 %v194, 128
  %v211 = vadd.s32 %v194, 136
  %v212 = vadd.s32 %v194, 144
  %v213 = vadd.s32 %v194, 152
  %v214 = vadd.s32 %v194, 160
  %v215 = vadd.s32 %v194, 168
  %v216 = vadd.s32 %v194, 176
  %v217 = vadd.s32 %v194, 184
  %v218 = vadd.s32 %v194, 192
  %v219 = vadd.s32 %v194, 200
  %v220 = vadd.s32 %v194, 208
  %v221 = vadd.s32 %v194, 216
  %v222 = vadd.s32 %v194, 224
  %v223 = vadd.s32 %v194, 232
  %v224 = vadd.s32 %v194, 240
  %v225 = vadd.s32 %v194, 248
  %v226 = vadd.s32 %v194, 256
  %v227 = vadd.s32 %v194, 264
  %v228 = vadd.s32 %v194, 272
  %v229 = vadd.s32 %v194, 280
  %v230 = vadd.s32 %v194, 288
  %v231 = vadd.s32 %v194, 296
  %v232 = vadd.s32 %v194, 304
  %v233 = vadd.s32 %v194, 312
  %v234 = vadd.s32 %v194, 320
  %v235 = vadd.s32 %v194, 328
  %v236 = vadd.s32 %v194, 336
  %v237 = vadd.s32 %v194, 344
  %v238 = vadd.s32 %v194, 352
  %v239 = vadd.s32 %v194, 360
  %v240 = vadd.s32 %v194, 368
  %v241 = vadd.s32 %v194, 376
  %v242 = vadd.s32 %v194, 384
  %v243 = vadd.s32 %v194, 392
  %v244 = vadd.s32 %v194, 400
  %v245 = vadd.s32 %v194, 408
  %v246 = vadd.s32 %v194, 416
  %v247 = vadd.s32 %v194, 424
  %v248 = vadd.s32 %v194, 432
  %v249 = vadd.s32 %v194, 440
  %v250 = vadd.s32 %v194, 448
  %v251 = vadd.s32 %v194, 456
  %v252 = vadd.s32 %v194, 464
  %v253 = vadd.s32 %v194, 472
  %v254 = vadd.s32 %v194, 480
  %v255 = vadd.s32 %v194, 488
  %v256 = vadd.s32 %v194, 496
  %v257 = vadd.s32 %v194, 504
  %vm258 = vcmp.lt.s32.totalorder %v194, 0
  %v259 = vsub.s32 0, %v194
  %v260 = vsel %vm258, %v259, %v194
  %v261 = vshrl.u32 %v260, 4
  %v262 = vand.u32 %v260, 15
  %v263 = vsub.s32 0, %v262
  %v264 = vsel %vm258, %v263, %v262
  %vm265 = vcmp.lt.s32.totalorder %v195, 0
  %v266 = vsub.s32 0, %v195
  %v267 = vsel %vm265, %v266, %v195
  %v268 = vshrl.u32 %v267, 4
  %v269 = vand.u32 %v267, 15
  %v270 = vsub.s32 0, %v269
  %v271 = vsel %vm265, %v270, %v269
  %vm272 = vcmp.lt.s32.totalorder %v196, 0
  %v273 = vsub.s32 0, %v196
  %v274 = vsel %vm272, %v273, %v196
  %v275 = vshrl.u32 %v274, 4
  %v276 = vand.u32 %v274, 15
  %v277 = vsub.s32 0, %v276
  %v278 = vsel %vm272, %v277, %v276
  %vm279 = vcmp.lt.s32.totalorder %v197, 0
  %v280 = vsub.s32 0, %v197
  %v281 = vsel %vm279, %v280, %v197
  %v282 = vshrl.u32 %v281, 4
  %v283 = vand.u32 %v281, 15
  %v284 = vsub.s32 0, %v283
  %v285 = vsel %vm279, %v284, %v283
  %vm286 = vcmp.lt.s32.totalorder %v198, 0
  %v287 = vsub.s32 0, %v198
  %v288 = vsel %vm286, %v287, %v198
  %v289 = vshrl.u32 %v288, 4
  %v290 = vand.u32 %v288, 15
  %v291 = vsub.s32 0, %v290
  %v292 = vsel %vm286, %v291, %v290
  %vm293 = vcmp.lt.s32.totalorder %v199, 0
  %v294 = vsub.s32 0, %v199
  %v295 = vsel %vm293, %v294, %v199
  %v296 = vshrl.u32 %v295, 4
  %v297 = vand.u32 %v295, 15
  %v298 = vsub.s32 0, %v297
  %v299 = vsel %vm293, %v298, %v297
  %vm300 = vcmp.lt.s32.totalorder %v200, 0
  %v301 = vsub.s32 0, %v200
  %v302 = vsel %vm300, %v301, %v200
  %v303 = vshrl.u32 %v302, 4
  %v304 = vand.u32 %v302, 15
  %v305 = vsub.s32 0, %v304
  %v306 = vsel %vm300, %v305, %v304
  %vm307 = vcmp.lt.s32.totalorder %v201, 0
  %v308 = vsub.s32 0, %v201
  %v309 = vsel %vm307, %v308, %v201
  %v310 = vshrl.u32 %v309, 4
  %v311 = vand.u32 %v309, 15
  %v312 = vsub.s32 0, %v311
  %v313 = vsel %vm307, %v312, %v311
  %vm314 = vcmp.lt.s32.totalorder %v202, 0
  %v315 = vsub.s32 0, %v202
  %v316 = vsel %vm314, %v315, %v202
  %v317 = vshrl.u32 %v316, 4
  %v318 = vand.u32 %v316, 15
  %v319 = vsub.s32 0, %v318
  %v320 = vsel %vm314, %v319, %v318
  %vm321 = vcmp.lt.s32.totalorder %v203, 0
  %v322 = vsub.s32 0, %v203
  %v323 = vsel %vm321, %v322, %v203
  %v324 = vshrl.u32 %v323, 4
  %v325 = vand.u32 %v323, 15
  %v326 = vsub.s32 0, %v325
  %v327 = vsel %vm321, %v326, %v325
  %vm328 = vcmp.lt.s32.totalorder %v204, 0
  %v329 = vsub.s32 0, %v204
  %v330 = vsel %vm328, %v329, %v204
  %v331 = vshrl.u32 %v330, 4
  %v332 = vand.u32 %v330, 15
  %v333 = vsub.s32 0, %v332
  %v334 = vsel %vm328, %v333, %v332
  %vm335 = vcmp.lt.s32.totalorder %v205, 0
  %v336 = vsub.s32 0, %v205
  %v337 = vsel %vm335, %v336, %v205
  %v338 = vshrl.u32 %v337, 4
  %v339 = vand.u32 %v337, 15
  %v340 = vsub.s32 0, %v339
  %v341 = vsel %vm335, %v340, %v339
  %vm342 = vcmp.lt.s32.totalorder %v206, 0
  %v343 = vsub.s32 0, %v206
  %v344 = vsel %vm342, %v343, %v206
  %v345 = vshrl.u32 %v344, 4
  %v346 = vand.u32 %v344, 15
  %v347 = vsub.s32 0, %v346
  %v348 = vsel %vm342, %v347, %v346
  %vm349 = vcmp.lt.s32.totalorder %v207, 0
  %v350 = vsub.s32 0, %v207
  %v351 = vsel %vm349, %v350, %v207
  %v352 = vshrl.u32 %v351, 4
  %v353 = vand.u32 %v351, 15
  %v354 = vsub.s32 0, %v353
  %v355 = vsel %vm349, %v354, %v353
  %vm356 = vcmp.lt.s32.totalorder %v208, 0
  %v357 = vsub.s32 0, %v208
  %v358 = vsel %vm356, %v357, %v208
  %v359 = vshrl.u32 %v358, 4
  %v360 = vand.u32 %v358, 15
  %v361 = vsub.s32 0, %v360
  %v362 = vsel %vm356, %v361, %v360
  %vm363 = vcmp.lt.s32.totalorder %v209, 0
  %v364 = vsub.s32 0, %v209
  %v365 = vsel %vm363, %v364, %v209
  %v366 = vshrl.u32 %v365, 4
  %v367 = vand.u32 %v365, 15
  %v368 = vsub.s32 0, %v367
  %v369 = vsel %vm363, %v368, %v367
  %vm370 = vcmp.lt.s32.totalorder %v210, 0
  %v371 = vsub.s32 0, %v210
  %v372 = vsel %vm370, %v371, %v210
  %v373 = vshrl.u32 %v372, 4
  %v374 = vand.u32 %v372, 15
  %v375 = vsub.s32 0, %v374
  %v376 = vsel %vm370, %v375, %v374
  %vm377 = vcmp.lt.s32.totalorder %v211, 0
  %v378 = vsub.s32 0, %v211
  %v379 = vsel %vm377, %v378, %v211
  %v380 = vshrl.u32 %v379, 4
  %v381 = vand.u32 %v379, 15
  %v382 = vsub.s32 0, %v381
  %v383 = vsel %vm377, %v382, %v381
  %vm384 = vcmp.lt.s32.totalorder %v212, 0
  %v385 = vsub.s32 0, %v212
  %v386 = vsel %vm384, %v385, %v212
  %v387 = vshrl.u32 %v386, 4
  %v388 = vand.u32 %v386, 15
  %v389 = vsub.s32 0, %v388
  %v390 = vsel %vm384, %v389, %v388
  %vm391 = vcmp.lt.s32.totalorder %v213, 0
  %v392 = vsub.s32 0, %v213
  %v393 = vsel %vm391, %v392, %v213
  %v394 = vshrl.u32 %v393, 4
  %v395 = vand.u32 %v393, 15
  %v396 = vsub.s32 0, %v395
  %v397 = vsel %vm391, %v396, %v395
  %vm398 = vcmp.lt.s32.totalorder %v214, 0
  %v399 = vsub.s32 0, %v214
  %v400 = vsel %vm398, %v399, %v214
  %v401 = vshrl.u32 %v400, 4
  %v402 = vand.u32 %v400, 15
  %v403 = vsub.s32 0, %v402
  %v404 = vsel %vm398, %v403, %v402
  %vm405 = vcmp.lt.s32.totalorder %v215, 0
  %v406 = vsub.s32 0, %v215
  %v407 = vsel %vm405, %v406, %v215
  %v408 = vshrl.u32 %v407, 4
  %v409 = vand.u32 %v407, 15
  %v410 = vsub.s32 0, %v409
  %v411 = vsel %vm405, %v410, %v409
  %vm412 = vcmp.lt.s32.totalorder %v216, 0
  %v413 = vsub.s32 0, %v216
  %v414 = vsel %vm412, %v413, %v216
  %v415 = vshrl.u32 %v414, 4
  %v416 = vand.u32 %v414, 15
  %v417 = vsub.s32 0, %v416
  %v418 = vsel %vm412, %v417, %v416
  %vm419 = vcmp.lt.s32.totalorder %v217, 0
  %v420 = vsub.s32 0, %v217
  %v421 = vsel %vm419, %v420, %v217
  %v422 = vshrl.u32 %v421, 4
  %v423 = vand.u32 %v421, 15
  %v424 = vsub.s32 0, %v423
  %v425 = vsel %vm419, %v424, %v423
  %vm426 = vcmp.lt.s32.totalorder %v218, 0
  %v427 = vsub.s32 0, %v218
  %v428 = vsel %vm426, %v427, %v218
  %v429 = vshrl.u32 %v428, 4
  %v430 = vand.u32 %v428, 15
  %v431 = vsub.s32 0, %v430
  %v432 = vsel %vm426, %v431, %v430
  %vm433 = vcmp.lt.s32.totalorder %v219, 0
  %v434 = vsub.s32 0, %v219
  %v435 = vsel %vm433, %v434, %v219
  %v436 = vshrl.u32 %v435, 4
  %v437 = vand.u32 %v435, 15
  %v438 = vsub.s32 0, %v437
  %v439 = vsel %vm433, %v438, %v437
  %vm440 = vcmp.lt.s32.totalorder %v220, 0
  %v441 = vsub.s32 0, %v220
  %v442 = vsel %vm440, %v441, %v220
  %v443 = vshrl.u32 %v442, 4
  %v444 = vand.u32 %v442, 15
  %v445 = vsub.s32 0, %v444
  %v446 = vsel %vm440, %v445, %v444
  %vm447 = vcmp.lt.s32.totalorder %v221, 0
  %v448 = vsub.s32 0, %v221
  %v449 = vsel %vm447, %v448, %v221
  %v450 = vshrl.u32 %v449, 4
  %v451 = vand.u32 %v449, 15
  %v452 = vsub.s32 0, %v451
  %v453 = vsel %vm447, %v452, %v451
  %vm454 = vcmp.lt.s32.totalorder %v222, 0
  %v455 = vsub.s32 0, %v222
  %v456 = vsel %vm454, %v455, %v222
  %v457 = vshrl.u32 %v456, 4
  %v458 = vand.u32 %v456, 15
  %v459 = vsub.s32 0, %v458
  %v460 = vsel %vm454, %v459, %v458
  %vm461 = vcmp.lt.s32.totalorder %v223, 0
  %v462 = vsub.s32 0, %v223
  %v463 = vsel %vm461, %v462, %v223
  %v464 = vshrl.u32 %v463, 4
  %v465 = vand.u32 %v463, 15
  %v466 = vsub.s32 0, %v465
  %v467 = vsel %vm461, %v466, %v465
  %vm468 = vcmp.lt.s32.totalorder %v224, 0
  %v469 = vsub.s32 0, %v224
  %v470 = vsel %vm468, %v469, %v224
  %v471 = vshrl.u32 %v470, 4
  %v472 = vand.u32 %v470, 15
  %v473 = vsub.s32 0, %v472
  %v474 = vsel %vm468, %v473, %v472
  %vm475 = vcmp.lt.s32.totalorder %v225, 0
  %v476 = vsub.s32 0, %v225
  %v477 = vsel %vm475, %v476, %v225
  %v478 = vshrl.u32 %v477, 4
  %v479 = vand.u32 %v477, 15
  %v480 = vsub.s32 0, %v479
  %v481 = vsel %vm475, %v480, %v479
  %vm482 = vcmp.lt.s32.totalorder %v226, 0
  %v483 = vsub.s32 0, %v226
  %v484 = vsel %vm482, %v483, %v226
  %v485 = vshrl.u32 %v484, 4
  %v486 = vand.u32 %v484, 15
  %v487 = vsub.s32 0, %v486
  %v488 = vsel %vm482, %v487, %v486
  %vm489 = vcmp.lt.s32.totalorder %v227, 0
  %v490 = vsub.s32 0, %v227
  %v491 = vsel %vm489, %v490, %v227
  %v492 = vshrl.u32 %v491, 4
  %v493 = vand.u32 %v491, 15
  %v494 = vsub.s32 0, %v493
  %v495 = vsel %vm489, %v494, %v493
  %vm496 = vcmp.lt.s32.totalorder %v228, 0
  %v497 = vsub.s32 0, %v228
  %v498 = vsel %vm496, %v497, %v228
  %v499 = vshrl.u32 %v498, 4
  %v500 = vand.u32 %v498, 15
  %v501 = vsub.s32 0, %v500
  %v502 = vsel %vm496, %v501, %v500
  %vm503 = vcmp.lt.s32.totalorder %v229, 0
  %v504 = vsub.s32 0, %v229
  %v505 = vsel %vm503, %v504, %v229
  %v506 = vshrl.u32 %v505, 4
  %v507 = vand.u32 %v505, 15
  %v508 = vsub.s32 0, %v507
  %v509 = vsel %vm503, %v508, %v507
  %vm510 = vcmp.lt.s32.totalorder %v230, 0
  %v511 = vsub.s32 0, %v230
  %v512 = vsel %vm510, %v511, %v230
  %v513 = vshrl.u32 %v512, 4
  %v514 = vand.u32 %v512, 15
  %v515 = vsub.s32 0, %v514
  %v516 = vsel %vm510, %v515, %v514
  %vm517 = vcmp.lt.s32.totalorder %v231, 0
  %v518 = vsub.s32 0, %v231
  %v519 = vsel %vm517, %v518, %v231
  %v520 = vshrl.u32 %v519, 4
  %v521 = vand.u32 %v519, 15
  %v522 = vsub.s32 0, %v521
  %v523 = vsel %vm517, %v522, %v521
  %vm524 = vcmp.lt.s32.totalorder %v232, 0
  %v525 = vsub.s32 0, %v232
  %v526 = vsel %vm524, %v525, %v232
  %v527 = vshrl.u32 %v526, 4
  %v528 = vand.u32 %v526, 15
  %v529 = vsub.s32 0, %v528
  %v530 = vsel %vm524, %v529, %v528
  %vm531 = vcmp.lt.s32.totalorder %v233, 0
  %v532 = vsub.s32 0, %v233
  %v533 = vsel %vm531, %v532, %v233
  %v534 = vshrl.u32 %v533, 4
  %v535 = vand.u32 %v533, 15
  %v536 = vsub.s32 0, %v535
  %v537 = vsel %vm531, %v536, %v535
  %vm538 = vcmp.lt.s32.totalorder %v234, 0
  %v539 = vsub.s32 0, %v234
  %v540 = vsel %vm538, %v539, %v234
  %v541 = vshrl.u32 %v540, 4
  %v542 = vand.u32 %v540, 15
  %v543 = vsub.s32 0, %v542
  %v544 = vsel %vm538, %v543, %v542
  %vm545 = vcmp.lt.s32.totalorder %v235, 0
  %v546 = vsub.s32 0, %v235
  %v547 = vsel %vm545, %v546, %v235
  %v548 = vshrl.u32 %v547, 4
  %v549 = vand.u32 %v547, 15
  %v550 = vsub.s32 0, %v549
  %v551 = vsel %vm545, %v550, %v549
  %vm552 = vcmp.lt.s32.totalorder %v236, 0
  %v553 = vsub.s32 0, %v236
  %v554 = vsel %vm552, %v553, %v236
  %v555 = vshrl.u32 %v554, 4
  %v556 = vand.u32 %v554, 15
  %v557 = vsub.s32 0, %v556
  %v558 = vsel %vm552, %v557, %v556
  %vm559 = vcmp.lt.s32.totalorder %v237, 0
  %v560 = vsub.s32 0, %v237
  %v561 = vsel %vm559, %v560, %v237
  %v562 = vshrl.u32 %v561, 4
  %v563 = vand.u32 %v561, 15
  %v564 = vsub.s32 0, %v563
  %v565 = vsel %vm559, %v564, %v563
  %vm566 = vcmp.lt.s32.totalorder %v238, 0
  %v567 = vsub.s32 0, %v238
  %v568 = vsel %vm566, %v567, %v238
  %v569 = vshrl.u32 %v568, 4
  %v570 = vand.u32 %v568, 15
  %v571 = vsub.s32 0, %v570
  %v572 = vsel %vm566, %v571, %v570
  %vm573 = vcmp.lt.s32.totalorder %v239, 0
  %v574 = vsub.s32 0, %v239
  %v575 = vsel %vm573, %v574, %v239
  %v576 = vshrl.u32 %v575, 4
  %v577 = vand.u32 %v575, 15
  %v578 = vsub.s32 0, %v577
  %v579 = vsel %vm573, %v578, %v577
  %vm580 = vcmp.lt.s32.totalorder %v240, 0
  %v581 = vsub.s32 0, %v240
  %v582 = vsel %vm580, %v581, %v240
  %v583 = vshrl.u32 %v582, 4
  %v584 = vand.u32 %v582, 15
  %v585 = vsub.s32 0, %v584
  %v586 = vsel %vm580, %v585, %v584
  %vm587 = vcmp.lt.s32.totalorder %v241, 0
  %v588 = vsub.s32 0, %v241
  %v589 = vsel %vm587, %v588, %v241
  %v590 = vshrl.u32 %v589, 4
  %v591 = vand.u32 %v589, 15
  %v592 = vsub.s32 0, %v591
  %v593 = vsel %vm587, %v592, %v591
  %vm594 = vcmp.lt.s32.totalorder %v242, 0
  %v595 = vsub.s32 0, %v242
  %v596 = vsel %vm594, %v595, %v242
  %v597 = vshrl.u32 %v596, 4
  %v598 = vand.u32 %v596, 15
  %v599 = vsub.s32 0, %v598
  %v600 = vsel %vm594, %v599, %v598
  %vm601 = vcmp.lt.s32.totalorder %v243, 0
  %v602 = vsub.s32 0, %v243
  %v603 = vsel %vm601, %v602, %v243
  %v604 = vshrl.u32 %v603, 4
  %v605 = vand.u32 %v603, 15
  %v606 = vsub.s32 0, %v605
  %v607 = vsel %vm601, %v606, %v605
  %vm608 = vcmp.lt.s32.totalorder %v244, 0
  %v609 = vsub.s32 0, %v244
  %v610 = vsel %vm608, %v609, %v244
  %v611 = vshrl.u32 %v610, 4
  %v612 = vand.u32 %v610, 15
  %v613 = vsub.s32 0, %v612
  %v614 = vsel %vm608, %v613, %v612
  %vm615 = vcmp.lt.s32.totalorder %v245, 0
  %v616 = vsub.s32 0, %v245
  %v617 = vsel %vm615, %v616, %v245
  %v618 = vshrl.u32 %v617, 4
  %v619 = vand.u32 %v617, 15
  %v620 = vsub.s32 0, %v619
  %v621 = vsel %vm615, %v620, %v619
  %vm622 = vcmp.lt.s32.totalorder %v246, 0
  %v623 = vsub.s32 0, %v246
  %v624 = vsel %vm622, %v623, %v246
  %v625 = vshrl.u32 %v624, 4
  %v626 = vand.u32 %v624, 15
  %v627 = vsub.s32 0, %v626
  %v628 = vsel %vm622, %v627, %v626
  %vm629 = vcmp.lt.s32.totalorder %v247, 0
  %v630 = vsub.s32 0, %v247
  %v631 = vsel %vm629, %v630, %v247
  %v632 = vshrl.u32 %v631, 4
  %v633 = vand.u32 %v631, 15
  %v634 = vsub.s32 0, %v633
  %v635 = vsel %vm629, %v634, %v633
  %vm636 = vcmp.lt.s32.totalorder %v248, 0
  %v637 = vsub.s32 0, %v248
  %v638 = vsel %vm636, %v637, %v248
  %v639 = vshrl.u32 %v638, 4
  %v640 = vand.u32 %v638, 15
  %v641 = vsub.s32 0, %v640
  %v642 = vsel %vm636, %v641, %v640
  %vm643 = vcmp.lt.s32.totalorder %v249, 0
  %v644 = vsub.s32 0, %v249
  %v645 = vsel %vm643, %v644, %v249
  %v646 = vshrl.u32 %v645, 4
  %v647 = vand.u32 %v645, 15
  %v648 = vsub.s32 0, %v647
  %v649 = vsel %vm643, %v648, %v647
  %vm650 = vcmp.lt.s32.totalorder %v250, 0
  %v651 = vsub.s32 0, %v250
  %v652 = vsel %vm650, %v651, %v250
  %v653 = vshrl.u32 %v652, 4
  %v654 = vand.u32 %v652, 15
  %v655 = vsub.s32 0, %v654
  %v656 = vsel %vm650, %v655, %v654
  %vm657 = vcmp.lt.s32.totalorder %v251, 0
  %v658 = vsub.s32 0, %v251
  %v659 = vsel %vm657, %v658, %v251
  %v660 = vshrl.u32 %v659, 4
  %v661 = vand.u32 %v659, 15
  %v662 = vsub.s32 0, %v661
  %v663 = vsel %vm657, %v662, %v661
  %vm664 = vcmp.lt.s32.totalorder %v252, 0
  %v665 = vsub.s32 0, %v252
  %v666 = vsel %vm664, %v665, %v252
  %v667 = vshrl.u32 %v666, 4
  %v668 = vand.u32 %v666, 15
  %v669 = vsub.s32 0, %v668
  %v670 = vsel %vm664, %v669, %v668
  %vm671 = vcmp.lt.s32.totalorder %v253, 0
  %v672 = vsub.s32 0, %v253
  %v673 = vsel %vm671, %v672, %v253
  %v674 = vshrl.u32 %v673, 4
  %v675 = vand.u32 %v673, 15
  %v676 = vsub.s32 0, %v675
  %v677 = vsel %vm671, %v676, %v675
  %vm678 = vcmp.lt.s32.totalorder %v254, 0
  %v679 = vsub.s32 0, %v254
  %v680 = vsel %vm678, %v679, %v254
  %v681 = vshrl.u32 %v680, 4
  %v682 = vand.u32 %v680, 15
  %v683 = vsub.s32 0, %v682
  %v684 = vsel %vm678, %v683, %v682
  %vm685 = vcmp.lt.s32.totalorder %v255, 0
  %v686 = vsub.s32 0, %v255
  %v687 = vsel %vm685, %v686, %v255
  %v688 = vshrl.u32 %v687, 4
  %v689 = vand.u32 %v687, 15
  %v690 = vsub.s32 0, %v689
  %v691 = vsel %vm685, %v690, %v689
  %vm692 = vcmp.lt.s32.totalorder %v256, 0
  %v693 = vsub.s32 0, %v256
  %v694 = vsel %vm692, %v693, %v256
  %v695 = vshrl.u32 %v694, 4
  %v696 = vand.u32 %v694, 15
  %v697 = vsub.s32 0, %v696
  %v698 = vsel %vm692, %v697, %v696
  %vm699 = vcmp.lt.s32.totalorder %v257, 0
  %v700 = vsub.s32 0, %v257
  %v701 = vsel %vm699, %v700, %v257
  %v702 = vshrl.u32 %v701, 4
  %v703 = vand.u32 %v701, 15
  %v704 = vsub.s32 0, %v703
  %v705 = vsel %vm699, %v704, %v703
  %vm706 = vcmp.ne.s32.totalorder %v264, 0
  %vm707 = vcmp.ne.s32.totalorder %v271, 0
  %vm708 = vcmp.ne.s32.totalorder %v278, 0
  %vm709 = vcmp.ne.s32.totalorder %v285, 0
  %vm710 = vcmp.ne.s32.totalorder %v292, 0
  %vm711 = vcmp.ne.s32.totalorder %v299, 0
  %vm712 = vcmp.ne.s32.totalorder %v306, 0
  %vm713 = vcmp.ne.s32.totalorder %v313, 0
  %vm714 = vcmp.ne.s32.totalorder %v320, 0
  %vm715 = vcmp.ne.s32.totalorder %v327, 0
  %vm716 = vcmp.ne.s32.totalorder %v334, 0
  %vm717 = vcmp.ne.s32.totalorder %v341, 0
  %vm718 = vcmp.ne.s32.totalorder %v348, 0
  %vm719 = vcmp.ne.s32.totalorder %v355, 0
  %vm720 = vcmp.ne.s32.totalorder %v362, 0
  %vm721 = vcmp.ne.s32.totalorder %v369, 0
  %vm722 = vcmp.ne.s32.totalorder %v376, 0
  %vm723 = vcmp.ne.s32.totalorder %v383, 0
  %vm724 = vcmp.ne.s32.totalorder %v390, 0
  %vm725 = vcmp.ne.s32.totalorder %v397, 0
  %vm726 = vcmp.ne.s32.totalorder %v404, 0
  %vm727 = vcmp.ne.s32.totalorder %v411, 0
  %vm728 = vcmp.ne.s32.totalorder %v418, 0
  %vm729 = vcmp.ne.s32.totalorder %v425, 0
  %vm730 = vcmp.ne.s32.totalorder %v432, 0
  %vm731 = vcmp.ne.s32.totalorder %v439, 0
  %vm732 = vcmp.ne.s32.totalorder %v446, 0
  %vm733 = vcmp.ne.s32.totalorder %v453, 0
  %vm734 = vcmp.ne.s32.totalorder %v460, 0
  %vm735 = vcmp.ne.s32.totalorder %v467, 0
  %vm736 = vcmp.ne.s32.totalorder %v474, 0
  %vm737 = vcmp.ne.s32.totalorder %v481, 0
  %vm738 = vcmp.ne.s32.totalorder %v488, 0
  %vm739 = vcmp.ne.s32.totalorder %v495, 0
  %vm740 = vcmp.ne.s32.totalorder %v502, 0
  %vm741 = vcmp.ne.s32.totalorder %v509, 0
  %vm742 = vcmp.ne.s32.totalorder %v516, 0
  %vm743 = vcmp.ne.s32.totalorder %v523, 0
  %vm744 = vcmp.ne.s32.totalorder %v530, 0
  %vm745 = vcmp.ne.s32.totalorder %v537, 0
  %vm746 = vcmp.ne.s32.totalorder %v544, 0
  %vm747 = vcmp.ne.s32.totalorder %v551, 0
  %vm748 = vcmp.ne.s32.totalorder %v558, 0
  %vm749 = vcmp.ne.s32.totalorder %v565, 0
  %vm750 = vcmp.ne.s32.totalorder %v572, 0
  %vm751 = vcmp.ne.s32.totalorder %v579, 0
  %vm752 = vcmp.ne.s32.totalorder %v586, 0
  %vm753 = vcmp.ne.s32.totalorder %v593, 0
  %vm754 = vcmp.ne.s32.totalorder %v600, 0
  %vm755 = vcmp.ne.s32.totalorder %v607, 0
  %vm756 = vcmp.ne.s32.totalorder %v614, 0
  %vm757 = vcmp.ne.s32.totalorder %v621, 0
  %vm758 = vcmp.ne.s32.totalorder %v628, 0
  %vm759 = vcmp.ne.s32.totalorder %v635, 0
  %vm760 = vcmp.ne.s32.totalorder %v642, 0
  %vm761 = vcmp.ne.s32.totalorder %v649, 0
  %vm762 = vcmp.ne.s32.totalorder %v656, 0
  %vm763 = vcmp.ne.s32.totalorder %v663, 0
  %vm764 = vcmp.ne.s32.totalorder %v670, 0
  %vm765 = vcmp.ne.s32.totalorder %v677, 0
  %vm766 = vcmp.ne.s32.totalorder %v684, 0
  %vm767 = vcmp.ne.s32.totalorder %v691, 0
  %vm768 = vcmp.ne.s32.totalorder %v698, 0
  %vm769 = vcmp.ne.s32.totalorder %v705, 0
  %vm770 = vcmp.lt.s32.totalorder %v264, 0
  %vm771 = vcmp.lt.s32.totalorder %v271, 0
  %vm772 = vcmp.lt.s32.totalorder %v278, 0
  %vm773 = vcmp.lt.s32.totalorder %v285, 0
  %vm774 = vcmp.lt.s32.totalorder %v292, 0
  %vm775 = vcmp.lt.s32.totalorder %v299, 0
  %vm776 = vcmp.lt.s32.totalorder %v306, 0
  %vm777 = vcmp.lt.s32.totalorder %v313, 0
  %vm778 = vcmp.lt.s32.totalorder %v320, 0
  %vm779 = vcmp.lt.s32.totalorder %v327, 0
  %vm780 = vcmp.lt.s32.totalorder %v334, 0
  %vm781 = vcmp.lt.s32.totalorder %v341, 0
  %vm782 = vcmp.lt.s32.totalorder %v348, 0
  %vm783 = vcmp.lt.s32.totalorder %v355, 0
  %vm784 = vcmp.lt.s32.totalorder %v362, 0
  %vm785 = vcmp.lt.s32.totalorder %v369, 0
  %vm786 = vcmp.lt.s32.totalorder %v376, 0
  %vm787 = vcmp.lt.s32.totalorder %v383, 0
  %vm788 = vcmp.lt.s32.totalorder %v390, 0
  %vm789 = vcmp.lt.s32.totalorder %v397, 0
  %vm790 = vcmp.lt.s32.totalorder %v404, 0
  %vm791 = vcmp.lt.s32.totalorder %v411, 0
  %vm792 = vcmp.lt.s32.totalorder %v418, 0
  %vm793 = vcmp.lt.s32.totalorder %v425, 0
  %vm794 = vcmp.lt.s32.totalorder %v432, 0
  %vm795 = vcmp.lt.s32.totalorder %v439, 0
  %vm796 = vcmp.lt.s32.totalorder %v446, 0
  %vm797 = vcmp.lt.s32.totalorder %v453, 0
  %vm798 = vcmp.lt.s32.totalorder %v460, 0
  %vm799 = vcmp.lt.s32.totalorder %v467, 0
  %vm800 = vcmp.lt.s32.totalorder %v474, 0
  %vm801 = vcmp.lt.s32.totalorder %v481, 0
  %vm802 = vcmp.lt.s32.totalorder %v488, 0
  %vm803 = vcmp.lt.s32.totalorder %v495, 0
  %vm804 = vcmp.lt.s32.totalorder %v502, 0
  %vm805 = vcmp.lt.s32.totalorder %v509, 0
  %vm806 = vcmp.lt.s32.totalorder %v516, 0
  %vm807 = vcmp.lt.s32.totalorder %v523, 0
  %vm808 = vcmp.lt.s32.totalorder %v530, 0
  %vm809 = vcmp.lt.s32.totalorder %v537, 0
  %vm810 = vcmp.lt.s32.totalorder %v544, 0
  %vm811 = vcmp.lt.s32.totalorder %v551, 0
  %vm812 = vcmp.lt.s32.totalorder %v558, 0
  %vm813 = vcmp.lt.s32.totalorder %v565, 0
  %vm814 = vcmp.lt.s32.totalorder %v572, 0
  %vm815 = vcmp.lt.s32.totalorder %v579, 0
  %vm816 = vcmp.lt.s32.totalorder %v586, 0
  %vm817 = vcmp.lt.s32.totalorder %v593, 0
  %vm818 = vcmp.lt.s32.totalorder %v600, 0
  %vm819 = vcmp.lt.s32.totalorder %v607, 0
  %vm820 = vcmp.lt.s32.totalorder %v614, 0
  %vm821 = vcmp.lt.s32.totalorder %v621, 0
  %vm822 = vcmp.lt.s32.totalorder %v628, 0
  %vm823 = vcmp.lt.s32.totalorder %v635, 0
  %vm824 = vcmp.lt.s32.totalorder %v642, 0
  %vm825 = vcmp.lt.s32.totalorder %v649, 0
  %vm826 = vcmp.lt.s32.totalorder %v656, 0
  %vm827 = vcmp.lt.s32.totalorder %v663, 0
  %vm828 = vcmp.lt.s32.totalorder %v670, 0
  %vm829 = vcmp.lt.s32.totalorder %v677, 0
  %vm830 = vcmp.lt.s32.totalorder %v684, 0
  %vm831 = vcmp.lt.s32.totalorder %v691, 0
  %vm832 = vcmp.lt.s32.totalorder %v698, 0
  %vm833 = vcmp.lt.s32.totalorder %v705, 0
  %vm834 = vmand %vm770, %vm706
  %vm835 = vmand %vm771, %vm707
  %vm836 = vmand %vm772, %vm708
  %vm837 = vmand %vm773, %vm709
  %vm838 = vmand %vm774, %vm710
  %vm839 = vmand %vm775, %vm711
  %vm840 = vmand %vm776, %vm712
  %vm841 = vmand %vm777, %vm713
  %vm842 = vmand %vm778, %vm714
  %vm843 = vmand %vm779, %vm715
  %vm844 = vmand %vm780, %vm716
  %vm845 = vmand %vm781, %vm717
  %vm846 = vmand %vm782, %vm718
  %vm847 = vmand %vm783, %vm719
  %vm848 = vmand %vm784, %vm720
  %vm849 = vmand %vm785, %vm721
  %vm850 = vmand %vm786, %vm722
  %vm851 = vmand %vm787, %vm723
  %vm852 = vmand %vm788, %vm724
  %vm853 = vmand %vm789, %vm725
  %vm854 = vmand %vm790, %vm726
  %vm855 = vmand %vm791, %vm727
  %vm856 = vmand %vm792, %vm728
  %vm857 = vmand %vm793, %vm729
  %vm858 = vmand %vm794, %vm730
  %vm859 = vmand %vm795, %vm731
  %vm860 = vmand %vm796, %vm732
  %vm861 = vmand %vm797, %vm733
  %vm862 = vmand %vm798, %vm734
  %vm863 = vmand %vm799, %vm735
  %vm864 = vmand %vm800, %vm736
  %vm865 = vmand %vm801, %vm737
  %vm866 = vmand %vm802, %vm738
  %vm867 = vmand %vm803, %vm739
  %vm868 = vmand %vm804, %vm740
  %vm869 = vmand %vm805, %vm741
  %vm870 = vmand %vm806, %vm742
  %vm871 = vmand %vm807, %vm743
  %vm872 = vmand %vm808, %vm744
  %vm873 = vmand %vm809, %vm745
  %vm874 = vmand %vm810, %vm746
  %vm875 = vmand %vm811, %vm747
  %vm876 = vmand %vm812, %vm748
  %vm877 = vmand %vm813, %vm749
  %vm878 = vmand %vm814, %vm750
  %vm879 = vmand %vm815, %vm751
  %vm880 = vmand %vm816, %vm752
  %vm881 = vmand %vm817, %vm753
  %vm882 = vmand %vm818, %vm754
  %vm883 = vmand %vm819, %vm755
  %vm884 = vmand %vm820, %vm756
  %vm885 = vmand %vm821, %vm757
  %vm886 = vmand %vm822, %vm758
  %vm887 = vmand %vm823, %vm759
  %vm888 = vmand %vm824, %vm760
  %vm889 = vmand %vm825, %vm761
  %vm890 = vmand %vm826, %vm762
  %vm891 = vmand %vm827, %vm763
  %vm892 = vmand %vm828, %vm764
  %vm893 = vmand %vm829, %vm765
  %vm894 = vmand %vm830, %vm766
  %vm895 = vmand %vm831, %vm767
  %vm896 = vmand %vm832, %vm768
  %vm897 = vmand %vm833, %vm769
  %v898 = vadd.s32 %v264, 16
  %v899 = vadd.s32 %v271, 16
  %v900 = vadd.s32 %v278, 16
  %v901 = vadd.s32 %v285, 16
  %v902 = vadd.s32 %v292, 16
  %v903 = vadd.s32 %v299, 16
  %v904 = vadd.s32 %v306, 16
  %v905 = vadd.s32 %v313, 16
  %v906 = vadd.s32 %v320, 16
  %v907 = vadd.s32 %v327, 16
  %v908 = vadd.s32 %v334, 16
  %v909 = vadd.s32 %v341, 16
  %v910 = vadd.s32 %v348, 16
  %v911 = vadd.s32 %v355, 16
  %v912 = vadd.s32 %v362, 16
  %v913 = vadd.s32 %v369, 16
  %v914 = vadd.s32 %v376, 16
  %v915 = vadd.s32 %v383, 16
  %v916 = vadd.s32 %v390, 16
  %v917 = vadd.s32 %v397, 16
  %v918 = vadd.s32 %v404, 16
  %v919 = vadd.s32 %v411, 16
  %v920 = vadd.s32 %v418, 16
  %v921 = vadd.s32 %v425, 16
  %v922 = vadd.s32 %v432, 16
  %v923 = vadd.s32 %v439, 16
  %v924 = vadd.s32 %v446, 16
  %v925 = vadd.s32 %v453, 16
  %v926 = vadd.s32 %v460, 16
  %v927 = vadd.s32 %v467, 16
  %v928 = vadd.s32 %v474, 16
  %v929 = vadd.s32 %v481, 16
  %v930 = vadd.s32 %v488, 16
  %v931 = vadd.s32 %v495, 16
  %v932 = vadd.s32 %v502, 16
  %v933 = vadd.s32 %v509, 16
  %v934 = vadd.s32 %v516, 16
  %v935 = vadd.s32 %v523, 16
  %v936 = vadd.s32 %v530, 16
  %v937 = vadd.s32 %v537, 16
  %v938 = vadd.s32 %v544, 16
  %v939 = vadd.s32 %v551, 16
  %v940 = vadd.s32 %v558, 16
  %v941 = vadd.s32 %v565, 16
  %v942 = vadd.s32 %v572, 16
  %v943 = vadd.s32 %v579, 16
  %v944 = vadd.s32 %v586, 16
  %v945 = vadd.s32 %v593, 16
  %v946 = vadd.s32 %v600, 16
  %v947 = vadd.s32 %v607, 16
  %v948 = vadd.s32 %v614, 16
  %v949 = vadd.s32 %v621, 16
  %v950 = vadd.s32 %v628, 16
  %v951 = vadd.s32 %v635, 16
  %v952 = vadd.s32 %v642, 16
  %v953 = vadd.s32 %v649, 16
  %v954 = vadd.s32 %v656, 16
  %v955 = vadd.s32 %v663, 16
  %v956 = vadd.s32 %v670, 16
  %v957 = vadd.s32 %v677, 16
  %v958 = vadd.s32 %v684, 16
  %v959 = vadd.s32 %v691, 16
  %v960 = vadd.s32 %v698, 16
  %v961 = vadd.s32 %v705, 16
  %v962 = vsel %vm834, %v898, %v264
  %v963 = vsel %vm835, %v899, %v271
  %v964 = vsel %vm836, %v900, %v278
  %v965 = vsel %vm837, %v901, %v285
  %v966 = vsel %vm838, %v902, %v292
  %v967 = vsel %vm839, %v903, %v299
  %v968 = vsel %vm840, %v904, %v306
  %v969 = vsel %vm841, %v905, %v313
  %v970 = vsel %vm842, %v906, %v320
  %v971 = vsel %vm843, %v907, %v327
  %v972 = vsel %vm844, %v908, %v334
  %v973 = vsel %vm845, %v909, %v341
  %v974 = vsel %vm846, %v910, %v348
  %v975 = vsel %vm847, %v911, %v355
  %v976 = vsel %vm848, %v912, %v362
  %v977 = vsel %vm849, %v913, %v369
  %v978 = vsel %vm850, %v914, %v376
  %v979 = vsel %vm851, %v915, %v383
  %v980 = vsel %vm852, %v916, %v390
  %v981 = vsel %vm853, %v917, %v397
  %v982 = vsel %vm854, %v918, %v404
  %v983 = vsel %vm855, %v919, %v411
  %v984 = vsel %vm856, %v920, %v418
  %v985 = vsel %vm857, %v921, %v425
  %v986 = vsel %vm858, %v922, %v432
  %v987 = vsel %vm859, %v923, %v439
  %v988 = vsel %vm860, %v924, %v446
  %v989 = vsel %vm861, %v925, %v453
  %v990 = vsel %vm862, %v926, %v460
  %v991 = vsel %vm863, %v927, %v467
  %v992 = vsel %vm864, %v928, %v474
  %v993 = vsel %vm865, %v929, %v481
  %v994 = vsel %vm866, %v930, %v488
  %v995 = vsel %vm867, %v931, %v495
  %v996 = vsel %vm868, %v932, %v502
  %v997 = vsel %vm869, %v933, %v509
  %v998 = vsel %vm870, %v934, %v516
  %v999 = vsel %vm871, %v935, %v523
  %v1000 = vsel %vm872, %v936, %v530
  %v1001 = vsel %vm873, %v937, %v537
  %v1002 = vsel %vm874, %v938, %v544
  %v1003 = vsel %vm875, %v939, %v551
  %v1004 = vsel %vm876, %v940, %v558
  %v1005 = vsel %vm877, %v941, %v565
  %v1006 = vsel %vm878, %v942, %v572
  %v1007 = vsel %vm879, %v943, %v579
  %v1008 = vsel %vm880, %v944, %v586
  %v1009 = vsel %vm881, %v945, %v593
  %v1010 = vsel %vm882, %v946, %v600
  %v1011 = vsel %vm883, %v947, %v607
  %v1012 = vsel %vm884, %v948, %v614
  %v1013 = vsel %vm885, %v949, %v621
  %v1014 = vsel %vm886, %v950, %v628
  %v1015 = vsel %vm887, %v951, %v635
  %v1016 = vsel %vm888, %v952, %v642
  %v1017 = vsel %vm889, %v953, %v649
  %v1018 = vsel %vm890, %v954, %v656
  %v1019 = vsel %vm891, %v955, %v663
  %v1020 = vsel %vm892, %v956, %v670
  %v1021 = vsel %vm893, %v957, %v677
  %v1022 = vsel %vm894, %v958, %v684
  %v1023 = vsel %vm895, %v959, %v691
  %v1024 = vsel %vm896, %v960, %v698
  %v1025 = vsel %vm897, %v961, %v705
  %vm1026 = vcmp.ne.s32.totalorder %v962, 0
  %vm1027 = vcmp.ne.s32.totalorder %v963, 0
  %vm1028 = vcmp.ne.s32.totalorder %v964, 0
  %vm1029 = vcmp.ne.s32.totalorder %v965, 0
  %vm1030 = vcmp.ne.s32.totalorder %v966, 0
  %vm1031 = vcmp.ne.s32.totalorder %v967, 0
  %vm1032 = vcmp.ne.s32.totalorder %v968, 0
  %vm1033 = vcmp.ne.s32.totalorder %v969, 0
  %vm1034 = vcmp.ne.s32.totalorder %v970, 0
  %vm1035 = vcmp.ne.s32.totalorder %v971, 0
  %vm1036 = vcmp.ne.s32.totalorder %v972, 0
  %vm1037 = vcmp.ne.s32.totalorder %v973, 0
  %vm1038 = vcmp.ne.s32.totalorder %v974, 0
  %vm1039 = vcmp.ne.s32.totalorder %v975, 0
  %vm1040 = vcmp.ne.s32.totalorder %v976, 0
  %vm1041 = vcmp.ne.s32.totalorder %v977, 0
  %vm1042 = vcmp.ne.s32.totalorder %v978, 0
  %vm1043 = vcmp.ne.s32.totalorder %v979, 0
  %vm1044 = vcmp.ne.s32.totalorder %v980, 0
  %vm1045 = vcmp.ne.s32.totalorder %v981, 0
  %vm1046 = vcmp.ne.s32.totalorder %v982, 0
  %vm1047 = vcmp.ne.s32.totalorder %v983, 0
  %vm1048 = vcmp.ne.s32.totalorder %v984, 0
  %vm1049 = vcmp.ne.s32.totalorder %v985, 0
  %vm1050 = vcmp.ne.s32.totalorder %v986, 0
  %vm1051 = vcmp.ne.s32.totalorder %v987, 0
  %vm1052 = vcmp.ne.s32.totalorder %v988, 0
  %vm1053 = vcmp.ne.s32.totalorder %v989, 0
  %vm1054 = vcmp.ne.s32.totalorder %v990, 0
  %vm1055 = vcmp.ne.s32.totalorder %v991, 0
  %vm1056 = vcmp.ne.s32.totalorder %v992, 0
  %vm1057 = vcmp.ne.s32.totalorder %v993, 0
  %vm1058 = vcmp.ne.s32.totalorder %v994, 0
  %vm1059 = vcmp.ne.s32.totalorder %v995, 0
  %vm1060 = vcmp.ne.s32.totalorder %v996, 0
  %vm1061 = vcmp.ne.s32.totalorder %v997, 0
  %vm1062 = vcmp.ne.s32.totalorder %v998, 0
  %vm1063 = vcmp.ne.s32.totalorder %v999, 0
  %vm1064 = vcmp.ne.s32.totalorder %v1000, 0
  %vm1065 = vcmp.ne.s32.totalorder %v1001, 0
  %vm1066 = vcmp.ne.s32.totalorder %v1002, 0
  %vm1067 = vcmp.ne.s32.totalorder %v1003, 0
  %vm1068 = vcmp.ne.s32.totalorder %v1004, 0
  %vm1069 = vcmp.ne.s32.totalorder %v1005, 0
  %vm1070 = vcmp.ne.s32.totalorder %v1006, 0
  %vm1071 = vcmp.ne.s32.totalorder %v1007, 0
  %vm1072 = vcmp.ne.s32.totalorder %v1008, 0
  %vm1073 = vcmp.ne.s32.totalorder %v1009, 0
  %vm1074 = vcmp.ne.s32.totalorder %v1010, 0
  %vm1075 = vcmp.ne.s32.totalorder %v1011, 0
  %vm1076 = vcmp.ne.s32.totalorder %v1012, 0
  %vm1077 = vcmp.ne.s32.totalorder %v1013, 0
  %vm1078 = vcmp.ne.s32.totalorder %v1014, 0
  %vm1079 = vcmp.ne.s32.totalorder %v1015, 0
  %vm1080 = vcmp.ne.s32.totalorder %v1016, 0
  %vm1081 = vcmp.ne.s32.totalorder %v1017, 0
  %vm1082 = vcmp.ne.s32.totalorder %v1018, 0
  %vm1083 = vcmp.ne.s32.totalorder %v1019, 0
  %vm1084 = vcmp.ne.s32.totalorder %v1020, 0
  %vm1085 = vcmp.ne.s32.totalorder %v1021, 0
  %vm1086 = vcmp.ne.s32.totalorder %v1022, 0
  %vm1087 = vcmp.ne.s32.totalorder %v1023, 0
  %vm1088 = vcmp.ne.s32.totalorder %v1024, 0
  %vm1089 = vcmp.ne.s32.totalorder %v1025, 0
  %vm1090 = vcmp.ne.s32.totalorder %v962, 15
  %vm1091 = vcmp.ne.s32.totalorder %v963, 15
  %vm1092 = vcmp.ne.s32.totalorder %v964, 15
  %vm1093 = vcmp.ne.s32.totalorder %v965, 15
  %vm1094 = vcmp.ne.s32.totalorder %v966, 15
  %vm1095 = vcmp.ne.s32.totalorder %v967, 15
  %vm1096 = vcmp.ne.s32.totalorder %v968, 15
  %vm1097 = vcmp.ne.s32.totalorder %v969, 15
  %vm1098 = vcmp.ne.s32.totalorder %v970, 15
  %vm1099 = vcmp.ne.s32.totalorder %v971, 15
  %vm1100 = vcmp.ne.s32.totalorder %v972, 15
  %vm1101 = vcmp.ne.s32.totalorder %v973, 15
  %vm1102 = vcmp.ne.s32.totalorder %v974, 15
  %vm1103 = vcmp.ne.s32.totalorder %v975, 15
  %vm1104 = vcmp.ne.s32.totalorder %v976, 15
  %vm1105 = vcmp.ne.s32.totalorder %v977, 15
  %vm1106 = vcmp.ne.s32.totalorder %v978, 15
  %vm1107 = vcmp.ne.s32.totalorder %v979, 15
  %vm1108 = vcmp.ne.s32.totalorder %v980, 15
  %vm1109 = vcmp.ne.s32.totalorder %v981, 15
  %vm1110 = vcmp.ne.s32.totalorder %v982, 15
  %vm1111 = vcmp.ne.s32.totalorder %v983, 15
  %vm1112 = vcmp.ne.s32.totalorder %v984, 15
  %vm1113 = vcmp.ne.s32.totalorder %v985, 15
  %vm1114 = vcmp.ne.s32.totalorder %v986, 15
  %vm1115 = vcmp.ne.s32.totalorder %v987, 15
  %vm1116 = vcmp.ne.s32.totalorder %v988, 15
  %vm1117 = vcmp.ne.s32.totalorder %v989, 15
  %vm1118 = vcmp.ne.s32.totalorder %v990, 15
  %vm1119 = vcmp.ne.s32.totalorder %v991, 15
  %vm1120 = vcmp.ne.s32.totalorder %v992, 15
  %vm1121 = vcmp.ne.s32.totalorder %v993, 15
  %vm1122 = vcmp.ne.s32.totalorder %v994, 15
  %vm1123 = vcmp.ne.s32.totalorder %v995, 15
  %vm1124 = vcmp.ne.s32.totalorder %v996, 15
  %vm1125 = vcmp.ne.s32.totalorder %v997, 15
  %vm1126 = vcmp.ne.s32.totalorder %v998, 15
  %vm1127 = vcmp.ne.s32.totalorder %v999, 15
  %vm1128 = vcmp.ne.s32.totalorder %v1000, 15
  %vm1129 = vcmp.ne.s32.totalorder %v1001, 15
  %vm1130 = vcmp.ne.s32.totalorder %v1002, 15
  %vm1131 = vcmp.ne.s32.totalorder %v1003, 15
  %vm1132 = vcmp.ne.s32.totalorder %v1004, 15
  %vm1133 = vcmp.ne.s32.totalorder %v1005, 15
  %vm1134 = vcmp.ne.s32.totalorder %v1006, 15
  %vm1135 = vcmp.ne.s32.totalorder %v1007, 15
  %vm1136 = vcmp.ne.s32.totalorder %v1008, 15
  %vm1137 = vcmp.ne.s32.totalorder %v1009, 15
  %vm1138 = vcmp.ne.s32.totalorder %v1010, 15
  %vm1139 = vcmp.ne.s32.totalorder %v1011, 15
  %vm1140 = vcmp.ne.s32.totalorder %v1012, 15
  %vm1141 = vcmp.ne.s32.totalorder %v1013, 15
  %vm1142 = vcmp.ne.s32.totalorder %v1014, 15
  %vm1143 = vcmp.ne.s32.totalorder %v1015, 15
  %vm1144 = vcmp.ne.s32.totalorder %v1016, 15
  %vm1145 = vcmp.ne.s32.totalorder %v1017, 15
  %vm1146 = vcmp.ne.s32.totalorder %v1018, 15
  %vm1147 = vcmp.ne.s32.totalorder %v1019, 15
  %vm1148 = vcmp.ne.s32.totalorder %v1020, 15
  %vm1149 = vcmp.ne.s32.totalorder %v1021, 15
  %vm1150 = vcmp.ne.s32.totalorder %v1022, 15
  %vm1151 = vcmp.ne.s32.totalorder %v1023, 15
  %vm1152 = vcmp.ne.s32.totalorder %v1024, 15
  %vm1153 = vcmp.ne.s32.totalorder %v1025, 15
  %v1154 = vld [vmem:[#allocation2] sm:$0xff]
  %v1155 = vld [vmem:[#allocation2 + $0x8] sm:$0xff]
  %v1156 = vld [vmem:[#allocation2 + $0x10] sm:$0xff]
  %v1157 = vld [vmem:[#allocation2 + $0x18] sm:$0xff]
  %v1158 = vld [vmem:[#allocation2 + $0x20] sm:$0xff]
  %v1159 = vld [vmem:[#allocation2 + $0x28] sm:$0xff]
  %v1160 = vld [vmem:[#allocation2 + $0x30] sm:$0xff]
  %v1161 = vld [vmem:[#allocation2 + $0x38] sm:$0xff]
  %v1162 = vld [vmem:[#allocation2 + $0x40] sm:$0xff]
  %v1163 = vld [vmem:[#allocation2 + $0x48] sm:$0xff]
  %v1164 = vld [vmem:[#allocation2 + $0x50] sm:$0xff]
  %v1165 = vld [vmem:[#allocation2 + $0x58] sm:$0xff]
  %v1166 = vld [vmem:[#allocation2 + $0x60] sm:$0xff]
  %v1167 = vld [vmem:[#allocation2 + $0x68] sm:$0xff]
  %v1168 = vld [vmem:[#allocation2 + $0x70] sm:$0xff]
  %v1169 = vld [vmem:[#allocation2 + $0x78] sm:$0xff]
  %v1170 = vld [vmem:[#allocation2 + $0x80] sm:$0xff]
  %v1171 = vld [vmem:[#allocation2 + $0x88] sm:$0xff]
  %v1172 = vld [vmem:[#allocation2 + $0x90] sm:$0xff]
  %v1173 = vld [vmem:[#allocation2 + $0x98] sm:$0xff]
  %v1174 = vld [vmem:[#allocation2 + $0xa0] sm:$0xff]
  %v1175 = vld [vmem:[#allocation2 + $0xa8] sm:$0xff]
  %v1176 = vld [vmem:[#allocation2 + $0xb0] sm:$0xff]
  %v1177 = vld [vmem:[#allocation2 + $0xb8] sm:$0xff]
  %v1178 = vld [vmem:[#allocation2 + $0xc0] sm:$0xff]
  %v1179 = vld [vmem:[#allocation2 + $0xc8] sm:$0xff]
  %v1180 = vld [vmem:[#allocation2 + $0xd0] sm:$0xff]
  %v1181 = vld [vmem:[#allocation2 + $0xd8] sm:$0xff]
  %v1182 = vld [vmem:[#allocation2 + $0xe0] sm:$0xff]
  %v1183 = vld [vmem:[#allocation2 + $0xe8] sm:$0xff]
  %v1184 = vld [vmem:[#allocation2 + $0xf0] sm:$0xff]
  %v1185 = vld [vmem:[#allocation2 + $0xf8] sm:$0xff]
  %v1186 = vld [vmem:[#allocation2 + $0x128] sm:$0xff]
  %v1187 = vld [vmem:[#allocation2 + $0x130] sm:$0xff]
  %v1188 = vld [vmem:[#allocation2 + $0x138] sm:$0xff]
  %v1189 = vld [vmem:[#allocation2 + $0x140] sm:$0xff]
  %v1190 = vld [vmem:[#allocation2 + $0x148] sm:$0xff]
  %v1191 = vld [vmem:[#allocation2 + $0x150] sm:$0xff]
  %v1192 = vld [vmem:[#allocation2 + $0x158] sm:$0xff]
  %v1193 = vld [vmem:[#allocation2 + $0x160] sm:$0xff]
  %v1194 = vld [vmem:[#allocation2 + $0x168] sm:$0xff]
  %v1195 = vld [vmem:[#allocation2 + $0x170] sm:$0xff]
  %v1196 = vld [vmem:[#allocation2 + $0x178] sm:$0xff]
  %v1197 = vld [vmem:[#allocation2 + $0x180] sm:$0xff]
  %v1198 = vld [vmem:[#allocation2 + $0x188] sm:$0xff]
  %v1199 = vld [vmem:[#allocation2 + $0x190] sm:$0xff]
  %v1200 = vld [vmem:[#allocation2 + $0x198] sm:$0xff]
  %v1201 = vld [vmem:[#allocation2 + $0x1a0] sm:$0xff]
  %v1202 = vld [vmem:[#allocation2 + $0x1a8] sm:$0xff]
  %v1203 = vld [vmem:[#allocation2 + $0x1b0] sm:$0xff]
  %v1204 = vld [vmem:[#allocation2 + $0x1b8] sm:$0xff]
  %v1205 = vld [vmem:[#allocation2 + $0x1c0] sm:$0xff]
  %v1206 = vld [vmem:[#allocation2 + $0x1c8] sm:$0xff]
  %v1207 = vld [vmem:[#allocation2 + $0x1d0] sm:$0xff]
  %v1208 = vld [vmem:[#allocation2 + $0x1d8] sm:$0xff]
  %v1209 = vld [vmem:[#allocation2 + $0x1e0] sm:$0xff]
  %v1210 = vld [vmem:[#allocation2 + $0x1e8] sm:$0xff]
  %v1211 = vld [vmem:[#allocation2 + $0x1f0] sm:$0xff]
  %v1212 = vld [vmem:[#allocation2 + $0x1f8] sm:$0xff]
  %v1213 = vld [vmem:[#allocation2 + $0x200] sm:$0xff]
  %v1214 = vld [vmem:[#allocation2 + $0x208] sm:$0xff]
  %v1215 = vld [vmem:[#allocation2 + $0x210] sm:$0xff]
  %v1216 = vld [vmem:[#allocation2 + $0x218] sm:$0xff]
  %v1217 = vld [vmem:[#allocation2 + $0x220] sm:$0xff]
  %v1218 = vsel %vm1026, %v1154, 0.0
  %v1219 = vsel %vm1027, %v1155, 0.0
  %v1220 = vsel %vm1028, %v1156, 0.0
  %v1221 = vsel %vm1029, %v1157, 0.0
  %v1222 = vsel %vm1030, %v1158, 0.0
  %v1223 = vsel %vm1031, %v1159, 0.0
  %v1224 = vsel %vm1032, %v1160, 0.0
  %v1225 = vsel %vm1033, %v1161, 0.0
  %v1226 = vsel %vm1034, %v1162, 0.0
  %v1227 = vsel %vm1035, %v1163, 0.0
  %v1228 = vsel %vm1036, %v1164, 0.0
  %v1229 = vsel %vm1037, %v1165, 0.0
  %v1230 = vsel %vm1038, %v1166, 0.0
  %v1231 = vsel %vm1039, %v1167, 0.0
  %v1232 = vsel %vm1040, %v1168, 0.0
  %v1233 = vsel %vm1041, %v1169, 0.0
  %v1234 = vsel %vm1042, %v1170, 0.0
  %v1235 = vsel %vm1043, %v1171, 0.0
  %v1236 = vsel %vm1044, %v1172, 0.0
  %v1237 = vsel %vm1045, %v1173, 0.0
  %v1238 = vsel %vm1046, %v1174, 0.0
  %v1239 = vsel %vm1047, %v1175, 0.0
  %v1240 = vsel %vm1048, %v1176, 0.0
  %v1241 = vsel %vm1049, %v1177, 0.0
  %v1242 = vsel %vm1050, %v1178, 0.0
  %v1243 = vsel %vm1051, %v1179, 0.0
  %v1244 = vsel %vm1052, %v1180, 0.0
  %v1245 = vsel %vm1053, %v1181, 0.0
  %v1246 = vsel %vm1054, %v1182, 0.0
  %v1247 = vsel %vm1055, %v1183, 0.0
  %v1248 = vsel %vm1056, %v1184, 0.0
  %v1249 = vsel %vm1057, %v1185, 0.0
  %v1250 = vsel %vm1058, %v1186, 0.0
  %v1251 = vsel %vm1059, %v1187, 0.0
  %v1252 = vsel %vm1060, %v1188, 0.0
  %v1253 = vsel %vm1061, %v1189, 0.0
  %v1254 = vsel %vm1062, %v1190, 0.0
  %v1255 = vsel %vm1063, %v1191, 0.0
  %v1256 = vsel %vm1064, %v1192, 0.0
  %v1257 = vsel %vm1065, %v1193, 0.0
  %v1258 = vsel %vm1066, %v1194, 0.0
  %v1259 = vsel %vm1067, %v1195, 0.0
  %v1260 = vsel %vm1068, %v1196, 0.0
  %v1261 = vsel %vm1069, %v1197, 0.0
  %v1262 = vsel %vm1070, %v1198, 0.0
  %v1263 = vsel %vm1071, %v1199, 0.0
  %v1264 = vsel %vm1072, %v1200, 0.0
  %v1265 = vsel %vm1073, %v1201, 0.0
  %v1266 = vsel %vm1074, %v1202, 0.0
  %v1267 = vsel %vm1075, %v1203, 0.0
  %v1268 = vsel %vm1076, %v1204, 0.0
  %v1269 = vsel %vm1077, %v1205, 0.0
  %v1270 = vsel %vm1078, %v1206, 0.0
  %v1271 = vsel %vm1079, %v1207, 0.0
  %v1272 = vsel %vm1080, %v1208, 0.0
  %v1273 = vsel %vm1081, %v1209, 0.0
  %v1274 = vsel %vm1082, %v1210, 0.0
  %v1275 = vsel %vm1083, %v1211, 0.0
  %v1276 = vsel %vm1084, %v1212, 0.0
  %v1277 = vsel %vm1085, %v1213, 0.0
  %v1278 = vsel %vm1086, %v1214, 0.0
  %v1279 = vsel %vm1087, %v1215, 0.0
  %v1280 = vsel %vm1088, %v1216, 0.0
  %v1281 = vsel %vm1089, %v1217, 0.0
  %v1282 = vld [vmem:[%s1] sm:$0xff]
  %v1283 = vld [vmem:[#allocation2 + $0x1] sm:$0xff]
  %v1284 = vld [vmem:[#allocation2 + $0x9] sm:$0xff]
  %v1285 = vld [vmem:[#allocation2 + $0x11] sm:$0xff]
  %v1286 = vld [vmem:[#allocation2 + $0x19] sm:$0xff]
  %v1287 = vld [vmem:[#allocation2 + $0x21] sm:$0xff]
  %v1288 = vld [vmem:[#allocation2 + $0x29] sm:$0xff]
  %v1289 = vld [vmem:[#allocation2 + $0x31] sm:$0xff]
  %v1290 = vld [vmem:[#allocation2 + $0x39] sm:$0xff]
  %v1291 = vld [vmem:[#allocation2 + $0x41] sm:$0xff]
  %v1292 = vld [vmem:[#allocation2 + $0x49] sm:$0xff]
  %v1293 = vld [vmem:[#allocation2 + $0x51] sm:$0xff]
  %v1294 = vld [vmem:[#allocation2 + $0x59] sm:$0xff]
  %v1295 = vld [vmem:[#allocation2 + $0x61] sm:$0xff]
  %v1296 = vld [vmem:[#allocation2 + $0x69] sm:$0xff]
  %v1297 = vld [vmem:[#allocation2 + $0x71] sm:$0xff]
  %v1298 = vld [vmem:[#allocation2 + $0x79] sm:$0xff]
  %v1299 = vld [vmem:[#allocation2 + $0x81] sm:$0xff]
  %v1300 = vld [vmem:[#allocation2 + $0x89] sm:$0xff]
  %v1301 = vld [vmem:[#allocation2 + $0x91] sm:$0xff]
  %v1302 = vld [vmem:[#allocation2 + $0x99] sm:$0xff]
  %v1303 = vld [vmem:[#allocation2 + $0xa1] sm:$0xff]
  %v1304 = vld [vmem:[#allocation2 + $0xa9] sm:$0xff]
  %v1305 = vld [vmem:[#allocation2 + $0xb1] sm:$0xff]
  %v1306 = vld [vmem:[#allocation2 + $0xb9] sm:$0xff]
  %v1307 = vld [vmem:[#allocation2 + $0xc1] sm:$0xff]
  %v1308 = vld [vmem:[#allocation2 + $0xc9] sm:$0xff]
  %v1309 = vld [vmem:[#allocation2 + $0xd1] sm:$0xff]
  %v1310 = vld [vmem:[#allocation2 + $0xd9] sm:$0xff]
  %v1311 = vld [vmem:[#allocation2 + $0xe1] sm:$0xff]
  %v1312 = vld [vmem:[#allocation2 + $0xe9] sm:$0xff]
  %v1313 = vld [vmem:[#allocation2 + $0xf1] sm:$0xff]
  %v1314 = vld [vmem:[#allocation2 + $0xf9] sm:$0xff]
  %v1315 = vld [vmem:[#allocation2 + $0x129] sm:$0xff]
  %v1316 = vld [vmem:[#allocation2 + $0x131] sm:$0xff]
  %v1317 = vld [vmem:[#allocation2 + $0x139] sm:$0xff]
  %v1318 = vld [vmem:[#allocation2 + $0x141] sm:$0xff]
  %v1319 = vld [vmem:[#allocation2 + $0x149] sm:$0xff]
  %v1320 = vld [vmem:[#allocation2 + $0x151] sm:$0xff]
  %v1321 = vld [vmem:[#allocation2 + $0x159] sm:$0xff]
  %v1322 = vld [vmem:[#allocation2 + $0x161] sm:$0xff]
  %v1323 = vld [vmem:[#allocation2 + $0x169] sm:$0xff]
  %v1324 = vld [vmem:[#allocation2 + $0x171] sm:$0xff]
  %v1325 = vld [vmem:[#allocation2 + $0x179] sm:$0xff]
  %v1326 = vld [vmem:[#allocation2 + $0x181] sm:$0xff]
  %v1327 = vld [vmem:[#allocation2 + $0x189] sm:$0xff]
  %v1328 = vld [vmem:[#allocation2 + $0x191] sm:$0xff]
  %v1329 = vld [vmem:[#allocation2 + $0x199] sm:$0xff]
  %v1330 = vld [vmem:[#allocation2 + $0x1a1] sm:$0xff]
  %v1331 = vld [vmem:[#allocation2 + $0x1a9] sm:$0xff]
  %v1332 = vld [vmem:[#allocation2 + $0x1b1] sm:$0xff]
  %v1333 = vld [vmem:[#allocation2 + $0x1b9] sm:$0xff]
  %v1334 = vld [vmem:[#allocation2 + $0x1c1] sm:$0xff]
  %v1335 = vld [vmem:[#allocation2 + $0x1c9] sm:$0xff]
  %v1336 = vld [vmem:[#allocation2 + $0x1d1] sm:$0xff]
  %v1337 = vld [vmem:[#allocation2 + $0x1d9] sm:$0xff]
  %v1338 = vld [vmem:[#allocation2 + $0x1e1] sm:$0xff]
  %v1339 = vld [vmem:[#allocation2 + $0x1e9] sm:$0xff]
  %v1340 = vld [vmem:[#allocation2 + $0x1f1] sm:$0xff]
  %v1341 = vld [vmem:[#allocation2 + $0x1f9] sm:$0xff]
  %v1342 = vld [vmem:[#allocation2 + $0x201] sm:$0xff]
  %v1343 = vld [vmem:[#allocation2 + $0x209] sm:$0xff]
  %v1344 = vld [vmem:[#allocation2 + $0x211] sm:$0xff]
  %v1345 = vld [vmem:[#allocation2 + $0x219] sm:$0xff]
  %v1346 = vld [vmem:[#allocation2 + $0x221] sm:$0xff]
  %s1347 = scalar_lea.vmem %s1, 8
  %v1348 = vld [vmem:[%s1347] sm:$0xff]
  %v1350 = vsel %vm32, %v1283, 0
  %v1353 = vsel %vm32, %v1284, 0
  %v1356 = vsel %vm32, %v1285, 0
  %v1359 = vsel %vm32, %v1286, 0
  %v1362 = vsel %vm32, %v1287, 0
  %v1365 = vsel %vm32, %v1288, 0
  %v1368 = vsel %vm32, %v1289, 0
  %v1371 = vsel %vm32, %v1290, 0
  %v1374 = vsel %vm32, %v1291, 0
  %v1377 = vsel %vm32, %v1292, 0
  %v1380 = vsel %vm32, %v1293, 0
  %v1383 = vsel %vm32, %v1294, 0
  %v1386 = vsel %vm32, %v1295, 0
  %v1389 = vsel %vm32, %v1296, 0
  %v1392 = vsel %vm32, %v1297, 0
  %v1395 = vsel %vm32, %v1298, 0
  %v1398 = vsel %vm32, %v1299, 0
  %v1401 = vsel %vm32, %v1300, 0
  %v1404 = vsel %vm32, %v1301, 0
  %v1407 = vsel %vm32, %v1302, 0
  %v1410 = vsel %vm32, %v1303, 0
  %v1413 = vsel %vm32, %v1304, 0
  %v1416 = vsel %vm32, %v1305, 0
  %v1419 = vsel %vm32, %v1306, 0
  %v1422 = vsel %vm32, %v1307, 0
  %v1425 = vsel %vm32, %v1308, 0
  %v1428 = vsel %vm32, %v1309, 0
  %v1431 = vsel %vm32, %v1310, 0
  %v1434 = vsel %vm32, %v1311, 0
  %v1437 = vsel %vm32, %v1312, 0
  %v1440 = vsel %vm32, %v1313, 0
  %v1443 = vsel %vm32, %v1314, 0
  %v1446 = vsel %vm32, %v1315, 0
  %v1449 = vsel %vm32, %v1316, 0
  %v1452 = vsel %vm32, %v1317, 0
  %v1455 = vsel %vm32, %v1318, 0
  %v1458 = vsel %vm32, %v1319, 0
  %v1461 = vsel %vm32, %v1320, 0
  %v1464 = vsel %vm32, %v1321, 0
  %v1467 = vsel %vm32, %v1322, 0
  %v1470 = vsel %vm32, %v1323, 0
  %v1473 = vsel %vm32, %v1324, 0
  %v1476 = vsel %vm32, %v1325, 0
  %v1479 = vsel %vm32, %v1326, 0
  %v1482 = vsel %vm32, %v1327, 0
  %v1485 = vsel %vm32, %v1328, 0
  %v1488 = vsel %vm32, %v1329, 0
  %v1491 = vsel %vm32, %v1330, 0
  %v1494 = vsel %vm32, %v1331, 0
  %v1497 = vsel %vm32, %v1332, 0
  %v1500 = vsel %vm32, %v1333, 0
  %v1503 = vsel %vm32, %v1334, 0
  %v1506 = vsel %vm32, %v1335, 0
  %v1509 = vsel %vm32, %v1336, 0
  %v1512 = vsel %vm32, %v1337, 0
  %v1515 = vsel %vm32, %v1338, 0
  %v1518 = vsel %vm32, %v1339, 0
  %v1521 = vsel %vm32, %v1340, 0
  %v1524 = vsel %vm32, %v1341, 0
  %v1527 = vsel %vm32, %v1342, 0
  %v1530 = vsel %vm32, %v1343, 0
  %v1533 = vsel %vm32, %v1344, 0
  %v1536 = vsel %vm32, %v1345, 0
  %v1539 = vsel %vm32, %v1346, 0
  %1541 = vmatpush.msra.mxu0 0.0
  %1542 = vmatpush.msra.mxu0 0.0
  %1543 = vmatpush.msra.mxu0 0.0
  %1544 = vmatpush.msra.mxu0 0.0
  %1545 = vmatpush.msra.mxu0 0.0
  %1546 = vmatpush.msra.mxu0 0.0
  %1547 = vmatpush.msra.mxu0 0.0
  %1548 = vmatpush.msra.mxu0 0.0
  %1549 = vmatpush.msra.mxu0 0.0
  %1550 = vmatpush.msra.mxu0 0.0
  %1551 = vmatpush.msra.mxu0 0.0
  %1552 = vmatpush.msra.mxu0 0.0
  %1553 = vmatpush.msra.mxu0 0.0
  %1554 = vmatpush.msra.mxu0 0.0
  %1555 = vmatpush.msra.mxu0 0.0
  %1556 = vmatpush.msra.mxu0 %v1348
  %1557 = vmatmul.f32.gmra.mxu0 %v1350
  %v1558 = vpop.f32.mrf.mxu0
  %v1559 = vadd.f32 0.0, %v1558
  %1560 = vmatmul.f32.gmra.mxu0 %v1353
  %v1561 = vpop.f32.mrf.mxu0
  %v1562 = vadd.f32 0.0, %v1561
  %1563 = vmatmul.f32.gmra.mxu0 %v1356
  %v1564 = vpop.f32.mrf.mxu0
  %v1565 = vadd.f32 0.0, %v1564
  %1566 = vmatmul.f32.gmra.mxu0 %v1359
  %v1567 = vpop.f32.mrf.mxu0
  %v1568 = vadd.f32 0.0, %v1567
  %1569 = vmatmul.f32.gmra.mxu0 %v1362
  %v1570 = vpop.f32.mrf.mxu0
  %v1571 = vadd.f32 0.0, %v1570
  %1572 = vmatmul.f32.gmra.mxu0 %v1365
  %v1573 = vpop.f32.mrf.mxu0
  %v1574 = vadd.f32 0.0, %v1573
  %1575 = vmatmul.f32.gmra.mxu0 %v1368
  %v1576 = vpop.f32.mrf.mxu0
  %v1577 = vadd.f32 0.0, %v1576
  %1578 = vmatmul.f32.gmra.mxu0 %v1371
  %v1579 = vpop.f32.mrf.mxu0
  %v1580 = vadd.f32 0.0, %v1579
  %1581 = vmatmul.f32.gmra.mxu0 %v1374
  %v1582 = vpop.f32.mrf.mxu0
  %v1583 = vadd.f32 0.0, %v1582
  %1584 = vmatmul.f32.gmra.mxu0 %v1377
  %v1585 = vpop.f32.mrf.mxu0
  %v1586 = vadd.f32 0.0, %v1585
  %1587 = vmatmul.f32.gmra.mxu0 %v1380
  %v1588 = vpop.f32.mrf.mxu0
  %v1589 = vadd.f32 0.0, %v1588
  %1590 = vmatmul.f32.gmra.mxu0 %v1383
  %v1591 = vpop.f32.mrf.mxu0
  %v1592 = vadd.f32 0.0, %v1591
  %1593 = vmatmul.f32.gmra.mxu0 %v1386
  %v1594 = vpop.f32.mrf.mxu0
  %v1595 = vadd.f32 0.0, %v1594
  %1596 = vmatmul.f32.gmra.mxu0 %v1389
  %v1597 = vpop.f32.mrf.mxu0
  %v1598 = vadd.f32 0.0, %v1597
  %1599 = vmatmul.f32.gmra.mxu0 %v1392
  %v1600 = vpop.f32.mrf.mxu0
  %v1601 = vadd.f32 0.0, %v1600
  %1602 = vmatmul.f32.gmra.mxu0 %v1395
  %v1603 = vpop.f32.mrf.mxu0
  %v1604 = vadd.f32 0.0, %v1603
  %1605 = vmatmul.f32.gmra.mxu0 %v1398
  %v1606 = vpop.f32.mrf.mxu0
  %v1607 = vadd.f32 0.0, %v1606
  %1608 = vmatmul.f32.gmra.mxu0 %v1401
  %v1609 = vpop.f32.mrf.mxu0
  %v1610 = vadd.f32 0.0, %v1609
  %1611 = vmatmul.f32.gmra.mxu0 %v1404
  %v1612 = vpop.f32.mrf.mxu0
  %v1613 = vadd.f32 0.0, %v1612
  %1614 = vmatmul.f32.gmra.mxu0 %v1407
  %v1615 = vpop.f32.mrf.mxu0
  %v1616 = vadd.f32 0.0, %v1615
  %1617 = vmatmul.f32.gmra.mxu0 %v1410
  %v1618 = vpop.f32.mrf.mxu0
  %v1619 = vadd.f32 0.0, %v1618
  %1620 = vmatmul.f32.gmra.mxu0 %v1413
  %v1621 = vpop.f32.mrf.mxu0
  %v1622 = vadd.f32 0.0, %v1621
  %1623 = vmatmul.f32.gmra.mxu0 %v1416
  %v1624 = vpop.f32.mrf.mxu0
  %v1625 = vadd.f32 0.0, %v1624
  %1626 = vmatmul.f32.gmra.mxu0 %v1419
  %v1627 = vpop.f32.mrf.mxu0
  %v1628 = vadd.f32 0.0, %v1627
  %1629 = vmatmul.f32.gmra.mxu0 %v1422
  %v1630 = vpop.f32.mrf.mxu0
  %v1631 = vadd.f32 0.0, %v1630
  %1632 = vmatmul.f32.gmra.mxu0 %v1425
  %v1633 = vpop.f32.mrf.mxu0
  %v1634 = vadd.f32 0.0, %v1633
  %1635 = vmatmul.f32.gmra.mxu0 %v1428
  %v1636 = vpop.f32.mrf.mxu0
  %v1637 = vadd.f32 0.0, %v1636
  %1638 = vmatmul.f32.gmra.mxu0 %v1431
  %v1639 = vpop.f32.mrf.mxu0
  %v1640 = vadd.f32 0.0, %v1639
  %1641 = vmatmul.f32.gmra.mxu0 %v1434
  %v1642 = vpop.f32.mrf.mxu0
  %v1643 = vadd.f32 0.0, %v1642
  %1644 = vmatmul.f32.gmra.mxu0 %v1437
  %v1645 = vpop.f32.mrf.mxu0
  %v1646 = vadd.f32 0.0, %v1645
  %1647 = vmatmul.f32.gmra.mxu0 %v1440
  %v1648 = vpop.f32.mrf.mxu0
  %v1649 = vadd.f32 0.0, %v1648
  %1650 = vmatmul.f32.gmra.mxu0 %v1443
  %v1651 = vpop.f32.mrf.mxu0
  %v1652 = vadd.f32 0.0, %v1651
  %1653 = vmatmul.f32.gmra.mxu0 %v1446
  %v1654 = vpop.f32.mrf.mxu0
  %v1655 = vadd.f32 0.0, %v1654
  %1656 = vmatmul.f32.gmra.mxu0 %v1449
  %v1657 = vpop.f32.mrf.mxu0
  %v1658 = vadd.f32 0.0, %v1657
  %1659 = vmatmul.f32.gmra.mxu0 %v1452
  %v1660 = vpop.f32.mrf.mxu0
  %v1661 = vadd.f32 0.0, %v1660
  %1662 = vmatmul.f32.gmra.mxu0 %v1455
  %v1663 = vpop.f32.mrf.mxu0
  %v1664 = vadd.f32 0.0, %v1663
  %1665 = vmatmul.f32.gmra.mxu0 %v1458
  %v1666 = vpop.f32.mrf.mxu0
  %v1667 = vadd.f32 0.0, %v1666
  %1668 = vmatmul.f32.gmra.mxu0 %v1461
  %v1669 = vpop.f32.mrf.mxu0
  %v1670 = vadd.f32 0.0, %v1669
  %1671 = vmatmul.f32.gmra.mxu0 %v1464
  %v1672 = vpop.f32.mrf.mxu0
  %v1673 = vadd.f32 0.0, %v1672
  %1674 = vmatmul.f32.gmra.mxu0 %v1467
  %v1675 = vpop.f32.mrf.mxu0
  %v1676 = vadd.f32 0.0, %v1675
  %1677 = vmatmul.f32.gmra.mxu0 %v1470
  %v1678 = vpop.f32.mrf.mxu0
  %v1679 = vadd.f32 0.0, %v1678
  %1680 = vmatmul.f32.gmra.mxu0 %v1473
  %v1681 = vpop.f32.mrf.mxu0
  %v1682 = vadd.f32 0.0, %v1681
  %1683 = vmatmul.f32.gmra.mxu0 %v1476
  %v1684 = vpop.f32.mrf.mxu0
  %v1685 = vadd.f32 0.0, %v1684
  %1686 = vmatmul.f32.gmra.mxu0 %v1479
  %v1687 = vpop.f32.mrf.mxu0
  %v1688 = vadd.f32 0.0, %v1687
  %1689 = vmatmul.f32.gmra.mxu0 %v1482
  %v1690 = vpop.f32.mrf.mxu0
  %v1691 = vadd.f32 0.0, %v1690
  %1692 = vmatmul.f32.gmra.mxu0 %v1485
  %v1693 = vpop.f32.mrf.mxu0
  %v1694 = vadd.f32 0.0, %v1693
  %1695 = vmatmul.f32.gmra.mxu0 %v1488
  %v1696 = vpop.f32.mrf.mxu0
  %v1697 = vadd.f32 0.0, %v1696
  %1698 = vmatmul.f32.gmra.mxu0 %v1491
  %v1699 = vpop.f32.mrf.mxu0
  %v1700 = vadd.f32 0.0, %v1699
  %1701 = vmatmul.f32.gmra.mxu0 %v1494
  %v1702 = vpop.f32.mrf.mxu0
  %v1703 = vadd.f32 0.0, %v1702
  %1704 = vmatmul.f32.gmra.mxu0 %v1497
  %v1705 = vpop.f32.mrf.mxu0
  %v1706 = vadd.f32 0.0, %v1705
  %1707 = vmatmul.f32.gmra.mxu0 %v1500
  %v1708 = vpop.f32.mrf.mxu0
  %v1709 = vadd.f32 0.0, %v1708
  %1710 = vmatmul.f32.gmra.mxu0 %v1503
  %v1711 = vpop.f32.mrf.mxu0
  %v1712 = vadd.f32 0.0, %v1711
  %1713 = vmatmul.f32.gmra.mxu0 %v1506
  %v1714 = vpop.f32.mrf.mxu0
  %v1715 = vadd.f32 0.0, %v1714
  %1716 = vmatmul.f32.gmra.mxu0 %v1509
  %v1717 = vpop.f32.mrf.mxu0
  %v1718 = vadd.f32 0.0, %v1717
  %1719 = vmatmul.f32.gmra.mxu0 %v1512
  %v1720 = vpop.f32.mrf.mxu0
  %v1721 = vadd.f32 0.0, %v1720
  %1722 = vmatmul.f32.gmra.mxu0 %v1515
  %v1723 = vpop.f32.mrf.mxu0
  %v1724 = vadd.f32 0.0, %v1723
  %1725 = vmatmul.f32.gmra.mxu0 %v1518
  %v1726 = vpop.f32.mrf.mxu0
  %v1727 = vadd.f32 0.0, %v1726
  %1728 = vmatmul.f32.gmra.mxu0 %v1521
  %v1729 = vpop.f32.mrf.mxu0
  %v1730 = vadd.f32 0.0, %v1729
  %1731 = vmatmul.f32.gmra.mxu0 %v1524
  %v1732 = vpop.f32.mrf.mxu0
  %v1733 = vadd.f32 0.0, %v1732
  %1734 = vmatmul.f32.gmra.mxu0 %v1527
  %v1735 = vpop.f32.mrf.mxu0
  %v1736 = vadd.f32 0.0, %v1735
  %1737 = vmatmul.f32.gmra.mxu0 %v1530
  %v1738 = vpop.f32.mrf.mxu0
  %v1739 = vadd.f32 0.0, %v1738
  %1740 = vmatmul.f32.gmra.mxu0 %v1533
  %v1741 = vpop.f32.mrf.mxu0
  %v1742 = vadd.f32 0.0, %v1741
  %1743 = vmatmul.f32.gmra.mxu0 %v1536
  %v1744 = vpop.f32.mrf.mxu0
  %v1745 = vadd.f32 0.0, %v1744
  %1746 = vmatmul.f32.gmra.mxu0 %v1539
  %v1747 = vpop.f32.mrf.mxu0
  %v1748 = vadd.f32 0.0, %v1747
  %1749 = vdwg.mxu0
  %v1751 = vsel %vm32, %v1218, 0
  %v1754 = vsel %vm32, %v1219, 0
  %v1757 = vsel %vm32, %v1220, 0
  %v1760 = vsel %vm32, %v1221, 0
  %v1763 = vsel %vm32, %v1222, 0
  %v1766 = vsel %vm32, %v1223, 0
  %v1769 = vsel %vm32, %v1224, 0
  %v1772 = vsel %vm32, %v1225, 0
  %v1775 = vsel %vm32, %v1226, 0
  %v1778 = vsel %vm32, %v1227, 0
  %v1781 = vsel %vm32, %v1228, 0
  %v1784 = vsel %vm32, %v1229, 0
  %v1787 = vsel %vm32, %v1230, 0
  %v1790 = vsel %vm32, %v1231, 0
  %v1793 = vsel %vm32, %v1232, 0
  %v1796 = vsel %vm32, %v1233, 0
  %v1799 = vsel %vm32, %v1234, 0
  %v1802 = vsel %vm32, %v1235, 0
  %v1805 = vsel %vm32, %v1236, 0
  %v1808 = vsel %vm32, %v1237, 0
  %v1811 = vsel %vm32, %v1238, 0
  %v1814 = vsel %vm32, %v1239, 0
  %v1817 = vsel %vm32, %v1240, 0
  %v1820 = vsel %vm32, %v1241, 0
  %v1823 = vsel %vm32, %v1242, 0
  %v1826 = vsel %vm32, %v1243, 0
  %v1829 = vsel %vm32, %v1244, 0
  %v1832 = vsel %vm32, %v1245, 0
  %v1835 = vsel %vm32, %v1246, 0
  %v1838 = vsel %vm32, %v1247, 0
  %v1841 = vsel %vm32, %v1248, 0
  %v1844 = vsel %vm32, %v1249, 0
  %v1847 = vsel %vm32, %v1250, 0
  %v1850 = vsel %vm32, %v1251, 0
  %v1853 = vsel %vm32, %v1252, 0
  %v1856 = vsel %vm32, %v1253, 0
  %v1859 = vsel %vm32, %v1254, 0
  %v1862 = vsel %vm32, %v1255, 0
  %v1865 = vsel %vm32, %v1256, 0
  %v1868 = vsel %vm32, %v1257, 0
  %v1871 = vsel %vm32, %v1258, 0
  %v1874 = vsel %vm32, %v1259, 0
  %v1877 = vsel %vm32, %v1260, 0
  %v1880 = vsel %vm32, %v1261, 0
  %v1883 = vsel %vm32, %v1262, 0
  %v1886 = vsel %vm32, %v1263, 0
  %v1889 = vsel %vm32, %v1264, 0
  %v1892 = vsel %vm32, %v1265, 0
  %v1895 = vsel %vm32, %v1266, 0
  %v1898 = vsel %vm32, %v1267, 0
  %v1901 = vsel %vm32, %v1268, 0
  %v1904 = vsel %vm32, %v1269, 0
  %v1907 = vsel %vm32, %v1270, 0
  %v1910 = vsel %vm32, %v1271, 0
  %v1913 = vsel %vm32, %v1272, 0
  %v1916 = vsel %vm32, %v1273, 0
  %v1919 = vsel %vm32, %v1274, 0
  %v1922 = vsel %vm32, %v1275, 0
  %v1925 = vsel %vm32, %v1276, 0
  %v1928 = vsel %vm32, %v1277, 0
  %v1931 = vsel %vm32, %v1278, 0
  %v1934 = vsel %vm32, %v1279, 0
  %v1937 = vsel %vm32, %v1280, 0
  %v1940 = vsel %vm32, %v1281, 0
  %1942 = vmatpush.msra.mxu0 0.0
  %1943 = vmatpush.msra.mxu0 0.0
  %1944 = vmatpush.msra.mxu0 0.0
  %1945 = vmatpush.msra.mxu0 0.0
  %1946 = vmatpush.msra.mxu0 0.0
  %1947 = vmatpush.msra.mxu0 0.0
  %1948 = vmatpush.msra.mxu0 0.0
  %1949 = vmatpush.msra.mxu0 0.0
  %1950 = vmatpush.msra.mxu0 0.0
  %1951 = vmatpush.msra.mxu0 0.0
  %1952 = vmatpush.msra.mxu0 0.0
  %1953 = vmatpush.msra.mxu0 0.0
  %1954 = vmatpush.msra.mxu0 0.0
  %1955 = vmatpush.msra.mxu0 0.0
  %1956 = vmatpush.msra.mxu0 0.0
  %1957 = vmatpush.msra.mxu0 %v1282
  %1958 = vmatmul.f32.gmra.mxu0 %v1751
  %v1959 = vpop.f32.mrf.mxu0
  %v1960 = vadd.f32 %v1559, %v1959
  %1961 = vmatmul.f32.gmra.mxu0 %v1754
  %v1962 = vpop.f32.mrf.mxu0
  %v1963 = vadd.f32 %v1562, %v1962
  %1964 = vmatmul.f32.gmra.mxu0 %v1757
  %v1965 = vpop.f32.mrf.mxu0
  %v1966 = vadd.f32 %v1565, %v1965
  %1967 = vmatmul.f32.gmra.mxu0 %v1760
  %v1968 = vpop.f32.mrf.mxu0
  %v1969 = vadd.f32 %v1568, %v1968
  %1970 = vmatmul.f32.gmra.mxu0 %v1763
  %v1971 = vpop.f32.mrf.mxu0
  %v1972 = vadd.f32 %v1571, %v1971
  %1973 = vmatmul.f32.gmra.mxu0 %v1766
  %v1974 = vpop.f32.mrf.mxu0
  %v1975 = vadd.f32 %v1574, %v1974
  %1976 = vmatmul.f32.gmra.mxu0 %v1769
  %v1977 = vpop.f32.mrf.mxu0
  %v1978 = vadd.f32 %v1577, %v1977
  %1979 = vmatmul.f32.gmra.mxu0 %v1772
  %v1980 = vpop.f32.mrf.mxu0
  %v1981 = vadd.f32 %v1580, %v1980
  %1982 = vmatmul.f32.gmra.mxu0 %v1775
  %v1983 = vpop.f32.mrf.mxu0
  %v1984 = vadd.f32 %v1583, %v1983
  %1985 = vmatmul.f32.gmra.mxu0 %v1778
  %v1986 = vpop.f32.mrf.mxu0
  %v1987 = vadd.f32 %v1586, %v1986
  %1988 = vmatmul.f32.gmra.mxu0 %v1781
  %v1989 = vpop.f32.mrf.mxu0
  %v1990 = vadd.f32 %v1589, %v1989
  %1991 = vmatmul.f32.gmra.mxu0 %v1784
  %v1992 = vpop.f32.mrf.mxu0
  %v1993 = vadd.f32 %v1592, %v1992
  %1994 = vmatmul.f32.gmra.mxu0 %v1787
  %v1995 = vpop.f32.mrf.mxu0
  %v1996 = vadd.f32 %v1595, %v1995
  %1997 = vmatmul.f32.gmra.mxu0 %v1790
  %v1998 = vpop.f32.mrf.mxu0
  %v1999 = vadd.f32 %v1598, %v1998
  %2000 = vmatmul.f32.gmra.mxu0 %v1793
  %v2001 = vpop.f32.mrf.mxu0
  %v2002 = vadd.f32 %v1601, %v2001
  %2003 = vmatmul.f32.gmra.mxu0 %v1796
  %v2004 = vpop.f32.mrf.mxu0
  %v2005 = vadd.f32 %v1604, %v2004
  %2006 = vmatmul.f32.gmra.mxu0 %v1799
  %v2007 = vpop.f32.mrf.mxu0
  %v2008 = vadd.f32 %v1607, %v2007
  %2009 = vmatmul.f32.gmra.mxu0 %v1802
  %v2010 = vpop.f32.mrf.mxu0
  %v2011 = vadd.f32 %v1610, %v2010
  %2012 = vmatmul.f32.gmra.mxu0 %v1805
  %v2013 = vpop.f32.mrf.mxu0
  %v2014 = vadd.f32 %v1613, %v2013
  %2015 = vmatmul.f32.gmra.mxu0 %v1808
  %v2016 = vpop.f32.mrf.mxu0
  %v2017 = vadd.f32 %v1616, %v2016
  %2018 = vmatmul.f32.gmra.mxu0 %v1811
  %v2019 = vpop.f32.mrf.mxu0
  %v2020 = vadd.f32 %v1619, %v2019
  %2021 = vmatmul.f32.gmra.mxu0 %v1814
  %v2022 = vpop.f32.mrf.mxu0
  %v2023 = vadd.f32 %v1622, %v2022
  %2024 = vmatmul.f32.gmra.mxu0 %v1817
  %v2025 = vpop.f32.mrf.mxu0
  %v2026 = vadd.f32 %v1625, %v2025
  %2027 = vmatmul.f32.gmra.mxu0 %v1820
  %v2028 = vpop.f32.mrf.mxu0
  %v2029 = vadd.f32 %v1628, %v2028
  %2030 = vmatmul.f32.gmra.mxu0 %v1823
  %v2031 = vpop.f32.mrf.mxu0
  %v2032 = vadd.f32 %v1631, %v2031
  %2033 = vmatmul.f32.gmra.mxu0 %v1826
  %v2034 = vpop.f32.mrf.mxu0
  %v2035 = vadd.f32 %v1634, %v2034
  %2036 = vmatmul.f32.gmra.mxu0 %v1829
  %v2037 = vpop.f32.mrf.mxu0
  %v2038 = vadd.f32 %v1637, %v2037
  %2039 = vmatmul.f32.gmra.mxu0 %v1832
  %v2040 = vpop.f32.mrf.mxu0
  %v2041 = vadd.f32 %v1640, %v2040
  %2042 = vmatmul.f32.gmra.mxu0 %v1835
  %v2043 = vpop.f32.mrf.mxu0
  %v2044 = vadd.f32 %v1643, %v2043
  %2045 = vmatmul.f32.gmra.mxu0 %v1838
  %v2046 = vpop.f32.mrf.mxu0
  %v2047 = vadd.f32 %v1646, %v2046
  %2048 = vmatmul.f32.gmra.mxu0 %v1841
  %v2049 = vpop.f32.mrf.mxu0
  %v2050 = vadd.f32 %v1649, %v2049
  %2051 = vmatmul.f32.gmra.mxu0 %v1844
  %v2052 = vpop.f32.mrf.mxu0
  %v2053 = vadd.f32 %v1652, %v2052
  %2054 = vmatmul.f32.gmra.mxu0 %v1847
  %v2055 = vpop.f32.mrf.mxu0
  %v2056 = vadd.f32 %v1655, %v2055
  %2057 = vmatmul.f32.gmra.mxu0 %v1850
  %v2058 = vpop.f32.mrf.mxu0
  %v2059 = vadd.f32 %v1658, %v2058
  %2060 = vmatmul.f32.gmra.mxu0 %v1853
  %v2061 = vpop.f32.mrf.mxu0
  %v2062 = vadd.f32 %v1661, %v2061
  %2063 = vmatmul.f32.gmra.mxu0 %v1856
  %v2064 = vpop.f32.mrf.mxu0
  %v2065 = vadd.f32 %v1664, %v2064
  %2066 = vmatmul.f32.gmra.mxu0 %v1859
  %v2067 = vpop.f32.mrf.mxu0
  %v2068 = vadd.f32 %v1667, %v2067
  %2069 = vmatmul.f32.gmra.mxu0 %v1862
  %v2070 = vpop.f32.mrf.mxu0
  %v2071 = vadd.f32 %v1670, %v2070
  %2072 = vmatmul.f32.gmra.mxu0 %v1865
  %v2073 = vpop.f32.mrf.mxu0
  %v2074 = vadd.f32 %v1673, %v2073
  %2075 = vmatmul.f32.gmra.mxu0 %v1868
  %v2076 = vpop.f32.mrf.mxu0
  %v2077 = vadd.f32 %v1676, %v2076
  %2078 = vmatmul.f32.gmra.mxu0 %v1871
  %v2079 = vpop.f32.mrf.mxu0
  %v2080 = vadd.f32 %v1679, %v2079
  %2081 = vmatmul.f32.gmra.mxu0 %v1874
  %v2082 = vpop.f32.mrf.mxu0
  %v2083 = vadd.f32 %v1682, %v2082
  %2084 = vmatmul.f32.gmra.mxu0 %v1877
  %v2085 = vpop.f32.mrf.mxu0
  %v2086 = vadd.f32 %v1685, %v2085
  %2087 = vmatmul.f32.gmra.mxu0 %v1880
  %v2088 = vpop.f32.mrf.mxu0
  %v2089 = vadd.f32 %v1688, %v2088
  %2090 = vmatmul.f32.gmra.mxu0 %v1883
  %v2091 = vpop.f32.mrf.mxu0
  %v2092 = vadd.f32 %v1691, %v2091
  %2093 = vmatmul.f32.gmra.mxu0 %v1886
  %v2094 = vpop.f32.mrf.mxu0
  %v2095 = vadd.f32 %v1694, %v2094
  %2096 = vmatmul.f32.gmra.mxu0 %v1889
  %v2097 = vpop.f32.mrf.mxu0
  %v2098 = vadd.f32 %v1697, %v2097
  %2099 = vmatmul.f32.gmra.mxu0 %v1892
  %v2100 = vpop.f32.mrf.mxu0
  %v2101 = vadd.f32 %v1700, %v2100
  %2102 = vmatmul.f32.gmra.mxu0 %v1895
  %v2103 = vpop.f32.mrf.mxu0
  %v2104 = vadd.f32 %v1703, %v2103
  %2105 = vmatmul.f32.gmra.mxu0 %v1898
  %v2106 = vpop.f32.mrf.mxu0
  %v2107 = vadd.f32 %v1706, %v2106
  %2108 = vmatmul.f32.gmra.mxu0 %v1901
  %v2109 = vpop.f32.mrf.mxu0
  %v2110 = vadd.f32 %v1709, %v2109
  %2111 = vmatmul.f32.gmra.mxu0 %v1904
  %v2112 = vpop.f32.mrf.mxu0
  %v2113 = vadd.f32 %v1712, %v2112
  %2114 = vmatmul.f32.gmra.mxu0 %v1907
  %v2115 = vpop.f32.mrf.mxu0
  %v2116 = vadd.f32 %v1715, %v2115
  %2117 = vmatmul.f32.gmra.mxu0 %v1910
  %v2118 = vpop.f32.mrf.mxu0
  %v2119 = vadd.f32 %v1718, %v2118
  %2120 = vmatmul.f32.gmra.mxu0 %v1913
  %v2121 = vpop.f32.mrf.mxu0
  %v2122 = vadd.f32 %v1721, %v2121
  %2123 = vmatmul.f32.gmra.mxu0 %v1916
  %v2124 = vpop.f32.mrf.mxu0
  %v2125 = vadd.f32 %v1724, %v2124
  %2126 = vmatmul.f32.gmra.mxu0 %v1919
  %v2127 = vpop.f32.mrf.mxu0
  %v2128 = vadd.f32 %v1727, %v2127
  %2129 = vmatmul.f32.gmra.mxu0 %v1922
  %v2130 = vpop.f32.mrf.mxu0
  %v2131 = vadd.f32 %v1730, %v2130
  %2132 = vmatmul.f32.gmra.mxu0 %v1925
  %v2133 = vpop.f32.mrf.mxu0
  %v2134 = vadd.f32 %v1733, %v2133
  %2135 = vmatmul.f32.gmra.mxu0 %v1928
  %v2136 = vpop.f32.mrf.mxu0
  %v2137 = vadd.f32 %v1736, %v2136
  %2138 = vmatmul.f32.gmra.mxu0 %v1931
  %v2139 = vpop.f32.mrf.mxu0
  %v2140 = vadd.f32 %v1739, %v2139
  %2141 = vmatmul.f32.gmra.mxu0 %v1934
  %v2142 = vpop.f32.mrf.mxu0
  %v2143 = vadd.f32 %v1742, %v2142
  %2144 = vmatmul.f32.gmra.mxu0 %v1937
  %v2145 = vpop.f32.mrf.mxu0
  %v2146 = vadd.f32 %v1745, %v2145
  %2147 = vmatmul.f32.gmra.mxu0 %v1940
  %v2148 = vpop.f32.mrf.mxu0
  %v2149 = vadd.f32 %v1748, %v2148
  %2150 = vdwg.mxu0
  %v2151 = vld [vmem:[#allocation2 + $0x2] sm:$0xff]
  %v2152 = vld [vmem:[#allocation2 + $0xa] sm:$0xff]
  %v2153 = vld [vmem:[#allocation2 + $0x12] sm:$0xff]
  %v2154 = vld [vmem:[#allocation2 + $0x1a] sm:$0xff]
  %v2155 = vld [vmem:[#allocation2 + $0x22] sm:$0xff]
  %v2156 = vld [vmem:[#allocation2 + $0x2a] sm:$0xff]
  %v2157 = vld [vmem:[#allocation2 + $0x32] sm:$0xff]
  %v2158 = vld [vmem:[#allocation2 + $0x3a] sm:$0xff]
  %v2159 = vld [vmem:[#allocation2 + $0x42] sm:$0xff]
  %v2160 = vld [vmem:[#allocation2 + $0x4a] sm:$0xff]
  %v2161 = vld [vmem:[#allocation2 + $0x52] sm:$0xff]
  %v2162 = vld [vmem:[#allocation2 + $0x5a] sm:$0xff]
  %v2163 = vld [vmem:[#allocation2 + $0x62] sm:$0xff]
  %v2164 = vld [vmem:[#allocation2 + $0x6a] sm:$0xff]
  %v2165 = vld [vmem:[#allocation2 + $0x72] sm:$0xff]
  %v2166 = vld [vmem:[#allocation2 + $0x7a] sm:$0xff]
  %v2167 = vld [vmem:[#allocation2 + $0x82] sm:$0xff]
  %v2168 = vld [vmem:[#allocation2 + $0x8a] sm:$0xff]
  %v2169 = vld [vmem:[#allocation2 + $0x92] sm:$0xff]
  %v2170 = vld [vmem:[#allocation2 + $0x9a] sm:$0xff]
  %v2171 = vld [vmem:[#allocation2 + $0xa2] sm:$0xff]
  %v2172 = vld [vmem:[#allocation2 + $0xaa] sm:$0xff]
  %v2173 = vld [vmem:[#allocation2 + $0xb2] sm:$0xff]
  %v2174 = vld [vmem:[#allocation2 + $0xba] sm:$0xff]
  %v2175 = vld [vmem:[#allocation2 + $0xc2] sm:$0xff]
  %v2176 = vld [vmem:[#allocation2 + $0xca] sm:$0xff]
  %v2177 = vld [vmem:[#allocation2 + $0xd2] sm:$0xff]
  %v2178 = vld [vmem:[#allocation2 + $0xda] sm:$0xff]
  %v2179 = vld [vmem:[#allocation2 + $0xe2] sm:$0xff]
  %v2180 = vld [vmem:[#allocation2 + $0xea] sm:$0xff]
  %v2181 = vld [vmem:[#allocation2 + $0xf2] sm:$0xff]
  %v2182 = vld [vmem:[#allocation2 + $0xfa] sm:$0xff]
  %v2183 = vld [vmem:[#allocation2 + $0x12a] sm:$0xff]
  %v2184 = vld [vmem:[#allocation2 + $0x132] sm:$0xff]
  %v2185 = vld [vmem:[#allocation2 + $0x13a] sm:$0xff]
  %v2186 = vld [vmem:[#allocation2 + $0x142] sm:$0xff]
  %v2187 = vld [vmem:[#allocation2 + $0x14a] sm:$0xff]
  %v2188 = vld [vmem:[#allocation2 + $0x152] sm:$0xff]
  %v2189 = vld [vmem:[#allocation2 + $0x15a] sm:$0xff]
  %v2190 = vld [vmem:[#allocation2 + $0x162] sm:$0xff]
  %v2191 = vld [vmem:[#allocation2 + $0x16a] sm:$0xff]
  %v2192 = vld [vmem:[#allocation2 + $0x172] sm:$0xff]
  %v2193 = vld [vmem:[#allocation2 + $0x17a] sm:$0xff]
  %v2194 = vld [vmem:[#allocation2 + $0x182] sm:$0xff]
  %v2195 = vld [vmem:[#allocation2 + $0x18a] sm:$0xff]
  %v2196 = vld [vmem:[#allocation2 + $0x192] sm:$0xff]
  %v2197 = vld [vmem:[#allocation2 + $0x19a] sm:$0xff]
  %v2198 = vld [vmem:[#allocation2 + $0x1a2] sm:$0xff]
  %v2199 = vld [vmem:[#allocation2 + $0x1aa] sm:$0xff]
  %v2200 = vld [vmem:[#allocation2 + $0x1b2] sm:$0xff]
  %v2201 = vld [vmem:[#allocation2 + $0x1ba] sm:$0xff]
  %v2202 = vld [vmem:[#allocation2 + $0x1c2] sm:$0xff]
  %v2203 = vld [vmem:[#allocation2 + $0x1ca] sm:$0xff]
  %v2204 = vld [vmem:[#allocation2 + $0x1d2] sm:$0xff]
  %v2205 = vld [vmem:[#allocation2 + $0x1da] sm:$0xff]
  %v2206 = vld [vmem:[#allocation2 + $0x1e2] sm:$0xff]
  %v2207 = vld [vmem:[#allocation2 + $0x1ea] sm:$0xff]
  %v2208 = vld [vmem:[#allocation2 + $0x1f2] sm:$0xff]
  %v2209 = vld [vmem:[#allocation2 + $0x1fa] sm:$0xff]
  %v2210 = vld [vmem:[#allocation2 + $0x202] sm:$0xff]
  %v2211 = vld [vmem:[#allocation2 + $0x20a] sm:$0xff]
  %v2212 = vld [vmem:[#allocation2 + $0x212] sm:$0xff]
  %v2213 = vld [vmem:[#allocation2 + $0x21a] sm:$0xff]
  %v2214 = vld [vmem:[#allocation2 + $0x222] sm:$0xff]
  %v2215 = vsel %vm1090, %v2151, 0.0
  %v2216 = vsel %vm1091, %v2152, 0.0
  %v2217 = vsel %vm1092, %v2153, 0.0
  %v2218 = vsel %vm1093, %v2154, 0.0
  %v2219 = vsel %vm1094, %v2155, 0.0
  %v2220 = vsel %vm1095, %v2156, 0.0
  %v2221 = vsel %vm1096, %v2157, 0.0
  %v2222 = vsel %vm1097, %v2158, 0.0
  %v2223 = vsel %vm1098, %v2159, 0.0
  %v2224 = vsel %vm1099, %v2160, 0.0
  %v2225 = vsel %vm1100, %v2161, 0.0
  %v2226 = vsel %vm1101, %v2162, 0.0
  %v2227 = vsel %vm1102, %v2163, 0.0
  %v2228 = vsel %vm1103, %v2164, 0.0
  %v2229 = vsel %vm1104, %v2165, 0.0
  %v2230 = vsel %vm1105, %v2166, 0.0
  %v2231 = vsel %vm1106, %v2167, 0.0
  %v2232 = vsel %vm1107, %v2168, 0.0
  %v2233 = vsel %vm1108, %v2169, 0.0
  %v2234 = vsel %vm1109, %v2170, 0.0
  %v2235 = vsel %vm1110, %v2171, 0.0
  %v2236 = vsel %vm1111, %v2172, 0.0
  %v2237 = vsel %vm1112, %v2173, 0.0
  %v2238 = vsel %vm1113, %v2174, 0.0
  %v2239 = vsel %vm1114, %v2175, 0.0
  %v2240 = vsel %vm1115, %v2176, 0.0
  %v2241 = vsel %vm1116, %v2177, 0.0
  %v2242 = vsel %vm1117, %v2178, 0.0
  %v2243 = vsel %vm1118, %v2179, 0.0
  %v2244 = vsel %vm1119, %v2180, 0.0
  %v2245 = vsel %vm1120, %v2181, 0.0
  %v2246 = vsel %vm1121, %v2182, 0.0
  %v2247 = vsel %vm1122, %v2183, 0.0
  %v2248 = vsel %vm1123, %v2184, 0.0
  %v2249 = vsel %vm1124, %v2185, 0.0
  %v2250 = vsel %vm1125, %v2186, 0.0
  %v2251 = vsel %vm1126, %v2187, 0.0
  %v2252 = vsel %vm1127, %v2188, 0.0
  %v2253 = vsel %vm1128, %v2189, 0.0
  %v2254 = vsel %vm1129, %v2190, 0.0
  %v2255 = vsel %vm1130, %v2191, 0.0
  %v2256 = vsel %vm1131, %v2192, 0.0
  %v2257 = vsel %vm1132, %v2193, 0.0
  %v2258 = vsel %vm1133, %v2194, 0.0
  %v2259 = vsel %vm1134, %v2195, 0.0
  %v2260 = vsel %vm1135, %v2196, 0.0
  %v2261 = vsel %vm1136, %v2197, 0.0
  %v2262 = vsel %vm1137, %v2198, 0.0
  %v2263 = vsel %vm1138, %v2199, 0.0
  %v2264 = vsel %vm1139, %v2200, 0.0
  %v2265 = vsel %vm1140, %v2201, 0.0
  %v2266 = vsel %vm1141, %v2202, 0.0
  %v2267 = vsel %vm1142, %v2203, 0.0
  %v2268 = vsel %vm1143, %v2204, 0.0
  %v2269 = vsel %vm1144, %v2205, 0.0
  %v2270 = vsel %vm1145, %v2206, 0.0
  %v2271 = vsel %vm1146, %v2207, 0.0
  %v2272 = vsel %vm1147, %v2208, 0.0
  %v2273 = vsel %vm1148, %v2209, 0.0
  %v2274 = vsel %vm1149, %v2210, 0.0
  %v2275 = vsel %vm1150, %v2211, 0.0
  %v2276 = vsel %vm1151, %v2212, 0.0
  %v2277 = vsel %vm1152, %v2213, 0.0
  %v2278 = vsel %vm1153, %v2214, 0.0
  %s2279 = scalar_lea.vmem %s1, 16
  %v2280 = vld [vmem:[%s2279] sm:$0xff]
  %v2282 = vsel %vm32, %v2215, 0
  %v2285 = vsel %vm32, %v2216, 0
  %v2288 = vsel %vm32, %v2217, 0
  %v2291 = vsel %vm32, %v2218, 0
  %v2294 = vsel %vm32, %v2219, 0
  %v2297 = vsel %vm32, %v2220, 0
  %v2300 = vsel %vm32, %v2221, 0
  %v2303 = vsel %vm32, %v2222, 0
  %v2306 = vsel %vm32, %v2223, 0
  %v2309 = vsel %vm32, %v2224, 0
  %v2312 = vsel %vm32, %v2225, 0
  %v2315 = vsel %vm32, %v2226, 0
  %v2318 = vsel %vm32, %v2227, 0
  %v2321 = vsel %vm32, %v2228, 0
  %v2324 = vsel %vm32, %v2229, 0
  %v2327 = vsel %vm32, %v2230, 0
  %v2330 = vsel %vm32, %v2231, 0
  %v2333 = vsel %vm32, %v2232, 0
  %v2336 = vsel %vm32, %v2233, 0
  %v2339 = vsel %vm32, %v2234, 0
  %v2342 = vsel %vm32, %v2235, 0
  %v2345 = vsel %vm32, %v2236, 0
  %v2348 = vsel %vm32, %v2237, 0
  %v2351 = vsel %vm32, %v2238, 0
  %v2354 = vsel %vm32, %v2239, 0
  %v2357 = vsel %vm32, %v2240, 0
  %v2360 = vsel %vm32, %v2241, 0
  %v2363 = vsel %vm32, %v2242, 0
  %v2366 = vsel %vm32, %v2243, 0
  %v2369 = vsel %vm32, %v2244, 0
  %v2372 = vsel %vm32, %v2245, 0
  %v2375 = vsel %vm32, %v2246, 0
  %v2378 = vsel %vm32, %v2247, 0
  %v2381 = vsel %vm32, %v2248, 0
  %v2384 = vsel %vm32, %v2249, 0
  %v2387 = vsel %vm32, %v2250, 0
  %v2390 = vsel %vm32, %v2251, 0
  %v2393 = vsel %vm32, %v2252, 0
  %v2396 = vsel %vm32, %v2253, 0
  %v2399 = vsel %vm32, %v2254, 0
  %v2402 = vsel %vm32, %v2255, 0
  %v2405 = vsel %vm32, %v2256, 0
  %v2408 = vsel %vm32, %v2257, 0
  %v2411 = vsel %vm32, %v2258, 0
  %v2414 = vsel %vm32, %v2259, 0
  %v2417 = vsel %vm32, %v2260, 0
  %v2420 = vsel %vm32, %v2261, 0
  %v2423 = vsel %vm32, %v2262, 0
  %v2426 = vsel %vm32, %v2263, 0
  %v2429 = vsel %vm32, %v2264, 0
  %v2432 = vsel %vm32, %v2265, 0
  %v2435 = vsel %vm32, %v2266, 0
  %v2438 = vsel %vm32, %v2267, 0
  %v2441 = vsel %vm32, %v2268, 0
  %v2444 = vsel %vm32, %v2269, 0
  %v2447 = vsel %vm32, %v2270, 0
  %v2450 = vsel %vm32, %v2271, 0
  %v2453 = vsel %vm32, %v2272, 0
  %v2456 = vsel %vm32, %v2273, 0
  %v2459 = vsel %vm32, %v2274, 0
  %v2462 = vsel %vm32, %v2275, 0
  %v2465 = vsel %vm32, %v2276, 0
  %v2468 = vsel %vm32, %v2277, 0
  %v2471 = vsel %vm32, %v2278, 0
  %2473 = vmatpush.msra.mxu0 0.0
  %2474 = vmatpush.msra.mxu0 0.0
  %2475 = vmatpush.msra.mxu0 0.0
  %2476 = vmatpush.msra.mxu0 0.0
  %2477 = vmatpush.msra.mxu0 0.0
  %2478 = vmatpush.msra.mxu0 0.0
  %2479 = vmatpush.msra.mxu0 0.0
  %2480 = vmatpush.msra.mxu0 0.0
  %2481 = vmatpush.msra.mxu0 0.0
  %2482 = vmatpush.msra.mxu0 0.0
  %2483 = vmatpush.msra.mxu0 0.0
  %2484 = vmatpush.msra.mxu0 0.0
  %2485 = vmatpush.msra.mxu0 0.0
  %2486 = vmatpush.msra.mxu0 0.0
  %2487 = vmatpush.msra.mxu0 0.0
  %2488 = vmatpush.msra.mxu0 %v2280
  %2489 = vmatmul.f32.gmra.mxu0 %v2282
  %v2490 = vpop.f32.mrf.mxu0
  %v2491 = vadd.f32 0.0, %v2490
  %2492 = vmatmul.f32.gmra.mxu0 %v2285
  %v2493 = vpop.f32.mrf.mxu0
  %v2494 = vadd.f32 0.0, %v2493
  %2495 = vmatmul.f32.gmra.mxu0 %v2288
  %v2496 = vpop.f32.mrf.mxu0
  %v2497 = vadd.f32 0.0, %v2496
  %2498 = vmatmul.f32.gmra.mxu0 %v2291
  %v2499 = vpop.f32.mrf.mxu0
  %v2500 = vadd.f32 0.0, %v2499
  %2501 = vmatmul.f32.gmra.mxu0 %v2294
  %v2502 = vpop.f32.mrf.mxu0
  %v2503 = vadd.f32 0.0, %v2502
  %2504 = vmatmul.f32.gmra.mxu0 %v2297
  %v2505 = vpop.f32.mrf.mxu0
  %v2506 = vadd.f32 0.0, %v2505
  %2507 = vmatmul.f32.gmra.mxu0 %v2300
  %v2508 = vpop.f32.mrf.mxu0
  %v2509 = vadd.f32 0.0, %v2508
  %2510 = vmatmul.f32.gmra.mxu0 %v2303
  %v2511 = vpop.f32.mrf.mxu0
  %v2512 = vadd.f32 0.0, %v2511
  %2513 = vmatmul.f32.gmra.mxu0 %v2306
  %v2514 = vpop.f32.mrf.mxu0
  %v2515 = vadd.f32 0.0, %v2514
  %2516 = vmatmul.f32.gmra.mxu0 %v2309
  %v2517 = vpop.f32.mrf.mxu0
  %v2518 = vadd.f32 0.0, %v2517
  %2519 = vmatmul.f32.gmra.mxu0 %v2312
  %v2520 = vpop.f32.mrf.mxu0
  %v2521 = vadd.f32 0.0, %v2520
  %2522 = vmatmul.f32.gmra.mxu0 %v2315
  %v2523 = vpop.f32.mrf.mxu0
  %v2524 = vadd.f32 0.0, %v2523
  %2525 = vmatmul.f32.gmra.mxu0 %v2318
  %v2526 = vpop.f32.mrf.mxu0
  %v2527 = vadd.f32 0.0, %v2526
  %2528 = vmatmul.f32.gmra.mxu0 %v2321
  %v2529 = vpop.f32.mrf.mxu0
  %v2530 = vadd.f32 0.0, %v2529
  %2531 = vmatmul.f32.gmra.mxu0 %v2324
  %v2532 = vpop.f32.mrf.mxu0
  %v2533 = vadd.f32 0.0, %v2532
  %2534 = vmatmul.f32.gmra.mxu0 %v2327
  %v2535 = vpop.f32.mrf.mxu0
  %v2536 = vadd.f32 0.0, %v2535
  %2537 = vmatmul.f32.gmra.mxu0 %v2330
  %v2538 = vpop.f32.mrf.mxu0
  %v2539 = vadd.f32 0.0, %v2538
  %2540 = vmatmul.f32.gmra.mxu0 %v2333
  %v2541 = vpop.f32.mrf.mxu0
  %v2542 = vadd.f32 0.0, %v2541
  %2543 = vmatmul.f32.gmra.mxu0 %v2336
  %v2544 = vpop.f32.mrf.mxu0
  %v2545 = vadd.f32 0.0, %v2544
  %2546 = vmatmul.f32.gmra.mxu0 %v2339
  %v2547 = vpop.f32.mrf.mxu0
  %v2548 = vadd.f32 0.0, %v2547
  %2549 = vmatmul.f32.gmra.mxu0 %v2342
  %v2550 = vpop.f32.mrf.mxu0
  %v2551 = vadd.f32 0.0, %v2550
  %2552 = vmatmul.f32.gmra.mxu0 %v2345
  %v2553 = vpop.f32.mrf.mxu0
  %v2554 = vadd.f32 0.0, %v2553
  %2555 = vmatmul.f32.gmra.mxu0 %v2348
  %v2556 = vpop.f32.mrf.mxu0
  %v2557 = vadd.f32 0.0, %v2556
  %2558 = vmatmul.f32.gmra.mxu0 %v2351
  %v2559 = vpop.f32.mrf.mxu0
  %v2560 = vadd.f32 0.0, %v2559
  %2561 = vmatmul.f32.gmra.mxu0 %v2354
  %v2562 = vpop.f32.mrf.mxu0
  %v2563 = vadd.f32 0.0, %v2562
  %2564 = vmatmul.f32.gmra.mxu0 %v2357
  %v2565 = vpop.f32.mrf.mxu0
  %v2566 = vadd.f32 0.0, %v2565
  %2567 = vmatmul.f32.gmra.mxu0 %v2360
  %v2568 = vpop.f32.mrf.mxu0
  %v2569 = vadd.f32 0.0, %v2568
  %2570 = vmatmul.f32.gmra.mxu0 %v2363
  %v2571 = vpop.f32.mrf.mxu0
  %v2572 = vadd.f32 0.0, %v2571
  %2573 = vmatmul.f32.gmra.mxu0 %v2366
  %v2574 = vpop.f32.mrf.mxu0
  %v2575 = vadd.f32 0.0, %v2574
  %2576 = vmatmul.f32.gmra.mxu0 %v2369
  %v2577 = vpop.f32.mrf.mxu0
  %v2578 = vadd.f32 0.0, %v2577
  %2579 = vmatmul.f32.gmra.mxu0 %v2372
  %v2580 = vpop.f32.mrf.mxu0
  %v2581 = vadd.f32 0.0, %v2580
  %2582 = vmatmul.f32.gmra.mxu0 %v2375
  %v2583 = vpop.f32.mrf.mxu0
  %v2584 = vadd.f32 0.0, %v2583
  %2585 = vmatmul.f32.gmra.mxu0 %v2378
  %v2586 = vpop.f32.mrf.mxu0
  %v2587 = vadd.f32 0.0, %v2586
  %2588 = vmatmul.f32.gmra.mxu0 %v2381
  %v2589 = vpop.f32.mrf.mxu0
  %v2590 = vadd.f32 0.0, %v2589
  %2591 = vmatmul.f32.gmra.mxu0 %v2384
  %v2592 = vpop.f32.mrf.mxu0
  %v2593 = vadd.f32 0.0, %v2592
  %2594 = vmatmul.f32.gmra.mxu0 %v2387
  %v2595 = vpop.f32.mrf.mxu0
  %v2596 = vadd.f32 0.0, %v2595
  %2597 = vmatmul.f32.gmra.mxu0 %v2390
  %v2598 = vpop.f32.mrf.mxu0
  %v2599 = vadd.f32 0.0, %v2598
  %2600 = vmatmul.f32.gmra.mxu0 %v2393
  %v2601 = vpop.f32.mrf.mxu0
  %v2602 = vadd.f32 0.0, %v2601
  %2603 = vmatmul.f32.gmra.mxu0 %v2396
  %v2604 = vpop.f32.mrf.mxu0
  %v2605 = vadd.f32 0.0, %v2604
  %2606 = vmatmul.f32.gmra.mxu0 %v2399
  %v2607 = vpop.f32.mrf.mxu0
  %v2608 = vadd.f32 0.0, %v2607
  %2609 = vmatmul.f32.gmra.mxu0 %v2402
  %v2610 = vpop.f32.mrf.mxu0
  %v2611 = vadd.f32 0.0, %v2610
  %2612 = vmatmul.f32.gmra.mxu0 %v2405
  %v2613 = vpop.f32.mrf.mxu0
  %v2614 = vadd.f32 0.0, %v2613
  %2615 = vmatmul.f32.gmra.mxu0 %v2408
  %v2616 = vpop.f32.mrf.mxu0
  %v2617 = vadd.f32 0.0, %v2616
  %2618 = vmatmul.f32.gmra.mxu0 %v2411
  %v2619 = vpop.f32.mrf.mxu0
  %v2620 = vadd.f32 0.0, %v2619
  %2621 = vmatmul.f32.gmra.mxu0 %v2414
  %v2622 = vpop.f32.mrf.mxu0
  %v2623 = vadd.f32 0.0, %v2622
  %2624 = vmatmul.f32.gmra.mxu0 %v2417
  %v2625 = vpop.f32.mrf.mxu0
  %v2626 = vadd.f32 0.0, %v2625
  %2627 = vmatmul.f32.gmra.mxu0 %v2420
  %v2628 = vpop.f32.mrf.mxu0
  %v2629 = vadd.f32 0.0, %v2628
  %2630 = vmatmul.f32.gmra.mxu0 %v2423
  %v2631 = vpop.f32.mrf.mxu0
  %v2632 = vadd.f32 0.0, %v2631
  %2633 = vmatmul.f32.gmra.mxu0 %v2426
  %v2634 = vpop.f32.mrf.mxu0
  %v2635 = vadd.f32 0.0, %v2634
  %2636 = vmatmul.f32.gmra.mxu0 %v2429
  %v2637 = vpop.f32.mrf.mxu0
  %v2638 = vadd.f32 0.0, %v2637
  %2639 = vmatmul.f32.gmra.mxu0 %v2432
  %v2640 = vpop.f32.mrf.mxu0
  %v2641 = vadd.f32 0.0, %v2640
  %2642 = vmatmul.f32.gmra.mxu0 %v2435
  %v2643 = vpop.f32.mrf.mxu0
  %v2644 = vadd.f32 0.0, %v2643
  %2645 = vmatmul.f32.gmra.mxu0 %v2438
  %v2646 = vpop.f32.mrf.mxu0
  %v2647 = vadd.f32 0.0, %v2646
  %2648 = vmatmul.f32.gmra.mxu0 %v2441
  %v2649 = vpop.f32.mrf.mxu0
  %v2650 = vadd.f32 0.0, %v2649
  %2651 = vmatmul.f32.gmra.mxu0 %v2444
  %v2652 = vpop.f32.mrf.mxu0
  %v2653 = vadd.f32 0.0, %v2652
  %2654 = vmatmul.f32.gmra.mxu0 %v2447
  %v2655 = vpop.f32.mrf.mxu0
  %v2656 = vadd.f32 0.0, %v2655
  %2657 = vmatmul.f32.gmra.mxu0 %v2450
  %v2658 = vpop.f32.mrf.mxu0
  %v2659 = vadd.f32 0.0, %v2658
  %2660 = vmatmul.f32.gmra.mxu0 %v2453
  %v2661 = vpop.f32.mrf.mxu0
  %v2662 = vadd.f32 0.0, %v2661
  %2663 = vmatmul.f32.gmra.mxu0 %v2456
  %v2664 = vpop.f32.mrf.mxu0
  %v2665 = vadd.f32 0.0, %v2664
  %2666 = vmatmul.f32.gmra.mxu0 %v2459
  %v2667 = vpop.f32.mrf.mxu0
  %v2668 = vadd.f32 0.0, %v2667
  %2669 = vmatmul.f32.gmra.mxu0 %v2462
  %v2670 = vpop.f32.mrf.mxu0
  %v2671 = vadd.f32 0.0, %v2670
  %2672 = vmatmul.f32.gmra.mxu0 %v2465
  %v2673 = vpop.f32.mrf.mxu0
  %v2674 = vadd.f32 0.0, %v2673
  %2675 = vmatmul.f32.gmra.mxu0 %v2468
  %v2676 = vpop.f32.mrf.mxu0
  %v2677 = vadd.f32 0.0, %v2676
  %2678 = vmatmul.f32.gmra.mxu0 %v2471
  %v2679 = vpop.f32.mrf.mxu0
  %v2680 = vadd.f32 0.0, %v2679
  %2681 = vdwg.mxu0
  %v2682 = vadd.f32 %v1960, %v2491
  %v2683 = vadd.f32 %v1963, %v2494
  %v2684 = vadd.f32 %v1966, %v2497
  %v2685 = vadd.f32 %v1969, %v2500
  %v2686 = vadd.f32 %v1972, %v2503
  %v2687 = vadd.f32 %v1975, %v2506
  %v2688 = vadd.f32 %v1978, %v2509
  %v2689 = vadd.f32 %v1981, %v2512
  %v2690 = vadd.f32 %v1984, %v2515
  %v2691 = vadd.f32 %v1987, %v2518
  %v2692 = vadd.f32 %v1990, %v2521
  %v2693 = vadd.f32 %v1993, %v2524
  %v2694 = vadd.f32 %v1996, %v2527
  %v2695 = vadd.f32 %v1999, %v2530
  %v2696 = vadd.f32 %v2002, %v2533
  %v2697 = vadd.f32 %v2005, %v2536
  %v2698 = vadd.f32 %v2008, %v2539
  %v2699 = vadd.f32 %v2011, %v2542
  %v2700 = vadd.f32 %v2014, %v2545
  %v2701 = vadd.f32 %v2017, %v2548
  %v2702 = vadd.f32 %v2020, %v2551
  %v2703 = vadd.f32 %v2023, %v2554
  %v2704 = vadd.f32 %v2026, %v2557
  %v2705 = vadd.f32 %v2029, %v2560
  %v2706 = vadd.f32 %v2032, %v2563
  %v2707 = vadd.f32 %v2035, %v2566
  %v2708 = vadd.f32 %v2038, %v2569
  %v2709 = vadd.f32 %v2041, %v2572
  %v2710 = vadd.f32 %v2044, %v2575
  %v2711 = vadd.f32 %v2047, %v2578
  %v2712 = vadd.f32 %v2050, %v2581
  %v2713 = vadd.f32 %v2053, %v2584
  %v2714 = vadd.f32 %v2056, %v2587
  %v2715 = vadd.f32 %v2059, %v2590
  %v2716 = vadd.f32 %v2062, %v2593
  %v2717 = vadd.f32 %v2065, %v2596
  %v2718 = vadd.f32 %v2068, %v2599
  %v2719 = vadd.f32 %v2071, %v2602
  %v2720 = vadd.f32 %v2074, %v2605
  %v2721 = vadd.f32 %v2077, %v2608
  %v2722 = vadd.f32 %v2080, %v2611
  %v2723 = vadd.f32 %v2083, %v2614
  %v2724 = vadd.f32 %v2086, %v2617
  %v2725 = vadd.f32 %v2089, %v2620
  %v2726 = vadd.f32 %v2092, %v2623
  %v2727 = vadd.f32 %v2095, %v2626
  %v2728 = vadd.f32 %v2098, %v2629
  %v2729 = vadd.f32 %v2101, %v2632
  %v2730 = vadd.f32 %v2104, %v2635
  %v2731 = vadd.f32 %v2107, %v2638
  %v2732 = vadd.f32 %v2110, %v2641
  %v2733 = vadd.f32 %v2113, %v2644
  %v2734 = vadd.f32 %v2116, %v2647
  %v2735 = vadd.f32 %v2119, %v2650
  %v2736 = vadd.f32 %v2122, %v2653
  %v2737 = vadd.f32 %v2125, %v2656
  %v2738 = vadd.f32 %v2128, %v2659
  %v2739 = vadd.f32 %v2131, %v2662
  %v2740 = vadd.f32 %v2134, %v2665
  %v2741 = vadd.f32 %v2137, %v2668
  %v2742 = vadd.f32 %v2140, %v2671
  %v2743 = vadd.f32 %v2143, %v2674
  %v2744 = vadd.f32 %v2146, %v2677
  %v2745 = vadd.f32 %v2149, %v2680
  %v2746 = vld [vmem:[#allocation2 + $0x10] sm:$0xff]
  %v2747 = vld [vmem:[#allocation2 + $0x18] sm:$0xff]
  %v2748 = vld [vmem:[#allocation2 + $0x20] sm:$0xff]
  %v2749 = vld [vmem:[#allocation2 + $0x28] sm:$0xff]
  %v2750 = vld [vmem:[#allocation2 + $0x30] sm:$0xff]
  %v2751 = vld [vmem:[#allocation2 + $0x38] sm:$0xff]
  %v2752 = vld [vmem:[#allocation2 + $0x40] sm:$0xff]
  %v2753 = vld [vmem:[#allocation2 + $0x48] sm:$0xff]
  %v2754 = vld [vmem:[#allocation2 + $0x50] sm:$0xff]
  %v2755 = vld [vmem:[#allocation2 + $0x58] sm:$0xff]
  %v2756 = vld [vmem:[#allocation2 + $0x60] sm:$0xff]
  %v2757 = vld [vmem:[#allocation2 + $0x68] sm:$0xff]
  %v2758 = vld [vmem:[#allocation2 + $0x70] sm:$0xff]
  %v2759 = vld [vmem:[#allocation2 + $0x78] sm:$0xff]
  %v2760 = vld [vmem:[#allocation2 + $0x80] sm:$0xff]
  %v2761 = vld [vmem:[#allocation2 + $0x88] sm:$0xff]
  %v2762 = vld [vmem:[#allocation2 + $0x90] sm:$0xff]
  %v2763 = vld [vmem:[#allocation2 + $0x98] sm:$0xff]
  %v2764 = vld [vmem:[#allocation2 + $0xa0] sm:$0xff]
  %v2765 = vld [vmem:[#allocation2 + $0xa8] sm:$0xff]
  %v2766 = vld [vmem:[#allocation2 + $0xb0] sm:$0xff]
  %v2767 = vld [vmem:[#allocation2 + $0xb8] sm:$0xff]
  %v2768 = vld [vmem:[#allocation2 + $0xc0] sm:$0xff]
  %v2769 = vld [vmem:[#allocation2 + $0xc8] sm:$0xff]
  %v2770 = vld [vmem:[#allocation2 + $0xd0] sm:$0xff]
  %v2771 = vld [vmem:[#allocation2 + $0xd8] sm:$0xff]
  %v2772 = vld [vmem:[#allocation2 + $0xe0] sm:$0xff]
  %v2773 = vld [vmem:[#allocation2 + $0xe8] sm:$0xff]
  %v2774 = vld [vmem:[#allocation2 + $0xf0] sm:$0xff]
  %v2775 = vld [vmem:[#allocation2 + $0xf8] sm:$0xff]
  %v2776 = vld [vmem:[#allocation2 + $0x100] sm:$0xff]
  %v2777 = vld [vmem:[#allocation2 + $0x108] sm:$0xff]
  %v2778 = vld [vmem:[#allocation2 + $0x138] sm:$0xff]
  %v2779 = vld [vmem:[#allocation2 + $0x140] sm:$0xff]
  %v2780 = vld [vmem:[#allocation2 + $0x148] sm:$0xff]
  %v2781 = vld [vmem:[#allocation2 + $0x150] sm:$0xff]
  %v2782 = vld [vmem:[#allocation2 + $0x158] sm:$0xff]
  %v2783 = vld [vmem:[#allocation2 + $0x160] sm:$0xff]
  %v2784 = vld [vmem:[#allocation2 + $0x168] sm:$0xff]
  %v2785 = vld [vmem:[#allocation2 + $0x170] sm:$0xff]
  %v2786 = vld [vmem:[#allocation2 + $0x178] sm:$0xff]
  %v2787 = vld [vmem:[#allocation2 + $0x180] sm:$0xff]
  %v2788 = vld [vmem:[#allocation2 + $0x188] sm:$0xff]
  %v2789 = vld [vmem:[#allocation2 + $0x190] sm:$0xff]
  %v2790 = vld [vmem:[#allocation2 + $0x198] sm:$0xff]
  %v2791 = vld [vmem:[#allocation2 + $0x1a0] sm:$0xff]
  %v2792 = vld [vmem:[#allocation2 + $0x1a8] sm:$0xff]
  %v2793 = vld [vmem:[#allocation2 + $0x1b0] sm:$0xff]
  %v2794 = vld [vmem:[#allocation2 + $0x1b8] sm:$0xff]
  %v2795 = vld [vmem:[#allocation2 + $0x1c0] sm:$0xff]
  %v2796 = vld [vmem:[#allocation2 + $0x1c8] sm:$0xff]
  %v2797 = vld [vmem:[#allocation2 + $0x1d0] sm:$0xff]
  %v2798 = vld [vmem:[#allocation2 + $0x1d8] sm:$0xff]
  %v2799 = vld [vmem:[#allocation2 + $0x1e0] sm:$0xff]
  %v2800 = vld [vmem:[#allocation2 + $0x1e8] sm:$0xff]
  %v2801 = vld [vmem:[#allocation2 + $0x1f0] sm:$0xff]
  %v2802 = vld [vmem:[#allocation2 + $0x1f8] sm:$0xff]
  %v2803 = vld [vmem:[#allocation2 + $0x200] sm:$0xff]
  %v2804 = vld [vmem:[#allocation2 + $0x208] sm:$0xff]
  %v2805 = vld [vmem:[#allocation2 + $0x210] sm:$0xff]
  %v2806 = vld [vmem:[#allocation2 + $0x218] sm:$0xff]
  %v2807 = vld [vmem:[#allocation2 + $0x220] sm:$0xff]
  %v2808 = vld [vmem:[#allocation2 + $0x228] sm:$0xff]
  %v2809 = vld [vmem:[#allocation2 + $0x230] sm:$0xff]
  %v2810 = vsel %vm1026, %v2746, 0.0
  %v2811 = vsel %vm1027, %v2747, 0.0
  %v2812 = vsel %vm1028, %v2748, 0.0
  %v2813 = vsel %vm1029, %v2749, 0.0
  %v2814 = vsel %vm1030, %v2750, 0.0
  %v2815 = vsel %vm1031, %v2751, 0.0
  %v2816 = vsel %vm1032, %v2752, 0.0
  %v2817 = vsel %vm1033, %v2753, 0.0
  %v2818 = vsel %vm1034, %v2754, 0.0
  %v2819 = vsel %vm1035, %v2755, 0.0
  %v2820 = vsel %vm1036, %v2756, 0.0
  %v2821 = vsel %vm1037, %v2757, 0.0
  %v2822 = vsel %vm1038, %v2758, 0.0
  %v2823 = vsel %vm1039, %v2759, 0.0
  %v2824 = vsel %vm1040, %v2760, 0.0
  %v2825 = vsel %vm1041, %v2761, 0.0
  %v2826 = vsel %vm1042, %v2762, 0.0
  %v2827 = vsel %vm1043, %v2763, 0.0
  %v2828 = vsel %vm1044, %v2764, 0.0
  %v2829 = vsel %vm1045, %v2765, 0.0
  %v2830 = vsel %vm1046, %v2766, 0.0
  %v2831 = vsel %vm1047, %v2767, 0.0
  %v2832 = vsel %vm1048, %v2768, 0.0
  %v2833 = vsel %vm1049, %v2769, 0.0
  %v2834 = vsel %vm1050, %v2770, 0.0
  %v2835 = vsel %vm1051, %v2771, 0.0
  %v2836 = vsel %vm1052, %v2772, 0.0
  %v2837 = vsel %vm1053, %v2773, 0.0
  %v2838 = vsel %vm1054, %v2774, 0.0
  %v2839 = vsel %vm1055, %v2775, 0.0
  %v2840 = vsel %vm1056, %v2776, 0.0
  %v2841 = vsel %vm1057, %v2777, 0.0
  %v2842 = vsel %vm1058, %v2778, 0.0
  %v2843 = vsel %vm1059, %v2779, 0.0
  %v2844 = vsel %vm1060, %v2780, 0.0
  %v2845 = vsel %vm1061, %v2781, 0.0
  %v2846 = vsel %vm1062, %v2782, 0.0
  %v2847 = vsel %vm1063, %v2783, 0.0
  %v2848 = vsel %vm1064, %v2784, 0.0
  %v2849 = vsel %vm1065, %v2785, 0.0
  %v2850 = vsel %vm1066, %v2786, 0.0
  %v2851 = vsel %vm1067, %v2787, 0.0
  %v2852 = vsel %vm1068, %v2788, 0.0
  %v2853 = vsel %vm1069, %v2789, 0.0
  %v2854 = vsel %vm1070, %v2790, 0.0
  %v2855 = vsel %vm1071, %v2791, 0.0
  %v2856 = vsel %vm1072, %v2792, 0.0
  %v2857 = vsel %vm1073, %v2793, 0.0
  %v2858 = vsel %vm1074, %v2794, 0.0
  %v2859 = vsel %vm1075, %v2795, 0.0
  %v2860 = vsel %vm1076, %v2796, 0.0
  %v2861 = vsel %vm1077, %v2797, 0.0
  %v2862 = vsel %vm1078, %v2798, 0.0
  %v2863 = vsel %vm1079, %v2799, 0.0
  %v2864 = vsel %vm1080, %v2800, 0.0
  %v2865 = vsel %vm1081, %v2801, 0.0
  %v2866 = vsel %vm1082, %v2802, 0.0
  %v2867 = vsel %vm1083, %v2803, 0.0
  %v2868 = vsel %vm1084, %v2804, 0.0
  %v2869 = vsel %vm1085, %v2805, 0.0
  %v2870 = vsel %vm1086, %v2806, 0.0
  %v2871 = vsel %vm1087, %v2807, 0.0
  %v2872 = vsel %vm1088, %v2808, 0.0
  %v2873 = vsel %vm1089, %v2809, 0.0
  %s2874 = scalar_lea.vmem %s1, 24
  %v2875 = vld [vmem:[%s2874] sm:$0xff]
  %v2877 = vsel %vm32, %v2810, 0
  %v2880 = vsel %vm32, %v2811, 0
  %v2883 = vsel %vm32, %v2812, 0
  %v2886 = vsel %vm32, %v2813, 0
  %v2889 = vsel %vm32, %v2814, 0
  %v2892 = vsel %vm32, %v2815, 0
  %v2895 = vsel %vm32, %v2816, 0
  %v2898 = vsel %vm32, %v2817, 0
  %v2901 = vsel %vm32, %v2818, 0
  %v2904 = vsel %vm32, %v2819, 0
  %v2907 = vsel %vm32, %v2820, 0
  %v2910 = vsel %vm32, %v2821, 0
  %v2913 = vsel %vm32, %v2822, 0
  %v2916 = vsel %vm32, %v2823, 0
  %v2919 = vsel %vm32, %v2824, 0
  %v2922 = vsel %vm32, %v2825, 0
  %v2925 = vsel %vm32, %v2826, 0
  %v2928 = vsel %vm32, %v2827, 0
  %v2931 = vsel %vm32, %v2828, 0
  %v2934 = vsel %vm32, %v2829, 0
  %v2937 = vsel %vm32, %v2830, 0
  %v2940 = vsel %vm32, %v2831, 0
  %v2943 = vsel %vm32, %v2832, 0
  %v2946 = vsel %vm32, %v2833, 0
  %v2949 = vsel %vm32, %v2834, 0
  %v2952 = vsel %vm32, %v2835, 0
  %v2955 = vsel %vm32, %v2836, 0
  %v2958 = vsel %vm32, %v2837, 0
  %v2961 = vsel %vm32, %v2838, 0
  %v2964 = vsel %vm32, %v2839, 0
  %v2967 = vsel %vm32, %v2840, 0
  %v2970 = vsel %vm32, %v2841, 0
  %v2973 = vsel %vm32, %v2842, 0
  %v2976 = vsel %vm32, %v2843, 0
  %v2979 = vsel %vm32, %v2844, 0
  %v2982 = vsel %vm32, %v2845, 0
  %v2985 = vsel %vm32, %v2846, 0
  %v2988 = vsel %vm32, %v2847, 0
  %v2991 = vsel %vm32, %v2848, 0
  %v2994 = vsel %vm32, %v2849, 0
  %v2997 = vsel %vm32, %v2850, 0
  %v3000 = vsel %vm32, %v2851, 0
  %v3003 = vsel %vm32, %v2852, 0
  %v3006 = vsel %vm32, %v2853, 0
  %v3009 = vsel %vm32, %v2854, 0
  %v3012 = vsel %vm32, %v2855, 0
  %v3015 = vsel %vm32, %v2856, 0
  %v3018 = vsel %vm32, %v2857, 0
  %v3021 = vsel %vm32, %v2858, 0
  %v3024 = vsel %vm32, %v2859, 0
  %v3027 = vsel %vm32, %v2860, 0
  %v3030 = vsel %vm32, %v2861, 0
  %v3033 = vsel %vm32, %v2862, 0
  %v3036 = vsel %vm32, %v2863, 0
  %v3039 = vsel %vm32, %v2864, 0
  %v3042 = vsel %vm32, %v2865, 0
  %v3045 = vsel %vm32, %v2866, 0
  %v3048 = vsel %vm32, %v2867, 0
  %v3051 = vsel %vm32, %v2868, 0
  %v3054 = vsel %vm32, %v2869, 0
  %v3057 = vsel %vm32, %v2870, 0
  %v3060 = vsel %vm32, %v2871, 0
  %v3063 = vsel %vm32, %v2872, 0
  %v3066 = vsel %vm32, %v2873, 0
  %3068 = vmatpush.msra.mxu0 0.0
  %3069 = vmatpush.msra.mxu0 0.0
  %3070 = vmatpush.msra.mxu0 0.0
  %3071 = vmatpush.msra.mxu0 0.0
  %3072 = vmatpush.msra.mxu0 0.0
  %3073 = vmatpush.msra.mxu0 0.0
  %3074 = vmatpush.msra.mxu0 0.0
  %3075 = vmatpush.msra.mxu0 0.0
  %3076 = vmatpush.msra.mxu0 0.0
  %3077 = vmatpush.msra.mxu0 0.0
  %3078 = vmatpush.msra.mxu0 0.0
  %3079 = vmatpush.msra.mxu0 0.0
  %3080 = vmatpush.msra.mxu0 0.0
  %3081 = vmatpush.msra.mxu0 0.0
  %3082 = vmatpush.msra.mxu0 0.0
  %3083 = vmatpush.msra.mxu0 %v2875
  %3084 = vmatmul.f32.gmra.mxu0 %v2877
  %v3085 = vpop.f32.mrf.mxu0
  %v3086 = vadd.f32 0.0, %v3085
  %3087 = vmatmul.f32.gmra.mxu0 %v2880
  %v3088 = vpop.f32.mrf.mxu0
  %v3089 = vadd.f32 0.0, %v3088
  %3090 = vmatmul.f32.gmra.mxu0 %v2883
  %v3091 = vpop.f32.mrf.mxu0
  %v3092 = vadd.f32 0.0, %v3091
  %3093 = vmatmul.f32.gmra.mxu0 %v2886
  %v3094 = vpop.f32.mrf.mxu0
  %v3095 = vadd.f32 0.0, %v3094
  %3096 = vmatmul.f32.gmra.mxu0 %v2889
  %v3097 = vpop.f32.mrf.mxu0
  %v3098 = vadd.f32 0.0, %v3097
  %3099 = vmatmul.f32.gmra.mxu0 %v2892
  %v3100 = vpop.f32.mrf.mxu0
  %v3101 = vadd.f32 0.0, %v3100
  %3102 = vmatmul.f32.gmra.mxu0 %v2895
  %v3103 = vpop.f32.mrf.mxu0
  %v3104 = vadd.f32 0.0, %v3103
  %3105 = vmatmul.f32.gmra.mxu0 %v2898
  %v3106 = vpop.f32.mrf.mxu0
  %v3107 = vadd.f32 0.0, %v3106
  %3108 = vmatmul.f32.gmra.mxu0 %v2901
  %v3109 = vpop.f32.mrf.mxu0
  %v3110 = vadd.f32 0.0, %v3109
  %3111 = vmatmul.f32.gmra.mxu0 %v2904
  %v3112 = vpop.f32.mrf.mxu0
  %v3113 = vadd.f32 0.0, %v3112
  %3114 = vmatmul.f32.gmra.mxu0 %v2907
  %v3115 = vpop.f32.mrf.mxu0
  %v3116 = vadd.f32 0.0, %v3115
  %3117 = vmatmul.f32.gmra.mxu0 %v2910
  %v3118 = vpop.f32.mrf.mxu0
  %v3119 = vadd.f32 0.0, %v3118
  %3120 = vmatmul.f32.gmra.mxu0 %v2913
  %v3121 = vpop.f32.mrf.mxu0
  %v3122 = vadd.f32 0.0, %v3121
  %3123 = vmatmul.f32.gmra.mxu0 %v2916
  %v3124 = vpop.f32.mrf.mxu0
  %v3125 = vadd.f32 0.0, %v3124
  %3126 = vmatmul.f32.gmra.mxu0 %v2919
  %v3127 = vpop.f32.mrf.mxu0
  %v3128 = vadd.f32 0.0, %v3127
  %3129 = vmatmul.f32.gmra.mxu0 %v2922
  %v3130 = vpop.f32.mrf.mxu0
  %v3131 = vadd.f32 0.0, %v3130
  %3132 = vmatmul.f32.gmra.mxu0 %v2925
  %v3133 = vpop.f32.mrf.mxu0
  %v3134 = vadd.f32 0.0, %v3133
  %3135 = vmatmul.f32.gmra.mxu0 %v2928
  %v3136 = vpop.f32.mrf.mxu0
  %v3137 = vadd.f32 0.0, %v3136
  %3138 = vmatmul.f32.gmra.mxu0 %v2931
  %v3139 = vpop.f32.mrf.mxu0
  %v3140 = vadd.f32 0.0, %v3139
  %3141 = vmatmul.f32.gmra.mxu0 %v2934
  %v3142 = vpop.f32.mrf.mxu0
  %v3143 = vadd.f32 0.0, %v3142
  %3144 = vmatmul.f32.gmra.mxu0 %v2937
  %v3145 = vpop.f32.mrf.mxu0
  %v3146 = vadd.f32 0.0, %v3145
  %3147 = vmatmul.f32.gmra.mxu0 %v2940
  %v3148 = vpop.f32.mrf.mxu0
  %v3149 = vadd.f32 0.0, %v3148
  %3150 = vmatmul.f32.gmra.mxu0 %v2943
  %v3151 = vpop.f32.mrf.mxu0
  %v3152 = vadd.f32 0.0, %v3151
  %3153 = vmatmul.f32.gmra.mxu0 %v2946
  %v3154 = vpop.f32.mrf.mxu0
  %v3155 = vadd.f32 0.0, %v3154
  %3156 = vmatmul.f32.gmra.mxu0 %v2949
  %v3157 = vpop.f32.mrf.mxu0
  %v3158 = vadd.f32 0.0, %v3157
  %3159 = vmatmul.f32.gmra.mxu0 %v2952
  %v3160 = vpop.f32.mrf.mxu0
  %v3161 = vadd.f32 0.0, %v3160
  %3162 = vmatmul.f32.gmra.mxu0 %v2955
  %v3163 = vpop.f32.mrf.mxu0
  %v3164 = vadd.f32 0.0, %v3163
  %3165 = vmatmul.f32.gmra.mxu0 %v2958
  %v3166 = vpop.f32.mrf.mxu0
  %v3167 = vadd.f32 0.0, %v3166
  %3168 = vmatmul.f32.gmra.mxu0 %v2961
  %v3169 = vpop.f32.mrf.mxu0
  %v3170 = vadd.f32 0.0, %v3169
  %3171 = vmatmul.f32.gmra.mxu0 %v2964
  %v3172 = vpop.f32.mrf.mxu0
  %v3173 = vadd.f32 0.0, %v3172
  %3174 = vmatmul.f32.gmra.mxu0 %v2967
  %v3175 = vpop.f32.mrf.mxu0
  %v3176 = vadd.f32 0.0, %v3175
  %3177 = vmatmul.f32.gmra.mxu0 %v2970
  %v3178 = vpop.f32.mrf.mxu0
  %v3179 = vadd.f32 0.0, %v3178
  %3180 = vmatmul.f32.gmra.mxu0 %v2973
  %v3181 = vpop.f32.mrf.mxu0
  %v3182 = vadd.f32 0.0, %v3181
  %3183 = vmatmul.f32.gmra.mxu0 %v2976
  %v3184 = vpop.f32.mrf.mxu0
  %v3185 = vadd.f32 0.0, %v3184
  %3186 = vmatmul.f32.gmra.mxu0 %v2979
  %v3187 = vpop.f32.mrf.mxu0
  %v3188 = vadd.f32 0.0, %v3187
  %3189 = vmatmul.f32.gmra.mxu0 %v2982
  %v3190 = vpop.f32.mrf.mxu0
  %v3191 = vadd.f32 0.0, %v3190
  %3192 = vmatmul.f32.gmra.mxu0 %v2985
  %v3193 = vpop.f32.mrf.mxu0
  %v3194 = vadd.f32 0.0, %v3193
  %3195 = vmatmul.f32.gmra.mxu0 %v2988
  %v3196 = vpop.f32.mrf.mxu0
  %v3197 = vadd.f32 0.0, %v3196
  %3198 = vmatmul.f32.gmra.mxu0 %v2991
  %v3199 = vpop.f32.mrf.mxu0
  %v3200 = vadd.f32 0.0, %v3199
  %3201 = vmatmul.f32.gmra.mxu0 %v2994
  %v3202 = vpop.f32.mrf.mxu0
  %v3203 = vadd.f32 0.0, %v3202
  %3204 = vmatmul.f32.gmra.mxu0 %v2997
  %v3205 = vpop.f32.mrf.mxu0
  %v3206 = vadd.f32 0.0, %v3205
  %3207 = vmatmul.f32.gmra.mxu0 %v3000
  %v3208 = vpop.f32.mrf.mxu0
  %v3209 = vadd.f32 0.0, %v3208
  %3210 = vmatmul.f32.gmra.mxu0 %v3003
  %v3211 = vpop.f32.mrf.mxu0
  %v3212 = vadd.f32 0.0, %v3211
  %3213 = vmatmul.f32.gmra.mxu0 %v3006
  %v3214 = vpop.f32.mrf.mxu0
  %v3215 = vadd.f32 0.0, %v3214
  %3216 = vmatmul.f32.gmra.mxu0 %v3009
  %v3217 = vpop.f32.mrf.mxu0
  %v3218 = vadd.f32 0.0, %v3217
  %3219 = vmatmul.f32.gmra.mxu0 %v3012
  %v3220 = vpop.f32.mrf.mxu0
  %v3221 = vadd.f32 0.0, %v3220
  %3222 = vmatmul.f32.gmra.mxu0 %v3015
  %v3223 = vpop.f32.mrf.mxu0
  %v3224 = vadd.f32 0.0, %v3223
  %3225 = vmatmul.f32.gmra.mxu0 %v3018
  %v3226 = vpop.f32.mrf.mxu0
  %v3227 = vadd.f32 0.0, %v3226
  %3228 = vmatmul.f32.gmra.mxu0 %v3021
  %v3229 = vpop.f32.mrf.mxu0
  %v3230 = vadd.f32 0.0, %v3229
  %3231 = vmatmul.f32.gmra.mxu0 %v3024
  %v3232 = vpop.f32.mrf.mxu0
  %v3233 = vadd.f32 0.0, %v3232
  %3234 = vmatmul.f32.gmra.mxu0 %v3027
  %v3235 = vpop.f32.mrf.mxu0
  %v3236 = vadd.f32 0.0, %v3235
  %3237 = vmatmul.f32.gmra.mxu0 %v3030
  %v3238 = vpop.f32.mrf.mxu0
  %v3239 = vadd.f32 0.0, %v3238
  %3240 = vmatmul.f32.gmra.mxu0 %v3033
  %v3241 = vpop.f32.mrf.mxu0
  %v3242 = vadd.f32 0.0, %v3241
  %3243 = vmatmul.f32.gmra.mxu0 %v3036
  %v3244 = vpop.f32.mrf.mxu0
  %v3245 = vadd.f32 0.0, %v3244
  %3246 = vmatmul.f32.gmra.mxu0 %v3039
  %v3247 = vpop.f32.mrf.mxu0
  %v3248 = vadd.f32 0.0, %v3247
  %3249 = vmatmul.f32.gmra.mxu0 %v3042
  %v3250 = vpop.f32.mrf.mxu0
  %v3251 = vadd.f32 0.0, %v3250
  %3252 = vmatmul.f32.gmra.mxu0 %v3045
  %v3253 = vpop.f32.mrf.mxu0
  %v3254 = vadd.f32 0.0, %v3253
  %3255 = vmatmul.f32.gmra.mxu0 %v3048
  %v3256 = vpop.f32.mrf.mxu0
  %v3257 = vadd.f32 0.0, %v3256
  %3258 = vmatmul.f32.gmra.mxu0 %v3051
  %v3259 = vpop.f32.mrf.mxu0
  %v3260 = vadd.f32 0.0, %v3259
  %3261 = vmatmul.f32.gmra.mxu0 %v3054
  %v3262 = vpop.f32.mrf.mxu0
  %v3263 = vadd.f32 0.0, %v3262
  %3264 = vmatmul.f32.gmra.mxu0 %v3057
  %v3265 = vpop.f32.mrf.mxu0
  %v3266 = vadd.f32 0.0, %v3265
  %3267 = vmatmul.f32.gmra.mxu0 %v3060
  %v3268 = vpop.f32.mrf.mxu0
  %v3269 = vadd.f32 0.0, %v3268
  %3270 = vmatmul.f32.gmra.mxu0 %v3063
  %v3271 = vpop.f32.mrf.mxu0
  %v3272 = vadd.f32 0.0, %v3271
  %3273 = vmatmul.f32.gmra.mxu0 %v3066
  %v3274 = vpop.f32.mrf.mxu0
  %v3275 = vadd.f32 0.0, %v3274
  %3276 = vdwg.mxu0
  %v3277 = vadd.f32 %v2682, %v3086
  %v3278 = vadd.f32 %v2683, %v3089
  %v3279 = vadd.f32 %v2684, %v3092
  %v3280 = vadd.f32 %v2685, %v3095
  %v3281 = vadd.f32 %v2686, %v3098
  %v3282 = vadd.f32 %v2687, %v3101
  %v3283 = vadd.f32 %v2688, %v3104
  %v3284 = vadd.f32 %v2689, %v3107
  %v3285 = vadd.f32 %v2690, %v3110
  %v3286 = vadd.f32 %v2691, %v3113
  %v3287 = vadd.f32 %v2692, %v3116
  %v3288 = vadd.f32 %v2693, %v3119
  %v3289 = vadd.f32 %v2694, %v3122
  %v3290 = vadd.f32 %v2695, %v3125
  %v3291 = vadd.f32 %v2696, %v3128
  %v3292 = vadd.f32 %v2697, %v3131
  %v3293 = vadd.f32 %v2698, %v3134
  %v3294 = vadd.f32 %v2699, %v3137
  %v3295 = vadd.f32 %v2700, %v3140
  %v3296 = vadd.f32 %v2701, %v3143
  %v3297 = vadd.f32 %v2702, %v3146
  %v3298 = vadd.f32 %v2703, %v3149
  %v3299 = vadd.f32 %v2704, %v3152
  %v3300 = vadd.f32 %v2705, %v3155
  %v3301 = vadd.f32 %v2706, %v3158
  %v3302 = vadd.f32 %v2707, %v3161
  %v3303 = vadd.f32 %v2708, %v3164
  %v3304 = vadd.f32 %v2709, %v3167
  %v3305 = vadd.f32 %v2710, %v3170
  %v3306 = vadd.f32 %v2711, %v3173
  %v3307 = vadd.f32 %v2712, %v3176
  %v3308 = vadd.f32 %v2713, %v3179
  %v3309 = vadd.f32 %v2714, %v3182
  %v3310 = vadd.f32 %v2715, %v3185
  %v3311 = vadd.f32 %v2716, %v3188
  %v3312 = vadd.f32 %v2717, %v3191
  %v3313 = vadd.f32 %v2718, %v3194
  %v3314 = vadd.f32 %v2719, %v3197
  %v3315 = vadd.f32 %v2720, %v3200
  %v3316 = vadd.f32 %v2721, %v3203
  %v3317 = vadd.f32 %v2722, %v3206
  %v3318 = vadd.f32 %v2723, %v3209
  %v3319 = vadd.f32 %v2724, %v3212
  %v3320 = vadd.f32 %v2725, %v3215
  %v3321 = vadd.f32 %v2726, %v3218
  %v3322 = vadd.f32 %v2727, %v3221
  %v3323 = vadd.f32 %v2728, %v3224
  %v3324 = vadd.f32 %v2729, %v3227
  %v3325 = vadd.f32 %v2730, %v3230
  %v3326 = vadd.f32 %v2731, %v3233
  %v3327 = vadd.f32 %v2732, %v3236
  %v3328 = vadd.f32 %v2733, %v3239
  %v3329 = vadd.f32 %v2734, %v3242
  %v3330 = vadd.f32 %v2735, %v3245
  %v3331 = vadd.f32 %v2736, %v3248
  %v3332 = vadd.f32 %v2737, %v3251
  %v3333 = vadd.f32 %v2738, %v3254
  %v3334 = vadd.f32 %v2739, %v3257
  %v3335 = vadd.f32 %v2740, %v3260
  %v3336 = vadd.f32 %v2741, %v3263
  %v3337 = vadd.f32 %v2742, %v3266
  %v3338 = vadd.f32 %v2743, %v3269
  %v3339 = vadd.f32 %v2744, %v3272
  %v3340 = vadd.f32 %v2745, %v3275
  %v3341 = vld [vmem:[#allocation2 + $0x11] sm:$0xff]
  %v3342 = vld [vmem:[#allocation2 + $0x19] sm:$0xff]
  %v3343 = vld [vmem:[#allocation2 + $0x21] sm:$0xff]
  %v3344 = vld [vmem:[#allocation2 + $0x29] sm:$0xff]
  %v3345 = vld [vmem:[#allocation2 + $0x31] sm:$0xff]
  %v3346 = vld [vmem:[#allocation2 + $0x39] sm:$0xff]
  %v3347 = vld [vmem:[#allocation2 + $0x41] sm:$0xff]
  %v3348 = vld [vmem:[#allocation2 + $0x49] sm:$0xff]
  %v3349 = vld [vmem:[#allocation2 + $0x51] sm:$0xff]
  %v3350 = vld [vmem:[#allocation2 + $0x59] sm:$0xff]
  %v3351 = vld [vmem:[#allocation2 + $0x61] sm:$0xff]
  %v3352 = vld [vmem:[#allocation2 + $0x69] sm:$0xff]
  %v3353 = vld [vmem:[#allocation2 + $0x71] sm:$0xff]
  %v3354 = vld [vmem:[#allocation2 + $0x79] sm:$0xff]
  %v3355 = vld [vmem:[#allocation2 + $0x81] sm:$0xff]
  %v3356 = vld [vmem:[#allocation2 + $0x89] sm:$0xff]
  %v3357 = vld [vmem:[#allocation2 + $0x91] sm:$0xff]
  %v3358 = vld [vmem:[#allocation2 + $0x99] sm:$0xff]
  %v3359 = vld [vmem:[#allocation2 + $0xa1] sm:$0xff]
  %v3360 = vld [vmem:[#allocation2 + $0xa9] sm:$0xff]
  %v3361 = vld [vmem:[#allocation2 + $0xb1] sm:$0xff]
  %v3362 = vld [vmem:[#allocation2 + $0xb9] sm:$0xff]
  %v3363 = vld [vmem:[#allocation2 + $0xc1] sm:$0xff]
  %v3364 = vld [vmem:[#allocation2 + $0xc9] sm:$0xff]
  %v3365 = vld [vmem:[#allocation2 + $0xd1] sm:$0xff]
  %v3366 = vld [vmem:[#allocation2 + $0xd9] sm:$0xff]
  %v3367 = vld [vmem:[#allocation2 + $0xe1] sm:$0xff]
  %v3368 = vld [vmem:[#allocation2 + $0xe9] sm:$0xff]
  %v3369 = vld [vmem:[#allocation2 + $0xf1] sm:$0xff]
  %v3370 = vld [vmem:[#allocation2 + $0xf9] sm:$0xff]
  %v3371 = vld [vmem:[#allocation2 + $0x101] sm:$0xff]
  %v3372 = vld [vmem:[#allocation2 + $0x109] sm:$0xff]
  %v3373 = vld [vmem:[#allocation2 + $0x139] sm:$0xff]
  %v3374 = vld [vmem:[#allocation2 + $0x141] sm:$0xff]
  %v3375 = vld [vmem:[#allocation2 + $0x149] sm:$0xff]
  %v3376 = vld [vmem:[#allocation2 + $0x151] sm:$0xff]
  %v3377 = vld [vmem:[#allocation2 + $0x159] sm:$0xff]
  %v3378 = vld [vmem:[#allocation2 + $0x161] sm:$0xff]
  %v3379 = vld [vmem:[#allocation2 + $0x169] sm:$0xff]
  %v3380 = vld [vmem:[#allocation2 + $0x171] sm:$0xff]
  %v3381 = vld [vmem:[#allocation2 + $0x179] sm:$0xff]
  %v3382 = vld [vmem:[#allocation2 + $0x181] sm:$0xff]
  %v3383 = vld [vmem:[#allocation2 + $0x189] sm:$0xff]
  %v3384 = vld [vmem:[#allocation2 + $0x191] sm:$0xff]
  %v3385 = vld [vmem:[#allocation2 + $0x199] sm:$0xff]
  %v3386 = vld [vmem:[#allocation2 + $0x1a1] sm:$0xff]
  %v3387 = vld [vmem:[#allocation2 + $0x1a9] sm:$0xff]
  %v3388 = vld [vmem:[#allocation2 + $0x1b1] sm:$0xff]
  %v3389 = vld [vmem:[#allocation2 + $0x1b9] sm:$0xff]
  %v3390 = vld [vmem:[#allocation2 + $0x1c1] sm:$0xff]
  %v3391 = vld [vmem:[#allocation2 + $0x1c9] sm:$0xff]
  %v3392 = vld [vmem:[#allocation2 + $0x1d1] sm:$0xff]
  %v3393 = vld [vmem:[#allocation2 + $0x1d9] sm:$0xff]
  %v3394 = vld [vmem:[#allocation2 + $0x1e1] sm:$0xff]
  %v3395 = vld [vmem:[#allocation2 + $0x1e9] sm:$0xff]
  %v3396 = vld [vmem:[#allocation2 + $0x1f1] sm:$0xff]
  %v3397 = vld [vmem:[#allocation2 + $0x1f9] sm:$0xff]
  %v3398 = vld [vmem:[#allocation2 + $0x201] sm:$0xff]
  %v3399 = vld [vmem:[#allocation2 + $0x209] sm:$0xff]
  %v3400 = vld [vmem:[#allocation2 + $0x211] sm:$0xff]
  %v3401 = vld [vmem:[#allocation2 + $0x219] sm:$0xff]
  %v3402 = vld [vmem:[#allocation2 + $0x221] sm:$0xff]
  %v3403 = vld [vmem:[#allocation2 + $0x229] sm:$0xff]
  %v3404 = vld [vmem:[#allocation2 + $0x231] sm:$0xff]
  %s3405 = scalar_lea.vmem %s1, 32
  %v3406 = vld [vmem:[%s3405] sm:$0xff]
  %v3408 = vsel %vm32, %v3341, 0
  %v3411 = vsel %vm32, %v3342, 0
  %v3414 = vsel %vm32, %v3343, 0
  %v3417 = vsel %vm32, %v3344, 0
  %v3420 = vsel %vm32, %v3345, 0
  %v3423 = vsel %vm32, %v3346, 0
  %v3426 = vsel %vm32, %v3347, 0
  %v3429 = vsel %vm32, %v3348, 0
  %v3432 = vsel %vm32, %v3349, 0
  %v3435 = vsel %vm32, %v3350, 0
  %v3438 = vsel %vm32, %v3351, 0
  %v3441 = vsel %vm32, %v3352, 0
  %v3444 = vsel %vm32, %v3353, 0
  %v3447 = vsel %vm32, %v3354, 0
  %v3450 = vsel %vm32, %v3355, 0
  %v3453 = vsel %vm32, %v3356, 0
  %v3456 = vsel %vm32, %v3357, 0
  %v3459 = vsel %vm32, %v3358, 0
  %v3462 = vsel %vm32, %v3359, 0
  %v3465 = vsel %vm32, %v3360, 0
  %v3468 = vsel %vm32, %v3361, 0
  %v3471 = vsel %vm32, %v3362, 0
  %v3474 = vsel %vm32, %v3363, 0
  %v3477 = vsel %vm32, %v3364, 0
  %v3480 = vsel %vm32, %v3365, 0
  %v3483 = vsel %vm32, %v3366, 0
  %v3486 = vsel %vm32, %v3367, 0
  %v3489 = vsel %vm32, %v3368, 0
  %v3492 = vsel %vm32, %v3369, 0
  %v3495 = vsel %vm32, %v3370, 0
  %v3498 = vsel %vm32, %v3371, 0
  %v3501 = vsel %vm32, %v3372, 0
  %v3504 = vsel %vm32, %v3373, 0
  %v3507 = vsel %vm32, %v3374, 0
  %v3510 = vsel %vm32, %v3375, 0
  %v3513 = vsel %vm32, %v3376, 0
  %v3516 = vsel %vm32, %v3377, 0
  %v3519 = vsel %vm32, %v3378, 0
  %v3522 = vsel %vm32, %v3379, 0
  %v3525 = vsel %vm32, %v3380, 0
  %v3528 = vsel %vm32, %v3381, 0
  %v3531 = vsel %vm32, %v3382, 0
  %v3534 = vsel %vm32, %v3383, 0
  %v3537 = vsel %vm32, %v3384, 0
  %v3540 = vsel %vm32, %v3385, 0
  %v3543 = vsel %vm32, %v3386, 0
  %v3546 = vsel %vm32, %v3387, 0
  %v3549 = vsel %vm32, %v3388, 0
  %v3552 = vsel %vm32, %v3389, 0
  %v3555 = vsel %vm32, %v3390, 0
  %v3558 = vsel %vm32, %v3391, 0
  %v3561 = vsel %vm32, %v3392, 0
  %v3564 = vsel %vm32, %v3393, 0
  %v3567 = vsel %vm32, %v3394, 0
  %v3570 = vsel %vm32, %v3395, 0
  %v3573 = vsel %vm32, %v3396, 0
  %v3576 = vsel %vm32, %v3397, 0
  %v3579 = vsel %vm32, %v3398, 0
  %v3582 = vsel %vm32, %v3399, 0
  %v3585 = vsel %vm32, %v3400, 0
  %v3588 = vsel %vm32, %v3401, 0
  %v3591 = vsel %vm32, %v3402, 0
  %v3594 = vsel %vm32, %v3403, 0
  %v3597 = vsel %vm32, %v3404, 0
  %3599 = vmatpush.msra.mxu0 0.0
  %3600 = vmatpush.msra.mxu0 0.0
  %3601 = vmatpush.msra.mxu0 0.0
  %3602 = vmatpush.msra.mxu0 0.0
  %3603 = vmatpush.msra.mxu0 0.0
  %3604 = vmatpush.msra.mxu0 0.0
  %3605 = vmatpush.msra.mxu0 0.0
  %3606 = vmatpush.msra.mxu0 0.0
  %3607 = vmatpush.msra.mxu0 0.0
  %3608 = vmatpush.msra.mxu0 0.0
  %3609 = vmatpush.msra.mxu0 0.0
  %3610 = vmatpush.msra.mxu0 0.0
  %3611 = vmatpush.msra.mxu0 0.0
  %3612 = vmatpush.msra.mxu0 0.0
  %3613 = vmatpush.msra.mxu0 0.0
  %3614 = vmatpush.msra.mxu0 %v3406
  %3615 = vmatmul.f32.gmra.mxu0 %v3408
  %v3616 = vpop.f32.mrf.mxu0
  %v3617 = vadd.f32 0.0, %v3616
  %3618 = vmatmul.f32.gmra.mxu0 %v3411
  %v3619 = vpop.f32.mrf.mxu0
  %v3620 = vadd.f32 0.0, %v3619
  %3621 = vmatmul.f32.gmra.mxu0 %v3414
  %v3622 = vpop.f32.mrf.mxu0
  %v3623 = vadd.f32 0.0, %v3622
  %3624 = vmatmul.f32.gmra.mxu0 %v3417
  %v3625 = vpop.f32.mrf.mxu0
  %v3626 = vadd.f32 0.0, %v3625
  %3627 = vmatmul.f32.gmra.mxu0 %v3420
  %v3628 = vpop.f32.mrf.mxu0
  %v3629 = vadd.f32 0.0, %v3628
  %3630 = vmatmul.f32.gmra.mxu0 %v3423
  %v3631 = vpop.f32.mrf.mxu0
  %v3632 = vadd.f32 0.0, %v3631
  %3633 = vmatmul.f32.gmra.mxu0 %v3426
  %v3634 = vpop.f32.mrf.mxu0
  %v3635 = vadd.f32 0.0, %v3634
  %3636 = vmatmul.f32.gmra.mxu0 %v3429
  %v3637 = vpop.f32.mrf.mxu0
  %v3638 = vadd.f32 0.0, %v3637
  %3639 = vmatmul.f32.gmra.mxu0 %v3432
  %v3640 = vpop.f32.mrf.mxu0
  %v3641 = vadd.f32 0.0, %v3640
  %3642 = vmatmul.f32.gmra.mxu0 %v3435
  %v3643 = vpop.f32.mrf.mxu0
  %v3644 = vadd.f32 0.0, %v3643
  %3645 = vmatmul.f32.gmra.mxu0 %v3438
  %v3646 = vpop.f32.mrf.mxu0
  %v3647 = vadd.f32 0.0, %v3646
  %3648 = vmatmul.f32.gmra.mxu0 %v3441
  %v3649 = vpop.f32.mrf.mxu0
  %v3650 = vadd.f32 0.0, %v3649
  %3651 = vmatmul.f32.gmra.mxu0 %v3444
  %v3652 = vpop.f32.mrf.mxu0
  %v3653 = vadd.f32 0.0, %v3652
  %3654 = vmatmul.f32.gmra.mxu0 %v3447
  %v3655 = vpop.f32.mrf.mxu0
  %v3656 = vadd.f32 0.0, %v3655
  %3657 = vmatmul.f32.gmra.mxu0 %v3450
  %v3658 = vpop.f32.mrf.mxu0
  %v3659 = vadd.f32 0.0, %v3658
  %3660 = vmatmul.f32.gmra.mxu0 %v3453
  %v3661 = vpop.f32.mrf.mxu0
  %v3662 = vadd.f32 0.0, %v3661
  %3663 = vmatmul.f32.gmra.mxu0 %v3456
  %v3664 = vpop.f32.mrf.mxu0
  %v3665 = vadd.f32 0.0, %v3664
  %3666 = vmatmul.f32.gmra.mxu0 %v3459
  %v3667 = vpop.f32.mrf.mxu0
  %v3668 = vadd.f32 0.0, %v3667
  %3669 = vmatmul.f32.gmra.mxu0 %v3462
  %v3670 = vpop.f32.mrf.mxu0
  %v3671 = vadd.f32 0.0, %v3670
  %3672 = vmatmul.f32.gmra.mxu0 %v3465
  %v3673 = vpop.f32.mrf.mxu0
  %v3674 = vadd.f32 0.0, %v3673
  %3675 = vmatmul.f32.gmra.mxu0 %v3468
  %v3676 = vpop.f32.mrf.mxu0
  %v3677 = vadd.f32 0.0, %v3676
  %3678 = vmatmul.f32.gmra.mxu0 %v3471
  %v3679 = vpop.f32.mrf.mxu0
  %v3680 = vadd.f32 0.0, %v3679
  %3681 = vmatmul.f32.gmra.mxu0 %v3474
  %v3682 = vpop.f32.mrf.mxu0
  %v3683 = vadd.f32 0.0, %v3682
  %3684 = vmatmul.f32.gmra.mxu0 %v3477
  %v3685 = vpop.f32.mrf.mxu0
  %v3686 = vadd.f32 0.0, %v3685
  %3687 = vmatmul.f32.gmra.mxu0 %v3480
  %v3688 = vpop.f32.mrf.mxu0
  %v3689 = vadd.f32 0.0, %v3688
  %3690 = vmatmul.f32.gmra.mxu0 %v3483
  %v3691 = vpop.f32.mrf.mxu0
  %v3692 = vadd.f32 0.0, %v3691
  %3693 = vmatmul.f32.gmra.mxu0 %v3486
  %v3694 = vpop.f32.mrf.mxu0
  %v3695 = vadd.f32 0.0, %v3694
  %3696 = vmatmul.f32.gmra.mxu0 %v3489
  %v3697 = vpop.f32.mrf.mxu0
  %v3698 = vadd.f32 0.0, %v3697
  %3699 = vmatmul.f32.gmra.mxu0 %v3492
  %v3700 = vpop.f32.mrf.mxu0
  %v3701 = vadd.f32 0.0, %v3700
  %3702 = vmatmul.f32.gmra.mxu0 %v3495
  %v3703 = vpop.f32.mrf.mxu0
  %v3704 = vadd.f32 0.0, %v3703
  %3705 = vmatmul.f32.gmra.mxu0 %v3498
  %v3706 = vpop.f32.mrf.mxu0
  %v3707 = vadd.f32 0.0, %v3706
  %3708 = vmatmul.f32.gmra.mxu0 %v3501
  %v3709 = vpop.f32.mrf.mxu0
  %v3710 = vadd.f32 0.0, %v3709
  %3711 = vmatmul.f32.gmra.mxu0 %v3504
  %v3712 = vpop.f32.mrf.mxu0
  %v3713 = vadd.f32 0.0, %v3712
  %3714 = vmatmul.f32.gmra.mxu0 %v3507
  %v3715 = vpop.f32.mrf.mxu0
  %v3716 = vadd.f32 0.0, %v3715
  %3717 = vmatmul.f32.gmra.mxu0 %v3510
  %v3718 = vpop.f32.mrf.mxu0
  %v3719 = vadd.f32 0.0, %v3718
  %3720 = vmatmul.f32.gmra.mxu0 %v3513
  %v3721 = vpop.f32.mrf.mxu0
  %v3722 = vadd.f32 0.0, %v3721
  %3723 = vmatmul.f32.gmra.mxu0 %v3516
  %v3724 = vpop.f32.mrf.mxu0
  %v3725 = vadd.f32 0.0, %v3724
  %3726 = vmatmul.f32.gmra.mxu0 %v3519
  %v3727 = vpop.f32.mrf.mxu0
  %v3728 = vadd.f32 0.0, %v3727
  %3729 = vmatmul.f32.gmra.mxu0 %v3522
  %v3730 = vpop.f32.mrf.mxu0
  %v3731 = vadd.f32 0.0, %v3730
  %3732 = vmatmul.f32.gmra.mxu0 %v3525
  %v3733 = vpop.f32.mrf.mxu0
  %v3734 = vadd.f32 0.0, %v3733
  %3735 = vmatmul.f32.gmra.mxu0 %v3528
  %v3736 = vpop.f32.mrf.mxu0
  %v3737 = vadd.f32 0.0, %v3736
  %3738 = vmatmul.f32.gmra.mxu0 %v3531
  %v3739 = vpop.f32.mrf.mxu0
  %v3740 = vadd.f32 0.0, %v3739
  %3741 = vmatmul.f32.gmra.mxu0 %v3534
  %v3742 = vpop.f32.mrf.mxu0
  %v3743 = vadd.f32 0.0, %v3742
  %3744 = vmatmul.f32.gmra.mxu0 %v3537
  %v3745 = vpop.f32.mrf.mxu0
  %v3746 = vadd.f32 0.0, %v3745
  %3747 = vmatmul.f32.gmra.mxu0 %v3540
  %v3748 = vpop.f32.mrf.mxu0
  %v3749 = vadd.f32 0.0, %v3748
  %3750 = vmatmul.f32.gmra.mxu0 %v3543
  %v3751 = vpop.f32.mrf.mxu0
  %v3752 = vadd.f32 0.0, %v3751
  %3753 = vmatmul.f32.gmra.mxu0 %v3546
  %v3754 = vpop.f32.mrf.mxu0
  %v3755 = vadd.f32 0.0, %v3754
  %3756 = vmatmul.f32.gmra.mxu0 %v3549
  %v3757 = vpop.f32.mrf.mxu0
  %v3758 = vadd.f32 0.0, %v3757
  %3759 = vmatmul.f32.gmra.mxu0 %v3552
  %v3760 = vpop.f32.mrf.mxu0
  %v3761 = vadd.f32 0.0, %v3760
  %3762 = vmatmul.f32.gmra.mxu0 %v3555
  %v3763 = vpop.f32.mrf.mxu0
  %v3764 = vadd.f32 0.0, %v3763
  %3765 = vmatmul.f32.gmra.mxu0 %v3558
  %v3766 = vpop.f32.mrf.mxu0
  %v3767 = vadd.f32 0.0, %v3766
  %3768 = vmatmul.f32.gmra.mxu0 %v3561
  %v3769 = vpop.f32.mrf.mxu0
  %v3770 = vadd.f32 0.0, %v3769
  %3771 = vmatmul.f32.gmra.mxu0 %v3564
  %v3772 = vpop.f32.mrf.mxu0
  %v3773 = vadd.f32 0.0, %v3772
  %3774 = vmatmul.f32.gmra.mxu0 %v3567
  %v3775 = vpop.f32.mrf.mxu0
  %v3776 = vadd.f32 0.0, %v3775
  %3777 = vmatmul.f32.gmra.mxu0 %v3570
  %v3778 = vpop.f32.mrf.mxu0
  %v3779 = vadd.f32 0.0, %v3778
  %3780 = vmatmul.f32.gmra.mxu0 %v3573
  %v3781 = vpop.f32.mrf.mxu0
  %v3782 = vadd.f32 0.0, %v3781
  %3783 = vmatmul.f32.gmra.mxu0 %v3576
  %v3784 = vpop.f32.mrf.mxu0
  %v3785 = vadd.f32 0.0, %v3784
  %3786 = vmatmul.f32.gmra.mxu0 %v3579
  %v3787 = vpop.f32.mrf.mxu0
  %v3788 = vadd.f32 0.0, %v3787
  %3789 = vmatmul.f32.gmra.mxu0 %v3582
  %v3790 = vpop.f32.mrf.mxu0
  %v3791 = vadd.f32 0.0, %v3790
  %3792 = vmatmul.f32.gmra.mxu0 %v3585
  %v3793 = vpop.f32.mrf.mxu0
  %v3794 = vadd.f32 0.0, %v3793
  %3795 = vmatmul.f32.gmra.mxu0 %v3588
  %v3796 = vpop.f32.mrf.mxu0
  %v3797 = vadd.f32 0.0, %v3796
  %3798 = vmatmul.f32.gmra.mxu0 %v3591
  %v3799 = vpop.f32.mrf.mxu0
  %v3800 = vadd.f32 0.0, %v3799
  %3801 = vmatmul.f32.gmra.mxu0 %v3594
  %v3802 = vpop.f32.mrf.mxu0
  %v3803 = vadd.f32 0.0, %v3802
  %3804 = vmatmul.f32.gmra.mxu0 %v3597
  %v3805 = vpop.f32.mrf.mxu0
  %v3806 = vadd.f32 0.0, %v3805
  %3807 = vdwg.mxu0
  %v3808 = vadd.f32 %v3277, %v3617
  %v3809 = vadd.f32 %v3278, %v3620
  %v3810 = vadd.f32 %v3279, %v3623
  %v3811 = vadd.f32 %v3280, %v3626
  %v3812 = vadd.f32 %v3281, %v3629
  %v3813 = vadd.f32 %v3282, %v3632
  %v3814 = vadd.f32 %v3283, %v3635
  %v3815 = vadd.f32 %v3284, %v3638
  %v3816 = vadd.f32 %v3285, %v3641
  %v3817 = vadd.f32 %v3286, %v3644
  %v3818 = vadd.f32 %v3287, %v3647
  %v3819 = vadd.f32 %v3288, %v3650
  %v3820 = vadd.f32 %v3289, %v3653
  %v3821 = vadd.f32 %v3290, %v3656
  %v3822 = vadd.f32 %v3291, %v3659
  %v3823 = vadd.f32 %v3292, %v3662
  %v3824 = vadd.f32 %v3293, %v3665
  %v3825 = vadd.f32 %v3294, %v3668
  %v3826 = vadd.f32 %v3295, %v3671
  %v3827 = vadd.f32 %v3296, %v3674
  %v3828 = vadd.f32 %v3297, %v3677
  %v3829 = vadd.f32 %v3298, %v3680
  %v3830 = vadd.f32 %v3299, %v3683
  %v3831 = vadd.f32 %v3300, %v3686
  %v3832 = vadd.f32 %v3301, %v3689
  %v3833 = vadd.f32 %v3302, %v3692
  %v3834 = vadd.f32 %v3303, %v3695
  %v3835 = vadd.f32 %v3304, %v3698
  %v3836 = vadd.f32 %v3305, %v3701
  %v3837 = vadd.f32 %v3306, %v3704
  %v3838 = vadd.f32 %v3307, %v3707
  %v3839 = vadd.f32 %v3308, %v3710
  %v3840 = vadd.f32 %v3309, %v3713
  %v3841 = vadd.f32 %v3310, %v3716
  %v3842 = vadd.f32 %v3311, %v3719
  %v3843 = vadd.f32 %v3312, %v3722
  %v3844 = vadd.f32 %v3313, %v3725
  %v3845 = vadd.f32 %v3314, %v3728
  %v3846 = vadd.f32 %v3315, %v3731
  %v3847 = vadd.f32 %v3316, %v3734
  %v3848 = vadd.f32 %v3317, %v3737
  %v3849 = vadd.f32 %v3318, %v3740
  %v3850 = vadd.f32 %v3319, %v3743
  %v3851 = vadd.f32 %v3320, %v3746
  %v3852 = vadd.f32 %v3321, %v3749
  %v3853 = vadd.f32 %v3322, %v3752
  %v3854 = vadd.f32 %v3323, %v3755
  %v3855 = vadd.f32 %v3324, %v3758
  %v3856 = vadd.f32 %v3325, %v3761
  %v3857 = vadd.f32 %v3326, %v3764
  %v3858 = vadd.f32 %v3327, %v3767
  %v3859 = vadd.f32 %v3328, %v3770
  %v3860 = vadd.f32 %v3329, %v3773
  %v3861 = vadd.f32 %v3330, %v3776
  %v3862 = vadd.f32 %v3331, %v3779
  %v3863 = vadd.f32 %v3332, %v3782
  %v3864 = vadd.f32 %v3333, %v3785
  %v3865 = vadd.f32 %v3334, %v3788
  %v3866 = vadd.f32 %v3335, %v3791
  %v3867 = vadd.f32 %v3336, %v3794
  %v3868 = vadd.f32 %v3337, %v3797
  %v3869 = vadd.f32 %v3338, %v3800
  %v3870 = vadd.f32 %v3339, %v3803
  %v3871 = vadd.f32 %v3340, %v3806
  %v3872 = vld [vmem:[#allocation2 + $0x12] sm:$0xff]
  %v3873 = vld [vmem:[#allocation2 + $0x1a] sm:$0xff]
  %v3874 = vld [vmem:[#allocation2 + $0x22] sm:$0xff]
  %v3875 = vld [vmem:[#allocation2 + $0x2a] sm:$0xff]
  %v3876 = vld [vmem:[#allocation2 + $0x32] sm:$0xff]
  %v3877 = vld [vmem:[#allocation2 + $0x3a] sm:$0xff]
  %v3878 = vld [vmem:[#allocation2 + $0x42] sm:$0xff]
  %v3879 = vld [vmem:[#allocation2 + $0x4a] sm:$0xff]
  %v3880 = vld [vmem:[#allocation2 + $0x52] sm:$0xff]
  %v3881 = vld [vmem:[#allocation2 + $0x5a] sm:$0xff]
  %v3882 = vld [vmem:[#allocation2 + $0x62] sm:$0xff]
  %v3883 = vld [vmem:[#allocation2 + $0x6a] sm:$0xff]
  %v3884 = vld [vmem:[#allocation2 + $0x72] sm:$0xff]
  %v3885 = vld [vmem:[#allocation2 + $0x7a] sm:$0xff]
  %v3886 = vld [vmem:[#allocation2 + $0x82] sm:$0xff]
  %v3887 = vld [vmem:[#allocation2 + $0x8a] sm:$0xff]
  %v3888 = vld [vmem:[#allocation2 + $0x92] sm:$0xff]
  %v3889 = vld [vmem:[#allocation2 + $0x9a] sm:$0xff]
  %v3890 = vld [vmem:[#allocation2 + $0xa2] sm:$0xff]
  %v3891 = vld [vmem:[#allocation2 + $0xaa] sm:$0xff]
  %v3892 = vld [vmem:[#allocation2 + $0xb2] sm:$0xff]
  %v3893 = vld [vmem:[#allocation2 + $0xba] sm:$0xff]
  %v3894 = vld [vmem:[#allocation2 + $0xc2] sm:$0xff]
  %v3895 = vld [vmem:[#allocation2 + $0xca] sm:$0xff]
  %v3896 = vld [vmem:[#allocation2 + $0xd2] sm:$0xff]
  %v3897 = vld [vmem:[#allocation2 + $0xda] sm:$0xff]
  %v3898 = vld [vmem:[#allocation2 + $0xe2] sm:$0xff]
  %v3899 = vld [vmem:[#allocation2 + $0xea] sm:$0xff]
  %v3900 = vld [vmem:[#allocation2 + $0xf2] sm:$0xff]
  %v3901 = vld [vmem:[#allocation2 + $0xfa] sm:$0xff]
  %v3902 = vld [vmem:[#allocation2 + $0x102] sm:$0xff]
  %v3903 = vld [vmem:[#allocation2 + $0x10a] sm:$0xff]
  %v3904 = vld [vmem:[#allocation2 + $0x13a] sm:$0xff]
  %v3905 = vld [vmem:[#allocation2 + $0x142] sm:$0xff]
  %v3906 = vld [vmem:[#allocation2 + $0x14a] sm:$0xff]
  %v3907 = vld [vmem:[#allocation2 + $0x152] sm:$0xff]
  %v3908 = vld [vmem:[#allocation2 + $0x15a] sm:$0xff]
  %v3909 = vld [vmem:[#allocation2 + $0x162] sm:$0xff]
  %v3910 = vld [vmem:[#allocation2 + $0x16a] sm:$0xff]
  %v3911 = vld [vmem:[#allocation2 + $0x172] sm:$0xff]
  %v3912 = vld [vmem:[#allocation2 + $0x17a] sm:$0xff]
  %v3913 = vld [vmem:[#allocation2 + $0x182] sm:$0xff]
  %v3914 = vld [vmem:[#allocation2 + $0x18a] sm:$0xff]
  %v3915 = vld [vmem:[#allocation2 + $0x192] sm:$0xff]
  %v3916 = vld [vmem:[#allocation2 + $0x19a] sm:$0xff]
  %v3917 = vld [vmem:[#allocation2 + $0x1a2] sm:$0xff]
  %v3918 = vld [vmem:[#allocation2 + $0x1aa] sm:$0xff]
  %v3919 = vld [vmem:[#allocation2 + $0x1b2] sm:$0xff]
  %v3920 = vld [vmem:[#allocation2 + $0x1ba] sm:$0xff]
  %v3921 = vld [vmem:[#allocation2 + $0x1c2] sm:$0xff]
  %v3922 = vld [vmem:[#allocation2 + $0x1ca] sm:$0xff]
  %v3923 = vld [vmem:[#allocation2 + $0x1d2] sm:$0xff]
  %v3924 = vld [vmem:[#allocation2 + $0x1da] sm:$0xff]
  %v3925 = vld [vmem:[#allocation2 + $0x1e2] sm:$0xff]
  %v3926 = vld [vmem:[#allocation2 + $0x1ea] sm:$0xff]
  %v3927 = vld [vmem:[#allocation2 + $0x1f2] sm:$0xff]
  %v3928 = vld [vmem:[#allocation2 + $0x1fa] sm:$0xff]
  %v3929 = vld [vmem:[#allocation2 + $0x202] sm:$0xff]
  %v3930 = vld [vmem:[#allocation2 + $0x20a] sm:$0xff]
  %v3931 = vld [vmem:[#allocation2 + $0x212] sm:$0xff]
  %v3932 = vld [vmem:[#allocation2 + $0x21a] sm:$0xff]
  %v3933 = vld [vmem:[#allocation2 + $0x222] sm:$0xff]
  %v3934 = vld [vmem:[#allocation2 + $0x22a] sm:$0xff]
  %v3935 = vld [vmem:[#allocation2 + $0x232] sm:$0xff]
  %v3936 = vsel %vm1090, %v3872, 0.0
  %v3937 = vsel %vm1091, %v3873, 0.0
  %v3938 = vsel %vm1092, %v3874, 0.0
  %v3939 = vsel %vm1093, %v3875, 0.0
  %v3940 = vsel %vm1094, %v3876, 0.0
  %v3941 = vsel %vm1095, %v3877, 0.0
  %v3942 = vsel %vm1096, %v3878, 0.0
  %v3943 = vsel %vm1097, %v3879, 0.0
  %v3944 = vsel %vm1098, %v3880, 0.0
  %v3945 = vsel %vm1099, %v3881, 0.0
  %v3946 = vsel %vm1100, %v3882, 0.0
  %v3947 = vsel %vm1101, %v3883, 0.0
  %v3948 = vsel %vm1102, %v3884, 0.0
  %v3949 = vsel %vm1103, %v3885, 0.0
  %v3950 = vsel %vm1104, %v3886, 0.0
  %v3951 = vsel %vm1105, %v3887, 0.0
  %v3952 = vsel %vm1106, %v3888, 0.0
  %v3953 = vsel %vm1107, %v3889, 0.0
  %v3954 = vsel %vm1108, %v3890, 0.0
  %v3955 = vsel %vm1109, %v3891, 0.0
  %v3956 = vsel %vm1110, %v3892, 0.0
  %v3957 = vsel %vm1111, %v3893, 0.0
  %v3958 = vsel %vm1112, %v3894, 0.0
  %v3959 = vsel %vm1113, %v3895, 0.0
  %v3960 = vsel %vm1114, %v3896, 0.0
  %v3961 = vsel %vm1115, %v3897, 0.0
  %v3962 = vsel %vm1116, %v3898, 0.0
  %v3963 = vsel %vm1117, %v3899, 0.0
  %v3964 = vsel %vm1118, %v3900, 0.0
  %v3965 = vsel %vm1119, %v3901, 0.0
  %v3966 = vsel %vm1120, %v3902, 0.0
  %v3967 = vsel %vm1121, %v3903, 0.0
  %v3968 = vsel %vm1122, %v3904, 0.0
  %v3969 = vsel %vm1123, %v3905, 0.0
  %v3970 = vsel %vm1124, %v3906, 0.0
  %v3971 = vsel %vm1125, %v3907, 0.0
  %v3972 = vsel %vm1126, %v3908, 0.0
  %v3973 = vsel %vm1127, %v3909, 0.0
  %v3974 = vsel %vm1128, %v3910, 0.0
  %v3975 = vsel %vm1129, %v3911, 0.0
  %v3976 = vsel %vm1130, %v3912, 0.0
  %v3977 = vsel %vm1131, %v3913, 0.0
  %v3978 = vsel %vm1132, %v3914, 0.0
  %v3979 = vsel %vm1133, %v3915, 0.0
  %v3980 = vsel %vm1134, %v3916, 0.0
  %v3981 = vsel %vm1135, %v3917, 0.0
  %v3982 = vsel %vm1136, %v3918, 0.0
  %v3983 = vsel %vm1137, %v3919, 0.0
  %v3984 = vsel %vm1138, %v3920, 0.0
  %v3985 = vsel %vm1139, %v3921, 0.0
  %v3986 = vsel %vm1140, %v3922, 0.0
  %v3987 = vsel %vm1141, %v3923, 0.0
  %v3988 = vsel %vm1142, %v3924, 0.0
  %v3989 = vsel %vm1143, %v3925, 0.0
  %v3990 = vsel %vm1144, %v3926, 0.0
  %v3991 = vsel %vm1145, %v3927, 0.0
  %v3992 = vsel %vm1146, %v3928, 0.0
  %v3993 = vsel %vm1147, %v3929, 0.0
  %v3994 = vsel %vm1148, %v3930, 0.0
  %v3995 = vsel %vm1149, %v3931, 0.0
  %v3996 = vsel %vm1150, %v3932, 0.0
  %v3997 = vsel %vm1151, %v3933, 0.0
  %v3998 = vsel %vm1152, %v3934, 0.0
  %v3999 = vsel %vm1153, %v3935, 0.0
  %s4000 = scalar_lea.vmem %s1, 40
  %v4001 = vld [vmem:[%s4000] sm:$0xff]
  %v4003 = vsel %vm32, %v3936, 0
  %v4006 = vsel %vm32, %v3937, 0
  %v4009 = vsel %vm32, %v3938, 0
  %v4012 = vsel %vm32, %v3939, 0
  %v4015 = vsel %vm32, %v3940, 0
  %v4018 = vsel %vm32, %v3941, 0
  %v4021 = vsel %vm32, %v3942, 0
  %v4024 = vsel %vm32, %v3943, 0
  %v4027 = vsel %vm32, %v3944, 0
  %v4030 = vsel %vm32, %v3945, 0
  %v4033 = vsel %vm32, %v3946, 0
  %v4036 = vsel %vm32, %v3947, 0
  %v4039 = vsel %vm32, %v3948, 0
  %v4042 = vsel %vm32, %v3949, 0
  %v4045 = vsel %vm32, %v3950, 0
  %v4048 = vsel %vm32, %v3951, 0
  %v4051 = vsel %vm32, %v3952, 0
  %v4054 = vsel %vm32, %v3953, 0
  %v4057 = vsel %vm32, %v3954, 0
  %v4060 = vsel %vm32, %v3955, 0
  %v4063 = vsel %vm32, %v3956, 0
  %v4066 = vsel %vm32, %v3957, 0
  %v4069 = vsel %vm32, %v3958, 0
  %v4072 = vsel %vm32, %v3959, 0
  %v4075 = vsel %vm32, %v3960, 0
  %v4078 = vsel %vm32, %v3961, 0
  %v4081 = vsel %vm32, %v3962, 0
  %v4084 = vsel %vm32, %v3963, 0
  %v4087 = vsel %vm32, %v3964, 0
  %v4090 = vsel %vm32, %v3965, 0
  %v4093 = vsel %vm32, %v3966, 0
  %v4096 = vsel %vm32, %v3967, 0
  %v4099 = vsel %vm32, %v3968, 0
  %v4102 = vsel %vm32, %v3969, 0
  %v4105 = vsel %vm32, %v3970, 0
  %v4108 = vsel %vm32, %v3971, 0
  %v4111 = vsel %vm32, %v3972, 0
  %v4114 = vsel %vm32, %v3973, 0
  %v4117 = vsel %vm32, %v3974, 0
  %v4120 = vsel %vm32, %v3975, 0
  %v4123 = vsel %vm32, %v3976, 0
  %v4126 = vsel %vm32, %v3977, 0
  %v4129 = vsel %vm32, %v3978, 0
  %v4132 = vsel %vm32, %v3979, 0
  %v4135 = vsel %vm32, %v3980, 0
  %v4138 = vsel %vm32, %v3981, 0
  %v4141 = vsel %vm32, %v3982, 0
  %v4144 = vsel %vm32, %v3983, 0
  %v4147 = vsel %vm32, %v3984, 0
  %v4150 = vsel %vm32, %v3985, 0
  %v4153 = vsel %vm32, %v3986, 0
  %v4156 = vsel %vm32, %v3987, 0
  %v4159 = vsel %vm32, %v3988, 0
  %v4162 = vsel %vm32, %v3989, 0
  %v4165 = vsel %vm32, %v3990, 0
  %v4168 = vsel %vm32, %v3991, 0
  %v4171 = vsel %vm32, %v3992, 0
  %v4174 = vsel %vm32, %v3993, 0
  %v4177 = vsel %vm32, %v3994, 0
  %v4180 = vsel %vm32, %v3995, 0
  %v4183 = vsel %vm32, %v3996, 0
  %v4186 = vsel %vm32, %v3997, 0
  %v4189 = vsel %vm32, %v3998, 0
  %v4192 = vsel %vm32, %v3999, 0
  %4194 = vmatpush.msra.mxu0 0.0
  %4195 = vmatpush.msra.mxu0 0.0
  %4196 = vmatpush.msra.mxu0 0.0
  %4197 = vmatpush.msra.mxu0 0.0
  %4198 = vmatpush.msra.mxu0 0.0
  %4199 = vmatpush.msra.mxu0 0.0
  %4200 = vmatpush.msra.mxu0 0.0
  %4201 = vmatpush.msra.mxu0 0.0
  %4202 = vmatpush.msra.mxu0 0.0
  %4203 = vmatpush.msra.mxu0 0.0
  %4204 = vmatpush.msra.mxu0 0.0
  %4205 = vmatpush.msra.mxu0 0.0
  %4206 = vmatpush.msra.mxu0 0.0
  %4207 = vmatpush.msra.mxu0 0.0
  %4208 = vmatpush.msra.mxu0 0.0
  %4209 = vmatpush.msra.mxu0 %v4001
  %4210 = vmatmul.f32.gmra.mxu0 %v4003
  %v4211 = vpop.f32.mrf.mxu0
  %v4212 = vadd.f32 0.0, %v4211
  %4213 = vmatmul.f32.gmra.mxu0 %v4006
  %v4214 = vpop.f32.mrf.mxu0
  %v4215 = vadd.f32 0.0, %v4214
  %4216 = vmatmul.f32.gmra.mxu0 %v4009
  %v4217 = vpop.f32.mrf.mxu0
  %v4218 = vadd.f32 0.0, %v4217
  %4219 = vmatmul.f32.gmra.mxu0 %v4012
  %v4220 = vpop.f32.mrf.mxu0
  %v4221 = vadd.f32 0.0, %v4220
  %4222 = vmatmul.f32.gmra.mxu0 %v4015
  %v4223 = vpop.f32.mrf.mxu0
  %v4224 = vadd.f32 0.0, %v4223
  %4225 = vmatmul.f32.gmra.mxu0 %v4018
  %v4226 = vpop.f32.mrf.mxu0
  %v4227 = vadd.f32 0.0, %v4226
  %4228 = vmatmul.f32.gmra.mxu0 %v4021
  %v4229 = vpop.f32.mrf.mxu0
  %v4230 = vadd.f32 0.0, %v4229
  %4231 = vmatmul.f32.gmra.mxu0 %v4024
  %v4232 = vpop.f32.mrf.mxu0
  %v4233 = vadd.f32 0.0, %v4232
  %4234 = vmatmul.f32.gmra.mxu0 %v4027
  %v4235 = vpop.f32.mrf.mxu0
  %v4236 = vadd.f32 0.0, %v4235
  %4237 = vmatmul.f32.gmra.mxu0 %v4030
  %v4238 = vpop.f32.mrf.mxu0
  %v4239 = vadd.f32 0.0, %v4238
  %4240 = vmatmul.f32.gmra.mxu0 %v4033
  %v4241 = vpop.f32.mrf.mxu0
  %v4242 = vadd.f32 0.0, %v4241
  %4243 = vmatmul.f32.gmra.mxu0 %v4036
  %v4244 = vpop.f32.mrf.mxu0
  %v4245 = vadd.f32 0.0, %v4244
  %4246 = vmatmul.f32.gmra.mxu0 %v4039
  %v4247 = vpop.f32.mrf.mxu0
  %v4248 = vadd.f32 0.0, %v4247
  %4249 = vmatmul.f32.gmra.mxu0 %v4042
  %v4250 = vpop.f32.mrf.mxu0
  %v4251 = vadd.f32 0.0, %v4250
  %4252 = vmatmul.f32.gmra.mxu0 %v4045
  %v4253 = vpop.f32.mrf.mxu0
  %v4254 = vadd.f32 0.0, %v4253
  %4255 = vmatmul.f32.gmra.mxu0 %v4048
  %v4256 = vpop.f32.mrf.mxu0
  %v4257 = vadd.f32 0.0, %v4256
  %4258 = vmatmul.f32.gmra.mxu0 %v4051
  %v4259 = vpop.f32.mrf.mxu0
  %v4260 = vadd.f32 0.0, %v4259
  %4261 = vmatmul.f32.gmra.mxu0 %v4054
  %v4262 = vpop.f32.mrf.mxu0
  %v4263 = vadd.f32 0.0, %v4262
  %4264 = vmatmul.f32.gmra.mxu0 %v4057
  %v4265 = vpop.f32.mrf.mxu0
  %v4266 = vadd.f32 0.0, %v4265
  %4267 = vmatmul.f32.gmra.mxu0 %v4060
  %v4268 = vpop.f32.mrf.mxu0
  %v4269 = vadd.f32 0.0, %v4268
  %4270 = vmatmul.f32.gmra.mxu0 %v4063
  %v4271 = vpop.f32.mrf.mxu0
  %v4272 = vadd.f32 0.0, %v4271
  %4273 = vmatmul.f32.gmra.mxu0 %v4066
  %v4274 = vpop.f32.mrf.mxu0
  %v4275 = vadd.f32 0.0, %v4274
  %4276 = vmatmul.f32.gmra.mxu0 %v4069
  %v4277 = vpop.f32.mrf.mxu0
  %v4278 = vadd.f32 0.0, %v4277
  %4279 = vmatmul.f32.gmra.mxu0 %v4072
  %v4280 = vpop.f32.mrf.mxu0
  %v4281 = vadd.f32 0.0, %v4280
  %4282 = vmatmul.f32.gmra.mxu0 %v4075
  %v4283 = vpop.f32.mrf.mxu0
  %v4284 = vadd.f32 0.0, %v4283
  %4285 = vmatmul.f32.gmra.mxu0 %v4078
  %v4286 = vpop.f32.mrf.mxu0
  %v4287 = vadd.f32 0.0, %v4286
  %4288 = vmatmul.f32.gmra.mxu0 %v4081
  %v4289 = vpop.f32.mrf.mxu0
  %v4290 = vadd.f32 0.0, %v4289
  %4291 = vmatmul.f32.gmra.mxu0 %v4084
  %v4292 = vpop.f32.mrf.mxu0
  %v4293 = vadd.f32 0.0, %v4292
  %4294 = vmatmul.f32.gmra.mxu0 %v4087
  %v4295 = vpop.f32.mrf.mxu0
  %v4296 = vadd.f32 0.0, %v4295
  %4297 = vmatmul.f32.gmra.mxu0 %v4090
  %v4298 = vpop.f32.mrf.mxu0
  %v4299 = vadd.f32 0.0, %v4298
  %4300 = vmatmul.f32.gmra.mxu0 %v4093
  %v4301 = vpop.f32.mrf.mxu0
  %v4302 = vadd.f32 0.0, %v4301
  %4303 = vmatmul.f32.gmra.mxu0 %v4096
  %v4304 = vpop.f32.mrf.mxu0
  %v4305 = vadd.f32 0.0, %v4304
  %4306 = vmatmul.f32.gmra.mxu0 %v4099
  %v4307 = vpop.f32.mrf.mxu0
  %v4308 = vadd.f32 0.0, %v4307
  %4309 = vmatmul.f32.gmra.mxu0 %v4102
  %v4310 = vpop.f32.mrf.mxu0
  %v4311 = vadd.f32 0.0, %v4310
  %4312 = vmatmul.f32.gmra.mxu0 %v4105
  %v4313 = vpop.f32.mrf.mxu0
  %v4314 = vadd.f32 0.0, %v4313
  %4315 = vmatmul.f32.gmra.mxu0 %v4108
  %v4316 = vpop.f32.mrf.mxu0
  %v4317 = vadd.f32 0.0, %v4316
  %4318 = vmatmul.f32.gmra.mxu0 %v4111
  %v4319 = vpop.f32.mrf.mxu0
  %v4320 = vadd.f32 0.0, %v4319
  %4321 = vmatmul.f32.gmra.mxu0 %v4114
  %v4322 = vpop.f32.mrf.mxu0
  %v4323 = vadd.f32 0.0, %v4322
  %4324 = vmatmul.f32.gmra.mxu0 %v4117
  %v4325 = vpop.f32.mrf.mxu0
  %v4326 = vadd.f32 0.0, %v4325
  %4327 = vmatmul.f32.gmra.mxu0 %v4120
  %v4328 = vpop.f32.mrf.mxu0
  %v4329 = vadd.f32 0.0, %v4328
  %4330 = vmatmul.f32.gmra.mxu0 %v4123
  %v4331 = vpop.f32.mrf.mxu0
  %v4332 = vadd.f32 0.0, %v4331
  %4333 = vmatmul.f32.gmra.mxu0 %v4126
  %v4334 = vpop.f32.mrf.mxu0
  %v4335 = vadd.f32 0.0, %v4334
  %4336 = vmatmul.f32.gmra.mxu0 %v4129
  %v4337 = vpop.f32.mrf.mxu0
  %v4338 = vadd.f32 0.0, %v4337
  %4339 = vmatmul.f32.gmra.mxu0 %v4132
  %v4340 = vpop.f32.mrf.mxu0
  %v4341 = vadd.f32 0.0, %v4340
  %4342 = vmatmul.f32.gmra.mxu0 %v4135
  %v4343 = vpop.f32.mrf.mxu0
  %v4344 = vadd.f32 0.0, %v4343
  %4345 = vmatmul.f32.gmra.mxu0 %v4138
  %v4346 = vpop.f32.mrf.mxu0
  %v4347 = vadd.f32 0.0, %v4346
  %4348 = vmatmul.f32.gmra.mxu0 %v4141
  %v4349 = vpop.f32.mrf.mxu0
  %v4350 = vadd.f32 0.0, %v4349
  %4351 = vmatmul.f32.gmra.mxu0 %v4144
  %v4352 = vpop.f32.mrf.mxu0
  %v4353 = vadd.f32 0.0, %v4352
  %4354 = vmatmul.f32.gmra.mxu0 %v4147
  %v4355 = vpop.f32.mrf.mxu0
  %v4356 = vadd.f32 0.0, %v4355
  %4357 = vmatmul.f32.gmra.mxu0 %v4150
  %v4358 = vpop.f32.mrf.mxu0
  %v4359 = vadd.f32 0.0, %v4358
  %4360 = vmatmul.f32.gmra.mxu0 %v4153
  %v4361 = vpop.f32.mrf.mxu0
  %v4362 = vadd.f32 0.0, %v4361
  %4363 = vmatmul.f32.gmra.mxu0 %v4156
  %v4364 = vpop.f32.mrf.mxu0
  %v4365 = vadd.f32 0.0, %v4364
  %4366 = vmatmul.f32.gmra.mxu0 %v4159
  %v4367 = vpop.f32.mrf.mxu0
  %v4368 = vadd.f32 0.0, %v4367
  %4369 = vmatmul.f32.gmra.mxu0 %v4162
  %v4370 = vpop.f32.mrf.mxu0
  %v4371 = vadd.f32 0.0, %v4370
  %4372 = vmatmul.f32.gmra.mxu0 %v4165
  %v4373 = vpop.f32.mrf.mxu0
  %v4374 = vadd.f32 0.0, %v4373
  %4375 = vmatmul.f32.gmra.mxu0 %v4168
  %v4376 = vpop.f32.mrf.mxu0
  %v4377 = vadd.f32 0.0, %v4376
  %4378 = vmatmul.f32.gmra.mxu0 %v4171
  %v4379 = vpop.f32.mrf.mxu0
  %v4380 = vadd.f32 0.0, %v4379
  %4381 = vmatmul.f32.gmra.mxu0 %v4174
  %v4382 = vpop.f32.mrf.mxu0
  %v4383 = vadd.f32 0.0, %v4382
  %4384 = vmatmul.f32.gmra.mxu0 %v4177
  %v4385 = vpop.f32.mrf.mxu0
  %v4386 = vadd.f32 0.0, %v4385
  %4387 = vmatmul.f32.gmra.mxu0 %v4180
  %v4388 = vpop.f32.mrf.mxu0
  %v4389 = vadd.f32 0.0, %v4388
  %4390 = vmatmul.f32.gmra.mxu0 %v4183
  %v4391 = vpop.f32.mrf.mxu0
  %v4392 = vadd.f32 0.0, %v4391
  %4393 = vmatmul.f32.gmra.mxu0 %v4186
  %v4394 = vpop.f32.mrf.mxu0
  %v4395 = vadd.f32 0.0, %v4394
  %4396 = vmatmul.f32.gmra.mxu0 %v4189
  %v4397 = vpop.f32.mrf.mxu0
  %v4398 = vadd.f32 0.0, %v4397
  %4399 = vmatmul.f32.gmra.mxu0 %v4192
  %v4400 = vpop.f32.mrf.mxu0
  %v4401 = vadd.f32 0.0, %v4400
  %4402 = vdwg.mxu0
  %v4403 = vadd.f32 %v3808, %v4212
  %v4404 = vadd.f32 %v3809, %v4215
  %v4405 = vadd.f32 %v3810, %v4218
  %v4406 = vadd.f32 %v3811, %v4221
  %v4407 = vadd.f32 %v3812, %v4224
  %v4408 = vadd.f32 %v3813, %v4227
  %v4409 = vadd.f32 %v3814, %v4230
  %v4410 = vadd.f32 %v3815, %v4233
  %v4411 = vadd.f32 %v3816, %v4236
  %v4412 = vadd.f32 %v3817, %v4239
  %v4413 = vadd.f32 %v3818, %v4242
  %v4414 = vadd.f32 %v3819, %v4245
  %v4415 = vadd.f32 %v3820, %v4248
  %v4416 = vadd.f32 %v3821, %v4251
  %v4417 = vadd.f32 %v3822, %v4254
  %v4418 = vadd.f32 %v3823, %v4257
  %v4419 = vadd.f32 %v3824, %v4260
  %v4420 = vadd.f32 %v3825, %v4263
  %v4421 = vadd.f32 %v3826, %v4266
  %v4422 = vadd.f32 %v3827, %v4269
  %v4423 = vadd.f32 %v3828, %v4272
  %v4424 = vadd.f32 %v3829, %v4275
  %v4425 = vadd.f32 %v3830, %v4278
  %v4426 = vadd.f32 %v3831, %v4281
  %v4427 = vadd.f32 %v3832, %v4284
  %v4428 = vadd.f32 %v3833, %v4287
  %v4429 = vadd.f32 %v3834, %v4290
  %v4430 = vadd.f32 %v3835, %v4293
  %v4431 = vadd.f32 %v3836, %v4296
  %v4432 = vadd.f32 %v3837, %v4299
  %v4433 = vadd.f32 %v3838, %v4302
  %v4434 = vadd.f32 %v3839, %v4305
  %v4435 = vadd.f32 %v3840, %v4308
  %v4436 = vadd.f32 %v3841, %v4311
  %v4437 = vadd.f32 %v3842, %v4314
  %v4438 = vadd.f32 %v3843, %v4317
  %v4439 = vadd.f32 %v3844, %v4320
  %v4440 = vadd.f32 %v3845, %v4323
  %v4441 = vadd.f32 %v3846, %v4326
  %v4442 = vadd.f32 %v3847, %v4329
  %v4443 = vadd.f32 %v3848, %v4332
  %v4444 = vadd.f32 %v3849, %v4335
  %v4445 = vadd.f32 %v3850, %v4338
  %v4446 = vadd.f32 %v3851, %v4341
  %v4447 = vadd.f32 %v3852, %v4344
  %v4448 = vadd.f32 %v3853, %v4347
  %v4449 = vadd.f32 %v3854, %v4350
  %v4450 = vadd.f32 %v3855, %v4353
  %v4451 = vadd.f32 %v3856, %v4356
  %v4452 = vadd.f32 %v3857, %v4359
  %v4453 = vadd.f32 %v3858, %v4362
  %v4454 = vadd.f32 %v3859, %v4365
  %v4455 = vadd.f32 %v3860, %v4368
  %v4456 = vadd.f32 %v3861, %v4371
  %v4457 = vadd.f32 %v3862, %v4374
  %v4458 = vadd.f32 %v3863, %v4377
  %v4459 = vadd.f32 %v3864, %v4380
  %v4460 = vadd.f32 %v3865, %v4383
  %v4461 = vadd.f32 %v3866, %v4386
  %v4462 = vadd.f32 %v3867, %v4389
  %v4463 = vadd.f32 %v3868, %v4392
  %v4464 = vadd.f32 %v3869, %v4395
  %v4465 = vadd.f32 %v3870, %v4398
  %v4466 = vadd.f32 %v3871, %v4401
  %v4467 = vld [vmem:[#allocation2 + $0x20] sm:$0xff]
  %v4468 = vld [vmem:[#allocation2 + $0x28] sm:$0xff]
  %v4469 = vld [vmem:[#allocation2 + $0x30] sm:$0xff]
  %v4470 = vld [vmem:[#allocation2 + $0x38] sm:$0xff]
  %v4471 = vld [vmem:[#allocation2 + $0x40] sm:$0xff]
  %v4472 = vld [vmem:[#allocation2 + $0x48] sm:$0xff]
  %v4473 = vld [vmem:[#allocation2 + $0x50] sm:$0xff]
  %v4474 = vld [vmem:[#allocation2 + $0x58] sm:$0xff]
  %v4475 = vld [vmem:[#allocation2 + $0x60] sm:$0xff]
  %v4476 = vld [vmem:[#allocation2 + $0x68] sm:$0xff]
  %v4477 = vld [vmem:[#allocation2 + $0x70] sm:$0xff]
  %v4478 = vld [vmem:[#allocation2 + $0x78] sm:$0xff]
  %v4479 = vld [vmem:[#allocation2 + $0x80] sm:$0xff]
  %v4480 = vld [vmem:[#allocation2 + $0x88] sm:$0xff]
  %v4481 = vld [vmem:[#allocation2 + $0x90] sm:$0xff]
  %v4482 = vld [vmem:[#allocation2 + $0x98] sm:$0xff]
  %v4483 = vld [vmem:[#allocation2 + $0xa0] sm:$0xff]
  %v4484 = vld [vmem:[#allocation2 + $0xa8] sm:$0xff]
  %v4485 = vld [vmem:[#allocation2 + $0xb0] sm:$0xff]
  %v4486 = vld [vmem:[#allocation2 + $0xb8] sm:$0xff]
  %v4487 = vld [vmem:[#allocation2 + $0xc0] sm:$0xff]
  %v4488 = vld [vmem:[#allocation2 + $0xc8] sm:$0xff]
  %v4489 = vld [vmem:[#allocation2 + $0xd0] sm:$0xff]
  %v4490 = vld [vmem:[#allocation2 + $0xd8] sm:$0xff]
  %v4491 = vld [vmem:[#allocation2 + $0xe0] sm:$0xff]
  %v4492 = vld [vmem:[#allocation2 + $0xe8] sm:$0xff]
  %v4493 = vld [vmem:[#allocation2 + $0xf0] sm:$0xff]
  %v4494 = vld [vmem:[#allocation2 + $0xf8] sm:$0xff]
  %v4495 = vld [vmem:[#allocation2 + $0x100] sm:$0xff]
  %v4496 = vld [vmem:[#allocation2 + $0x108] sm:$0xff]
  %v4497 = vld [vmem:[#allocation2 + $0x110] sm:$0xff]
  %v4498 = vld [vmem:[#allocation2 + $0x118] sm:$0xff]
  %v4499 = vld [vmem:[#allocation2 + $0x148] sm:$0xff]
  %v4500 = vld [vmem:[#allocation2 + $0x150] sm:$0xff]
  %v4501 = vld [vmem:[#allocation2 + $0x158] sm:$0xff]
  %v4502 = vld [vmem:[#allocation2 + $0x160] sm:$0xff]
  %v4503 = vld [vmem:[#allocation2 + $0x168] sm:$0xff]
  %v4504 = vld [vmem:[#allocation2 + $0x170] sm:$0xff]
  %v4505 = vld [vmem:[#allocation2 + $0x178] sm:$0xff]
  %v4506 = vld [vmem:[#allocation2 + $0x180] sm:$0xff]
  %v4507 = vld [vmem:[#allocation2 + $0x188] sm:$0xff]
  %v4508 = vld [vmem:[#allocation2 + $0x190] sm:$0xff]
  %v4509 = vld [vmem:[#allocation2 + $0x198] sm:$0xff]
  %v4510 = vld [vmem:[#allocation2 + $0x1a0] sm:$0xff]
  %v4511 = vld [vmem:[#allocation2 + $0x1a8] sm:$0xff]
  %v4512 = vld [vmem:[#allocation2 + $0x1b0] sm:$0xff]
  %v4513 = vld [vmem:[#allocation2 + $0x1b8] sm:$0xff]
  %v4514 = vld [vmem:[#allocation2 + $0x1c0] sm:$0xff]
  %v4515 = vld [vmem:[#allocation2 + $0x1c8] sm:$0xff]
  %v4516 = vld [vmem:[#allocation2 + $0x1d0] sm:$0xff]
  %v4517 = vld [vmem:[#allocation2 + $0x1d8] sm:$0xff]
  %v4518 = vld [vmem:[#allocation2 + $0x1e0] sm:$0xff]
  %v4519 = vld [vmem:[#allocation2 + $0x1e8] sm:$0xff]
  %v4520 = vld [vmem:[#allocation2 + $0x1f0] sm:$0xff]
  %v4521 = vld [vmem:[#allocation2 + $0x1f8] sm:$0xff]
  %v4522 = vld [vmem:[#allocation2 + $0x200] sm:$0xff]
  %v4523 = vld [vmem:[#allocation2 + $0x208] sm:$0xff]
  %v4524 = vld [vmem:[#allocation2 + $0x210] sm:$0xff]
  %v4525 = vld [vmem:[#allocation2 + $0x218] sm:$0xff]
  %v4526 = vld [vmem:[#allocation2 + $0x220] sm:$0xff]
  %v4527 = vld [vmem:[#allocation2 + $0x228] sm:$0xff]
  %v4528 = vld [vmem:[#allocation2 + $0x230] sm:$0xff]
  %v4529 = vld [vmem:[#allocation2 + $0x238] sm:$0xff]
  %v4530 = vld [vmem:[#allocation2 + $0x240] sm:$0xff]
  %v4531 = vsel %vm1026, %v4467, 0.0
  %v4532 = vsel %vm1027, %v4468, 0.0
  %v4533 = vsel %vm1028, %v4469, 0.0
  %v4534 = vsel %vm1029, %v4470, 0.0
  %v4535 = vsel %vm1030, %v4471, 0.0
  %v4536 = vsel %vm1031, %v4472, 0.0
  %v4537 = vsel %vm1032, %v4473, 0.0
  %v4538 = vsel %vm1033, %v4474, 0.0
  %v4539 = vsel %vm1034, %v4475, 0.0
  %v4540 = vsel %vm1035, %v4476, 0.0
  %v4541 = vsel %vm1036, %v4477, 0.0
  %v4542 = vsel %vm1037, %v4478, 0.0
  %v4543 = vsel %vm1038, %v4479, 0.0
  %v4544 = vsel %vm1039, %v4480, 0.0
  %v4545 = vsel %vm1040, %v4481, 0.0
  %v4546 = vsel %vm1041, %v4482, 0.0
  %v4547 = vsel %vm1042, %v4483, 0.0
  %v4548 = vsel %vm1043, %v4484, 0.0
  %v4549 = vsel %vm1044, %v4485, 0.0
  %v4550 = vsel %vm1045, %v4486, 0.0
  %v4551 = vsel %vm1046, %v4487, 0.0
  %v4552 = vsel %vm1047, %v4488, 0.0
  %v4553 = vsel %vm1048, %v4489, 0.0
  %v4554 = vsel %vm1049, %v4490, 0.0
  %v4555 = vsel %vm1050, %v4491, 0.0
  %v4556 = vsel %vm1051, %v4492, 0.0
  %v4557 = vsel %vm1052, %v4493, 0.0
  %v4558 = vsel %vm1053, %v4494, 0.0
  %v4559 = vsel %vm1054, %v4495, 0.0
  %v4560 = vsel %vm1055, %v4496, 0.0
  %v4561 = vsel %vm1056, %v4497, 0.0
  %v4562 = vsel %vm1057, %v4498, 0.0
  %v4563 = vsel %vm1058, %v4499, 0.0
  %v4564 = vsel %vm1059, %v4500, 0.0
  %v4565 = vsel %vm1060, %v4501, 0.0
  %v4566 = vsel %vm1061, %v4502, 0.0
  %v4567 = vsel %vm1062, %v4503, 0.0
  %v4568 = vsel %vm1063, %v4504, 0.0
  %v4569 = vsel %vm1064, %v4505, 0.0
  %v4570 = vsel %vm1065, %v4506, 0.0
  %v4571 = vsel %vm1066, %v4507, 0.0
  %v4572 = vsel %vm1067, %v4508, 0.0
  %v4573 = vsel %vm1068, %v4509, 0.0
  %v4574 = vsel %vm1069, %v4510, 0.0
  %v4575 = vsel %vm1070, %v4511, 0.0
  %v4576 = vsel %vm1071, %v4512, 0.0
  %v4577 = vsel %vm1072, %v4513, 0.0
  %v4578 = vsel %vm1073, %v4514, 0.0
  %v4579 = vsel %vm1074, %v4515, 0.0
  %v4580 = vsel %vm1075, %v4516, 0.0
  %v4581 = vsel %vm1076, %v4517, 0.0
  %v4582 = vsel %vm1077, %v4518, 0.0
  %v4583 = vsel %vm1078, %v4519, 0.0
  %v4584 = vsel %vm1079, %v4520, 0.0
  %v4585 = vsel %vm1080, %v4521, 0.0
  %v4586 = vsel %vm1081, %v4522, 0.0
  %v4587 = vsel %vm1082, %v4523, 0.0
  %v4588 = vsel %vm1083, %v4524, 0.0
  %v4589 = vsel %vm1084, %v4525, 0.0
  %v4590 = vsel %vm1085, %v4526, 0.0
  %v4591 = vsel %vm1086, %v4527, 0.0
  %v4592 = vsel %vm1087, %v4528, 0.0
  %v4593 = vsel %vm1088, %v4529, 0.0
  %v4594 = vsel %vm1089, %v4530, 0.0
  %s4595 = scalar_lea.vmem %s1, 48
  %v4596 = vld [vmem:[%s4595] sm:$0xff]
  %v4598 = vsel %vm32, %v4531, 0
  %v4601 = vsel %vm32, %v4532, 0
  %v4604 = vsel %vm32, %v4533, 0
  %v4607 = vsel %vm32, %v4534, 0
  %v4610 = vsel %vm32, %v4535, 0
  %v4613 = vsel %vm32, %v4536, 0
  %v4616 = vsel %vm32, %v4537, 0
  %v4619 = vsel %vm32, %v4538, 0
  %v4622 = vsel %vm32, %v4539, 0
  %v4625 = vsel %vm32, %v4540, 0
  %v4628 = vsel %vm32, %v4541, 0
  %v4631 = vsel %vm32, %v4542, 0
  %v4634 = vsel %vm32, %v4543, 0
  %v4637 = vsel %vm32, %v4544, 0
  %v4640 = vsel %vm32, %v4545, 0
  %v4643 = vsel %vm32, %v4546, 0
  %v4646 = vsel %vm32, %v4547, 0
  %v4649 = vsel %vm32, %v4548, 0
  %v4652 = vsel %vm32, %v4549, 0
  %v4655 = vsel %vm32, %v4550, 0
  %v4658 = vsel %vm32, %v4551, 0
  %v4661 = vsel %vm32, %v4552, 0
  %v4664 = vsel %vm32, %v4553, 0
  %v4667 = vsel %vm32, %v4554, 0
  %v4670 = vsel %vm32, %v4555, 0
  %v4673 = vsel %vm32, %v4556, 0
  %v4676 = vsel %vm32, %v4557, 0
  %v4679 = vsel %vm32, %v4558, 0
  %v4682 = vsel %vm32, %v4559, 0
  %v4685 = vsel %vm32, %v4560, 0
  %v4688 = vsel %vm32, %v4561, 0
  %v4691 = vsel %vm32, %v4562, 0
  %v4694 = vsel %vm32, %v4563, 0
  %v4697 = vsel %vm32, %v4564, 0
  %v4700 = vsel %vm32, %v4565, 0
  %v4703 = vsel %vm32, %v4566, 0
  %v4706 = vsel %vm32, %v4567, 0
  %v4709 = vsel %vm32, %v4568, 0
  %v4712 = vsel %vm32, %v4569, 0
  %v4715 = vsel %vm32, %v4570, 0
  %v4718 = vsel %vm32, %v4571, 0
  %v4721 = vsel %vm32, %v4572, 0
  %v4724 = vsel %vm32, %v4573, 0
  %v4727 = vsel %vm32, %v4574, 0
  %v4730 = vsel %vm32, %v4575, 0
  %v4733 = vsel %vm32, %v4576, 0
  %v4736 = vsel %vm32, %v4577, 0
  %v4739 = vsel %vm32, %v4578, 0
  %v4742 = vsel %vm32, %v4579, 0
  %v4745 = vsel %vm32, %v4580, 0
  %v4748 = vsel %vm32, %v4581, 0
  %v4751 = vsel %vm32, %v4582, 0
  %v4754 = vsel %vm32, %v4583, 0
  %v4757 = vsel %vm32, %v4584, 0
  %v4760 = vsel %vm32, %v4585, 0
  %v4763 = vsel %vm32, %v4586, 0
  %v4766 = vsel %vm32, %v4587, 0
  %v4769 = vsel %vm32, %v4588, 0
  %v4772 = vsel %vm32, %v4589, 0
  %v4775 = vsel %vm32, %v4590, 0
  %v4778 = vsel %vm32, %v4591, 0
  %v4781 = vsel %vm32, %v4592, 0
  %v4784 = vsel %vm32, %v4593, 0
  %v4787 = vsel %vm32, %v4594, 0
  %4789 = vmatpush.msra.mxu0 0.0
  %4790 = vmatpush.msra.mxu0 0.0
  %4791 = vmatpush.msra.mxu0 0.0
  %4792 = vmatpush.msra.mxu0 0.0
  %4793 = vmatpush.msra.mxu0 0.0
  %4794 = vmatpush.msra.mxu0 0.0
  %4795 = vmatpush.msra.mxu0 0.0
  %4796 = vmatpush.msra.mxu0 0.0
  %4797 = vmatpush.msra.mxu0 0.0
  %4798 = vmatpush.msra.mxu0 0.0
  %4799 = vmatpush.msra.mxu0 0.0
  %4800 = vmatpush.msra.mxu0 0.0
  %4801 = vmatpush.msra.mxu0 0.0
  %4802 = vmatpush.msra.mxu0 0.0
  %4803 = vmatpush.msra.mxu0 0.0
  %4804 = vmatpush.msra.mxu0 %v4596
  %4805 = vmatmul.f32.gmra.mxu0 %v4598
  %v4806 = vpop.f32.mrf.mxu0
  %v4807 = vadd.f32 0.0, %v4806
  %4808 = vmatmul.f32.gmra.mxu0 %v4601
  %v4809 = vpop.f32.mrf.mxu0
  %v4810 = vadd.f32 0.0, %v4809
  %4811 = vmatmul.f32.gmra.mxu0 %v4604
  %v4812 = vpop.f32.mrf.mxu0
  %v4813 = vadd.f32 0.0, %v4812
  %4814 = vmatmul.f32.gmra.mxu0 %v4607
  %v4815 = vpop.f32.mrf.mxu0
  %v4816 = vadd.f32 0.0, %v4815
  %4817 = vmatmul.f32.gmra.mxu0 %v4610
  %v4818 = vpop.f32.mrf.mxu0
  %v4819 = vadd.f32 0.0, %v4818
  %4820 = vmatmul.f32.gmra.mxu0 %v4613
  %v4821 = vpop.f32.mrf.mxu0
  %v4822 = vadd.f32 0.0, %v4821
  %4823 = vmatmul.f32.gmra.mxu0 %v4616
  %v4824 = vpop.f32.mrf.mxu0
  %v4825 = vadd.f32 0.0, %v4824
  %4826 = vmatmul.f32.gmra.mxu0 %v4619
  %v4827 = vpop.f32.mrf.mxu0
  %v4828 = vadd.f32 0.0, %v4827
  %4829 = vmatmul.f32.gmra.mxu0 %v4622
  %v4830 = vpop.f32.mrf.mxu0
  %v4831 = vadd.f32 0.0, %v4830
  %4832 = vmatmul.f32.gmra.mxu0 %v4625
  %v4833 = vpop.f32.mrf.mxu0
  %v4834 = vadd.f32 0.0, %v4833
  %4835 = vmatmul.f32.gmra.mxu0 %v4628
  %v4836 = vpop.f32.mrf.mxu0
  %v4837 = vadd.f32 0.0, %v4836
  %4838 = vmatmul.f32.gmra.mxu0 %v4631
  %v4839 = vpop.f32.mrf.mxu0
  %v4840 = vadd.f32 0.0, %v4839
  %4841 = vmatmul.f32.gmra.mxu0 %v4634
  %v4842 = vpop.f32.mrf.mxu0
  %v4843 = vadd.f32 0.0, %v4842
  %4844 = vmatmul.f32.gmra.mxu0 %v4637
  %v4845 = vpop.f32.mrf.mxu0
  %v4846 = vadd.f32 0.0, %v4845
  %4847 = vmatmul.f32.gmra.mxu0 %v4640
  %v4848 = vpop.f32.mrf.mxu0
  %v4849 = vadd.f32 0.0, %v4848
  %4850 = vmatmul.f32.gmra.mxu0 %v4643
  %v4851 = vpop.f32.mrf.mxu0
  %v4852 = vadd.f32 0.0, %v4851
  %4853 = vmatmul.f32.gmra.mxu0 %v4646
  %v4854 = vpop.f32.mrf.mxu0
  %v4855 = vadd.f32 0.0, %v4854
  %4856 = vmatmul.f32.gmra.mxu0 %v4649
  %v4857 = vpop.f32.mrf.mxu0
  %v4858 = vadd.f32 0.0, %v4857
  %4859 = vmatmul.f32.gmra.mxu0 %v4652
  %v4860 = vpop.f32.mrf.mxu0
  %v4861 = vadd.f32 0.0, %v4860
  %4862 = vmatmul.f32.gmra.mxu0 %v4655
  %v4863 = vpop.f32.mrf.mxu0
  %v4864 = vadd.f32 0.0, %v4863
  %4865 = vmatmul.f32.gmra.mxu0 %v4658
  %v4866 = vpop.f32.mrf.mxu0
  %v4867 = vadd.f32 0.0, %v4866
  %4868 = vmatmul.f32.gmra.mxu0 %v4661
  %v4869 = vpop.f32.mrf.mxu0
  %v4870 = vadd.f32 0.0, %v4869
  %4871 = vmatmul.f32.gmra.mxu0 %v4664
  %v4872 = vpop.f32.mrf.mxu0
  %v4873 = vadd.f32 0.0, %v4872
  %4874 = vmatmul.f32.gmra.mxu0 %v4667
  %v4875 = vpop.f32.mrf.mxu0
  %v4876 = vadd.f32 0.0, %v4875
  %4877 = vmatmul.f32.gmra.mxu0 %v4670
  %v4878 = vpop.f32.mrf.mxu0
  %v4879 = vadd.f32 0.0, %v4878
  %4880 = vmatmul.f32.gmra.mxu0 %v4673
  %v4881 = vpop.f32.mrf.mxu0
  %v4882 = vadd.f32 0.0, %v4881
  %4883 = vmatmul.f32.gmra.mxu0 %v4676
  %v4884 = vpop.f32.mrf.mxu0
  %v4885 = vadd.f32 0.0, %v4884
  %4886 = vmatmul.f32.gmra.mxu0 %v4679
  %v4887 = vpop.f32.mrf.mxu0
  %v4888 = vadd.f32 0.0, %v4887
  %4889 = vmatmul.f32.gmra.mxu0 %v4682
  %v4890 = vpop.f32.mrf.mxu0
  %v4891 = vadd.f32 0.0, %v4890
  %4892 = vmatmul.f32.gmra.mxu0 %v4685
  %v4893 = vpop.f32.mrf.mxu0
  %v4894 = vadd.f32 0.0, %v4893
  %4895 = vmatmul.f32.gmra.mxu0 %v4688
  %v4896 = vpop.f32.mrf.mxu0
  %v4897 = vadd.f32 0.0, %v4896
  %4898 = vmatmul.f32.gmra.mxu0 %v4691
  %v4899 = vpop.f32.mrf.mxu0
  %v4900 = vadd.f32 0.0, %v4899
  %4901 = vmatmul.f32.gmra.mxu0 %v4694
  %v4902 = vpop.f32.mrf.mxu0
  %v4903 = vadd.f32 0.0, %v4902
  %4904 = vmatmul.f32.gmra.mxu0 %v4697
  %v4905 = vpop.f32.mrf.mxu0
  %v4906 = vadd.f32 0.0, %v4905
  %4907 = vmatmul.f32.gmra.mxu0 %v4700
  %v4908 = vpop.f32.mrf.mxu0
  %v4909 = vadd.f32 0.0, %v4908
  %4910 = vmatmul.f32.gmra.mxu0 %v4703
  %v4911 = vpop.f32.mrf.mxu0
  %v4912 = vadd.f32 0.0, %v4911
  %4913 = vmatmul.f32.gmra.mxu0 %v4706
  %v4914 = vpop.f32.mrf.mxu0
  %v4915 = vadd.f32 0.0, %v4914
  %4916 = vmatmul.f32.gmra.mxu0 %v4709
  %v4917 = vpop.f32.mrf.mxu0
  %v4918 = vadd.f32 0.0, %v4917
  %4919 = vmatmul.f32.gmra.mxu0 %v4712
  %v4920 = vpop.f32.mrf.mxu0
  %v4921 = vadd.f32 0.0, %v4920
  %4922 = vmatmul.f32.gmra.mxu0 %v4715
  %v4923 = vpop.f32.mrf.mxu0
  %v4924 = vadd.f32 0.0, %v4923
  %4925 = vmatmul.f32.gmra.mxu0 %v4718
  %v4926 = vpop.f32.mrf.mxu0
  %v4927 = vadd.f32 0.0, %v4926
  %4928 = vmatmul.f32.gmra.mxu0 %v4721
  %v4929 = vpop.f32.mrf.mxu0
  %v4930 = vadd.f32 0.0, %v4929
  %4931 = vmatmul.f32.gmra.mxu0 %v4724
  %v4932 = vpop.f32.mrf.mxu0
  %v4933 = vadd.f32 0.0, %v4932
  %4934 = vmatmul.f32.gmra.mxu0 %v4727
  %v4935 = vpop.f32.mrf.mxu0
  %v4936 = vadd.f32 0.0, %v4935
  %4937 = vmatmul.f32.gmra.mxu0 %v4730
  %v4938 = vpop.f32.mrf.mxu0
  %v4939 = vadd.f32 0.0, %v4938
  %4940 = vmatmul.f32.gmra.mxu0 %v4733
  %v4941 = vpop.f32.mrf.mxu0
  %v4942 = vadd.f32 0.0, %v4941
  %4943 = vmatmul.f32.gmra.mxu0 %v4736
  %v4944 = vpop.f32.mrf.mxu0
  %v4945 = vadd.f32 0.0, %v4944
  %4946 = vmatmul.f32.gmra.mxu0 %v4739
  %v4947 = vpop.f32.mrf.mxu0
  %v4948 = vadd.f32 0.0, %v4947
  %4949 = vmatmul.f32.gmra.mxu0 %v4742
  %v4950 = vpop.f32.mrf.mxu0
  %v4951 = vadd.f32 0.0, %v4950
  %4952 = vmatmul.f32.gmra.mxu0 %v4745
  %v4953 = vpop.f32.mrf.mxu0
  %v4954 = vadd.f32 0.0, %v4953
  %4955 = vmatmul.f32.gmra.mxu0 %v4748
  %v4956 = vpop.f32.mrf.mxu0
  %v4957 = vadd.f32 0.0, %v4956
  %4958 = vmatmul.f32.gmra.mxu0 %v4751
  %v4959 = vpop.f32.mrf.mxu0
  %v4960 = vadd.f32 0.0, %v4959
  %4961 = vmatmul.f32.gmra.mxu0 %v4754
  %v4962 = vpop.f32.mrf.mxu0
  %v4963 = vadd.f32 0.0, %v4962
  %4964 = vmatmul.f32.gmra.mxu0 %v4757
  %v4965 = vpop.f32.mrf.mxu0
  %v4966 = vadd.f32 0.0, %v4965
  %4967 = vmatmul.f32.gmra.mxu0 %v4760
  %v4968 = vpop.f32.mrf.mxu0
  %v4969 = vadd.f32 0.0, %v4968
  %4970 = vmatmul.f32.gmra.mxu0 %v4763
  %v4971 = vpop.f32.mrf.mxu0
  %v4972 = vadd.f32 0.0, %v4971
  %4973 = vmatmul.f32.gmra.mxu0 %v4766
  %v4974 = vpop.f32.mrf.mxu0
  %v4975 = vadd.f32 0.0, %v4974
  %4976 = vmatmul.f32.gmra.mxu0 %v4769
  %v4977 = vpop.f32.mrf.mxu0
  %v4978 = vadd.f32 0.0, %v4977
  %4979 = vmatmul.f32.gmra.mxu0 %v4772
  %v4980 = vpop.f32.mrf.mxu0
  %v4981 = vadd.f32 0.0, %v4980
  %4982 = vmatmul.f32.gmra.mxu0 %v4775
  %v4983 = vpop.f32.mrf.mxu0
  %v4984 = vadd.f32 0.0, %v4983
  %4985 = vmatmul.f32.gmra.mxu0 %v4778
  %v4986 = vpop.f32.mrf.mxu0
  %v4987 = vadd.f32 0.0, %v4986
  %4988 = vmatmul.f32.gmra.mxu0 %v4781
  %v4989 = vpop.f32.mrf.mxu0
  %v4990 = vadd.f32 0.0, %v4989
  %4991 = vmatmul.f32.gmra.mxu0 %v4784
  %v4992 = vpop.f32.mrf.mxu0
  %v4993 = vadd.f32 0.0, %v4992
  %4994 = vmatmul.f32.gmra.mxu0 %v4787
  %v4995 = vpop.f32.mrf.mxu0
  %v4996 = vadd.f32 0.0, %v4995
  %4997 = vdwg.mxu0
  %v4998 = vadd.f32 %v4403, %v4807
  %v4999 = vadd.f32 %v4404, %v4810
  %v5000 = vadd.f32 %v4405, %v4813
  %v5001 = vadd.f32 %v4406, %v4816
  %v5002 = vadd.f32 %v4407, %v4819
  %v5003 = vadd.f32 %v4408, %v4822
  %v5004 = vadd.f32 %v4409, %v4825
  %v5005 = vadd.f32 %v4410, %v4828
  %v5006 = vadd.f32 %v4411, %v4831
  %v5007 = vadd.f32 %v4412, %v4834
  %v5008 = vadd.f32 %v4413, %v4837
  %v5009 = vadd.f32 %v4414, %v4840
  %v5010 = vadd.f32 %v4415, %v4843
  %v5011 = vadd.f32 %v4416, %v4846
  %v5012 = vadd.f32 %v4417, %v4849
  %v5013 = vadd.f32 %v4418, %v4852
  %v5014 = vadd.f32 %v4419, %v4855
  %v5015 = vadd.f32 %v4420, %v4858
  %v5016 = vadd.f32 %v4421, %v4861
  %v5017 = vadd.f32 %v4422, %v4864
  %v5018 = vadd.f32 %v4423, %v4867
  %v5019 = vadd.f32 %v4424, %v4870
  %v5020 = vadd.f32 %v4425, %v4873
  %v5021 = vadd.f32 %v4426, %v4876
  %v5022 = vadd.f32 %v4427, %v4879
  %v5023 = vadd.f32 %v4428, %v4882
  %v5024 = vadd.f32 %v4429, %v4885
  %v5025 = vadd.f32 %v4430, %v4888
  %v5026 = vadd.f32 %v4431, %v4891
  %v5027 = vadd.f32 %v4432, %v4894
  %v5028 = vadd.f32 %v4433, %v4897
  %v5029 = vadd.f32 %v4434, %v4900
  %v5030 = vadd.f32 %v4435, %v4903
  %v5031 = vadd.f32 %v4436, %v4906
  %v5032 = vadd.f32 %v4437, %v4909
  %v5033 = vadd.f32 %v4438, %v4912
  %v5034 = vadd.f32 %v4439, %v4915
  %v5035 = vadd.f32 %v4440, %v4918
  %v5036 = vadd.f32 %v4441, %v4921
  %v5037 = vadd.f32 %v4442, %v4924
  %v5038 = vadd.f32 %v4443, %v4927
  %v5039 = vadd.f32 %v4444, %v4930
  %v5040 = vadd.f32 %v4445, %v4933
  %v5041 = vadd.f32 %v4446, %v4936
  %v5042 = vadd.f32 %v4447, %v4939
  %v5043 = vadd.f32 %v4448, %v4942
  %v5044 = vadd.f32 %v4449, %v4945
  %v5045 = vadd.f32 %v4450, %v4948
  %v5046 = vadd.f32 %v4451, %v4951
  %v5047 = vadd.f32 %v4452, %v4954
  %v5048 = vadd.f32 %v4453, %v4957
  %v5049 = vadd.f32 %v4454, %v4960
  %v5050 = vadd.f32 %v4455, %v4963
  %v5051 = vadd.f32 %v4456, %v4966
  %v5052 = vadd.f32 %v4457, %v4969
  %v5053 = vadd.f32 %v4458, %v4972
  %v5054 = vadd.f32 %v4459, %v4975
  %v5055 = vadd.f32 %v4460, %v4978
  %v5056 = vadd.f32 %v4461, %v4981
  %v5057 = vadd.f32 %v4462, %v4984
  %v5058 = vadd.f32 %v4463, %v4987
  %v5059 = vadd.f32 %v4464, %v4990
  %v5060 = vadd.f32 %v4465, %v4993
  %v5061 = vadd.f32 %v4466, %v4996
  %v5062 = vld [vmem:[#allocation2 + $0x21] sm:$0xff]
  %v5063 = vld [vmem:[#allocation2 + $0x29] sm:$0xff]
  %v5064 = vld [vmem:[#allocation2 + $0x31] sm:$0xff]
  %v5065 = vld [vmem:[#allocation2 + $0x39] sm:$0xff]
  %v5066 = vld [vmem:[#allocation2 + $0x41] sm:$0xff]
  %v5067 = vld [vmem:[#allocation2 + $0x49] sm:$0xff]
  %v5068 = vld [vmem:[#allocation2 + $0x51] sm:$0xff]
  %v5069 = vld [vmem:[#allocation2 + $0x59] sm:$0xff]
  %v5070 = vld [vmem:[#allocation2 + $0x61] sm:$0xff]
  %v5071 = vld [vmem:[#allocation2 + $0x69] sm:$0xff]
  %v5072 = vld [vmem:[#allocation2 + $0x71] sm:$0xff]
  %v5073 = vld [vmem:[#allocation2 + $0x79] sm:$0xff]
  %v5074 = vld [vmem:[#allocation2 + $0x81] sm:$0xff]
  %v5075 = vld [vmem:[#allocation2 + $0x89] sm:$0xff]
  %v5076 = vld [vmem:[#allocation2 + $0x91] sm:$0xff]
  %v5077 = vld [vmem:[#allocation2 + $0x99] sm:$0xff]
  %v5078 = vld [vmem:[#allocation2 + $0xa1] sm:$0xff]
  %v5079 = vld [vmem:[#allocation2 + $0xa9] sm:$0xff]
  %v5080 = vld [vmem:[#allocation2 + $0xb1] sm:$0xff]
  %v5081 = vld [vmem:[#allocation2 + $0xb9] sm:$0xff]
  %v5082 = vld [vmem:[#allocation2 + $0xc1] sm:$0xff]
  %v5083 = vld [vmem:[#allocation2 + $0xc9] sm:$0xff]
  %v5084 = vld [vmem:[#allocation2 + $0xd1] sm:$0xff]
  %v5085 = vld [vmem:[#allocation2 + $0xd9] sm:$0xff]
  %v5086 = vld [vmem:[#allocation2 + $0xe1] sm:$0xff]
  %v5087 = vld [vmem:[#allocation2 + $0xe9] sm:$0xff]
  %v5088 = vld [vmem:[#allocation2 + $0xf1] sm:$0xff]
  %v5089 = vld [vmem:[#allocation2 + $0xf9] sm:$0xff]
  %v5090 = vld [vmem:[#allocation2 + $0x101] sm:$0xff]
  %v5091 = vld [vmem:[#allocation2 + $0x109] sm:$0xff]
  %v5092 = vld [vmem:[#allocation2 + $0x111] sm:$0xff]
  %v5093 = vld [vmem:[#allocation2 + $0x119] sm:$0xff]
  %v5094 = vld [vmem:[#allocation2 + $0x149] sm:$0xff]
  %v5095 = vld [vmem:[#allocation2 + $0x151] sm:$0xff]
  %v5096 = vld [vmem:[#allocation2 + $0x159] sm:$0xff]
  %v5097 = vld [vmem:[#allocation2 + $0x161] sm:$0xff]
  %v5098 = vld [vmem:[#allocation2 + $0x169] sm:$0xff]
  %v5099 = vld [vmem:[#allocation2 + $0x171] sm:$0xff]
  %v5100 = vld [vmem:[#allocation2 + $0x179] sm:$0xff]
  %v5101 = vld [vmem:[#allocation2 + $0x181] sm:$0xff]
  %v5102 = vld [vmem:[#allocation2 + $0x189] sm:$0xff]
  %v5103 = vld [vmem:[#allocation2 + $0x191] sm:$0xff]
  %v5104 = vld [vmem:[#allocation2 + $0x199] sm:$0xff]
  %v5105 = vld [vmem:[#allocation2 + $0x1a1] sm:$0xff]
  %v5106 = vld [vmem:[#allocation2 + $0x1a9] sm:$0xff]
  %v5107 = vld [vmem:[#allocation2 + $0x1b1] sm:$0xff]
  %v5108 = vld [vmem:[#allocation2 + $0x1b9] sm:$0xff]
  %v5109 = vld [vmem:[#allocation2 + $0x1c1] sm:$0xff]
  %v5110 = vld [vmem:[#allocation2 + $0x1c9] sm:$0xff]
  %v5111 = vld [vmem:[#allocation2 + $0x1d1] sm:$0xff]
  %v5112 = vld [vmem:[#allocation2 + $0x1d9] sm:$0xff]
  %v5113 = vld [vmem:[#allocation2 + $0x1e1] sm:$0xff]
  %v5114 = vld [vmem:[#allocation2 + $0x1e9] sm:$0xff]
  %v5115 = vld [vmem:[#allocation2 + $0x1f1] sm:$0xff]
  %v5116 = vld [vmem:[#allocation2 + $0x1f9] sm:$0xff]
  %v5117 = vld [vmem:[#allocation2 + $0x201] sm:$0xff]
  %v5118 = vld [vmem:[#allocation2 + $0x209] sm:$0xff]
  %v5119 = vld [vmem:[#allocation2 + $0x211] sm:$0xff]
  %v5120 = vld [vmem:[#allocation2 + $0x219] sm:$0xff]
  %v5121 = vld [vmem:[#allocation2 + $0x221] sm:$0xff]
  %v5122 = vld [vmem:[#allocation2 + $0x229] sm:$0xff]
  %v5123 = vld [vmem:[#allocation2 + $0x231] sm:$0xff]
  %v5124 = vld [vmem:[#allocation2 + $0x239] sm:$0xff]
  %v5125 = vld [vmem:[#allocation2 + $0x241] sm:$0xff]
  %s5126 = scalar_lea.vmem %s1, 56
  %v5127 = vld [vmem:[%s5126] sm:$0xff]
  %v5129 = vsel %vm32, %v5062, 0
  %v5132 = vsel %vm32, %v5063, 0
  %v5135 = vsel %vm32, %v5064, 0
  %v5138 = vsel %vm32, %v5065, 0
  %v5141 = vsel %vm32, %v5066, 0
  %v5144 = vsel %vm32, %v5067, 0
  %v5147 = vsel %vm32, %v5068, 0
  %v5150 = vsel %vm32, %v5069, 0
  %v5153 = vsel %vm32, %v5070, 0
  %v5156 = vsel %vm32, %v5071, 0
  %v5159 = vsel %vm32, %v5072, 0
  %v5162 = vsel %vm32, %v5073, 0
  %v5165 = vsel %vm32, %v5074, 0
  %v5168 = vsel %vm32, %v5075, 0
  %v5171 = vsel %vm32, %v5076, 0
  %v5174 = vsel %vm32, %v5077, 0
  %v5177 = vsel %vm32, %v5078, 0
  %v5180 = vsel %vm32, %v5079, 0
  %v5183 = vsel %vm32, %v5080, 0
  %v5186 = vsel %vm32, %v5081, 0
  %v5189 = vsel %vm32, %v5082, 0
  %v5192 = vsel %vm32, %v5083, 0
  %v5195 = vsel %vm32, %v5084, 0
  %v5198 = vsel %vm32, %v5085, 0
  %v5201 = vsel %vm32, %v5086, 0
  %v5204 = vsel %vm32, %v5087, 0
  %v5207 = vsel %vm32, %v5088, 0
  %v5210 = vsel %vm32, %v5089, 0
  %v5213 = vsel %vm32, %v5090, 0
  %v5216 = vsel %vm32, %v5091, 0
  %v5219 = vsel %vm32, %v5092, 0
  %v5222 = vsel %vm32, %v5093, 0
  %v5225 = vsel %vm32, %v5094, 0
  %v5228 = vsel %vm32, %v5095, 0
  %v5231 = vsel %vm32, %v5096, 0
  %v5234 = vsel %vm32, %v5097, 0
  %v5237 = vsel %vm32, %v5098, 0
  %v5240 = vsel %vm32, %v5099, 0
  %v5243 = vsel %vm32, %v5100, 0
  %v5246 = vsel %vm32, %v5101, 0
  %v5249 = vsel %vm32, %v5102, 0
  %v5252 = vsel %vm32, %v5103, 0
  %v5255 = vsel %vm32, %v5104, 0
  %v5258 = vsel %vm32, %v5105, 0
  %v5261 = vsel %vm32, %v5106, 0
  %v5264 = vsel %vm32, %v5107, 0
  %v5267 = vsel %vm32, %v5108, 0
  %v5270 = vsel %vm32, %v5109, 0
  %v5273 = vsel %vm32, %v5110, 0
  %v5276 = vsel %vm32, %v5111, 0
  %v5279 = vsel %vm32, %v5112, 0
  %v5282 = vsel %vm32, %v5113, 0
  %v5285 = vsel %vm32, %v5114, 0
  %v5288 = vsel %vm32, %v5115, 0
  %v5291 = vsel %vm32, %v5116, 0
  %v5294 = vsel %vm32, %v5117, 0
  %v5297 = vsel %vm32, %v5118, 0
  %v5300 = vsel %vm32, %v5119, 0
  %v5303 = vsel %vm32, %v5120, 0
  %v5306 = vsel %vm32, %v5121, 0
  %v5309 = vsel %vm32, %v5122, 0
  %v5312 = vsel %vm32, %v5123, 0
  %v5315 = vsel %vm32, %v5124, 0
  %v5318 = vsel %vm32, %v5125, 0
  %5320 = vmatpush.msra.mxu0 0.0
  %5321 = vmatpush.msra.mxu0 0.0
  %5322 = vmatpush.msra.mxu0 0.0
  %5323 = vmatpush.msra.mxu0 0.0
  %5324 = vmatpush.msra.mxu0 0.0
  %5325 = vmatpush.msra.mxu0 0.0
  %5326 = vmatpush.msra.mxu0 0.0
  %5327 = vmatpush.msra.mxu0 0.0
  %5328 = vmatpush.msra.mxu0 0.0
  %5329 = vmatpush.msra.mxu0 0.0
  %5330 = vmatpush.msra.mxu0 0.0
  %5331 = vmatpush.msra.mxu0 0.0
  %5332 = vmatpush.msra.mxu0 0.0
  %5333 = vmatpush.msra.mxu0 0.0
  %5334 = vmatpush.msra.mxu0 0.0
  %5335 = vmatpush.msra.mxu0 %v5127
  %5336 = vmatmul.f32.gmra.mxu0 %v5129
  %v5337 = vpop.f32.mrf.mxu0
  %v5338 = vadd.f32 0.0, %v5337
  %5339 = vmatmul.f32.gmra.mxu0 %v5132
  %v5340 = vpop.f32.mrf.mxu0
  %v5341 = vadd.f32 0.0, %v5340
  %5342 = vmatmul.f32.gmra.mxu0 %v5135
  %v5343 = vpop.f32.mrf.mxu0
  %v5344 = vadd.f32 0.0, %v5343
  %5345 = vmatmul.f32.gmra.mxu0 %v5138
  %v5346 = vpop.f32.mrf.mxu0
  %v5347 = vadd.f32 0.0, %v5346
  %5348 = vmatmul.f32.gmra.mxu0 %v5141
  %v5349 = vpop.f32.mrf.mxu0
  %v5350 = vadd.f32 0.0, %v5349
  %5351 = vmatmul.f32.gmra.mxu0 %v5144
  %v5352 = vpop.f32.mrf.mxu0
  %v5353 = vadd.f32 0.0, %v5352
  %5354 = vmatmul.f32.gmra.mxu0 %v5147
  %v5355 = vpop.f32.mrf.mxu0
  %v5356 = vadd.f32 0.0, %v5355
  %5357 = vmatmul.f32.gmra.mxu0 %v5150
  %v5358 = vpop.f32.mrf.mxu0
  %v5359 = vadd.f32 0.0, %v5358
  %5360 = vmatmul.f32.gmra.mxu0 %v5153
  %v5361 = vpop.f32.mrf.mxu0
  %v5362 = vadd.f32 0.0, %v5361
  %5363 = vmatmul.f32.gmra.mxu0 %v5156
  %v5364 = vpop.f32.mrf.mxu0
  %v5365 = vadd.f32 0.0, %v5364
  %5366 = vmatmul.f32.gmra.mxu0 %v5159
  %v5367 = vpop.f32.mrf.mxu0
  %v5368 = vadd.f32 0.0, %v5367
  %5369 = vmatmul.f32.gmra.mxu0 %v5162
  %v5370 = vpop.f32.mrf.mxu0
  %v5371 = vadd.f32 0.0, %v5370
  %5372 = vmatmul.f32.gmra.mxu0 %v5165
  %v5373 = vpop.f32.mrf.mxu0
  %v5374 = vadd.f32 0.0, %v5373
  %5375 = vmatmul.f32.gmra.mxu0 %v5168
  %v5376 = vpop.f32.mrf.mxu0
  %v5377 = vadd.f32 0.0, %v5376
  %5378 = vmatmul.f32.gmra.mxu0 %v5171
  %v5379 = vpop.f32.mrf.mxu0
  %v5380 = vadd.f32 0.0, %v5379
  %5381 = vmatmul.f32.gmra.mxu0 %v5174
  %v5382 = vpop.f32.mrf.mxu0
  %v5383 = vadd.f32 0.0, %v5382
  %5384 = vmatmul.f32.gmra.mxu0 %v5177
  %v5385 = vpop.f32.mrf.mxu0
  %v5386 = vadd.f32 0.0, %v5385
  %5387 = vmatmul.f32.gmra.mxu0 %v5180
  %v5388 = vpop.f32.mrf.mxu0
  %v5389 = vadd.f32 0.0, %v5388
  %5390 = vmatmul.f32.gmra.mxu0 %v5183
  %v5391 = vpop.f32.mrf.mxu0
  %v5392 = vadd.f32 0.0, %v5391
  %5393 = vmatmul.f32.gmra.mxu0 %v5186
  %v5394 = vpop.f32.mrf.mxu0
  %v5395 = vadd.f32 0.0, %v5394
  %5396 = vmatmul.f32.gmra.mxu0 %v5189
  %v5397 = vpop.f32.mrf.mxu0
  %v5398 = vadd.f32 0.0, %v5397
  %5399 = vmatmul.f32.gmra.mxu0 %v5192
  %v5400 = vpop.f32.mrf.mxu0
  %v5401 = vadd.f32 0.0, %v5400
  %5402 = vmatmul.f32.gmra.mxu0 %v5195
  %v5403 = vpop.f32.mrf.mxu0
  %v5404 = vadd.f32 0.0, %v5403
  %5405 = vmatmul.f32.gmra.mxu0 %v5198
  %v5406 = vpop.f32.mrf.mxu0
  %v5407 = vadd.f32 0.0, %v5406
  %5408 = vmatmul.f32.gmra.mxu0 %v5201
  %v5409 = vpop.f32.mrf.mxu0
  %v5410 = vadd.f32 0.0, %v5409
  %5411 = vmatmul.f32.gmra.mxu0 %v5204
  %v5412 = vpop.f32.mrf.mxu0
  %v5413 = vadd.f32 0.0, %v5412
  %5414 = vmatmul.f32.gmra.mxu0 %v5207
  %v5415 = vpop.f32.mrf.mxu0
  %v5416 = vadd.f32 0.0, %v5415
  %5417 = vmatmul.f32.gmra.mxu0 %v5210
  %v5418 = vpop.f32.mrf.mxu0
  %v5419 = vadd.f32 0.0, %v5418
  %5420 = vmatmul.f32.gmra.mxu0 %v5213
  %v5421 = vpop.f32.mrf.mxu0
  %v5422 = vadd.f32 0.0, %v5421
  %5423 = vmatmul.f32.gmra.mxu0 %v5216
  %v5424 = vpop.f32.mrf.mxu0
  %v5425 = vadd.f32 0.0, %v5424
  %5426 = vmatmul.f32.gmra.mxu0 %v5219
  %v5427 = vpop.f32.mrf.mxu0
  %v5428 = vadd.f32 0.0, %v5427
  %5429 = vmatmul.f32.gmra.mxu0 %v5222
  %v5430 = vpop.f32.mrf.mxu0
  %v5431 = vadd.f32 0.0, %v5430
  %5432 = vmatmul.f32.gmra.mxu0 %v5225
  %v5433 = vpop.f32.mrf.mxu0
  %v5434 = vadd.f32 0.0, %v5433
  %5435 = vmatmul.f32.gmra.mxu0 %v5228
  %v5436 = vpop.f32.mrf.mxu0
  %v5437 = vadd.f32 0.0, %v5436
  %5438 = vmatmul.f32.gmra.mxu0 %v5231
  %v5439 = vpop.f32.mrf.mxu0
  %v5440 = vadd.f32 0.0, %v5439
  %5441 = vmatmul.f32.gmra.mxu0 %v5234
  %v5442 = vpop.f32.mrf.mxu0
  %v5443 = vadd.f32 0.0, %v5442
  %5444 = vmatmul.f32.gmra.mxu0 %v5237
  %v5445 = vpop.f32.mrf.mxu0
  %v5446 = vadd.f32 0.0, %v5445
  %5447 = vmatmul.f32.gmra.mxu0 %v5240
  %v5448 = vpop.f32.mrf.mxu0
  %v5449 = vadd.f32 0.0, %v5448
  %5450 = vmatmul.f32.gmra.mxu0 %v5243
  %v5451 = vpop.f32.mrf.mxu0
  %v5452 = vadd.f32 0.0, %v5451
  %5453 = vmatmul.f32.gmra.mxu0 %v5246
  %v5454 = vpop.f32.mrf.mxu0
  %v5455 = vadd.f32 0.0, %v5454
  %5456 = vmatmul.f32.gmra.mxu0 %v5249
  %v5457 = vpop.f32.mrf.mxu0
  %v5458 = vadd.f32 0.0, %v5457
  %5459 = vmatmul.f32.gmra.mxu0 %v5252
  %v5460 = vpop.f32.mrf.mxu0
  %v5461 = vadd.f32 0.0, %v5460
  %5462 = vmatmul.f32.gmra.mxu0 %v5255
  %v5463 = vpop.f32.mrf.mxu0
  %v5464 = vadd.f32 0.0, %v5463
  %5465 = vmatmul.f32.gmra.mxu0 %v5258
  %v5466 = vpop.f32.mrf.mxu0
  %v5467 = vadd.f32 0.0, %v5466
  %5468 = vmatmul.f32.gmra.mxu0 %v5261
  %v5469 = vpop.f32.mrf.mxu0
  %v5470 = vadd.f32 0.0, %v5469
  %5471 = vmatmul.f32.gmra.mxu0 %v5264
  %v5472 = vpop.f32.mrf.mxu0
  %v5473 = vadd.f32 0.0, %v5472
  %5474 = vmatmul.f32.gmra.mxu0 %v5267
  %v5475 = vpop.f32.mrf.mxu0
  %v5476 = vadd.f32 0.0, %v5475
  %5477 = vmatmul.f32.gmra.mxu0 %v5270
  %v5478 = vpop.f32.mrf.mxu0
  %v5479 = vadd.f32 0.0, %v5478
  %5480 = vmatmul.f32.gmra.mxu0 %v5273
  %v5481 = vpop.f32.mrf.mxu0
  %v5482 = vadd.f32 0.0, %v5481
  %5483 = vmatmul.f32.gmra.mxu0 %v5276
  %v5484 = vpop.f32.mrf.mxu0
  %v5485 = vadd.f32 0.0, %v5484
  %5486 = vmatmul.f32.gmra.mxu0 %v5279
  %v5487 = vpop.f32.mrf.mxu0
  %v5488 = vadd.f32 0.0, %v5487
  %5489 = vmatmul.f32.gmra.mxu0 %v5282
  %v5490 = vpop.f32.mrf.mxu0
  %v5491 = vadd.f32 0.0, %v5490
  %5492 = vmatmul.f32.gmra.mxu0 %v5285
  %v5493 = vpop.f32.mrf.mxu0
  %v5494 = vadd.f32 0.0, %v5493
  %5495 = vmatmul.f32.gmra.mxu0 %v5288
  %v5496 = vpop.f32.mrf.mxu0
  %v5497 = vadd.f32 0.0, %v5496
  %5498 = vmatmul.f32.gmra.mxu0 %v5291
  %v5499 = vpop.f32.mrf.mxu0
  %v5500 = vadd.f32 0.0, %v5499
  %5501 = vmatmul.f32.gmra.mxu0 %v5294
  %v5502 = vpop.f32.mrf.mxu0
  %v5503 = vadd.f32 0.0, %v5502
  %5504 = vmatmul.f32.gmra.mxu0 %v5297
  %v5505 = vpop.f32.mrf.mxu0
  %v5506 = vadd.f32 0.0, %v5505
  %5507 = vmatmul.f32.gmra.mxu0 %v5300
  %v5508 = vpop.f32.mrf.mxu0
  %v5509 = vadd.f32 0.0, %v5508
  %5510 = vmatmul.f32.gmra.mxu0 %v5303
  %v5511 = vpop.f32.mrf.mxu0
  %v5512 = vadd.f32 0.0, %v5511
  %5513 = vmatmul.f32.gmra.mxu0 %v5306
  %v5514 = vpop.f32.mrf.mxu0
  %v5515 = vadd.f32 0.0, %v5514
  %5516 = vmatmul.f32.gmra.mxu0 %v5309
  %v5517 = vpop.f32.mrf.mxu0
  %v5518 = vadd.f32 0.0, %v5517
  %5519 = vmatmul.f32.gmra.mxu0 %v5312
  %v5520 = vpop.f32.mrf.mxu0
  %v5521 = vadd.f32 0.0, %v5520
  %5522 = vmatmul.f32.gmra.mxu0 %v5315
  %v5523 = vpop.f32.mrf.mxu0
  %v5524 = vadd.f32 0.0, %v5523
  %5525 = vmatmul.f32.gmra.mxu0 %v5318
  %v5526 = vpop.f32.mrf.mxu0
  %v5527 = vadd.f32 0.0, %v5526
  %5528 = vdwg.mxu0
  %v5529 = vadd.f32 %v4998, %v5338
  %v5530 = vadd.f32 %v4999, %v5341
  %v5531 = vadd.f32 %v5000, %v5344
  %v5532 = vadd.f32 %v5001, %v5347
  %v5533 = vadd.f32 %v5002, %v5350
  %v5534 = vadd.f32 %v5003, %v5353
  %v5535 = vadd.f32 %v5004, %v5356
  %v5536 = vadd.f32 %v5005, %v5359
  %v5537 = vadd.f32 %v5006, %v5362
  %v5538 = vadd.f32 %v5007, %v5365
  %v5539 = vadd.f32 %v5008, %v5368
  %v5540 = vadd.f32 %v5009, %v5371
  %v5541 = vadd.f32 %v5010, %v5374
  %v5542 = vadd.f32 %v5011, %v5377
  %v5543 = vadd.f32 %v5012, %v5380
  %v5544 = vadd.f32 %v5013, %v5383
  %v5545 = vadd.f32 %v5014, %v5386
  %v5546 = vadd.f32 %v5015, %v5389
  %v5547 = vadd.f32 %v5016, %v5392
  %v5548 = vadd.f32 %v5017, %v5395
  %v5549 = vadd.f32 %v5018, %v5398
  %v5550 = vadd.f32 %v5019, %v5401
  %v5551 = vadd.f32 %v5020, %v5404
  %v5552 = vadd.f32 %v5021, %v5407
  %v5553 = vadd.f32 %v5022, %v5410
  %v5554 = vadd.f32 %v5023, %v5413
  %v5555 = vadd.f32 %v5024, %v5416
  %v5556 = vadd.f32 %v5025, %v5419
  %v5557 = vadd.f32 %v5026, %v5422
  %v5558 = vadd.f32 %v5027, %v5425
  %v5559 = vadd.f32 %v5028, %v5428
  %v5560 = vadd.f32 %v5029, %v5431
  %v5561 = vadd.f32 %v5030, %v5434
  %v5562 = vadd.f32 %v5031, %v5437
  %v5563 = vadd.f32 %v5032, %v5440
  %v5564 = vadd.f32 %v5033, %v5443
  %v5565 = vadd.f32 %v5034, %v5446
  %v5566 = vadd.f32 %v5035, %v5449
  %v5567 = vadd.f32 %v5036, %v5452
  %v5568 = vadd.f32 %v5037, %v5455
  %v5569 = vadd.f32 %v5038, %v5458
  %v5570 = vadd.f32 %v5039, %v5461
  %v5571 = vadd.f32 %v5040, %v5464
  %v5572 = vadd.f32 %v5041, %v5467
  %v5573 = vadd.f32 %v5042, %v5470
  %v5574 = vadd.f32 %v5043, %v5473
  %v5575 = vadd.f32 %v5044, %v5476
  %v5576 = vadd.f32 %v5045, %v5479
  %v5577 = vadd.f32 %v5046, %v5482
  %v5578 = vadd.f32 %v5047, %v5485
  %v5579 = vadd.f32 %v5048, %v5488
  %v5580 = vadd.f32 %v5049, %v5491
  %v5581 = vadd.f32 %v5050, %v5494
  %v5582 = vadd.f32 %v5051, %v5497
  %v5583 = vadd.f32 %v5052, %v5500
  %v5584 = vadd.f32 %v5053, %v5503
  %v5585 = vadd.f32 %v5054, %v5506
  %v5586 = vadd.f32 %v5055, %v5509
  %v5587 = vadd.f32 %v5056, %v5512
  %v5588 = vadd.f32 %v5057, %v5515
  %v5589 = vadd.f32 %v5058, %v5518
  %v5590 = vadd.f32 %v5059, %v5521
  %v5591 = vadd.f32 %v5060, %v5524
  %v5592 = vadd.f32 %v5061, %v5527
  %v5593 = vld [vmem:[#allocation2 + $0x22] sm:$0xff]
  %v5594 = vld [vmem:[#allocation2 + $0x2a] sm:$0xff]
  %v5595 = vld [vmem:[#allocation2 + $0x32] sm:$0xff]
  %v5596 = vld [vmem:[#allocation2 + $0x3a] sm:$0xff]
  %v5597 = vld [vmem:[#allocation2 + $0x42] sm:$0xff]
  %v5598 = vld [vmem:[#allocation2 + $0x4a] sm:$0xff]
  %v5599 = vld [vmem:[#allocation2 + $0x52] sm:$0xff]
  %v5600 = vld [vmem:[#allocation2 + $0x5a] sm:$0xff]
  %v5601 = vld [vmem:[#allocation2 + $0x62] sm:$0xff]
  %v5602 = vld [vmem:[#allocation2 + $0x6a] sm:$0xff]
  %v5603 = vld [vmem:[#allocation2 + $0x72] sm:$0xff]
  %v5604 = vld [vmem:[#allocation2 + $0x7a] sm:$0xff]
  %v5605 = vld [vmem:[#allocation2 + $0x82] sm:$0xff]
  %v5606 = vld [vmem:[#allocation2 + $0x8a] sm:$0xff]
  %v5607 = vld [vmem:[#allocation2 + $0x92] sm:$0xff]
  %v5608 = vld [vmem:[#allocation2 + $0x9a] sm:$0xff]
  %v5609 = vld [vmem:[#allocation2 + $0xa2] sm:$0xff]
  %v5610 = vld [vmem:[#allocation2 + $0xaa] sm:$0xff]
  %v5611 = vld [vmem:[#allocation2 + $0xb2] sm:$0xff]
  %v5612 = vld [vmem:[#allocation2 + $0xba] sm:$0xff]
  %v5613 = vld [vmem:[#allocation2 + $0xc2] sm:$0xff]
  %v5614 = vld [vmem:[#allocation2 + $0xca] sm:$0xff]
  %v5615 = vld [vmem:[#allocation2 + $0xd2] sm:$0xff]
  %v5616 = vld [vmem:[#allocation2 + $0xda] sm:$0xff]
  %v5617 = vld [vmem:[#allocation2 + $0xe2] sm:$0xff]
  %v5618 = vld [vmem:[#allocation2 + $0xea] sm:$0xff]
  %v5619 = vld [vmem:[#allocation2 + $0xf2] sm:$0xff]
  %v5620 = vld [vmem:[#allocation2 + $0xfa] sm:$0xff]
  %v5621 = vld [vmem:[#allocation2 + $0x102] sm:$0xff]
  %v5622 = vld [vmem:[#allocation2 + $0x10a] sm:$0xff]
  %v5623 = vld [vmem:[#allocation2 + $0x112] sm:$0xff]
  %v5624 = vld [vmem:[#allocation2 + $0x11a] sm:$0xff]
  %v5625 = vld [vmem:[#allocation2 + $0x14a] sm:$0xff]
  %v5626 = vld [vmem:[#allocation2 + $0x152] sm:$0xff]
  %v5627 = vld [vmem:[#allocation2 + $0x15a] sm:$0xff]
  %v5628 = vld [vmem:[#allocation2 + $0x162] sm:$0xff]
  %v5629 = vld [vmem:[#allocation2 + $0x16a] sm:$0xff]
  %v5630 = vld [vmem:[#allocation2 + $0x172] sm:$0xff]
  %v5631 = vld [vmem:[#allocation2 + $0x17a] sm:$0xff]
  %v5632 = vld [vmem:[#allocation2 + $0x182] sm:$0xff]
  %v5633 = vld [vmem:[#allocation2 + $0x18a] sm:$0xff]
  %v5634 = vld [vmem:[#allocation2 + $0x192] sm:$0xff]
  %v5635 = vld [vmem:[#allocation2 + $0x19a] sm:$0xff]
  %v5636 = vld [vmem:[#allocation2 + $0x1a2] sm:$0xff]
  %v5637 = vld [vmem:[#allocation2 + $0x1aa] sm:$0xff]
  %v5638 = vld [vmem:[#allocation2 + $0x1b2] sm:$0xff]
  %v5639 = vld [vmem:[#allocation2 + $0x1ba] sm:$0xff]
  %v5640 = vld [vmem:[#allocation2 + $0x1c2] sm:$0xff]
  %v5641 = vld [vmem:[#allocation2 + $0x1ca] sm:$0xff]
  %v5642 = vld [vmem:[#allocation2 + $0x1d2] sm:$0xff]
  %v5643 = vld [vmem:[#allocation2 + $0x1da] sm:$0xff]
  %v5644 = vld [vmem:[#allocation2 + $0x1e2] sm:$0xff]
  %v5645 = vld [vmem:[#allocation2 + $0x1ea] sm:$0xff]
  %v5646 = vld [vmem:[#allocation2 + $0x1f2] sm:$0xff]
  %v5647 = vld [vmem:[#allocation2 + $0x1fa] sm:$0xff]
  %v5648 = vld [vmem:[#allocation2 + $0x202] sm:$0xff]
  %v5649 = vld [vmem:[#allocation2 + $0x20a] sm:$0xff]
  %v5650 = vld [vmem:[#allocation2 + $0x212] sm:$0xff]
  %v5651 = vld [vmem:[#allocation2 + $0x21a] sm:$0xff]
  %v5652 = vld [vmem:[#allocation2 + $0x222] sm:$0xff]
  %v5653 = vld [vmem:[#allocation2 + $0x22a] sm:$0xff]
  %v5654 = vld [vmem:[#allocation2 + $0x232] sm:$0xff]
  %v5655 = vld [vmem:[#allocation2 + $0x23a] sm:$0xff]
  %v5656 = vld [vmem:[#allocation2 + $0x242] sm:$0xff]
  %v5657 = vsel %vm1090, %v5593, 0.0
  %v5658 = vsel %vm1091, %v5594, 0.0
  %v5659 = vsel %vm1092, %v5595, 0.0
  %v5660 = vsel %vm1093, %v5596, 0.0
  %v5661 = vsel %vm1094, %v5597, 0.0
  %v5662 = vsel %vm1095, %v5598, 0.0
  %v5663 = vsel %vm1096, %v5599, 0.0
  %v5664 = vsel %vm1097, %v5600, 0.0
  %v5665 = vsel %vm1098, %v5601, 0.0
  %v5666 = vsel %vm1099, %v5602, 0.0
  %v5667 = vsel %vm1100, %v5603, 0.0
  %v5668 = vsel %vm1101, %v5604, 0.0
  %v5669 = vsel %vm1102, %v5605, 0.0
  %v5670 = vsel %vm1103, %v5606, 0.0
  %v5671 = vsel %vm1104, %v5607, 0.0
  %v5672 = vsel %vm1105, %v5608, 0.0
  %v5673 = vsel %vm1106, %v5609, 0.0
  %v5674 = vsel %vm1107, %v5610, 0.0
  %v5675 = vsel %vm1108, %v5611, 0.0
  %v5676 = vsel %vm1109, %v5612, 0.0
  %v5677 = vsel %vm1110, %v5613, 0.0
  %v5678 = vsel %vm1111, %v5614, 0.0
  %v5679 = vsel %vm1112, %v5615, 0.0
  %v5680 = vsel %vm1113, %v5616, 0.0
  %v5681 = vsel %vm1114, %v5617, 0.0
  %v5682 = vsel %vm1115, %v5618, 0.0
  %v5683 = vsel %vm1116, %v5619, 0.0
  %v5684 = vsel %vm1117, %v5620, 0.0
  %v5685 = vsel %vm1118, %v5621, 0.0
  %v5686 = vsel %vm1119, %v5622, 0.0
  %v5687 = vsel %vm1120, %v5623, 0.0
  %v5688 = vsel %vm1121, %v5624, 0.0
  %v5689 = vsel %vm1122, %v5625, 0.0
  %v5690 = vsel %vm1123, %v5626, 0.0
  %v5691 = vsel %vm1124, %v5627, 0.0
  %v5692 = vsel %vm1125, %v5628, 0.0
  %v5693 = vsel %vm1126, %v5629, 0.0
  %v5694 = vsel %vm1127, %v5630, 0.0
  %v5695 = vsel %vm1128, %v5631, 0.0
  %v5696 = vsel %vm1129, %v5632, 0.0
  %v5697 = vsel %vm1130, %v5633, 0.0
  %v5698 = vsel %vm1131, %v5634, 0.0
  %v5699 = vsel %vm1132, %v5635, 0.0
  %v5700 = vsel %vm1133, %v5636, 0.0
  %v5701 = vsel %vm1134, %v5637, 0.0
  %v5702 = vsel %vm1135, %v5638, 0.0
  %v5703 = vsel %vm1136, %v5639, 0.0
  %v5704 = vsel %vm1137, %v5640, 0.0
  %v5705 = vsel %vm1138, %v5641, 0.0
  %v5706 = vsel %vm1139, %v5642, 0.0
  %v5707 = vsel %vm1140, %v5643, 0.0
  %v5708 = vsel %vm1141, %v5644, 0.0
  %v5709 = vsel %vm1142, %v5645, 0.0
  %v5710 = vsel %vm1143, %v5646, 0.0
  %v5711 = vsel %vm1144, %v5647, 0.0
  %v5712 = vsel %vm1145, %v5648, 0.0
  %v5713 = vsel %vm1146, %v5649, 0.0
  %v5714 = vsel %vm1147, %v5650, 0.0
  %v5715 = vsel %vm1148, %v5651, 0.0
  %v5716 = vsel %vm1149, %v5652, 0.0
  %v5717 = vsel %vm1150, %v5653, 0.0
  %v5718 = vsel %vm1151, %v5654, 0.0
  %v5719 = vsel %vm1152, %v5655, 0.0
  %v5720 = vsel %vm1153, %v5656, 0.0
  %s5721 = scalar_lea.vmem %s1, 64
  %v5722 = vld [vmem:[%s5721] sm:$0xff]
  %v5724 = vsel %vm32, %v5657, 0
  %v5727 = vsel %vm32, %v5658, 0
  %v5730 = vsel %vm32, %v5659, 0
  %v5733 = vsel %vm32, %v5660, 0
  %v5736 = vsel %vm32, %v5661, 0
  %v5739 = vsel %vm32, %v5662, 0
  %v5742 = vsel %vm32, %v5663, 0
  %v5745 = vsel %vm32, %v5664, 0
  %v5748 = vsel %vm32, %v5665, 0
  %v5751 = vsel %vm32, %v5666, 0
  %v5754 = vsel %vm32, %v5667, 0
  %v5757 = vsel %vm32, %v5668, 0
  %v5760 = vsel %vm32, %v5669, 0
  %v5763 = vsel %vm32, %v5670, 0
  %v5766 = vsel %vm32, %v5671, 0
  %v5769 = vsel %vm32, %v5672, 0
  %v5772 = vsel %vm32, %v5673, 0
  %v5775 = vsel %vm32, %v5674, 0
  %v5778 = vsel %vm32, %v5675, 0
  %v5781 = vsel %vm32, %v5676, 0
  %v5784 = vsel %vm32, %v5677, 0
  %v5787 = vsel %vm32, %v5678, 0
  %v5790 = vsel %vm32, %v5679, 0
  %v5793 = vsel %vm32, %v5680, 0
  %v5796 = vsel %vm32, %v5681, 0
  %v5799 = vsel %vm32, %v5682, 0
  %v5802 = vsel %vm32, %v5683, 0
  %v5805 = vsel %vm32, %v5684, 0
  %v5808 = vsel %vm32, %v5685, 0
  %v5811 = vsel %vm32, %v5686, 0
  %v5814 = vsel %vm32, %v5687, 0
  %v5817 = vsel %vm32, %v5688, 0
  %v5820 = vsel %vm32, %v5689, 0
  %v5823 = vsel %vm32, %v5690, 0
  %v5826 = vsel %vm32, %v5691, 0
  %v5829 = vsel %vm32, %v5692, 0
  %v5832 = vsel %vm32, %v5693, 0
  %v5835 = vsel %vm32, %v5694, 0
  %v5838 = vsel %vm32, %v5695, 0
  %v5841 = vsel %vm32, %v5696, 0
  %v5844 = vsel %vm32, %v5697, 0
  %v5847 = vsel %vm32, %v5698, 0
  %v5850 = vsel %vm32, %v5699, 0
  %v5853 = vsel %vm32, %v5700, 0
  %v5856 = vsel %vm32, %v5701, 0
  %v5859 = vsel %vm32, %v5702, 0
  %v5862 = vsel %vm32, %v5703, 0
  %v5865 = vsel %vm32, %v5704, 0
  %v5868 = vsel %vm32, %v5705, 0
  %v5871 = vsel %vm32, %v5706, 0
  %v5874 = vsel %vm32, %v5707, 0
  %v5877 = vsel %vm32, %v5708, 0
  %v5880 = vsel %vm32, %v5709, 0
  %v5883 = vsel %vm32, %v5710, 0
  %v5886 = vsel %vm32, %v5711, 0
  %v5889 = vsel %vm32, %v5712, 0
  %v5892 = vsel %vm32, %v5713, 0
  %v5895 = vsel %vm32, %v5714, 0
  %v5898 = vsel %vm32, %v5715, 0
  %v5901 = vsel %vm32, %v5716, 0
  %v5904 = vsel %vm32, %v5717, 0
  %v5907 = vsel %vm32, %v5718, 0
  %v5910 = vsel %vm32, %v5719, 0
  %v5913 = vsel %vm32, %v5720, 0
  %5915 = vmatpush.msra.mxu0 0.0
  %5916 = vmatpush.msra.mxu0 0.0
  %5917 = vmatpush.msra.mxu0 0.0
  %5918 = vmatpush.msra.mxu0 0.0
  %5919 = vmatpush.msra.mxu0 0.0
  %5920 = vmatpush.msra.mxu0 0.0
  %5921 = vmatpush.msra.mxu0 0.0
  %5922 = vmatpush.msra.mxu0 0.0
  %5923 = vmatpush.msra.mxu0 0.0
  %5924 = vmatpush.msra.mxu0 0.0
  %5925 = vmatpush.msra.mxu0 0.0
  %5926 = vmatpush.msra.mxu0 0.0
  %5927 = vmatpush.msra.mxu0 0.0
  %5928 = vmatpush.msra.mxu0 0.0
  %5929 = vmatpush.msra.mxu0 0.0
  %5930 = vmatpush.msra.mxu0 %v5722
  %5931 = vmatmul.f32.gmra.mxu0 %v5724
  %v5932 = vpop.f32.mrf.mxu0
  %v5933 = vadd.f32 0.0, %v5932
  %5934 = vmatmul.f32.gmra.mxu0 %v5727
  %v5935 = vpop.f32.mrf.mxu0
  %v5936 = vadd.f32 0.0, %v5935
  %5937 = vmatmul.f32.gmra.mxu0 %v5730
  %v5938 = vpop.f32.mrf.mxu0
  %v5939 = vadd.f32 0.0, %v5938
  %5940 = vmatmul.f32.gmra.mxu0 %v5733
  %v5941 = vpop.f32.mrf.mxu0
  %v5942 = vadd.f32 0.0, %v5941
  %5943 = vmatmul.f32.gmra.mxu0 %v5736
  %v5944 = vpop.f32.mrf.mxu0
  %v5945 = vadd.f32 0.0, %v5944
  %5946 = vmatmul.f32.gmra.mxu0 %v5739
  %v5947 = vpop.f32.mrf.mxu0
  %v5948 = vadd.f32 0.0, %v5947
  %5949 = vmatmul.f32.gmra.mxu0 %v5742
  %v5950 = vpop.f32.mrf.mxu0
  %v5951 = vadd.f32 0.0, %v5950
  %5952 = vmatmul.f32.gmra.mxu0 %v5745
  %v5953 = vpop.f32.mrf.mxu0
  %v5954 = vadd.f32 0.0, %v5953
  %5955 = vmatmul.f32.gmra.mxu0 %v5748
  %v5956 = vpop.f32.mrf.mxu0
  %v5957 = vadd.f32 0.0, %v5956
  %5958 = vmatmul.f32.gmra.mxu0 %v5751
  %v5959 = vpop.f32.mrf.mxu0
  %v5960 = vadd.f32 0.0, %v5959
  %5961 = vmatmul.f32.gmra.mxu0 %v5754
  %v5962 = vpop.f32.mrf.mxu0
  %v5963 = vadd.f32 0.0, %v5962
  %5964 = vmatmul.f32.gmra.mxu0 %v5757
  %v5965 = vpop.f32.mrf.mxu0
  %v5966 = vadd.f32 0.0, %v5965
  %5967 = vmatmul.f32.gmra.mxu0 %v5760
  %v5968 = vpop.f32.mrf.mxu0
  %v5969 = vadd.f32 0.0, %v5968
  %5970 = vmatmul.f32.gmra.mxu0 %v5763
  %v5971 = vpop.f32.mrf.mxu0
  %v5972 = vadd.f32 0.0, %v5971
  %5973 = vmatmul.f32.gmra.mxu0 %v5766
  %v5974 = vpop.f32.mrf.mxu0
  %v5975 = vadd.f32 0.0, %v5974
  %5976 = vmatmul.f32.gmra.mxu0 %v5769
  %v5977 = vpop.f32.mrf.mxu0
  %v5978 = vadd.f32 0.0, %v5977
  %5979 = vmatmul.f32.gmra.mxu0 %v5772
  %v5980 = vpop.f32.mrf.mxu0
  %v5981 = vadd.f32 0.0, %v5980
  %5982 = vmatmul.f32.gmra.mxu0 %v5775
  %v5983 = vpop.f32.mrf.mxu0
  %v5984 = vadd.f32 0.0, %v5983
  %5985 = vmatmul.f32.gmra.mxu0 %v5778
  %v5986 = vpop.f32.mrf.mxu0
  %v5987 = vadd.f32 0.0, %v5986
  %5988 = vmatmul.f32.gmra.mxu0 %v5781
  %v5989 = vpop.f32.mrf.mxu0
  %v5990 = vadd.f32 0.0, %v5989
  %5991 = vmatmul.f32.gmra.mxu0 %v5784
  %v5992 = vpop.f32.mrf.mxu0
  %v5993 = vadd.f32 0.0, %v5992
  %5994 = vmatmul.f32.gmra.mxu0 %v5787
  %v5995 = vpop.f32.mrf.mxu0
  %v5996 = vadd.f32 0.0, %v5995
  %5997 = vmatmul.f32.gmra.mxu0 %v5790
  %v5998 = vpop.f32.mrf.mxu0
  %v5999 = vadd.f32 0.0, %v5998
  %6000 = vmatmul.f32.gmra.mxu0 %v5793
  %v6001 = vpop.f32.mrf.mxu0
  %v6002 = vadd.f32 0.0, %v6001
  %6003 = vmatmul.f32.gmra.mxu0 %v5796
  %v6004 = vpop.f32.mrf.mxu0
  %v6005 = vadd.f32 0.0, %v6004
  %6006 = vmatmul.f32.gmra.mxu0 %v5799
  %v6007 = vpop.f32.mrf.mxu0
  %v6008 = vadd.f32 0.0, %v6007
  %6009 = vmatmul.f32.gmra.mxu0 %v5802
  %v6010 = vpop.f32.mrf.mxu0
  %v6011 = vadd.f32 0.0, %v6010
  %6012 = vmatmul.f32.gmra.mxu0 %v5805
  %v6013 = vpop.f32.mrf.mxu0
  %v6014 = vadd.f32 0.0, %v6013
  %6015 = vmatmul.f32.gmra.mxu0 %v5808
  %v6016 = vpop.f32.mrf.mxu0
  %v6017 = vadd.f32 0.0, %v6016
  %6018 = vmatmul.f32.gmra.mxu0 %v5811
  %v6019 = vpop.f32.mrf.mxu0
  %v6020 = vadd.f32 0.0, %v6019
  %6021 = vmatmul.f32.gmra.mxu0 %v5814
  %v6022 = vpop.f32.mrf.mxu0
  %v6023 = vadd.f32 0.0, %v6022
  %6024 = vmatmul.f32.gmra.mxu0 %v5817
  %v6025 = vpop.f32.mrf.mxu0
  %v6026 = vadd.f32 0.0, %v6025
  %6027 = vmatmul.f32.gmra.mxu0 %v5820
  %v6028 = vpop.f32.mrf.mxu0
  %v6029 = vadd.f32 0.0, %v6028
  %6030 = vmatmul.f32.gmra.mxu0 %v5823
  %v6031 = vpop.f32.mrf.mxu0
  %v6032 = vadd.f32 0.0, %v6031
  %6033 = vmatmul.f32.gmra.mxu0 %v5826
  %v6034 = vpop.f32.mrf.mxu0
  %v6035 = vadd.f32 0.0, %v6034
  %6036 = vmatmul.f32.gmra.mxu0 %v5829
  %v6037 = vpop.f32.mrf.mxu0
  %v6038 = vadd.f32 0.0, %v6037
  %6039 = vmatmul.f32.gmra.mxu0 %v5832
  %v6040 = vpop.f32.mrf.mxu0
  %v6041 = vadd.f32 0.0, %v6040
  %6042 = vmatmul.f32.gmra.mxu0 %v5835
  %v6043 = vpop.f32.mrf.mxu0
  %v6044 = vadd.f32 0.0, %v6043
  %6045 = vmatmul.f32.gmra.mxu0 %v5838
  %v6046 = vpop.f32.mrf.mxu0
  %v6047 = vadd.f32 0.0, %v6046
  %6048 = vmatmul.f32.gmra.mxu0 %v5841
  %v6049 = vpop.f32.mrf.mxu0
  %v6050 = vadd.f32 0.0, %v6049
  %6051 = vmatmul.f32.gmra.mxu0 %v5844
  %v6052 = vpop.f32.mrf.mxu0
  %v6053 = vadd.f32 0.0, %v6052
  %6054 = vmatmul.f32.gmra.mxu0 %v5847
  %v6055 = vpop.f32.mrf.mxu0
  %v6056 = vadd.f32 0.0, %v6055
  %6057 = vmatmul.f32.gmra.mxu0 %v5850
  %v6058 = vpop.f32.mrf.mxu0
  %v6059 = vadd.f32 0.0, %v6058
  %6060 = vmatmul.f32.gmra.mxu0 %v5853
  %v6061 = vpop.f32.mrf.mxu0
  %v6062 = vadd.f32 0.0, %v6061
  %6063 = vmatmul.f32.gmra.mxu0 %v5856
  %v6064 = vpop.f32.mrf.mxu0
  %v6065 = vadd.f32 0.0, %v6064
  %6066 = vmatmul.f32.gmra.mxu0 %v5859
  %v6067 = vpop.f32.mrf.mxu0
  %v6068 = vadd.f32 0.0, %v6067
  %6069 = vmatmul.f32.gmra.mxu0 %v5862
  %v6070 = vpop.f32.mrf.mxu0
  %v6071 = vadd.f32 0.0, %v6070
  %6072 = vmatmul.f32.gmra.mxu0 %v5865
  %v6073 = vpop.f32.mrf.mxu0
  %v6074 = vadd.f32 0.0, %v6073
  %6075 = vmatmul.f32.gmra.mxu0 %v5868
  %v6076 = vpop.f32.mrf.mxu0
  %v6077 = vadd.f32 0.0, %v6076
  %6078 = vmatmul.f32.gmra.mxu0 %v5871
  %v6079 = vpop.f32.mrf.mxu0
  %v6080 = vadd.f32 0.0, %v6079
  %6081 = vmatmul.f32.gmra.mxu0 %v5874
  %v6082 = vpop.f32.mrf.mxu0
  %v6083 = vadd.f32 0.0, %v6082
  %6084 = vmatmul.f32.gmra.mxu0 %v5877
  %v6085 = vpop.f32.mrf.mxu0
  %v6086 = vadd.f32 0.0, %v6085
  %6087 = vmatmul.f32.gmra.mxu0 %v5880
  %v6088 = vpop.f32.mrf.mxu0
  %v6089 = vadd.f32 0.0, %v6088
  %6090 = vmatmul.f32.gmra.mxu0 %v5883
  %v6091 = vpop.f32.mrf.mxu0
  %v6092 = vadd.f32 0.0, %v6091
  %6093 = vmatmul.f32.gmra.mxu0 %v5886
  %v6094 = vpop.f32.mrf.mxu0
  %v6095 = vadd.f32 0.0, %v6094
  %6096 = vmatmul.f32.gmra.mxu0 %v5889
  %v6097 = vpop.f32.mrf.mxu0
  %v6098 = vadd.f32 0.0, %v6097
  %6099 = vmatmul.f32.gmra.mxu0 %v5892
  %v6100 = vpop.f32.mrf.mxu0
  %v6101 = vadd.f32 0.0, %v6100
  %6102 = vmatmul.f32.gmra.mxu0 %v5895
  %v6103 = vpop.f32.mrf.mxu0
  %v6104 = vadd.f32 0.0, %v6103
  %6105 = vmatmul.f32.gmra.mxu0 %v5898
  %v6106 = vpop.f32.mrf.mxu0
  %v6107 = vadd.f32 0.0, %v6106
  %6108 = vmatmul.f32.gmra.mxu0 %v5901
  %v6109 = vpop.f32.mrf.mxu0
  %v6110 = vadd.f32 0.0, %v6109
  %6111 = vmatmul.f32.gmra.mxu0 %v5904
  %v6112 = vpop.f32.mrf.mxu0
  %v6113 = vadd.f32 0.0, %v6112
  %6114 = vmatmul.f32.gmra.mxu0 %v5907
  %v6115 = vpop.f32.mrf.mxu0
  %v6116 = vadd.f32 0.0, %v6115
  %6117 = vmatmul.f32.gmra.mxu0 %v5910
  %v6118 = vpop.f32.mrf.mxu0
  %v6119 = vadd.f32 0.0, %v6118
  %6120 = vmatmul.f32.gmra.mxu0 %v5913
  %v6121 = vpop.f32.mrf.mxu0
  %v6122 = vadd.f32 0.0, %v6121
  %6123 = vdwg.mxu0
  %v6124 = vadd.f32 %v5529, %v5933
  %v6125 = vadd.f32 %v5530, %v5936
  %v6126 = vadd.f32 %v5531, %v5939
  %v6127 = vadd.f32 %v5532, %v5942
  %v6128 = vadd.f32 %v5533, %v5945
  %v6129 = vadd.f32 %v5534, %v5948
  %v6130 = vadd.f32 %v5535, %v5951
  %v6131 = vadd.f32 %v5536, %v5954
  %v6132 = vadd.f32 %v5537, %v5957
  %v6133 = vadd.f32 %v5538, %v5960
  %v6134 = vadd.f32 %v5539, %v5963
  %v6135 = vadd.f32 %v5540, %v5966
  %v6136 = vadd.f32 %v5541, %v5969
  %v6137 = vadd.f32 %v5542, %v5972
  %v6138 = vadd.f32 %v5543, %v5975
  %v6139 = vadd.f32 %v5544, %v5978
  %v6140 = vadd.f32 %v5545, %v5981
  %v6141 = vadd.f32 %v5546, %v5984
  %v6142 = vadd.f32 %v5547, %v5987
  %v6143 = vadd.f32 %v5548, %v5990
  %v6144 = vadd.f32 %v5549, %v5993
  %v6145 = vadd.f32 %v5550, %v5996
  %v6146 = vadd.f32 %v5551, %v5999
  %v6147 = vadd.f32 %v5552, %v6002
  %v6148 = vadd.f32 %v5553, %v6005
  %v6149 = vadd.f32 %v5554, %v6008
  %v6150 = vadd.f32 %v5555, %v6011
  %v6151 = vadd.f32 %v5556, %v6014
  %v6152 = vadd.f32 %v5557, %v6017
  %v6153 = vadd.f32 %v5558, %v6020
  %v6154 = vadd.f32 %v5559, %v6023
  %v6155 = vadd.f32 %v5560, %v6026
  %v6156 = vadd.f32 %v5561, %v6029
  %v6157 = vadd.f32 %v5562, %v6032
  %v6158 = vadd.f32 %v5563, %v6035
  %v6159 = vadd.f32 %v5564, %v6038
  %v6160 = vadd.f32 %v5565, %v6041
  %v6161 = vadd.f32 %v5566, %v6044
  %v6162 = vadd.f32 %v5567, %v6047
  %v6163 = vadd.f32 %v5568, %v6050
  %v6164 = vadd.f32 %v5569, %v6053
  %v6165 = vadd.f32 %v5570, %v6056
  %v6166 = vadd.f32 %v5571, %v6059
  %v6167 = vadd.f32 %v5572, %v6062
  %v6168 = vadd.f32 %v5573, %v6065
  %v6169 = vadd.f32 %v5574, %v6068
  %v6170 = vadd.f32 %v5575, %v6071
  %v6171 = vadd.f32 %v5576, %v6074
  %v6172 = vadd.f32 %v5577, %v6077
  %v6173 = vadd.f32 %v5578, %v6080
  %v6174 = vadd.f32 %v5579, %v6083
  %v6175 = vadd.f32 %v5580, %v6086
  %v6176 = vadd.f32 %v5581, %v6089
  %v6177 = vadd.f32 %v5582, %v6092
  %v6178 = vadd.f32 %v5583, %v6095
  %v6179 = vadd.f32 %v5584, %v6098
  %v6180 = vadd.f32 %v5585, %v6101
  %v6181 = vadd.f32 %v5586, %v6104
  %v6182 = vadd.f32 %v5587, %v6107
  %v6183 = vadd.f32 %v5588, %v6110
  %v6184 = vadd.f32 %v5589, %v6113
  %v6185 = vadd.f32 %v5590, %v6116
  %v6186 = vadd.f32 %v5591, %v6119
  %v6187 = vadd.f32 %v5592, %v6122
  %v6188 = vld [vmem:[%s2] sm:$0x1]
  %v6190 = vperm.slane %v6188, 0
  %v6192 = vadd.f32 %v6124, %v6190
  %v6193 = vadd.f32 %v6125, %v6190
  %v6194 = vadd.f32 %v6126, %v6190
  %v6195 = vadd.f32 %v6127, %v6190
  %v6196 = vadd.f32 %v6128, %v6190
  %v6197 = vadd.f32 %v6129, %v6190
  %v6198 = vadd.f32 %v6130, %v6190
  %v6199 = vadd.f32 %v6131, %v6190
  %v6200 = vadd.f32 %v6132, %v6190
  %v6201 = vadd.f32 %v6133, %v6190
  %v6202 = vadd.f32 %v6134, %v6190
  %v6203 = vadd.f32 %v6135, %v6190
  %v6204 = vadd.f32 %v6136, %v6190
  %v6205 = vadd.f32 %v6137, %v6190
  %v6206 = vadd.f32 %v6138, %v6190
  %v6207 = vadd.f32 %v6139, %v6190
  %v6208 = vadd.f32 %v6140, %v6190
  %v6209 = vadd.f32 %v6141, %v6190
  %v6210 = vadd.f32 %v6142, %v6190
  %v6211 = vadd.f32 %v6143, %v6190
  %v6212 = vadd.f32 %v6144, %v6190
  %v6213 = vadd.f32 %v6145, %v6190
  %v6214 = vadd.f32 %v6146, %v6190
  %v6215 = vadd.f32 %v6147, %v6190
  %v6216 = vadd.f32 %v6148, %v6190
  %v6217 = vadd.f32 %v6149, %v6190
  %v6218 = vadd.f32 %v6150, %v6190
  %v6219 = vadd.f32 %v6151, %v6190
  %v6220 = vadd.f32 %v6152, %v6190
  %v6221 = vadd.f32 %v6153, %v6190
  %v6222 = vadd.f32 %v6154, %v6190
  %v6223 = vadd.f32 %v6155, %v6190
  %v6224 = vadd.f32 %v6156, %v6190
  %v6225 = vadd.f32 %v6157, %v6190
  %v6226 = vadd.f32 %v6158, %v6190
  %v6227 = vadd.f32 %v6159, %v6190
  %v6228 = vadd.f32 %v6160, %v6190
  %v6229 = vadd.f32 %v6161, %v6190
  %v6230 = vadd.f32 %v6162, %v6190
  %v6231 = vadd.f32 %v6163, %v6190
  %v6232 = vadd.f32 %v6164, %v6190
  %v6233 = vadd.f32 %v6165, %v6190
  %v6234 = vadd.f32 %v6166, %v6190
  %v6235 = vadd.f32 %v6167, %v6190
  %v6236 = vadd.f32 %v6168, %v6190
  %v6237 = vadd.f32 %v6169, %v6190
  %v6238 = vadd.f32 %v6170, %v6190
  %v6239 = vadd.f32 %v6171, %v6190
  %v6240 = vadd.f32 %v6172, %v6190
  %v6241 = vadd.f32 %v6173, %v6190
  %v6242 = vadd.f32 %v6174, %v6190
  %v6243 = vadd.f32 %v6175, %v6190
  %v6244 = vadd.f32 %v6176, %v6190
  %v6245 = vadd.f32 %v6177, %v6190
  %v6246 = vadd.f32 %v6178, %v6190
  %v6247 = vadd.f32 %v6179, %v6190
  %v6248 = vadd.f32 %v6180, %v6190
  %v6249 = vadd.f32 %v6181, %v6190
  %v6250 = vadd.f32 %v6182, %v6190
  %v6251 = vadd.f32 %v6183, %v6190
  %v6252 = vadd.f32 %v6184, %v6190
  %v6253 = vadd.f32 %v6185, %v6190
  %v6254 = vadd.f32 %v6186, %v6190
  %v6255 = vadd.f32 %v6187, %v6190
  %vm6256 = vcmp.gt.f32.partialorder %v6192, 0.0
  %vm6257 = vcmp.gt.f32.partialorder %v6193, 0.0
  %vm6258 = vcmp.gt.f32.partialorder %v6194, 0.0
  %vm6259 = vcmp.gt.f32.partialorder %v6195, 0.0
  %vm6260 = vcmp.gt.f32.partialorder %v6196, 0.0
  %vm6261 = vcmp.gt.f32.partialorder %v6197, 0.0
  %vm6262 = vcmp.gt.f32.partialorder %v6198, 0.0
  %vm6263 = vcmp.gt.f32.partialorder %v6199, 0.0
  %vm6264 = vcmp.gt.f32.partialorder %v6200, 0.0
  %vm6265 = vcmp.gt.f32.partialorder %v6201, 0.0
  %vm6266 = vcmp.gt.f32.partialorder %v6202, 0.0
  %vm6267 = vcmp.gt.f32.partialorder %v6203, 0.0
  %vm6268 = vcmp.gt.f32.partialorder %v6204, 0.0
  %vm6269 = vcmp.gt.f32.partialorder %v6205, 0.0
  %vm6270 = vcmp.gt.f32.partialorder %v6206, 0.0
  %vm6271 = vcmp.gt.f32.partialorder %v6207, 0.0
  %vm6272 = vcmp.gt.f32.partialorder %v6208, 0.0
  %vm6273 = vcmp.gt.f32.partialorder %v6209, 0.0
  %vm6274 = vcmp.gt.f32.partialorder %v6210, 0.0
  %vm6275 = vcmp.gt.f32.partialorder %v6211, 0.0
  %vm6276 = vcmp.gt.f32.partialorder %v6212, 0.0
  %vm6277 = vcmp.gt.f32.partialorder %v6213, 0.0
  %vm6278 = vcmp.gt.f32.partialorder %v6214, 0.0
  %vm6279 = vcmp.gt.f32.partialorder %v6215, 0.0
  %vm6280 = vcmp.gt.f32.partialorder %v6216, 0.0
  %vm6281 = vcmp.gt.f32.partialorder %v6217, 0.0
  %vm6282 = vcmp.gt.f32.partialorder %v6218, 0.0
  %vm6283 = vcmp.gt.f32.partialorder %v6219, 0.0
  %vm6284 = vcmp.gt.f32.partialorder %v6220, 0.0
  %vm6285 = vcmp.gt.f32.partialorder %v6221, 0.0
  %vm6286 = vcmp.gt.f32.partialorder %v6222, 0.0
  %vm6287 = vcmp.gt.f32.partialorder %v6223, 0.0
  %vm6288 = vcmp.gt.f32.partialorder %v6224, 0.0
  %vm6289 = vcmp.gt.f32.partialorder %v6225, 0.0
  %vm6290 = vcmp.gt.f32.partialorder %v6226, 0.0
  %vm6291 = vcmp.gt.f32.partialorder %v6227, 0.0
  %vm6292 = vcmp.gt.f32.partialorder %v6228, 0.0
  %vm6293 = vcmp.gt.f32.partialorder %v6229, 0.0
  %vm6294 = vcmp.gt.f32.partialorder %v6230, 0.0
  %vm6295 = vcmp.gt.f32.partialorder %v6231, 0.0
  %vm6296 = vcmp.gt.f32.partialorder %v6232, 0.0
  %vm6297 = vcmp.gt.f32.partialorder %v6233, 0.0
  %vm6298 = vcmp.gt.f32.partialorder %v6234, 0.0
  %vm6299 = vcmp.gt.f32.partialorder %v6235, 0.0
  %vm6300 = vcmp.gt.f32.partialorder %v6236, 0.0
  %vm6301 = vcmp.gt.f32.partialorder %v6237, 0.0
  %vm6302 = vcmp.gt.f32.partialorder %v6238, 0.0
  %vm6303 = vcmp.gt.f32.partialorder %v6239, 0.0
  %vm6304 = vcmp.gt.f32.partialorder %v6240, 0.0
  %vm6305 = vcmp.gt.f32.partialorder %v6241, 0.0
  %vm6306 = vcmp.gt.f32.partialorder %v6242, 0.0
  %vm6307 = vcmp.gt.f32.partialorder %v6243, 0.0
  %vm6308 = vcmp.gt.f32.partialorder %v6244, 0.0
  %vm6309 = vcmp.gt.f32.partialorder %v6245, 0.0
  %vm6310 = vcmp.gt.f32.partialorder %v6246, 0.0
  %vm6311 = vcmp.gt.f32.partialorder %v6247, 0.0
  %vm6312 = vcmp.gt.f32.partialorder %v6248, 0.0
  %vm6313 = vcmp.gt.f32.partialorder %v6249, 0.0
  %vm6314 = vcmp.gt.f32.partialorder %v6250, 0.0
  %vm6315 = vcmp.gt.f32.partialorder %v6251, 0.0
  %vm6316 = vcmp.gt.f32.partialorder %v6252, 0.0
  %vm6317 = vcmp.gt.f32.partialorder %v6253, 0.0
  %vm6318 = vcmp.gt.f32.partialorder %v6254, 0.0
  %vm6319 = vcmp.gt.f32.partialorder %v6255, 0.0
  %v6320 = vmul.f32 %v6192, 0.2
  %v6321 = vmul.f32 %v6193, 0.2
  %v6322 = vmul.f32 %v6194, 0.2
  %v6323 = vmul.f32 %v6195, 0.2
  %v6324 = vmul.f32 %v6196, 0.2
  %v6325 = vmul.f32 %v6197, 0.2
  %v6326 = vmul.f32 %v6198, 0.2
  %v6327 = vmul.f32 %v6199, 0.2
  %v6328 = vmul.f32 %v6200, 0.2
  %v6329 = vmul.f32 %v6201, 0.2
  %v6330 = vmul.f32 %v6202, 0.2
  %v6331 = vmul.f32 %v6203, 0.2
  %v6332 = vmul.f32 %v6204, 0.2
  %v6333 = vmul.f32 %v6205, 0.2
  %v6334 = vmul.f32 %v6206, 0.2
  %v6335 = vmul.f32 %v6207, 0.2
  %v6336 = vmul.f32 %v6208, 0.2
  %v6337 = vmul.f32 %v6209, 0.2
  %v6338 = vmul.f32 %v6210, 0.2
  %v6339 = vmul.f32 %v6211, 0.2
  %v6340 = vmul.f32 %v6212, 0.2
  %v6341 = vmul.f32 %v6213, 0.2
  %v6342 = vmul.f32 %v6214, 0.2
  %v6343 = vmul.f32 %v6215, 0.2
  %v6344 = vmul.f32 %v6216, 0.2
  %v6345 = vmul.f32 %v6217, 0.2
  %v6346 = vmul.f32 %v6218, 0.2
  %v6347 = vmul.f32 %v6219, 0.2
  %v6348 = vmul.f32 %v6220, 0.2
  %v6349 = vmul.f32 %v6221, 0.2
  %v6350 = vmul.f32 %v6222, 0.2
  %v6351 = vmul.f32 %v6223, 0.2
  %v6352 = vmul.f32 %v6224, 0.2
  %v6353 = vmul.f32 %v6225, 0.2
  %v6354 = vmul.f32 %v6226, 0.2
  %v6355 = vmul.f32 %v6227, 0.2
  %v6356 = vmul.f32 %v6228, 0.2
  %v6357 = vmul.f32 %v6229, 0.2
  %v6358 = vmul.f32 %v6230, 0.2
  %v6359 = vmul.f32 %v6231, 0.2
  %v6360 = vmul.f32 %v6232, 0.2
  %v6361 = vmul.f32 %v6233, 0.2
  %v6362 = vmul.f32 %v6234, 0.2
  %v6363 = vmul.f32 %v6235, 0.2
  %v6364 = vmul.f32 %v6236, 0.2
  %v6365 = vmul.f32 %v6237, 0.2
  %v6366 = vmul.f32 %v6238, 0.2
  %v6367 = vmul.f32 %v6239, 0.2
  %v6368 = vmul.f32 %v6240, 0.2
  %v6369 = vmul.f32 %v6241, 0.2
  %v6370 = vmul.f32 %v6242, 0.2
  %v6371 = vmul.f32 %v6243, 0.2
  %v6372 = vmul.f32 %v6244, 0.2
  %v6373 = vmul.f32 %v6245, 0.2
  %v6374 = vmul.f32 %v6246, 0.2
  %v6375 = vmul.f32 %v6247, 0.2
  %v6376 = vmul.f32 %v6248, 0.2
  %v6377 = vmul.f32 %v6249, 0.2
  %v6378 = vmul.f32 %v6250, 0.2
  %v6379 = vmul.f32 %v6251, 0.2
  %v6380 = vmul.f32 %v6252, 0.2
  %v6381 = vmul.f32 %v6253, 0.2
  %v6382 = vmul.f32 %v6254, 0.2
  %v6383 = vmul.f32 %v6255, 0.2
  %v6384 = vsel %vm6256, %v6192, %v6320
  %v6385 = vsel %vm6257, %v6193, %v6321
  %v6386 = vsel %vm6258, %v6194, %v6322
  %v6387 = vsel %vm6259, %v6195, %v6323
  %v6388 = vsel %vm6260, %v6196, %v6324
  %v6389 = vsel %vm6261, %v6197, %v6325
  %v6390 = vsel %vm6262, %v6198, %v6326
  %v6391 = vsel %vm6263, %v6199, %v6327
  %v6392 = vsel %vm6264, %v6200, %v6328
  %v6393 = vsel %vm6265, %v6201, %v6329
  %v6394 = vsel %vm6266, %v6202, %v6330
  %v6395 = vsel %vm6267, %v6203, %v6331
  %v6396 = vsel %vm6268, %v6204, %v6332
  %v6397 = vsel %vm6269, %v6205, %v6333
  %v6398 = vsel %vm6270, %v6206, %v6334
  %v6399 = vsel %vm6271, %v6207, %v6335
  %v6400 = vsel %vm6272, %v6208, %v6336
  %v6401 = vsel %vm6273, %v6209, %v6337
  %v6402 = vsel %vm6274, %v6210, %v6338
  %v6403 = vsel %vm6275, %v6211, %v6339
  %v6404 = vsel %vm6276, %v6212, %v6340
  %v6405 = vsel %vm6277, %v6213, %v6341
  %v6406 = vsel %vm6278, %v6214, %v6342
  %v6407 = vsel %vm6279, %v6215, %v6343
  %v6408 = vsel %vm6280, %v6216, %v6344
  %v6409 = vsel %vm6281, %v6217, %v6345
  %v6410 = vsel %vm6282, %v6218, %v6346
  %v6411 = vsel %vm6283, %v6219, %v6347
  %v6412 = vsel %vm6284, %v6220, %v6348
  %v6413 = vsel %vm6285, %v6221, %v6349
  %v6414 = vsel %vm6286, %v6222, %v6350
  %v6415 = vsel %vm6287, %v6223, %v6351
  %v6416 = vsel %vm6288, %v6224, %v6352
  %v6417 = vsel %vm6289, %v6225, %v6353
  %v6418 = vsel %vm6290, %v6226, %v6354
  %v6419 = vsel %vm6291, %v6227, %v6355
  %v6420 = vsel %vm6292, %v6228, %v6356
  %v6421 = vsel %vm6293, %v6229, %v6357
  %v6422 = vsel %vm6294, %v6230, %v6358
  %v6423 = vsel %vm6295, %v6231, %v6359
  %v6424 = vsel %vm6296, %v6232, %v6360
  %v6425 = vsel %vm6297, %v6233, %v6361
  %v6426 = vsel %vm6298, %v6234, %v6362
  %v6427 = vsel %vm6299, %v6235, %v6363
  %v6428 = vsel %vm6300, %v6236, %v6364
  %v6429 = vsel %vm6301, %v6237, %v6365
  %v6430 = vsel %vm6302, %v6238, %v6366
  %v6431 = vsel %vm6303, %v6239, %v6367
  %v6432 = vsel %vm6304, %v6240, %v6368
  %v6433 = vsel %vm6305, %v6241, %v6369
  %v6434 = vsel %vm6306, %v6242, %v6370
  %v6435 = vsel %vm6307, %v6243, %v6371
  %v6436 = vsel %vm6308, %v6244, %v6372
  %v6437 = vsel %vm6309, %v6245, %v6373
  %v6438 = vsel %vm6310, %v6246, %v6374
  %v6439 = vsel %vm6311, %v6247, %v6375
  %v6440 = vsel %vm6312, %v6248, %v6376
  %v6441 = vsel %vm6313, %v6249, %v6377
  %v6442 = vsel %vm6314, %v6250, %v6378
  %v6443 = vsel %vm6315, %v6251, %v6379
  %v6444 = vsel %vm6316, %v6252, %v6380
  %v6445 = vsel %vm6317, %v6253, %v6381
  %v6446 = vsel %vm6318, %v6254, %v6382
  %v6447 = vsel %vm6319, %v6255, %v6383
  %v6448 = vmax.f32 %v6384, %v6386
  %v6449 = vmax.f32 %v6385, %v6387
  %v6450 = vmax.f32 %v6388, %v6390
  %v6451 = vmax.f32 %v6389, %v6391
  %v6452 = vmax.f32 %v6392, %v6394
  %v6453 = vmax.f32 %v6393, %v6395
  %v6454 = vmax.f32 %v6396, %v6398
  %v6455 = vmax.f32 %v6397, %v6399
  %v6456 = vmax.f32 %v6400, %v6402
  %v6457 = vmax.f32 %v6401, %v6403
  %v6458 = vmax.f32 %v6404, %v6406
  %v6459 = vmax.f32 %v6405, %v6407
  %v6460 = vmax.f32 %v6408, %v6410
  %v6461 = vmax.f32 %v6409, %v6411
  %v6462 = vmax.f32 %v6412, %v6414
  %v6463 = vmax.f32 %v6413, %v6415
  %v6464 = vmax.f32 %v6416, %v6418
  %v6465 = vmax.f32 %v6417, %v6419
  %v6466 = vmax.f32 %v6420, %v6422
  %v6467 = vmax.f32 %v6421, %v6423
  %v6468 = vmax.f32 %v6424, %v6426
  %v6469 = vmax.f32 %v6425, %v6427
  %v6470 = vmax.f32 %v6428, %v6430
  %v6471 = vmax.f32 %v6429, %v6431
  %v6472 = vmax.f32 %v6432, %v6434
  %v6473 = vmax.f32 %v6433, %v6435
  %v6474 = vmax.f32 %v6436, %v6438
  %v6475 = vmax.f32 %v6437, %v6439
  %v6476 = vmax.f32 %v6440, %v6442
  %v6477 = vmax.f32 %v6441, %v6443
  %v6478 = vmax.f32 %v6444, %v6446
  %v6479 = vmax.f32 %v6445, %v6447
  %6480 = vst.msk [vmem:[#allocation6] sm:$0xff] %vm46, %v6448
  %6481 = vst.msk [vmem:[#allocation6 + $0x8] sm:$0xff] %vm46, %v6449
  %6482 = vst.msk [vmem:[#allocation6 + $0x10] sm:$0xff] %vm46, %v6450
  %6483 = vst.msk [vmem:[#allocation6 + $0x18] sm:$0xff] %vm46, %v6451
  %6484 = vst.msk [vmem:[#allocation6 + $0x20] sm:$0xff] %vm46, %v6452
  %6485 = vst.msk [vmem:[#allocation6 + $0x28] sm:$0xff] %vm46, %v6453
  %6486 = vst.msk [vmem:[#allocation6 + $0x30] sm:$0xff] %vm46, %v6454
  %6487 = vst.msk [vmem:[#allocation6 + $0x38] sm:$0xff] %vm46, %v6455
  %6488 = vst.msk [vmem:[#allocation6 + $0x40] sm:$0xff] %vm46, %v6456
  %6489 = vst.msk [vmem:[#allocation6 + $0x48] sm:$0xff] %vm46, %v6457
  %6490 = vst.msk [vmem:[#allocation6 + $0x50] sm:$0xff] %vm46, %v6458
  %6491 = vst.msk [vmem:[#allocation6 + $0x58] sm:$0xff] %vm46, %v6459
  %6492 = vst.msk [vmem:[#allocation6 + $0x60] sm:$0xff] %vm46, %v6460
  %6493 = vst.msk [vmem:[#allocation6 + $0x68] sm:$0xff] %vm46, %v6461
  %6494 = vst.msk [vmem:[#allocation6 + $0x70] sm:$0xff] %vm46, %v6462
  %6495 = vst.msk [vmem:[#allocation6 + $0x78] sm:$0xff] %vm46, %v6463
  %6496 = vst.msk [vmem:[#allocation6 + $0x80] sm:$0xff] %vm46, %v6464
  %6497 = vst.msk [vmem:[#allocation6 + $0x88] sm:$0xff] %vm46, %v6465
  %6498 = vst.msk [vmem:[#allocation6 + $0x90] sm:$0xff] %vm46, %v6466
  %6499 = vst.msk [vmem:[#allocation6 + $0x98] sm:$0xff] %vm46, %v6467
  %6500 = vst.msk [vmem:[#allocation6 + $0xa0] sm:$0xff] %vm46, %v6468
  %6501 = vst.msk [vmem:[#allocation6 + $0xa8] sm:$0xff] %vm46, %v6469
  %6502 = vst.msk [vmem:[#allocation6 + $0xb0] sm:$0xff] %vm46, %v6470
  %6503 = vst.msk [vmem:[#allocation6 + $0xb8] sm:$0xff] %vm46, %v6471
  %6504 = vst.msk [vmem:[#allocation6 + $0xc0] sm:$0xff] %vm46, %v6472
  %6505 = vst.msk [vmem:[#allocation6 + $0xc8] sm:$0xff] %vm46, %v6473
  %6506 = vst.msk [vmem:[#allocation6 + $0xd0] sm:$0xff] %vm46, %v6474
  %6507 = vst.msk [vmem:[#allocation6 + $0xd8] sm:$0xff] %vm46, %v6475
  %6508 = vst.msk [vmem:[#allocation6 + $0xe0] sm:$0xff] %vm46, %v6476
  %6509 = vst.msk [vmem:[#allocation6 + $0xe8] sm:$0xff] %vm46, %v6477
  %6510 = vst.msk [vmem:[#allocation6 + $0xf0] sm:$0xff] %vm46, %v6478
  %6511 = vst.msk [vmem:[#allocation6 + $0xf8] sm:$0xff] %vm46, %v6479
  %v6512 = vld [vmem:[#allocation6] ss:$2 sm:$0xff]
  %s6513 = scalar_lea.vmem [#allocation6], 16
  %v6514 = vld [vmem:[%s6513] ss:$2 sm:$0xff]
  %s6515 = scalar_lea.vmem [#allocation6], 32
  %v6516 = vld [vmem:[%s6515] ss:$2 sm:$0xff]
  %s6517 = scalar_lea.vmem [#allocation6], 48
  %v6518 = vld [vmem:[%s6517] ss:$2 sm:$0xff]
  %s6519 = scalar_lea.vmem [#allocation6], 64
  %v6520 = vld [vmem:[%s6519] ss:$2 sm:$0xff]
  %s6521 = scalar_lea.vmem [#allocation6], 80
  %v6522 = vld [vmem:[%s6521] ss:$2 sm:$0xff]
  %s6523 = scalar_lea.vmem [#allocation6], 96
  %v6524 = vld [vmem:[%s6523] ss:$2 sm:$0xff]
  %s6525 = scalar_lea.vmem [#allocation6], 112
  %v6526 = vld [vmem:[%s6525] ss:$2 sm:$0xff]
  %s6527 = scalar_lea.vmem [#allocation6], 128
  %v6528 = vld [vmem:[%s6527] ss:$2 sm:$0xff]
  %s6529 = scalar_lea.vmem [#allocation6], 144
  %v6530 = vld [vmem:[%s6529] ss:$2 sm:$0xff]
  %s6531 = scalar_lea.vmem [#allocation6], 160
  %v6532 = vld [vmem:[%s6531] ss:$2 sm:$0xff]
  %s6533 = scalar_lea.vmem [#allocation6], 176
  %v6534 = vld [vmem:[%s6533] ss:$2 sm:$0xff]
  %s6535 = scalar_lea.vmem [#allocation6], 192
  %v6536 = vld [vmem:[%s6535] ss:$2 sm:$0xff]
  %s6537 = scalar_lea.vmem [#allocation6], 208
  %v6538 = vld [vmem:[%s6537] ss:$2 sm:$0xff]
  %s6539 = scalar_lea.vmem [#allocation6], 224
  %v6540 = vld [vmem:[%s6539] ss:$2 sm:$0xff]
  %s6541 = scalar_lea.vmem [#allocation6], 240
  %v6542 = vld [vmem:[%s6541] ss:$2 sm:$0xff]
  %s6543 = scalar_lea.vmem [#allocation6], 1
  %v6544 = vld [vmem:[%s6543] ss:$2 sm:$0xff]
  %s6545 = scalar_lea.vmem [#allocation6], 17
  %v6546 = vld [vmem:[%s6545] ss:$2 sm:$0xff]
  %s6547 = scalar_lea.vmem [#allocation6], 33
  %v6548 = vld [vmem:[%s6547] ss:$2 sm:$0xff]
  %s6549 = scalar_lea.vmem [#allocation6], 49
  %v6550 = vld [vmem:[%s6549] ss:$2 sm:$0xff]
  %s6551 = scalar_lea.vmem [#allocation6], 65
  %v6552 = vld [vmem:[%s6551] ss:$2 sm:$0xff]
  %s6553 = scalar_lea.vmem [#allocation6], 81
  %v6554 = vld [vmem:[%s6553] ss:$2 sm:$0xff]
  %s6555 = scalar_lea.vmem [#allocation6], 97
  %v6556 = vld [vmem:[%s6555] ss:$2 sm:$0xff]
  %s6557 = scalar_lea.vmem [#allocation6], 113
  %v6558 = vld [vmem:[%s6557] ss:$2 sm:$0xff]
  %s6559 = scalar_lea.vmem [#allocation6], 129
  %v6560 = vld [vmem:[%s6559] ss:$2 sm:$0xff]
  %s6561 = scalar_lea.vmem [#allocation6], 145
  %v6562 = vld [vmem:[%s6561] ss:$2 sm:$0xff]
  %s6563 = scalar_lea.vmem [#allocation6], 161
  %v6564 = vld [vmem:[%s6563] ss:$2 sm:$0xff]
  %s6565 = scalar_lea.vmem [#allocation6], 177
  %v6566 = vld [vmem:[%s6565] ss:$2 sm:$0xff]
  %s6567 = scalar_lea.vmem [#allocation6], 193
  %v6568 = vld [vmem:[%s6567] ss:$2 sm:$0xff]
  %s6569 = scalar_lea.vmem [#allocation6], 209
  %v6570 = vld [vmem:[%s6569] ss:$2 sm:$0xff]
  %s6571 = scalar_lea.vmem [#allocation6], 225
  %v6572 = vld [vmem:[%s6571] ss:$2 sm:$0xff]
  %s6573 = scalar_lea.vmem [#allocation6], 241
  %v6574 = vld [vmem:[%s6573] ss:$2 sm:$0xff]
  %v6575 = vmax.f32 %v6512, %v6544
  %v6576 = vmax.f32 %v6514, %v6546
  %v6577 = vmax.f32 %v6516, %v6548
  %v6578 = vmax.f32 %v6518, %v6550
  %v6579 = vmax.f32 %v6520, %v6552
  %v6580 = vmax.f32 %v6522, %v6554
  %v6581 = vmax.f32 %v6524, %v6556
  %v6582 = vmax.f32 %v6526, %v6558
  %v6583 = vmax.f32 %v6528, %v6560
  %v6584 = vmax.f32 %v6530, %v6562
  %v6585 = vmax.f32 %v6532, %v6564
  %v6586 = vmax.f32 %v6534, %v6566
  %v6587 = vmax.f32 %v6536, %v6568
  %v6588 = vmax.f32 %v6538, %v6570
  %v6589 = vmax.f32 %v6540, %v6572
  %v6590 = vmax.f32 %v6542, %v6574
  %6591 = vst.msk [vmem:[#allocation3 + $0x9] sm:$0xff] %vm46, %v6575
  %6592 = vst.msk [vmem:[#allocation3 + $0x11] sm:$0xff] %vm46, %v6576
  %6593 = vst.msk [vmem:[#allocation3 + $0x19] sm:$0xff] %vm46, %v6577
  %6594 = vst.msk [vmem:[#allocation3 + $0x21] sm:$0xff] %vm46, %v6578
  %6595 = vst.msk [vmem:[#allocation3 + $0x29] sm:$0xff] %vm46, %v6579
  %6596 = vst.msk [vmem:[#allocation3 + $0x31] sm:$0xff] %vm46, %v6580
  %6597 = vst.msk [vmem:[#allocation3 + $0x39] sm:$0xff] %vm46, %v6581
  %6598 = vst.msk [vmem:[#allocation3 + $0x41] sm:$0xff] %vm46, %v6582
  %6599 = vst.msk [vmem:[#allocation3 + $0x61] sm:$0xff] %vm46, %v6583
  %6600 = vst.msk [vmem:[#allocation3 + $0x69] sm:$0xff] %vm46, %v6584
  %6601 = vst.msk [vmem:[#allocation3 + $0x71] sm:$0xff] %vm46, %v6585
  %6602 = vst.msk [vmem:[#allocation3 + $0x79] sm:$0xff] %vm46, %v6586
  %6603 = vst.msk [vmem:[#allocation3 + $0x81] sm:$0xff] %vm46, %v6587
  %6604 = vst.msk [vmem:[#allocation3 + $0x89] sm:$0xff] %vm46, %v6588
  %6605 = vst.msk [vmem:[#allocation3 + $0x91] sm:$0xff] %vm46, %v6589
  %6606 = vst.msk [vmem:[#allocation3 + $0x99] sm:$0xff] %vm46, %v6590
  %vm6607 = vcmp.lt.s32.totalorder %v194, 0
  %v6608 = vsub.s32 0, %v194
  %v6609 = vsel %vm6607, %v6608, %v194
  %v6610 = vshrl.u32 %v6609, 3
  %v6611 = vand.u32 %v6609, 7
  %v6612 = vsub.s32 0, %v6611
  %v6613 = vsel %vm6607, %v6612, %v6611
  %vm6614 = vcmp.lt.s32.totalorder %v195, 0
  %v6615 = vsub.s32 0, %v195
  %v6616 = vsel %vm6614, %v6615, %v195
  %v6617 = vshrl.u32 %v6616, 3
  %v6618 = vand.u32 %v6616, 7
  %v6619 = vsub.s32 0, %v6618
  %v6620 = vsel %vm6614, %v6619, %v6618
  %vm6621 = vcmp.lt.s32.totalorder %v196, 0
  %v6622 = vsub.s32 0, %v196
  %v6623 = vsel %vm6621, %v6622, %v196
  %v6624 = vshrl.u32 %v6623, 3
  %v6625 = vand.u32 %v6623, 7
  %v6626 = vsub.s32 0, %v6625
  %v6627 = vsel %vm6621, %v6626, %v6625
  %vm6628 = vcmp.lt.s32.totalorder %v197, 0
  %v6629 = vsub.s32 0, %v197
  %v6630 = vsel %vm6628, %v6629, %v197
  %v6631 = vshrl.u32 %v6630, 3
  %v6632 = vand.u32 %v6630, 7
  %v6633 = vsub.s32 0, %v6632
  %v6634 = vsel %vm6628, %v6633, %v6632
  %vm6635 = vcmp.lt.s32.totalorder %v198, 0
  %v6636 = vsub.s32 0, %v198
  %v6637 = vsel %vm6635, %v6636, %v198
  %v6638 = vshrl.u32 %v6637, 3
  %v6639 = vand.u32 %v6637, 7
  %v6640 = vsub.s32 0, %v6639
  %v6641 = vsel %vm6635, %v6640, %v6639
  %vm6642 = vcmp.lt.s32.totalorder %v199, 0
  %v6643 = vsub.s32 0, %v199
  %v6644 = vsel %vm6642, %v6643, %v199
  %v6645 = vshrl.u32 %v6644, 3
  %v6646 = vand.u32 %v6644, 7
  %v6647 = vsub.s32 0, %v6646
  %v6648 = vsel %vm6642, %v6647, %v6646
  %vm6649 = vcmp.lt.s32.totalorder %v200, 0
  %v6650 = vsub.s32 0, %v200
  %v6651 = vsel %vm6649, %v6650, %v200
  %v6652 = vshrl.u32 %v6651, 3
  %v6653 = vand.u32 %v6651, 7
  %v6654 = vsub.s32 0, %v6653
  %v6655 = vsel %vm6649, %v6654, %v6653
  %vm6656 = vcmp.lt.s32.totalorder %v201, 0
  %v6657 = vsub.s32 0, %v201
  %v6658 = vsel %vm6656, %v6657, %v201
  %v6659 = vshrl.u32 %v6658, 3
  %v6660 = vand.u32 %v6658, 7
  %v6661 = vsub.s32 0, %v6660
  %v6662 = vsel %vm6656, %v6661, %v6660
  %vm6663 = vcmp.lt.s32.totalorder %v202, 0
  %v6664 = vsub.s32 0, %v202
  %v6665 = vsel %vm6663, %v6664, %v202
  %v6666 = vshrl.u32 %v6665, 3
  %v6667 = vand.u32 %v6665, 7
  %v6668 = vsub.s32 0, %v6667
  %v6669 = vsel %vm6663, %v6668, %v6667
  %vm6670 = vcmp.lt.s32.totalorder %v203, 0
  %v6671 = vsub.s32 0, %v203
  %v6672 = vsel %vm6670, %v6671, %v203
  %v6673 = vshrl.u32 %v6672, 3
  %v6674 = vand.u32 %v6672, 7
  %v6675 = vsub.s32 0, %v6674
  %v6676 = vsel %vm6670, %v6675, %v6674
  %vm6677 = vcmp.lt.s32.totalorder %v204, 0
  %v6678 = vsub.s32 0, %v204
  %v6679 = vsel %vm6677, %v6678, %v204
  %v6680 = vshrl.u32 %v6679, 3
  %v6681 = vand.u32 %v6679, 7
  %v6682 = vsub.s32 0, %v6681
  %v6683 = vsel %vm6677, %v6682, %v6681
  %vm6684 = vcmp.lt.s32.totalorder %v205, 0
  %v6685 = vsub.s32 0, %v205
  %v6686 = vsel %vm6684, %v6685, %v205
  %v6687 = vshrl.u32 %v6686, 3
  %v6688 = vand.u32 %v6686, 7
  %v6689 = vsub.s32 0, %v6688
  %v6690 = vsel %vm6684, %v6689, %v6688
  %vm6691 = vcmp.lt.s32.totalorder %v206, 0
  %v6692 = vsub.s32 0, %v206
  %v6693 = vsel %vm6691, %v6692, %v206
  %v6694 = vshrl.u32 %v6693, 3
  %v6695 = vand.u32 %v6693, 7
  %v6696 = vsub.s32 0, %v6695
  %v6697 = vsel %vm6691, %v6696, %v6695
  %vm6698 = vcmp.lt.s32.totalorder %v207, 0
  %v6699 = vsub.s32 0, %v207
  %v6700 = vsel %vm6698, %v6699, %v207
  %v6701 = vshrl.u32 %v6700, 3
  %v6702 = vand.u32 %v6700, 7
  %v6703 = vsub.s32 0, %v6702
  %v6704 = vsel %vm6698, %v6703, %v6702
  %vm6705 = vcmp.lt.s32.totalorder %v208, 0
  %v6706 = vsub.s32 0, %v208
  %v6707 = vsel %vm6705, %v6706, %v208
  %v6708 = vshrl.u32 %v6707, 3
  %v6709 = vand.u32 %v6707, 7
  %v6710 = vsub.s32 0, %v6709
  %v6711 = vsel %vm6705, %v6710, %v6709
  %vm6712 = vcmp.lt.s32.totalorder %v209, 0
  %v6713 = vsub.s32 0, %v209
  %v6714 = vsel %vm6712, %v6713, %v209
  %v6715 = vshrl.u32 %v6714, 3
  %v6716 = vand.u32 %v6714, 7
  %v6717 = vsub.s32 0, %v6716
  %v6718 = vsel %vm6712, %v6717, %v6716
  %vm6719 = vcmp.ne.s32.totalorder %v6613, 0
  %vm6720 = vcmp.ne.s32.totalorder %v6620, 0
  %vm6721 = vcmp.ne.s32.totalorder %v6627, 0
  %vm6722 = vcmp.ne.s32.totalorder %v6634, 0
  %vm6723 = vcmp.ne.s32.totalorder %v6641, 0
  %vm6724 = vcmp.ne.s32.totalorder %v6648, 0
  %vm6725 = vcmp.ne.s32.totalorder %v6655, 0
  %vm6726 = vcmp.ne.s32.totalorder %v6662, 0
  %vm6727 = vcmp.ne.s32.totalorder %v6669, 0
  %vm6728 = vcmp.ne.s32.totalorder %v6676, 0
  %vm6729 = vcmp.ne.s32.totalorder %v6683, 0
  %vm6730 = vcmp.ne.s32.totalorder %v6690, 0
  %vm6731 = vcmp.ne.s32.totalorder %v6697, 0
  %vm6732 = vcmp.ne.s32.totalorder %v6704, 0
  %vm6733 = vcmp.ne.s32.totalorder %v6711, 0
  %vm6734 = vcmp.ne.s32.totalorder %v6718, 0
  %vm6735 = vcmp.lt.s32.totalorder %v6613, 0
  %vm6736 = vcmp.lt.s32.totalorder %v6620, 0
  %vm6737 = vcmp.lt.s32.totalorder %v6627, 0
  %vm6738 = vcmp.lt.s32.totalorder %v6634, 0
  %vm6739 = vcmp.lt.s32.totalorder %v6641, 0
  %vm6740 = vcmp.lt.s32.totalorder %v6648, 0
  %vm6741 = vcmp.lt.s32.totalorder %v6655, 0
  %vm6742 = vcmp.lt.s32.totalorder %v6662, 0
  %vm6743 = vcmp.lt.s32.totalorder %v6669, 0
  %vm6744 = vcmp.lt.s32.totalorder %v6676, 0
  %vm6745 = vcmp.lt.s32.totalorder %v6683, 0
  %vm6746 = vcmp.lt.s32.totalorder %v6690, 0
  %vm6747 = vcmp.lt.s32.totalorder %v6697, 0
  %vm6748 = vcmp.lt.s32.totalorder %v6704, 0
  %vm6749 = vcmp.lt.s32.totalorder %v6711, 0
  %vm6750 = vcmp.lt.s32.totalorder %v6718, 0
  %vm6751 = vmand %vm6735, %vm6719
  %vm6752 = vmand %vm6736, %vm6720
  %vm6753 = vmand %vm6737, %vm6721
  %vm6754 = vmand %vm6738, %vm6722
  %vm6755 = vmand %vm6739, %vm6723
  %vm6756 = vmand %vm6740, %vm6724
  %vm6757 = vmand %vm6741, %vm6725
  %vm6758 = vmand %vm6742, %vm6726
  %vm6759 = vmand %vm6743, %vm6727
  %vm6760 = vmand %vm6744, %vm6728
  %vm6761 = vmand %vm6745, %vm6729
  %vm6762 = vmand %vm6746, %vm6730
  %vm6763 = vmand %vm6747, %vm6731
  %vm6764 = vmand %vm6748, %vm6732
  %vm6765 = vmand %vm6749, %vm6733
  %vm6766 = vmand %vm6750, %vm6734
  %v6767 = vadd.s32 %v6613, 8
  %v6768 = vadd.s32 %v6620, 8
  %v6769 = vadd.s32 %v6627, 8
  %v6770 = vadd.s32 %v6634, 8
  %v6771 = vadd.s32 %v6641, 8
  %v6772 = vadd.s32 %v6648, 8
  %v6773 = vadd.s32 %v6655, 8
  %v6774 = vadd.s32 %v6662, 8
  %v6775 = vadd.s32 %v6669, 8
  %v6776 = vadd.s32 %v6676, 8
  %v6777 = vadd.s32 %v6683, 8
  %v6778 = vadd.s32 %v6690, 8
  %v6779 = vadd.s32 %v6697, 8
  %v6780 = vadd.s32 %v6704, 8
  %v6781 = vadd.s32 %v6711, 8
  %v6782 = vadd.s32 %v6718, 8
  %v6783 = vsel %vm6751, %v6767, %v6613
  %v6784 = vsel %vm6752, %v6768, %v6620
  %v6785 = vsel %vm6753, %v6769, %v6627
  %v6786 = vsel %vm6754, %v6770, %v6634
  %v6787 = vsel %vm6755, %v6771, %v6641
  %v6788 = vsel %vm6756, %v6772, %v6648
  %v6789 = vsel %vm6757, %v6773, %v6655
  %v6790 = vsel %vm6758, %v6774, %v6662
  %v6791 = vsel %vm6759, %v6775, %v6669
  %v6792 = vsel %vm6760, %v6776, %v6676
  %v6793 = vsel %vm6761, %v6777, %v6683
  %v6794 = vsel %vm6762, %v6778, %v6690
  %v6795 = vsel %vm6763, %v6779, %v6697
  %v6796 = vsel %vm6764, %v6780, %v6704
  %v6797 = vsel %vm6765, %v6781, %v6711
  %v6798 = vsel %vm6766, %v6782, %v6718
  %vm6799 = vcmp.ne.s32.totalorder %v6783, 0
  %vm6800 = vcmp.ne.s32.totalorder %v6784, 0
  %vm6801 = vcmp.ne.s32.totalorder %v6785, 0
  %vm6802 = vcmp.ne.s32.totalorder %v6786, 0
  %vm6803 = vcmp.ne.s32.totalorder %v6787, 0
  %vm6804 = vcmp.ne.s32.totalorder %v6788, 0
  %vm6805 = vcmp.ne.s32.totalorder %v6789, 0
  %vm6806 = vcmp.ne.s32.totalorder %v6790, 0
  %vm6807 = vcmp.ne.s32.totalorder %v6791, 0
  %vm6808 = vcmp.ne.s32.totalorder %v6792, 0
  %vm6809 = vcmp.ne.s32.totalorder %v6793, 0
  %vm6810 = vcmp.ne.s32.totalorder %v6794, 0
  %vm6811 = vcmp.ne.s32.totalorder %v6795, 0
  %vm6812 = vcmp.ne.s32.totalorder %v6796, 0
  %vm6813 = vcmp.ne.s32.totalorder %v6797, 0
  %vm6814 = vcmp.ne.s32.totalorder %v6798, 0
  %vm6815 = vcmp.ne.s32.totalorder %v6783, 7
  %vm6816 = vcmp.ne.s32.totalorder %v6784, 7
  %vm6817 = vcmp.ne.s32.totalorder %v6785, 7
  %vm6818 = vcmp.ne.s32.totalorder %v6786, 7
  %vm6819 = vcmp.ne.s32.totalorder %v6787, 7
  %vm6820 = vcmp.ne.s32.totalorder %v6788, 7
  %vm6821 = vcmp.ne.s32.totalorder %v6789, 7
  %vm6822 = vcmp.ne.s32.totalorder %v6790, 7
  %vm6823 = vcmp.ne.s32.totalorder %v6791, 7
  %vm6824 = vcmp.ne.s32.totalorder %v6792, 7
  %vm6825 = vcmp.ne.s32.totalorder %v6793, 7
  %vm6826 = vcmp.ne.s32.totalorder %v6794, 7
  %vm6827 = vcmp.ne.s32.totalorder %v6795, 7
  %vm6828 = vcmp.ne.s32.totalorder %v6796, 7
  %vm6829 = vcmp.ne.s32.totalorder %v6797, 7
  %vm6830 = vcmp.ne.s32.totalorder %v6798, 7
  %v6831 = vld [vmem:[#allocation3] sm:$0xff]
  %v6832 = vld [vmem:[#allocation3 + $0x8] sm:$0xff]
  %v6833 = vld [vmem:[#allocation3 + $0x10] sm:$0xff]
  %v6834 = vld [vmem:[#allocation3 + $0x18] sm:$0xff]
  %v6835 = vld [vmem:[#allocation3 + $0x20] sm:$0xff]
  %v6836 = vld [vmem:[#allocation3 + $0x28] sm:$0xff]
  %v6837 = vld [vmem:[#allocation3 + $0x30] sm:$0xff]
  %v6838 = vld [vmem:[#allocation3 + $0x38] sm:$0xff]
  %v6839 = vld [vmem:[#allocation3 + $0x58] sm:$0xff]
  %v6840 = vld [vmem:[#allocation3 + $0x60] sm:$0xff]
  %v6841 = vld [vmem:[#allocation3 + $0x68] sm:$0xff]
  %v6842 = vld [vmem:[#allocation3 + $0x70] sm:$0xff]
  %v6843 = vld [vmem:[#allocation3 + $0x78] sm:$0xff]
  %v6844 = vld [vmem:[#allocation3 + $0x80] sm:$0xff]
  %v6845 = vld [vmem:[#allocation3 + $0x88] sm:$0xff]
  %v6846 = vld [vmem:[#allocation3 + $0x90] sm:$0xff]
  %v6847 = vsel %vm6799, %v6831, 0.0
  %v6848 = vsel %vm6800, %v6832, 0.0
  %v6849 = vsel %vm6801, %v6833, 0.0
  %v6850 = vsel %vm6802, %v6834, 0.0
  %v6851 = vsel %vm6803, %v6835, 0.0
  %v6852 = vsel %vm6804, %v6836, 0.0
  %v6853 = vsel %vm6805, %v6837, 0.0
  %v6854 = vsel %vm6806, %v6838, 0.0
  %v6855 = vsel %vm6807, %v6839, 0.0
  %v6856 = vsel %vm6808, %v6840, 0.0
  %v6857 = vsel %vm6809, %v6841, 0.0
  %v6858 = vsel %vm6810, %v6842, 0.0
  %v6859 = vsel %vm6811, %v6843, 0.0
  %v6860 = vsel %vm6812, %v6844, 0.0
  %v6861 = vsel %vm6813, %v6845, 0.0
  %v6862 = vsel %vm6814, %v6846, 0.0
  %v6863 = vld [vmem:[%s3] sm:$0xff]
  %v6864 = vld [vmem:[%s3 + $0x8] sm:$0xff]
  %v6865 = vld [vmem:[%s3 + $0x10] sm:$0xff]
  %v6866 = vld [vmem:[%s3 + $0x18] sm:$0xff]
  %v6867 = vld [vmem:[#allocation3 + $0x1] sm:$0xff]
  %v6868 = vld [vmem:[#allocation3 + $0x9] sm:$0xff]
  %v6869 = vld [vmem:[#allocation3 + $0x11] sm:$0xff]
  %v6870 = vld [vmem:[#allocation3 + $0x19] sm:$0xff]
  %v6871 = vld [vmem:[#allocation3 + $0x21] sm:$0xff]
  %v6872 = vld [vmem:[#allocation3 + $0x29] sm:$0xff]
  %v6873 = vld [vmem:[#allocation3 + $0x31] sm:$0xff]
  %v6874 = vld [vmem:[#allocation3 + $0x39] sm:$0xff]
  %v6875 = vld [vmem:[#allocation3 + $0x59] sm:$0xff]
  %v6876 = vld [vmem:[#allocation3 + $0x61] sm:$0xff]
  %v6877 = vld [vmem:[#allocation3 + $0x69] sm:$0xff]
  %v6878 = vld [vmem:[#allocation3 + $0x71] sm:$0xff]
  %v6879 = vld [vmem:[#allocation3 + $0x79] sm:$0xff]
  %v6880 = vld [vmem:[#allocation3 + $0x81] sm:$0xff]
  %v6881 = vld [vmem:[#allocation3 + $0x89] sm:$0xff]
  %v6882 = vld [vmem:[#allocation3 + $0x91] sm:$0xff]
  %s6883 = scalar_lea.vmem %s3, 32
  %v6884 = vld [vmem:[%s6883] sm:$0xff]
  %v6885 = vld [vmem:[%s6883 + $0x8] sm:$0xff]
  %v6886 = vld [vmem:[%s6883 + $0x10] sm:$0xff]
  %v6887 = vld [vmem:[%s6883 + $0x18] sm:$0xff]
  %v6889 = vsel %vm46, %v6867, 0
  %v6892 = vsel %vm46, %v6868, 0
  %v6895 = vsel %vm46, %v6869, 0
  %v6898 = vsel %vm46, %v6870, 0
  %v6901 = vsel %vm46, %v6871, 0
  %v6904 = vsel %vm46, %v6872, 0
  %v6907 = vsel %vm46, %v6873, 0
  %v6910 = vsel %vm46, %v6874, 0
  %v6913 = vsel %vm46, %v6875, 0
  %v6916 = vsel %vm46, %v6876, 0
  %v6919 = vsel %vm46, %v6877, 0
  %v6922 = vsel %vm46, %v6878, 0
  %v6925 = vsel %vm46, %v6879, 0
  %v6928 = vsel %vm46, %v6880, 0
  %v6931 = vsel %vm46, %v6881, 0
  %v6934 = vsel %vm46, %v6882, 0
  %6936 = vmatpush.msra.mxu0 0.0
  %6937 = vmatpush.msra.mxu0 0.0
  %6938 = vmatpush.msra.mxu0 0.0
  %6939 = vmatpush.msra.mxu0 0.0
  %6940 = vmatpush.msra.mxu0 0.0
  %6941 = vmatpush.msra.mxu0 0.0
  %6942 = vmatpush.msra.mxu0 0.0
  %6943 = vmatpush.msra.mxu0 0.0
  %6944 = vmatpush.msra.mxu0 0.0
  %6945 = vmatpush.msra.mxu0 0.0
  %6946 = vmatpush.msra.mxu0 0.0
  %6947 = vmatpush.msra.mxu0 0.0
  %6948 = vmatpush.msra.mxu0 %v6887
  %6949 = vmatpush.msra.mxu0 %v6886
  %6950 = vmatpush.msra.mxu0 %v6885
  %6951 = vmatpush.msra.mxu0 %v6884
  %6952 = vmatmul.f32.gmra.mxu0 %v6889
  %v6953 = vpop.f32.mrf.mxu0
  %v6954 = vadd.f32 0.0, %v6953
  %6955 = vmatmul.f32.gmra.mxu0 %v6892
  %v6956 = vpop.f32.mrf.mxu0
  %v6957 = vadd.f32 0.0, %v6956
  %6958 = vmatmul.f32.gmra.mxu0 %v6895
  %v6959 = vpop.f32.mrf.mxu0
  %v6960 = vadd.f32 0.0, %v6959
  %6961 = vmatmul.f32.gmra.mxu0 %v6898
  %v6962 = vpop.f32.mrf.mxu0
  %v6963 = vadd.f32 0.0, %v6962
  %6964 = vmatmul.f32.gmra.mxu0 %v6901
  %v6965 = vpop.f32.mrf.mxu0
  %v6966 = vadd.f32 0.0, %v6965
  %6967 = vmatmul.f32.gmra.mxu0 %v6904
  %v6968 = vpop.f32.mrf.mxu0
  %v6969 = vadd.f32 0.0, %v6968
  %6970 = vmatmul.f32.gmra.mxu0 %v6907
  %v6971 = vpop.f32.mrf.mxu0
  %v6972 = vadd.f32 0.0, %v6971
  %6973 = vmatmul.f32.gmra.mxu0 %v6910
  %v6974 = vpop.f32.mrf.mxu0
  %v6975 = vadd.f32 0.0, %v6974
  %6976 = vmatmul.f32.gmra.mxu0 %v6913
  %v6977 = vpop.f32.mrf.mxu0
  %v6978 = vadd.f32 0.0, %v6977
  %6979 = vmatmul.f32.gmra.mxu0 %v6916
  %v6980 = vpop.f32.mrf.mxu0
  %v6981 = vadd.f32 0.0, %v6980
  %6982 = vmatmul.f32.gmra.mxu0 %v6919
  %v6983 = vpop.f32.mrf.mxu0
  %v6984 = vadd.f32 0.0, %v6983
  %6985 = vmatmul.f32.gmra.mxu0 %v6922
  %v6986 = vpop.f32.mrf.mxu0
  %v6987 = vadd.f32 0.0, %v6986
  %6988 = vmatmul.f32.gmra.mxu0 %v6925
  %v6989 = vpop.f32.mrf.mxu0
  %v6990 = vadd.f32 0.0, %v6989
  %6991 = vmatmul.f32.gmra.mxu0 %v6928
  %v6992 = vpop.f32.mrf.mxu0
  %v6993 = vadd.f32 0.0, %v6992
  %6994 = vmatmul.f32.gmra.mxu0 %v6931
  %v6995 = vpop.f32.mrf.mxu0
  %v6996 = vadd.f32 0.0, %v6995
  %6997 = vmatmul.f32.gmra.mxu0 %v6934
  %v6998 = vpop.f32.mrf.mxu0
  %v6999 = vadd.f32 0.0, %v6998
  %7000 = vdwg.mxu0
  %v7002 = vsel %vm46, %v6847, 0
  %v7005 = vsel %vm46, %v6848, 0
  %v7008 = vsel %vm46, %v6849, 0
  %v7011 = vsel %vm46, %v6850, 0
  %v7014 = vsel %vm46, %v6851, 0
  %v7017 = vsel %vm46, %v6852, 0
  %v7020 = vsel %vm46, %v6853, 0
  %v7023 = vsel %vm46, %v6854, 0
  %v7026 = vsel %vm46, %v6855, 0
  %v7029 = vsel %vm46, %v6856, 0
  %v7032 = vsel %vm46, %v6857, 0
  %v7035 = vsel %vm46, %v6858, 0
  %v7038 = vsel %vm46, %v6859, 0
  %v7041 = vsel %vm46, %v6860, 0
  %v7044 = vsel %vm46, %v6861, 0
  %v7047 = vsel %vm46, %v6862, 0
  %7049 = vmatpush.msra.mxu0 0.0
  %7050 = vmatpush.msra.mxu0 0.0
  %7051 = vmatpush.msra.mxu0 0.0
  %7052 = vmatpush.msra.mxu0 0.0
  %7053 = vmatpush.msra.mxu0 0.0
  %7054 = vmatpush.msra.mxu0 0.0
  %7055 = vmatpush.msra.mxu0 0.0
  %7056 = vmatpush.msra.mxu0 0.0
  %7057 = vmatpush.msra.mxu0 0.0
  %7058 = vmatpush.msra.mxu0 0.0
  %7059 = vmatpush.msra.mxu0 0.0
  %7060 = vmatpush.msra.mxu0 0.0
  %7061 = vmatpush.msra.mxu0 %v6866
  %7062 = vmatpush.msra.mxu0 %v6865
  %7063 = vmatpush.msra.mxu0 %v6864
  %7064 = vmatpush.msra.mxu0 %v6863
  %7065 = vmatmul.f32.gmra.mxu0 %v7002
  %v7066 = vpop.f32.mrf.mxu0
  %v7067 = vadd.f32 %v6954, %v7066
  %7068 = vmatmul.f32.gmra.mxu0 %v7005
  %v7069 = vpop.f32.mrf.mxu0
  %v7070 = vadd.f32 %v6957, %v7069
  %7071 = vmatmul.f32.gmra.mxu0 %v7008
  %v7072 = vpop.f32.mrf.mxu0
  %v7073 = vadd.f32 %v6960, %v7072
  %7074 = vmatmul.f32.gmra.mxu0 %v7011
  %v7075 = vpop.f32.mrf.mxu0
  %v7076 = vadd.f32 %v6963, %v7075
  %7077 = vmatmul.f32.gmra.mxu0 %v7014
  %v7078 = vpop.f32.mrf.mxu0
  %v7079 = vadd.f32 %v6966, %v7078
  %7080 = vmatmul.f32.gmra.mxu0 %v7017
  %v7081 = vpop.f32.mrf.mxu0
  %v7082 = vadd.f32 %v6969, %v7081
  %7083 = vmatmul.f32.gmra.mxu0 %v7020
  %v7084 = vpop.f32.mrf.mxu0
  %v7085 = vadd.f32 %v6972, %v7084
  %7086 = vmatmul.f32.gmra.mxu0 %v7023
  %v7087 = vpop.f32.mrf.mxu0
  %v7088 = vadd.f32 %v6975, %v7087
  %7089 = vmatmul.f32.gmra.mxu0 %v7026
  %v7090 = vpop.f32.mrf.mxu0
  %v7091 = vadd.f32 %v6978, %v7090
  %7092 = vmatmul.f32.gmra.mxu0 %v7029
  %v7093 = vpop.f32.mrf.mxu0
  %v7094 = vadd.f32 %v6981, %v7093
  %7095 = vmatmul.f32.gmra.mxu0 %v7032
  %v7096 = vpop.f32.mrf.mxu0
  %v7097 = vadd.f32 %v6984, %v7096
  %7098 = vmatmul.f32.gmra.mxu0 %v7035
  %v7099 = vpop.f32.mrf.mxu0
  %v7100 = vadd.f32 %v6987, %v7099
  %7101 = vmatmul.f32.gmra.mxu0 %v7038
  %v7102 = vpop.f32.mrf.mxu0
  %v7103 = vadd.f32 %v6990, %v7102
  %7104 = vmatmul.f32.gmra.mxu0 %v7041
  %v7105 = vpop.f32.mrf.mxu0
  %v7106 = vadd.f32 %v6993, %v7105
  %7107 = vmatmul.f32.gmra.mxu0 %v7044
  %v7108 = vpop.f32.mrf.mxu0
  %v7109 = vadd.f32 %v6996, %v7108
  %7110 = vmatmul.f32.gmra.mxu0 %v7047
  %v7111 = vpop.f32.mrf.mxu0
  %v7112 = vadd.f32 %v6999, %v7111
  %7113 = vdwg.mxu0
  %v7114 = vld [vmem:[#allocation3 + $0x2] sm:$0xff]
  %v7115 = vld [vmem:[#allocation3 + $0xa] sm:$0xff]
  %v7116 = vld [vmem:[#allocation3 + $0x12] sm:$0xff]
  %v7117 = vld [vmem:[#allocation3 + $0x1a] sm:$0xff]
  %v7118 = vld [vmem:[#allocation3 + $0x22] sm:$0xff]
  %v7119 = vld [vmem:[#allocation3 + $0x2a] sm:$0xff]
  %v7120 = vld [vmem:[#allocation3 + $0x32] sm:$0xff]
  %v7121 = vld [vmem:[#allocation3 + $0x3a] sm:$0xff]
  %v7122 = vld [vmem:[#allocation3 + $0x5a] sm:$0xff]
  %v7123 = vld [vmem:[#allocation3 + $0x62] sm:$0xff]
  %v7124 = vld [vmem:[#allocation3 + $0x6a] sm:$0xff]
  %v7125 = vld [vmem:[#allocation3 + $0x72] sm:$0xff]
  %v7126 = vld [vmem:[#allocation3 + $0x7a] sm:$0xff]
  %v7127 = vld [vmem:[#allocation3 + $0x82] sm:$0xff]
  %v7128 = vld [vmem:[#allocation3 + $0x8a] sm:$0xff]
  %v7129 = vld [vmem:[#allocation3 + $0x92] sm:$0xff]
  %v7130 = vsel %vm6815, %v7114, 0.0
  %v7131 = vsel %vm6816, %v7115, 0.0
  %v7132 = vsel %vm6817, %v7116, 0.0
  %v7133 = vsel %vm6818, %v7117, 0.0
  %v7134 = vsel %vm6819, %v7118, 0.0
  %v7135 = vsel %vm6820, %v7119, 0.0
  %v7136 = vsel %vm6821, %v7120, 0.0
  %v7137 = vsel %vm6822, %v7121, 0.0
  %v7138 = vsel %vm6823, %v7122, 0.0
  %v7139 = vsel %vm6824, %v7123, 0.0
  %v7140 = vsel %vm6825, %v7124, 0.0
  %v7141 = vsel %vm6826, %v7125, 0.0
  %v7142 = vsel %vm6827, %v7126, 0.0
  %v7143 = vsel %vm6828, %v7127, 0.0
  %v7144 = vsel %vm6829, %v7128, 0.0
  %v7145 = vsel %vm6830, %v7129, 0.0
  %s7146 = scalar_lea.vmem %s3, 64
  %v7147 = vld [vmem:[%s7146] sm:$0xff]
  %v7148 = vld [vmem:[%s7146 + $0x8] sm:$0xff]
  %v7149 = vld [vmem:[%s7146 + $0x10] sm:$0xff]
  %v7150 = vld [vmem:[%s7146 + $0x18] sm:$0xff]
  %v7152 = vsel %vm46, %v7130, 0
  %v7155 = vsel %vm46, %v7131, 0
  %v7158 = vsel %vm46, %v7132, 0
  %v7161 = vsel %vm46, %v7133, 0
  %v7164 = vsel %vm46, %v7134, 0
  %v7167 = vsel %vm46, %v7135, 0
  %v7170 = vsel %vm46, %v7136, 0
  %v7173 = vsel %vm46, %v7137, 0
  %v7176 = vsel %vm46, %v7138, 0
  %v7179 = vsel %vm46, %v7139, 0
  %v7182 = vsel %vm46, %v7140, 0
  %v7185 = vsel %vm46, %v7141, 0
  %v7188 = vsel %vm46, %v7142, 0
  %v7191 = vsel %vm46, %v7143, 0
  %v7194 = vsel %vm46, %v7144, 0
  %v7197 = vsel %vm46, %v7145, 0
  %7199 = vmatpush.msra.mxu0 0.0
  %7200 = vmatpush.msra.mxu0 0.0
  %7201 = vmatpush.msra.mxu0 0.0
  %7202 = vmatpush.msra.mxu0 0.0
  %7203 = vmatpush.msra.mxu0 0.0
  %7204 = vmatpush.msra.mxu0 0.0
  %7205 = vmatpush.msra.mxu0 0.0
  %7206 = vmatpush.msra.mxu0 0.0
  %7207 = vmatpush.msra.mxu0 0.0
  %7208 = vmatpush.msra.mxu0 0.0
  %7209 = vmatpush.msra.mxu0 0.0
  %7210 = vmatpush.msra.mxu0 0.0
  %7211 = vmatpush.msra.mxu0 %v7150
  %7212 = vmatpush.msra.mxu0 %v7149
  %7213 = vmatpush.msra.mxu0 %v7148
  %7214 = vmatpush.msra.mxu0 %v7147
  %7215 = vmatmul.f32.gmra.mxu0 %v7152
  %v7216 = vpop.f32.mrf.mxu0
  %v7217 = vadd.f32 0.0, %v7216
  %7218 = vmatmul.f32.gmra.mxu0 %v7155
  %v7219 = vpop.f32.mrf.mxu0
  %v7220 = vadd.f32 0.0, %v7219
  %7221 = vmatmul.f32.gmra.mxu0 %v7158
  %v7222 = vpop.f32.mrf.mxu0
  %v7223 = vadd.f32 0.0, %v7222
  %7224 = vmatmul.f32.gmra.mxu0 %v7161
  %v7225 = vpop.f32.mrf.mxu0
  %v7226 = vadd.f32 0.0, %v7225
  %7227 = vmatmul.f32.gmra.mxu0 %v7164
  %v7228 = vpop.f32.mrf.mxu0
  %v7229 = vadd.f32 0.0, %v7228
  %7230 = vmatmul.f32.gmra.mxu0 %v7167
  %v7231 = vpop.f32.mrf.mxu0
  %v7232 = vadd.f32 0.0, %v7231
  %7233 = vmatmul.f32.gmra.mxu0 %v7170
  %v7234 = vpop.f32.mrf.mxu0
  %v7235 = vadd.f32 0.0, %v7234
  %7236 = vmatmul.f32.gmra.mxu0 %v7173
  %v7237 = vpop.f32.mrf.mxu0
  %v7238 = vadd.f32 0.0, %v7237
  %7239 = vmatmul.f32.gmra.mxu0 %v7176
  %v7240 = vpop.f32.mrf.mxu0
  %v7241 = vadd.f32 0.0, %v7240
  %7242 = vmatmul.f32.gmra.mxu0 %v7179
  %v7243 = vpop.f32.mrf.mxu0
  %v7244 = vadd.f32 0.0, %v7243
  %7245 = vmatmul.f32.gmra.mxu0 %v7182
  %v7246 = vpop.f32.mrf.mxu0
  %v7247 = vadd.f32 0.0, %v7246
  %7248 = vmatmul.f32.gmra.mxu0 %v7185
  %v7249 = vpop.f32.mrf.mxu0
  %v7250 = vadd.f32 0.0, %v7249
  %7251 = vmatmul.f32.gmra.mxu0 %v7188
  %v7252 = vpop.f32.mrf.mxu0
  %v7253 = vadd.f32 0.0, %v7252
  %7254 = vmatmul.f32.gmra.mxu0 %v7191
  %v7255 = vpop.f32.mrf.mxu0
  %v7256 = vadd.f32 0.0, %v7255
  %7257 = vmatmul.f32.gmra.mxu0 %v7194
  %v7258 = vpop.f32.mrf.mxu0
  %v7259 = vadd.f32 0.0, %v7258
  %7260 = vmatmul.f32.gmra.mxu0 %v7197
  %v7261 = vpop.f32.mrf.mxu0
  %v7262 = vadd.f32 0.0, %v7261
  %7263 = vdwg.mxu0
  %v7264 = vadd.f32 %v7067, %v7217
  %v7265 = vadd.f32 %v7070, %v7220
  %v7266 = vadd.f32 %v7073, %v7223
  %v7267 = vadd.f32 %v7076, %v7226
  %v7268 = vadd.f32 %v7079, %v7229
  %v7269 = vadd.f32 %v7082, %v7232
  %v7270 = vadd.f32 %v7085, %v7235
  %v7271 = vadd.f32 %v7088, %v7238
  %v7272 = vadd.f32 %v7091, %v7241
  %v7273 = vadd.f32 %v7094, %v7244
  %v7274 = vadd.f32 %v7097, %v7247
  %v7275 = vadd.f32 %v7100, %v7250
  %v7276 = vadd.f32 %v7103, %v7253
  %v7277 = vadd.f32 %v7106, %v7256
  %v7278 = vadd.f32 %v7109, %v7259
  %v7279 = vadd.f32 %v7112, %v7262
  %v7280 = vld [vmem:[#allocation3 + $0x8] sm:$0xff]
  %v7281 = vld [vmem:[#allocation3 + $0x10] sm:$0xff]
  %v7282 = vld [vmem:[#allocation3 + $0x18] sm:$0xff]
  %v7283 = vld [vmem:[#allocation3 + $0x20] sm:$0xff]
  %v7284 = vld [vmem:[#allocation3 + $0x28] sm:$0xff]
  %v7285 = vld [vmem:[#allocation3 + $0x30] sm:$0xff]
  %v7286 = vld [vmem:[#allocation3 + $0x38] sm:$0xff]
  %v7287 = vld [vmem:[#allocation3 + $0x40] sm:$0xff]
  %v7288 = vld [vmem:[#allocation3 + $0x60] sm:$0xff]
  %v7289 = vld [vmem:[#allocation3 + $0x68] sm:$0xff]
  %v7290 = vld [vmem:[#allocation3 + $0x70] sm:$0xff]
  %v7291 = vld [vmem:[#allocation3 + $0x78] sm:$0xff]
  %v7292 = vld [vmem:[#allocation3 + $0x80] sm:$0xff]
  %v7293 = vld [vmem:[#allocation3 + $0x88] sm:$0xff]
  %v7294 = vld [vmem:[#allocation3 + $0x90] sm:$0xff]
  %v7295 = vld [vmem:[#allocation3 + $0x98] sm:$0xff]
  %v7296 = vsel %vm6799, %v7280, 0.0
  %v7297 = vsel %vm6800, %v7281, 0.0
  %v7298 = vsel %vm6801, %v7282, 0.0
  %v7299 = vsel %vm6802, %v7283, 0.0
  %v7300 = vsel %vm6803, %v7284, 0.0
  %v7301 = vsel %vm6804, %v7285, 0.0
  %v7302 = vsel %vm6805, %v7286, 0.0
  %v7303 = vsel %vm6806, %v7287, 0.0
  %v7304 = vsel %vm6807, %v7288, 0.0
  %v7305 = vsel %vm6808, %v7289, 0.0
  %v7306 = vsel %vm6809, %v7290, 0.0
  %v7307 = vsel %vm6810, %v7291, 0.0
  %v7308 = vsel %vm6811, %v7292, 0.0
  %v7309 = vsel %vm6812, %v7293, 0.0
  %v7310 = vsel %vm6813, %v7294, 0.0
  %v7311 = vsel %vm6814, %v7295, 0.0
  %s7312 = scalar_lea.vmem %s3, 96
  %v7313 = vld [vmem:[%s7312] sm:$0xff]
  %v7314 = vld [vmem:[%s7312 + $0x8] sm:$0xff]
  %v7315 = vld [vmem:[%s7312 + $0x10] sm:$0xff]
  %v7316 = vld [vmem:[%s7312 + $0x18] sm:$0xff]
  %v7318 = vsel %vm46, %v7296, 0
  %v7321 = vsel %vm46, %v7297, 0
  %v7324 = vsel %vm46, %v7298, 0
  %v7327 = vsel %vm46, %v7299, 0
  %v7330 = vsel %vm46, %v7300, 0
  %v7333 = vsel %vm46, %v7301, 0
  %v7336 = vsel %vm46, %v7302, 0
  %v7339 = vsel %vm46, %v7303, 0
  %v7342 = vsel %vm46, %v7304, 0
  %v7345 = vsel %vm46, %v7305, 0
  %v7348 = vsel %vm46, %v7306, 0
  %v7351 = vsel %vm46, %v7307, 0
  %v7354 = vsel %vm46, %v7308, 0
  %v7357 = vsel %vm46, %v7309, 0
  %v7360 = vsel %vm46, %v7310, 0
  %v7363 = vsel %vm46, %v7311, 0
  %7365 = vmatpush.msra.mxu0 0.0
  %7366 = vmatpush.msra.mxu0 0.0
  %7367 = vmatpush.msra.mxu0 0.0
  %7368 = vmatpush.msra.mxu0 0.0
  %7369 = vmatpush.msra.mxu0 0.0
  %7370 = vmatpush.msra.mxu0 0.0
  %7371 = vmatpush.msra.mxu0 0.0
  %7372 = vmatpush.msra.mxu0 0.0
  %7373 = vmatpush.msra.mxu0 0.0
  %7374 = vmatpush.msra.mxu0 0.0
  %7375 = vmatpush.msra.mxu0 0.0
  %7376 = vmatpush.msra.mxu0 0.0
  %7377 = vmatpush.msra.mxu0 %v7316
  %7378 = vmatpush.msra.mxu0 %v7315
  %7379 = vmatpush.msra.mxu0 %v7314
  %7380 = vmatpush.msra.mxu0 %v7313
  %7381 = vmatmul.f32.gmra.mxu0 %v7318
  %v7382 = vpop.f32.mrf.mxu0
  %v7383 = vadd.f32 0.0, %v7382
  %7384 = vmatmul.f32.gmra.mxu0 %v7321
  %v7385 = vpop.f32.mrf.mxu0
  %v7386 = vadd.f32 0.0, %v7385
  %7387 = vmatmul.f32.gmra.mxu0 %v7324
  %v7388 = vpop.f32.mrf.mxu0
  %v7389 = vadd.f32 0.0, %v7388
  %7390 = vmatmul.f32.gmra.mxu0 %v7327
  %v7391 = vpop.f32.mrf.mxu0
  %v7392 = vadd.f32 0.0, %v7391
  %7393 = vmatmul.f32.gmra.mxu0 %v7330
  %v7394 = vpop.f32.mrf.mxu0
  %v7395 = vadd.f32 0.0, %v7394
  %7396 = vmatmul.f32.gmra.mxu0 %v7333
  %v7397 = vpop.f32.mrf.mxu0
  %v7398 = vadd.f32 0.0, %v7397
  %7399 = vmatmul.f32.gmra.mxu0 %v7336
  %v7400 = vpop.f32.mrf.mxu0
  %v7401 = vadd.f32 0.0, %v7400
  %7402 = vmatmul.f32.gmra.mxu0 %v7339
  %v7403 = vpop.f32.mrf.mxu0
  %v7404 = vadd.f32 0.0, %v7403
  %7405 = vmatmul.f32.gmra.mxu0 %v7342
  %v7406 = vpop.f32.mrf.mxu0
  %v7407 = vadd.f32 0.0, %v7406
  %7408 = vmatmul.f32.gmra.mxu0 %v7345
  %v7409 = vpop.f32.mrf.mxu0
  %v7410 = vadd.f32 0.0, %v7409
  %7411 = vmatmul.f32.gmra.mxu0 %v7348
  %v7412 = vpop.f32.mrf.mxu0
  %v7413 = vadd.f32 0.0, %v7412
  %7414 = vmatmul.f32.gmra.mxu0 %v7351
  %v7415 = vpop.f32.mrf.mxu0
  %v7416 = vadd.f32 0.0, %v7415
  %7417 = vmatmul.f32.gmra.mxu0 %v7354
  %v7418 = vpop.f32.mrf.mxu0
  %v7419 = vadd.f32 0.0, %v7418
  %7420 = vmatmul.f32.gmra.mxu0 %v7357
  %v7421 = vpop.f32.mrf.mxu0
  %v7422 = vadd.f32 0.0, %v7421
  %7423 = vmatmul.f32.gmra.mxu0 %v7360
  %v7424 = vpop.f32.mrf.mxu0
  %v7425 = vadd.f32 0.0, %v7424
  %7426 = vmatmul.f32.gmra.mxu0 %v7363
  %v7427 = vpop.f32.mrf.mxu0
  %v7428 = vadd.f32 0.0, %v7427
  %7429 = vdwg.mxu0
  %v7430 = vadd.f32 %v7264, %v7383
  %v7431 = vadd.f32 %v7265, %v7386
  %v7432 = vadd.f32 %v7266, %v7389
  %v7433 = vadd.f32 %v7267, %v7392
  %v7434 = vadd.f32 %v7268, %v7395
  %v7435 = vadd.f32 %v7269, %v7398
  %v7436 = vadd.f32 %v7270, %v7401
  %v7437 = vadd.f32 %v7271, %v7404
  %v7438 = vadd.f32 %v7272, %v7407
  %v7439 = vadd.f32 %v7273, %v7410
  %v7440 = vadd.f32 %v7274, %v7413
  %v7441 = vadd.f32 %v7275, %v7416
  %v7442 = vadd.f32 %v7276, %v7419
  %v7443 = vadd.f32 %v7277, %v7422
  %v7444 = vadd.f32 %v7278, %v7425
  %v7445 = vadd.f32 %v7279, %v7428
  %v7446 = vld [vmem:[#allocation3 + $0x9] sm:$0xff]
  %v7447 = vld [vmem:[#allocation3 + $0x11] sm:$0xff]
  %v7448 = vld [vmem:[#allocation3 + $0x19] sm:$0xff]
  %v7449 = vld [vmem:[#allocation3 + $0x21] sm:$0xff]
  %v7450 = vld [vmem:[#allocation3 + $0x29] sm:$0xff]
  %v7451 = vld [vmem:[#allocation3 + $0x31] sm:$0xff]
  %v7452 = vld [vmem:[#allocation3 + $0x39] sm:$0xff]
  %v7453 = vld [vmem:[#allocation3 + $0x41] sm:$0xff]
  %v7454 = vld [vmem:[#allocation3 + $0x61] sm:$0xff]
  %v7455 = vld [vmem:[#allocation3 + $0x69] sm:$0xff]
  %v7456 = vld [vmem:[#allocation3 + $0x71] sm:$0xff]
  %v7457 = vld [vmem:[#allocation3 + $0x79] sm:$0xff]
  %v7458 = vld [vmem:[#allocation3 + $0x81] sm:$0xff]
  %v7459 = vld [vmem:[#allocation3 + $0x89] sm:$0xff]
  %v7460 = vld [vmem:[#allocation3 + $0x91] sm:$0xff]
  %v7461 = vld [vmem:[#allocation3 + $0x99] sm:$0xff]
  %s7462 = scalar_lea.vmem %s3, 128
  %v7463 = vld [vmem:[%s7462] sm:$0xff]
  %v7464 = vld [vmem:[%s7462 + $0x8] sm:$0xff]
  %v7465 = vld [vmem:[%s7462 + $0x10] sm:$0xff]
  %v7466 = vld [vmem:[%s7462 + $0x18] sm:$0xff]
  %v7468 = vsel %vm46, %v7446, 0
  %v7471 = vsel %vm46, %v7447, 0
  %v7474 = vsel %vm46, %v7448, 0
  %v7477 = vsel %vm46, %v7449, 0
  %v7480 = vsel %vm46, %v7450, 0
  %v7483 = vsel %vm46, %v7451, 0
  %v7486 = vsel %vm46, %v7452, 0
  %v7489 = vsel %vm46, %v7453, 0
  %v7492 = vsel %vm46, %v7454, 0
  %v7495 = vsel %vm46, %v7455, 0
  %v7498 = vsel %vm46, %v7456, 0
  %v7501 = vsel %vm46, %v7457, 0
  %v7504 = vsel %vm46, %v7458, 0
  %v7507 = vsel %vm46, %v7459, 0
  %v7510 = vsel %vm46, %v7460, 0
  %v7513 = vsel %vm46, %v7461, 0
  %7515 = vmatpush.msra.mxu0 0.0
  %7516 = vmatpush.msra.mxu0 0.0
  %7517 = vmatpush.msra.mxu0 0.0
  %7518 = vmatpush.msra.mxu0 0.0
  %7519 = vmatpush.msra.mxu0 0.0
  %7520 = vmatpush.msra.mxu0 0.0
  %7521 = vmatpush.msra.mxu0 0.0
  %7522 = vmatpush.msra.mxu0 0.0
  %7523 = vmatpush.msra.mxu0 0.0
  %7524 = vmatpush.msra.mxu0 0.0
  %7525 = vmatpush.msra.mxu0 0.0
  %7526 = vmatpush.msra.mxu0 0.0
  %7527 = vmatpush.msra.mxu0 %v7466
  %7528 = vmatpush.msra.mxu0 %v7465
  %7529 = vmatpush.msra.mxu0 %v7464
  %7530 = vmatpush.msra.mxu0 %v7463
  %7531 = vmatmul.f32.gmra.mxu0 %v7468
  %v7532 = vpop.f32.mrf.mxu0
  %v7533 = vadd.f32 0.0, %v7532
  %7534 = vmatmul.f32.gmra.mxu0 %v7471
  %v7535 = vpop.f32.mrf.mxu0
  %v7536 = vadd.f32 0.0, %v7535
  %7537 = vmatmul.f32.gmra.mxu0 %v7474
  %v7538 = vpop.f32.mrf.mxu0
  %v7539 = vadd.f32 0.0, %v7538
  %7540 = vmatmul.f32.gmra.mxu0 %v7477
  %v7541 = vpop.f32.mrf.mxu0
  %v7542 = vadd.f32 0.0, %v7541
  %7543 = vmatmul.f32.gmra.mxu0 %v7480
  %v7544 = vpop.f32.mrf.mxu0
  %v7545 = vadd.f32 0.0, %v7544
  %7546 = vmatmul.f32.gmra.mxu0 %v7483
  %v7547 = vpop.f32.mrf.mxu0
  %v7548 = vadd.f32 0.0, %v7547
  %7549 = vmatmul.f32.gmra.mxu0 %v7486
  %v7550 = vpop.f32.mrf.mxu0
  %v7551 = vadd.f32 0.0, %v7550
  %7552 = vmatmul.f32.gmra.mxu0 %v7489
  %v7553 = vpop.f32.mrf.mxu0
  %v7554 = vadd.f32 0.0, %v7553
  %7555 = vmatmul.f32.gmra.mxu0 %v7492
  %v7556 = vpop.f32.mrf.mxu0
  %v7557 = vadd.f32 0.0, %v7556
  %7558 = vmatmul.f32.gmra.mxu0 %v7495
  %v7559 = vpop.f32.mrf.mxu0
  %v7560 = vadd.f32 0.0, %v7559
  %7561 = vmatmul.f32.gmra.mxu0 %v7498
  %v7562 = vpop.f32.mrf.mxu0
  %v7563 = vadd.f32 0.0, %v7562
  %7564 = vmatmul.f32.gmra.mxu0 %v7501
  %v7565 = vpop.f32.mrf.mxu0
  %v7566 = vadd.f32 0.0, %v7565
  %7567 = vmatmul.f32.gmra.mxu0 %v7504
  %v7568 = vpop.f32.mrf.mxu0
  %v7569 = vadd.f32 0.0, %v7568
  %7570 = vmatmul.f32.gmra.mxu0 %v7507
  %v7571 = vpop.f32.mrf.mxu0
  %v7572 = vadd.f32 0.0, %v7571
  %7573 = vmatmul.f32.gmra.mxu0 %v7510
  %v7574 = vpop.f32.mrf.mxu0
  %v7575 = vadd.f32 0.0, %v7574
  %7576 = vmatmul.f32.gmra.mxu0 %v7513
  %v7577 = vpop.f32.mrf.mxu0
  %v7578 = vadd.f32 0.0, %v7577
  %7579 = vdwg.mxu0
  %v7580 = vadd.f32 %v7430, %v7533
  %v7581 = vadd.f32 %v7431, %v7536
  %v7582 = vadd.f32 %v7432, %v7539
  %v7583 = vadd.f32 %v7433, %v7542
  %v7584 = vadd.f32 %v7434, %v7545
  %v7585 = vadd.f32 %v7435, %v7548
  %v7586 = vadd.f32 %v7436, %v7551
  %v7587 = vadd.f32 %v7437, %v7554
  %v7588 = vadd.f32 %v7438, %v7557
  %v7589 = vadd.f32 %v7439, %v7560
  %v7590 = vadd.f32 %v7440, %v7563
  %v7591 = vadd.f32 %v7441, %v7566
  %v7592 = vadd.f32 %v7442, %v7569
  %v7593 = vadd.f32 %v7443, %v7572
  %v7594 = vadd.f32 %v7444, %v7575
  %v7595 = vadd.f32 %v7445, %v7578
  %v7596 = vld [vmem:[#allocation3 + $0xa] sm:$0xff]
  %v7597 = vld [vmem:[#allocation3 + $0x12] sm:$0xff]
  %v7598 = vld [vmem:[#allocation3 + $0x1a] sm:$0xff]
  %v7599 = vld [vmem:[#allocation3 + $0x22] sm:$0xff]
  %v7600 = vld [vmem:[#allocation3 + $0x2a] sm:$0xff]
  %v7601 = vld [vmem:[#allocation3 + $0x32] sm:$0xff]
  %v7602 = vld [vmem:[#allocation3 + $0x3a] sm:$0xff]
  %v7603 = vld [vmem:[#allocation3 + $0x42] sm:$0xff]
  %v7604 = vld [vmem:[#allocation3 + $0x62] sm:$0xff]
  %v7605 = vld [vmem:[#allocation3 + $0x6a] sm:$0xff]
  %v7606 = vld [vmem:[#allocation3 + $0x72] sm:$0xff]
  %v7607 = vld [vmem:[#allocation3 + $0x7a] sm:$0xff]
  %v7608 = vld [vmem:[#allocation3 + $0x82] sm:$0xff]
  %v7609 = vld [vmem:[#allocation3 + $0x8a] sm:$0xff]
  %v7610 = vld [vmem:[#allocation3 + $0x92] sm:$0xff]
  %v7611 = vld [vmem:[#allocation3 + $0x9a] sm:$0xff]
  %v7612 = vsel %vm6815, %v7596, 0.0
  %v7613 = vsel %vm6816, %v7597, 0.0
  %v7614 = vsel %vm6817, %v7598, 0.0
  %v7615 = vsel %vm6818, %v7599, 0.0
  %v7616 = vsel %vm6819, %v7600, 0.0
  %v7617 = vsel %vm6820, %v7601, 0.0
  %v7618 = vsel %vm6821, %v7602, 0.0
  %v7619 = vsel %vm6822, %v7603, 0.0
  %v7620 = vsel %vm6823, %v7604, 0.0
  %v7621 = vsel %vm6824, %v7605, 0.0
  %v7622 = vsel %vm6825, %v7606, 0.0
  %v7623 = vsel %vm6826, %v7607, 0.0
  %v7624 = vsel %vm6827, %v7608, 0.0
  %v7625 = vsel %vm6828, %v7609, 0.0
  %v7626 = vsel %vm6829, %v7610, 0.0
  %v7627 = vsel %vm6830, %v7611, 0.0
  %s7628 = scalar_lea.vmem %s3, 160
  %v7629 = vld [vmem:[%s7628] sm:$0xff]
  %v7630 = vld [vmem:[%s7628 + $0x8] sm:$0xff]
  %v7631 = vld [vmem:[%s7628 + $0x10] sm:$0xff]
  %v7632 = vld [vmem:[%s7628 + $0x18] sm:$0xff]
  %v7634 = vsel %vm46, %v7612, 0
  %v7637 = vsel %vm46, %v7613, 0
  %v7640 = vsel %vm46, %v7614, 0
  %v7643 = vsel %vm46, %v7615, 0
  %v7646 = vsel %vm46, %v7616, 0
  %v7649 = vsel %vm46, %v7617, 0
  %v7652 = vsel %vm46, %v7618, 0
  %v7655 = vsel %vm46, %v7619, 0
  %v7658 = vsel %vm46, %v7620, 0
  %v7661 = vsel %vm46, %v7621, 0
  %v7664 = vsel %vm46, %v7622, 0
  %v7667 = vsel %vm46, %v7623, 0
  %v7670 = vsel %vm46, %v7624, 0
  %v7673 = vsel %vm46, %v7625, 0
  %v7676 = vsel %vm46, %v7626, 0
  %v7679 = vsel %vm46, %v7627, 0
  %7681 = vmatpush.msra.mxu0 0.0
  %7682 = vmatpush.msra.mxu0 0.0
  %7683 = vmatpush.msra.mxu0 0.0
  %7684 = vmatpush.msra.mxu0 0.0
  %7685 = vmatpush.msra.mxu0 0.0
  %7686 = vmatpush.msra.mxu0 0.0
  %7687 = vmatpush.msra.mxu0 0.0
  %7688 = vmatpush.msra.mxu0 0.0
  %7689 = vmatpush.msra.mxu0 0.0
  %7690 = vmatpush.msra.mxu0 0.0
  %7691 = vmatpush.msra.mxu0 0.0
  %7692 = vmatpush.msra.mxu0 0.0
  %7693 = vmatpush.msra.mxu0 %v7632
  %7694 = vmatpush.msra.mxu0 %v7631
  %7695 = vmatpush.msra.mxu0 %v7630
  %7696 = vmatpush.msra.mxu0 %v7629
  %7697 = vmatmul.f32.gmra.mxu0 %v7634
  %v7698 = vpop.f32.mrf.mxu0
  %v7699 = vadd.f32 0.0, %v7698
  %7700 = vmatmul.f32.gmra.mxu0 %v7637
  %v7701 = vpop.f32.mrf.mxu0
  %v7702 = vadd.f32 0.0, %v7701
  %7703 = vmatmul.f32.gmra.mxu0 %v7640
  %v7704 = vpop.f32.mrf.mxu0
  %v7705 = vadd.f32 0.0, %v7704
  %7706 = vmatmul.f32.gmra.mxu0 %v7643
  %v7707 = vpop.f32.mrf.mxu0
  %v7708 = vadd.f32 0.0, %v7707
  %7709 = vmatmul.f32.gmra.mxu0 %v7646
  %v7710 = vpop.f32.mrf.mxu0
  %v7711 = vadd.f32 0.0, %v7710
  %7712 = vmatmul.f32.gmra.mxu0 %v7649
  %v7713 = vpop.f32.mrf.mxu0
  %v7714 = vadd.f32 0.0, %v7713
  %7715 = vmatmul.f32.gmra.mxu0 %v7652
  %v7716 = vpop.f32.mrf.mxu0
  %v7717 = vadd.f32 0.0, %v7716
  %7718 = vmatmul.f32.gmra.mxu0 %v7655
  %v7719 = vpop.f32.mrf.mxu0
  %v7720 = vadd.f32 0.0, %v7719
  %7721 = vmatmul.f32.gmra.mxu0 %v7658
  %v7722 = vpop.f32.mrf.mxu0
  %v7723 = vadd.f32 0.0, %v7722
  %7724 = vmatmul.f32.gmra.mxu0 %v7661
  %v7725 = vpop.f32.mrf.mxu0
  %v7726 = vadd.f32 0.0, %v7725
  %7727 = vmatmul.f32.gmra.mxu0 %v7664
  %v7728 = vpop.f32.mrf.mxu0
  %v7729 = vadd.f32 0.0, %v7728
  %7730 = vmatmul.f32.gmra.mxu0 %v7667
  %v7731 = vpop.f32.mrf.mxu0
  %v7732 = vadd.f32 0.0, %v7731
  %7733 = vmatmul.f32.gmra.mxu0 %v7670
  %v7734 = vpop.f32.mrf.mxu0
  %v7735 = vadd.f32 0.0, %v7734
  %7736 = vmatmul.f32.gmra.mxu0 %v7673
  %v7737 = vpop.f32.mrf.mxu0
  %v7738 = vadd.f32 0.0, %v7737
  %7739 = vmatmul.f32.gmra.mxu0 %v7676
  %v7740 = vpop.f32.mrf.mxu0
  %v7741 = vadd.f32 0.0, %v7740
  %7742 = vmatmul.f32.gmra.mxu0 %v7679
  %v7743 = vpop.f32.mrf.mxu0
  %v7744 = vadd.f32 0.0, %v7743
  %7745 = vdwg.mxu0
  %v7746 = vadd.f32 %v7580, %v7699
  %v7747 = vadd.f32 %v7581, %v7702
  %v7748 = vadd.f32 %v7582, %v7705
  %v7749 = vadd.f32 %v7583, %v7708
  %v7750 = vadd.f32 %v7584, %v7711
  %v7751 = vadd.f32 %v7585, %v7714
  %v7752 = vadd.f32 %v7586, %v7717
  %v7753 = vadd.f32 %v7587, %v7720
  %v7754 = vadd.f32 %v7588, %v7723
  %v7755 = vadd.f32 %v7589, %v7726
  %v7756 = vadd.f32 %v7590, %v7729
  %v7757 = vadd.f32 %v7591, %v7732
  %v7758 = vadd.f32 %v7592, %v7735
  %v7759 = vadd.f32 %v7593, %v7738
  %v7760 = vadd.f32 %v7594, %v7741
  %v7761 = vadd.f32 %v7595, %v7744
  %v7762 = vld [vmem:[#allocation3 + $0x10] sm:$0xff]
  %v7763 = vld [vmem:[#allocation3 + $0x18] sm:$0xff]
  %v7764 = vld [vmem:[#allocation3 + $0x20] sm:$0xff]
  %v7765 = vld [vmem:[#allocation3 + $0x28] sm:$0xff]
  %v7766 = vld [vmem:[#allocation3 + $0x30] sm:$0xff]
  %v7767 = vld [vmem:[#allocation3 + $0x38] sm:$0xff]
  %v7768 = vld [vmem:[#allocation3 + $0x40] sm:$0xff]
  %v7769 = vld [vmem:[#allocation3 + $0x48] sm:$0xff]
  %v7770 = vld [vmem:[#allocation3 + $0x68] sm:$0xff]
  %v7771 = vld [vmem:[#allocation3 + $0x70] sm:$0xff]
  %v7772 = vld [vmem:[#allocation3 + $0x78] sm:$0xff]
  %v7773 = vld [vmem:[#allocation3 + $0x80] sm:$0xff]
  %v7774 = vld [vmem:[#allocation3 + $0x88] sm:$0xff]
  %v7775 = vld [vmem:[#allocation3 + $0x90] sm:$0xff]
  %v7776 = vld [vmem:[#allocation3 + $0x98] sm:$0xff]
  %v7777 = vld [vmem:[#allocation3 + $0xa0] sm:$0xff]
  %v7778 = vsel %vm6799, %v7762, 0.0
  %v7779 = vsel %vm6800, %v7763, 0.0
  %v7780 = vsel %vm6801, %v7764, 0.0
  %v7781 = vsel %vm6802, %v7765, 0.0
  %v7782 = vsel %vm6803, %v7766, 0.0
  %v7783 = vsel %vm6804, %v7767, 0.0
  %v7784 = vsel %vm6805, %v7768, 0.0
  %v7785 = vsel %vm6806, %v7769, 0.0
  %v7786 = vsel %vm6807, %v7770, 0.0
  %v7787 = vsel %vm6808, %v7771, 0.0
  %v7788 = vsel %vm6809, %v7772, 0.0
  %v7789 = vsel %vm6810, %v7773, 0.0
  %v7790 = vsel %vm6811, %v7774, 0.0
  %v7791 = vsel %vm6812, %v7775, 0.0
  %v7792 = vsel %vm6813, %v7776, 0.0
  %v7793 = vsel %vm6814, %v7777, 0.0
  %s7794 = scalar_lea.vmem %s3, 192
  %v7795 = vld [vmem:[%s7794] sm:$0xff]
  %v7796 = vld [vmem:[%s7794 + $0x8] sm:$0xff]
  %v7797 = vld [vmem:[%s7794 + $0x10] sm:$0xff]
  %v7798 = vld [vmem:[%s7794 + $0x18] sm:$0xff]
  %v7800 = vsel %vm46, %v7778, 0
  %v7803 = vsel %vm46, %v7779, 0
  %v7806 = vsel %vm46, %v7780, 0
  %v7809 = vsel %vm46, %v7781, 0
  %v7812 = vsel %vm46, %v7782, 0
  %v7815 = vsel %vm46, %v7783, 0
  %v7818 = vsel %vm46, %v7784, 0
  %v7821 = vsel %vm46, %v7785, 0
  %v7824 = vsel %vm46, %v7786, 0
  %v7827 = vsel %vm46, %v7787, 0
  %v7830 = vsel %vm46, %v7788, 0
  %v7833 = vsel %vm46, %v7789, 0
  %v7836 = vsel %vm46, %v7790, 0
  %v7839 = vsel %vm46, %v7791, 0
  %v7842 = vsel %vm46, %v7792, 0
  %v7845 = vsel %vm46, %v7793, 0
  %7847 = vmatpush.msra.mxu0 0.0
  %7848 = vmatpush.msra.mxu0 0.0
  %7849 = vmatpush.msra.mxu0 0.0
  %7850 = vmatpush.msra.mxu0 0.0
  %7851 = vmatpush.msra.mxu0 0.0
  %7852 = vmatpush.msra.mxu0 0.0
  %7853 = vmatpush.msra.mxu0 0.0
  %7854 = vmatpush.msra.mxu0 0.0
  %7855 = vmatpush.msra.mxu0 0.0
  %7856 = vmatpush.msra.mxu0 0.0
  %7857 = vmatpush.msra.mxu0 0.0
  %7858 = vmatpush.msra.mxu0 0.0
  %7859 = vmatpush.msra.mxu0 %v7798
  %7860 = vmatpush.msra.mxu0 %v7797
  %7861 = vmatpush.msra.mxu0 %v7796
  %7862 = vmatpush.msra.mxu0 %v7795
  %7863 = vmatmul.f32.gmra.mxu0 %v7800
  %v7864 = vpop.f32.mrf.mxu0
  %v7865 = vadd.f32 0.0, %v7864
  %7866 = vmatmul.f32.gmra.mxu0 %v7803
  %v7867 = vpop.f32.mrf.mxu0
  %v7868 = vadd.f32 0.0, %v7867
  %7869 = vmatmul.f32.gmra.mxu0 %v7806
  %v7870 = vpop.f32.mrf.mxu0
  %v7871 = vadd.f32 0.0, %v7870
  %7872 = vmatmul.f32.gmra.mxu0 %v7809
  %v7873 = vpop.f32.mrf.mxu0
  %v7874 = vadd.f32 0.0, %v7873
  %7875 = vmatmul.f32.gmra.mxu0 %v7812
  %v7876 = vpop.f32.mrf.mxu0
  %v7877 = vadd.f32 0.0, %v7876
  %7878 = vmatmul.f32.gmra.mxu0 %v7815
  %v7879 = vpop.f32.mrf.mxu0
  %v7880 = vadd.f32 0.0, %v7879
  %7881 = vmatmul.f32.gmra.mxu0 %v7818
  %v7882 = vpop.f32.mrf.mxu0
  %v7883 = vadd.f32 0.0, %v7882
  %7884 = vmatmul.f32.gmra.mxu0 %v7821
  %v7885 = vpop.f32.mrf.mxu0
  %v7886 = vadd.f32 0.0, %v7885
  %7887 = vmatmul.f32.gmra.mxu0 %v7824
  %v7888 = vpop.f32.mrf.mxu0
  %v7889 = vadd.f32 0.0, %v7888
  %7890 = vmatmul.f32.gmra.mxu0 %v7827
  %v7891 = vpop.f32.mrf.mxu0
  %v7892 = vadd.f32 0.0, %v7891
  %7893 = vmatmul.f32.gmra.mxu0 %v7830
  %v7894 = vpop.f32.mrf.mxu0
  %v7895 = vadd.f32 0.0, %v7894
  %7896 = vmatmul.f32.gmra.mxu0 %v7833
  %v7897 = vpop.f32.mrf.mxu0
  %v7898 = vadd.f32 0.0, %v7897
  %7899 = vmatmul.f32.gmra.mxu0 %v7836
  %v7900 = vpop.f32.mrf.mxu0
  %v7901 = vadd.f32 0.0, %v7900
  %7902 = vmatmul.f32.gmra.mxu0 %v7839
  %v7903 = vpop.f32.mrf.mxu0
  %v7904 = vadd.f32 0.0, %v7903
  %7905 = vmatmul.f32.gmra.mxu0 %v7842
  %v7906 = vpop.f32.mrf.mxu0
  %v7907 = vadd.f32 0.0, %v7906
  %7908 = vmatmul.f32.gmra.mxu0 %v7845
  %v7909 = vpop.f32.mrf.mxu0
  %v7910 = vadd.f32 0.0, %v7909
  %7911 = vdwg.mxu0
  %v7912 = vadd.f32 %v7746, %v7865
  %v7913 = vadd.f32 %v7747, %v7868
  %v7914 = vadd.f32 %v7748, %v7871
  %v7915 = vadd.f32 %v7749, %v7874
  %v7916 = vadd.f32 %v7750, %v7877
  %v7917 = vadd.f32 %v7751, %v7880
  %v7918 = vadd.f32 %v7752, %v7883
  %v7919 = vadd.f32 %v7753, %v7886
  %v7920 = vadd.f32 %v7754, %v7889
  %v7921 = vadd.f32 %v7755, %v7892
  %v7922 = vadd.f32 %v7756, %v7895
  %v7923 = vadd.f32 %v7757, %v7898
  %v7924 = vadd.f32 %v7758, %v7901
  %v7925 = vadd.f32 %v7759, %v7904
  %v7926 = vadd.f32 %v7760, %v7907
  %v7927 = vadd.f32 %v7761, %v7910
  %v7928 = vld [vmem:[#allocation3 + $0x11] sm:$0xff]
  %v7929 = vld [vmem:[#allocation3 + $0x19] sm:$0xff]
  %v7930 = vld [vmem:[#allocation3 + $0x21] sm:$0xff]
  %v7931 = vld [vmem:[#allocation3 + $0x29] sm:$0xff]
  %v7932 = vld [vmem:[#allocation3 + $0x31] sm:$0xff]
  %v7933 = vld [vmem:[#allocation3 + $0x39] sm:$0xff]
  %v7934 = vld [vmem:[#allocation3 + $0x41] sm:$0xff]
  %v7935 = vld [vmem:[#allocation3 + $0x49] sm:$0xff]
  %v7936 = vld [vmem:[#allocation3 + $0x69] sm:$0xff]
  %v7937 = vld [vmem:[#allocation3 + $0x71] sm:$0xff]
  %v7938 = vld [vmem:[#allocation3 + $0x79] sm:$0xff]
  %v7939 = vld [vmem:[#allocation3 + $0x81] sm:$0xff]
  %v7940 = vld [vmem:[#allocation3 + $0x89] sm:$0xff]
  %v7941 = vld [vmem:[#allocation3 + $0x91] sm:$0xff]
  %v7942 = vld [vmem:[#allocation3 + $0x99] sm:$0xff]
  %v7943 = vld [vmem:[#allocation3 + $0xa1] sm:$0xff]
  %s7944 = scalar_lea.vmem %s3, 224
  %v7945 = vld [vmem:[%s7944] sm:$0xff]
  %v7946 = vld [vmem:[%s7944 + $0x8] sm:$0xff]
  %v7947 = vld [vmem:[%s7944 + $0x10] sm:$0xff]
  %v7948 = vld [vmem:[%s7944 + $0x18] sm:$0xff]
  %v7950 = vsel %vm46, %v7928, 0
  %v7953 = vsel %vm46, %v7929, 0
  %v7956 = vsel %vm46, %v7930, 0
  %v7959 = vsel %vm46, %v7931, 0
  %v7962 = vsel %vm46, %v7932, 0
  %v7965 = vsel %vm46, %v7933, 0
  %v7968 = vsel %vm46, %v7934, 0
  %v7971 = vsel %vm46, %v7935, 0
  %v7974 = vsel %vm46, %v7936, 0
  %v7977 = vsel %vm46, %v7937, 0
  %v7980 = vsel %vm46, %v7938, 0
  %v7983 = vsel %vm46, %v7939, 0
  %v7986 = vsel %vm46, %v7940, 0
  %v7989 = vsel %vm46, %v7941, 0
  %v7992 = vsel %vm46, %v7942, 0
  %v7995 = vsel %vm46, %v7943, 0
  %7997 = vmatpush.msra.mxu0 0.0
  %7998 = vmatpush.msra.mxu0 0.0
  %7999 = vmatpush.msra.mxu0 0.0
  %8000 = vmatpush.msra.mxu0 0.0
  %8001 = vmatpush.msra.mxu0 0.0
  %8002 = vmatpush.msra.mxu0 0.0
  %8003 = vmatpush.msra.mxu0 0.0
  %8004 = vmatpush.msra.mxu0 0.0
  %8005 = vmatpush.msra.mxu0 0.0
  %8006 = vmatpush.msra.mxu0 0.0
  %8007 = vmatpush.msra.mxu0 0.0
  %8008 = vmatpush.msra.mxu0 0.0
  %8009 = vmatpush.msra.mxu0 %v7948
  %8010 = vmatpush.msra.mxu0 %v7947
  %8011 = vmatpush.msra.mxu0 %v7946
  %8012 = vmatpush.msra.mxu0 %v7945
  %8013 = vmatmul.f32.gmra.mxu0 %v7950
  %v8014 = vpop.f32.mrf.mxu0
  %v8015 = vadd.f32 0.0, %v8014
  %8016 = vmatmul.f32.gmra.mxu0 %v7953
  %v8017 = vpop.f32.mrf.mxu0
  %v8018 = vadd.f32 0.0, %v8017
  %8019 = vmatmul.f32.gmra.mxu0 %v7956
  %v8020 = vpop.f32.mrf.mxu0
  %v8021 = vadd.f32 0.0, %v8020
  %8022 = vmatmul.f32.gmra.mxu0 %v7959
  %v8023 = vpop.f32.mrf.mxu0
  %v8024 = vadd.f32 0.0, %v8023
  %8025 = vmatmul.f32.gmra.mxu0 %v7962
  %v8026 = vpop.f32.mrf.mxu0
  %v8027 = vadd.f32 0.0, %v8026
  %8028 = vmatmul.f32.gmra.mxu0 %v7965
  %v8029 = vpop.f32.mrf.mxu0
  %v8030 = vadd.f32 0.0, %v8029
  %8031 = vmatmul.f32.gmra.mxu0 %v7968
  %v8032 = vpop.f32.mrf.mxu0
  %v8033 = vadd.f32 0.0, %v8032
  %8034 = vmatmul.f32.gmra.mxu0 %v7971
  %v8035 = vpop.f32.mrf.mxu0
  %v8036 = vadd.f32 0.0, %v8035
  %8037 = vmatmul.f32.gmra.mxu0 %v7974
  %v8038 = vpop.f32.mrf.mxu0
  %v8039 = vadd.f32 0.0, %v8038
  %8040 = vmatmul.f32.gmra.mxu0 %v7977
  %v8041 = vpop.f32.mrf.mxu0
  %v8042 = vadd.f32 0.0, %v8041
  %8043 = vmatmul.f32.gmra.mxu0 %v7980
  %v8044 = vpop.f32.mrf.mxu0
  %v8045 = vadd.f32 0.0, %v8044
  %8046 = vmatmul.f32.gmra.mxu0 %v7983
  %v8047 = vpop.f32.mrf.mxu0
  %v8048 = vadd.f32 0.0, %v8047
  %8049 = vmatmul.f32.gmra.mxu0 %v7986
  %v8050 = vpop.f32.mrf.mxu0
  %v8051 = vadd.f32 0.0, %v8050
  %8052 = vmatmul.f32.gmra.mxu0 %v7989
  %v8053 = vpop.f32.mrf.mxu0
  %v8054 = vadd.f32 0.0, %v8053
  %8055 = vmatmul.f32.gmra.mxu0 %v7992
  %v8056 = vpop.f32.mrf.mxu0
  %v8057 = vadd.f32 0.0, %v8056
  %8058 = vmatmul.f32.gmra.mxu0 %v7995
  %v8059 = vpop.f32.mrf.mxu0
  %v8060 = vadd.f32 0.0, %v8059
  %8061 = vdwg.mxu0
  %v8062 = vadd.f32 %v7912, %v8015
  %v8063 = vadd.f32 %v7913, %v8018
  %v8064 = vadd.f32 %v7914, %v8021
  %v8065 = vadd.f32 %v7915, %v8024
  %v8066 = vadd.f32 %v7916, %v8027
  %v8067 = vadd.f32 %v7917, %v8030
  %v8068 = vadd.f32 %v7918, %v8033
  %v8069 = vadd.f32 %v7919, %v8036
  %v8070 = vadd.f32 %v7920, %v8039
  %v8071 = vadd.f32 %v7921, %v8042
  %v8072 = vadd.f32 %v7922, %v8045
  %v8073 = vadd.f32 %v7923, %v8048
  %v8074 = vadd.f32 %v7924, %v8051
  %v8075 = vadd.f32 %v7925, %v8054
  %v8076 = vadd.f32 %v7926, %v8057
  %v8077 = vadd.f32 %v7927, %v8060
  %v8078 = vld [vmem:[#allocation3 + $0x12] sm:$0xff]
  %v8079 = vld [vmem:[#allocation3 + $0x1a] sm:$0xff]
  %v8080 = vld [vmem:[#allocation3 + $0x22] sm:$0xff]
  %v8081 = vld [vmem:[#allocation3 + $0x2a] sm:$0xff]
  %v8082 = vld [vmem:[#allocation3 + $0x32] sm:$0xff]
  %v8083 = vld [vmem:[#allocation3 + $0x3a] sm:$0xff]
  %v8084 = vld [vmem:[#allocation3 + $0x42] sm:$0xff]
  %v8085 = vld [vmem:[#allocation3 + $0x4a] sm:$0xff]
  %v8086 = vld [vmem:[#allocation3 + $0x6a] sm:$0xff]
  %v8087 = vld [vmem:[#allocation3 + $0x72] sm:$0xff]
  %v8088 = vld [vmem:[#allocation3 + $0x7a] sm:$0xff]
  %v8089 = vld [vmem:[#allocation3 + $0x82] sm:$0xff]
  %v8090 = vld [vmem:[#allocation3 + $0x8a] sm:$0xff]
  %v8091 = vld [vmem:[#allocation3 + $0x92] sm:$0xff]
  %v8092 = vld [vmem:[#allocation3 + $0x9a] sm:$0xff]
  %v8093 = vld [vmem:[#allocation3 + $0xa2] sm:$0xff]
  %v8094 = vsel %vm6815, %v8078, 0.0
  %v8095 = vsel %vm6816, %v8079, 0.0
  %v8096 = vsel %vm6817, %v8080, 0.0
  %v8097 = vsel %vm6818, %v8081, 0.0
  %v8098 = vsel %vm6819, %v8082, 0.0
  %v8099 = vsel %vm6820, %v8083, 0.0
  %v8100 = vsel %vm6821, %v8084, 0.0
  %v8101 = vsel %vm6822, %v8085, 0.0
  %v8102 = vsel %vm6823, %v8086, 0.0
  %v8103 = vsel %vm6824, %v8087, 0.0
  %v8104 = vsel %vm6825, %v8088, 0.0
  %v8105 = vsel %vm6826, %v8089, 0.0
  %v8106 = vsel %vm6827, %v8090, 0.0
  %v8107 = vsel %vm6828, %v8091, 0.0
  %v8108 = vsel %vm6829, %v8092, 0.0
  %v8109 = vsel %vm6830, %v8093, 0.0
  %s8110 = scalar_lea.vmem %s3, 256
  %v8111 = vld [vmem:[%s8110] sm:$0xff]
  %v8112 = vld [vmem:[%s8110 + $0x8] sm:$0xff]
  %v8113 = vld [vmem:[%s8110 + $0x10] sm:$0xff]
  %v8114 = vld [vmem:[%s8110 + $0x18] sm:$0xff]
  %v8116 = vsel %vm46, %v8094, 0
  %v8119 = vsel %vm46, %v8095, 0
  %v8122 = vsel %vm46, %v8096, 0
  %v8125 = vsel %vm46, %v8097, 0
  %v8128 = vsel %vm46, %v8098, 0
  %v8131 = vsel %vm46, %v8099, 0
  %v8134 = vsel %vm46, %v8100, 0
  %v8137 = vsel %vm46, %v8101, 0
  %v8140 = vsel %vm46, %v8102, 0
  %v8143 = vsel %vm46, %v8103, 0
  %v8146 = vsel %vm46, %v8104, 0
  %v8149 = vsel %vm46, %v8105, 0
  %v8152 = vsel %vm46, %v8106, 0
  %v8155 = vsel %vm46, %v8107, 0
  %v8158 = vsel %vm46, %v8108, 0
  %v8161 = vsel %vm46, %v8109, 0
  %8163 = vmatpush.msra.mxu0 0.0
  %8164 = vmatpush.msra.mxu0 0.0
  %8165 = vmatpush.msra.mxu0 0.0
  %8166 = vmatpush.msra.mxu0 0.0
  %8167 = vmatpush.msra.mxu0 0.0
  %8168 = vmatpush.msra.mxu0 0.0
  %8169 = vmatpush.msra.mxu0 0.0
  %8170 = vmatpush.msra.mxu0 0.0
  %8171 = vmatpush.msra.mxu0 0.0
  %8172 = vmatpush.msra.mxu0 0.0
  %8173 = vmatpush.msra.mxu0 0.0
  %8174 = vmatpush.msra.mxu0 0.0
  %8175 = vmatpush.msra.mxu0 %v8114
  %8176 = vmatpush.msra.mxu0 %v8113
  %8177 = vmatpush.msra.mxu0 %v8112
  %8178 = vmatpush.msra.mxu0 %v8111
  %8179 = vmatmul.f32.gmra.mxu0 %v8116
  %v8180 = vpop.f32.mrf.mxu0
  %v8181 = vadd.f32 0.0, %v8180
  %8182 = vmatmul.f32.gmra.mxu0 %v8119
  %v8183 = vpop.f32.mrf.mxu0
  %v8184 = vadd.f32 0.0, %v8183
  %8185 = vmatmul.f32.gmra.mxu0 %v8122
  %v8186 = vpop.f32.mrf.mxu0
  %v8187 = vadd.f32 0.0, %v8186
  %8188 = vmatmul.f32.gmra.mxu0 %v8125
  %v8189 = vpop.f32.mrf.mxu0
  %v8190 = vadd.f32 0.0, %v8189
  %8191 = vmatmul.f32.gmra.mxu0 %v8128
  %v8192 = vpop.f32.mrf.mxu0
  %v8193 = vadd.f32 0.0, %v8192
  %8194 = vmatmul.f32.gmra.mxu0 %v8131
  %v8195 = vpop.f32.mrf.mxu0
  %v8196 = vadd.f32 0.0, %v8195
  %8197 = vmatmul.f32.gmra.mxu0 %v8134
  %v8198 = vpop.f32.mrf.mxu0
  %v8199 = vadd.f32 0.0, %v8198
  %8200 = vmatmul.f32.gmra.mxu0 %v8137
  %v8201 = vpop.f32.mrf.mxu0
  %v8202 = vadd.f32 0.0, %v8201
  %8203 = vmatmul.f32.gmra.mxu0 %v8140
  %v8204 = vpop.f32.mrf.mxu0
  %v8205 = vadd.f32 0.0, %v8204
  %8206 = vmatmul.f32.gmra.mxu0 %v8143
  %v8207 = vpop.f32.mrf.mxu0
  %v8208 = vadd.f32 0.0, %v8207
  %8209 = vmatmul.f32.gmra.mxu0 %v8146
  %v8210 = vpop.f32.mrf.mxu0
  %v8211 = vadd.f32 0.0, %v8210
  %8212 = vmatmul.f32.gmra.mxu0 %v8149
  %v8213 = vpop.f32.mrf.mxu0
  %v8214 = vadd.f32 0.0, %v8213
  %8215 = vmatmul.f32.gmra.mxu0 %v8152
  %v8216 = vpop.f32.mrf.mxu0
  %v8217 = vadd.f32 0.0, %v8216
  %8218 = vmatmul.f32.gmra.mxu0 %v8155
  %v8219 = vpop.f32.mrf.mxu0
  %v8220 = vadd.f32 0.0, %v8219
  %8221 = vmatmul.f32.gmra.mxu0 %v8158
  %v8222 = vpop.f32.mrf.mxu0
  %v8223 = vadd.f32 0.0, %v8222
  %8224 = vmatmul.f32.gmra.mxu0 %v8161
  %v8225 = vpop.f32.mrf.mxu0
  %v8226 = vadd.f32 0.0, %v8225
  %8227 = vdwg.mxu0
  %v8228 = vadd.f32 %v8062, %v8181
  %v8229 = vadd.f32 %v8063, %v8184
  %v8230 = vadd.f32 %v8064, %v8187
  %v8231 = vadd.f32 %v8065, %v8190
  %v8232 = vadd.f32 %v8066, %v8193
  %v8233 = vadd.f32 %v8067, %v8196
  %v8234 = vadd.f32 %v8068, %v8199
  %v8235 = vadd.f32 %v8069, %v8202
  %v8236 = vadd.f32 %v8070, %v8205
  %v8237 = vadd.f32 %v8071, %v8208
  %v8238 = vadd.f32 %v8072, %v8211
  %v8239 = vadd.f32 %v8073, %v8214
  %v8240 = vadd.f32 %v8074, %v8217
  %v8241 = vadd.f32 %v8075, %v8220
  %v8242 = vadd.f32 %v8076, %v8223
  %v8243 = vadd.f32 %v8077, %v8226
  %v8244 = vld [vmem:[%s4] sm:$0x1]
  %v8246 = vperm.slane %v8244, 0
  %v8248 = vadd.f32 %v8228, %v8246
  %v8249 = vadd.f32 %v8229, %v8246
  %v8250 = vadd.f32 %v8230, %v8246
  %v8251 = vadd.f32 %v8231, %v8246
  %v8252 = vadd.f32 %v8232, %v8246
  %v8253 = vadd.f32 %v8233, %v8246
  %v8254 = vadd.f32 %v8234, %v8246
  %v8255 = vadd.f32 %v8235, %v8246
  %v8256 = vadd.f32 %v8236, %v8246
  %v8257 = vadd.f32 %v8237, %v8246
  %v8258 = vadd.f32 %v8238, %v8246
  %v8259 = vadd.f32 %v8239, %v8246
  %v8260 = vadd.f32 %v8240, %v8246
  %v8261 = vadd.f32 %v8241, %v8246
  %v8262 = vadd.f32 %v8242, %v8246
  %v8263 = vadd.f32 %v8243, %v8246
  %vm8264 = vcmp.gt.f32.partialorder %v8248, 0.0
  %vm8265 = vcmp.gt.f32.partialorder %v8249, 0.0
  %vm8266 = vcmp.gt.f32.partialorder %v8250, 0.0
  %vm8267 = vcmp.gt.f32.partialorder %v8251, 0.0
  %vm8268 = vcmp.gt.f32.partialorder %v8252, 0.0
  %vm8269 = vcmp.gt.f32.partialorder %v8253, 0.0
  %vm8270 = vcmp.gt.f32.partialorder %v8254, 0.0
  %vm8271 = vcmp.gt.f32.partialorder %v8255, 0.0
  %vm8272 = vcmp.gt.f32.partialorder %v8256, 0.0
  %vm8273 = vcmp.gt.f32.partialorder %v8257, 0.0
  %vm8274 = vcmp.gt.f32.partialorder %v8258, 0.0
  %vm8275 = vcmp.gt.f32.partialorder %v8259, 0.0
  %vm8276 = vcmp.gt.f32.partialorder %v8260, 0.0
  %vm8277 = vcmp.gt.f32.partialorder %v8261, 0.0
  %vm8278 = vcmp.gt.f32.partialorder %v8262, 0.0
  %vm8279 = vcmp.gt.f32.partialorder %v8263, 0.0
  %v8280 = vmul.f32 %v8248, 0.2
  %v8281 = vmul.f32 %v8249, 0.2
  %v8282 = vmul.f32 %v8250, 0.2
  %v8283 = vmul.f32 %v8251, 0.2
  %v8284 = vmul.f32 %v8252, 0.2
  %v8285 = vmul.f32 %v8253, 0.2
  %v8286 = vmul.f32 %v8254, 0.2
  %v8287 = vmul.f32 %v8255, 0.2
  %v8288 = vmul.f32 %v8256, 0.2
  %v8289 = vmul.f32 %v8257, 0.2
  %v8290 = vmul.f32 %v8258, 0.2
  %v8291 = vmul.f32 %v8259, 0.2
  %v8292 = vmul.f32 %v8260, 0.2
  %v8293 = vmul.f32 %v8261, 0.2
  %v8294 = vmul.f32 %v8262, 0.2
  %v8295 = vmul.f32 %v8263, 0.2
  %v8296 = vsel %vm8264, %v8248, %v8280
  %v8297 = vsel %vm8265, %v8249, %v8281
  %v8298 = vsel %vm8266, %v8250, %v8282
  %v8299 = vsel %vm8267, %v8251, %v8283
  %v8300 = vsel %vm8268, %v8252, %v8284
  %v8301 = vsel %vm8269, %v8253, %v8285
  %v8302 = vsel %vm8270, %v8254, %v8286
  %v8303 = vsel %vm8271, %v8255, %v8287
  %v8304 = vsel %vm8272, %v8256, %v8288
  %v8305 = vsel %vm8273, %v8257, %v8289
  %v8306 = vsel %vm8274, %v8258, %v8290
  %v8307 = vsel %vm8275, %v8259, %v8291
  %v8308 = vsel %vm8276, %v8260, %v8292
  %v8309 = vsel %vm8277, %v8261, %v8293
  %v8310 = vsel %vm8278, %v8262, %v8294
  %v8311 = vsel %vm8279, %v8263, %v8295
  %v8312 = vmax.f32 %v8296, %v8297
  %v8313 = vmax.f32 %v8298, %v8299
  %v8314 = vmax.f32 %v8300, %v8301
  %v8315 = vmax.f32 %v8302, %v8303
  %v8316 = vmax.f32 %v8304, %v8305
  %v8317 = vmax.f32 %v8306, %v8307
  %v8318 = vmax.f32 %v8308, %v8309
  %v8319 = vmax.f32 %v8310, %v8311
  %8320 = vst [vmem:[#allocation7] sm:$0xff] %v8312
  %8321 = vst [vmem:[#allocation7 + $0x8] sm:$0xff] %v8313
  %8322 = vst [vmem:[#allocation7 + $0x10] sm:$0xff] %v8314
  %8323 = vst [vmem:[#allocation7 + $0x18] sm:$0xff] %v8315
  %8324 = vst [vmem:[#allocation7 + $0x20] sm:$0xff] %v8316
  %8325 = vst [vmem:[#allocation7 + $0x28] sm:$0xff] %v8317
  %8326 = vst [vmem:[#allocation7 + $0x30] sm:$0xff] %v8318
  %8327 = vst [vmem:[#allocation7 + $0x38] sm:$0xff] %v8319
  %v8328 = vld [vmem:[#allocation7] ss:$2 sm:$0xff]
  %s8329 = scalar_lea.vmem [#allocation7], 16
  %v8330 = vld [vmem:[%s8329] ss:$2 sm:$0xff]
  %s8331 = scalar_lea.vmem [#allocation7], 32
  %v8332 = vld [vmem:[%s8331] ss:$2 sm:$0xff]
  %s8333 = scalar_lea.vmem [#allocation7], 48
  %v8334 = vld [vmem:[%s8333] ss:$2 sm:$0xff]
  %s8335 = scalar_lea.vmem [#allocation7], 1
  %v8336 = vld [vmem:[%s8335] ss:$2 sm:$0xff]
  %s8337 = scalar_lea.vmem [#allocation7], 17
  %v8338 = vld [vmem:[%s8337] ss:$2 sm:$0xff]
  %s8339 = scalar_lea.vmem [#allocation7], 33
  %v8340 = vld [vmem:[%s8339] ss:$2 sm:$0xff]
  %s8341 = scalar_lea.vmem [#allocation7], 49
  %v8342 = vld [vmem:[%s8341] ss:$2 sm:$0xff]
  %v8343 = vmax.f32 %v8328, %v8336
  %v8344 = vmax.f32 %v8330, %v8338
  %v8345 = vmax.f32 %v8332, %v8340
  %v8346 = vmax.f32 %v8334, %v8342
  %8347 = vst [vmem:[#allocation4 + $0x5] sm:$0xff] %v8343
  %8348 = vst [vmem:[#allocation4 + $0xd] sm:$0xff] %v8344
  %8349 = vst [vmem:[#allocation4 + $0x25] sm:$0xff] %v8345
  %8350 = vst [vmem:[#allocation4 + $0x2d] sm:$0xff] %v8346
  %vm8351 = vcmp.lt.s32.totalorder %v194, 0
  %v8352 = vsub.s32 0, %v194
  %v8353 = vsel %vm8351, %v8352, %v194
  %v8354 = vshrl.u32 %v8353, 2
  %v8355 = vand.u32 %v8353, 3
  %v8356 = vsub.s32 0, %v8355
  %v8357 = vsel %vm8351, %v8356, %v8355
  %vm8358 = vcmp.lt.s32.totalorder %v195, 0
  %v8359 = vsub.s32 0, %v195
  %v8360 = vsel %vm8358, %v8359, %v195
  %v8361 = vshrl.u32 %v8360, 2
  %v8362 = vand.u32 %v8360, 3
  %v8363 = vsub.s32 0, %v8362
  %v8364 = vsel %vm8358, %v8363, %v8362
  %vm8365 = vcmp.lt.s32.totalorder %v196, 0
  %v8366 = vsub.s32 0, %v196
  %v8367 = vsel %vm8365, %v8366, %v196
  %v8368 = vshrl.u32 %v8367, 2
  %v8369 = vand.u32 %v8367, 3
  %v8370 = vsub.s32 0, %v8369
  %v8371 = vsel %vm8365, %v8370, %v8369
  %vm8372 = vcmp.lt.s32.totalorder %v197, 0
  %v8373 = vsub.s32 0, %v197
  %v8374 = vsel %vm8372, %v8373, %v197
  %v8375 = vshrl.u32 %v8374, 2
  %v8376 = vand.u32 %v8374, 3
  %v8377 = vsub.s32 0, %v8376
  %v8378 = vsel %vm8372, %v8377, %v8376
  %vm8379 = vcmp.ne.s32.totalorder %v8357, 0
  %vm8380 = vcmp.ne.s32.totalorder %v8364, 0
  %vm8381 = vcmp.ne.s32.totalorder %v8371, 0
  %vm8382 = vcmp.ne.s32.totalorder %v8378, 0
  %vm8383 = vcmp.lt.s32.totalorder %v8357, 0
  %vm8384 = vcmp.lt.s32.totalorder %v8364, 0
  %vm8385 = vcmp.lt.s32.totalorder %v8371, 0
  %vm8386 = vcmp.lt.s32.totalorder %v8378, 0
  %vm8387 = vmand %vm8383, %vm8379
  %vm8388 = vmand %vm8384, %vm8380
  %vm8389 = vmand %vm8385, %vm8381
  %vm8390 = vmand %vm8386, %vm8382
  %v8391 = vadd.s32 %v8357, 4
  %v8392 = vadd.s32 %v8364, 4
  %v8393 = vadd.s32 %v8371, 4
  %v8394 = vadd.s32 %v8378, 4
  %v8395 = vsel %vm8387, %v8391, %v8357
  %v8396 = vsel %vm8388, %v8392, %v8364
  %v8397 = vsel %vm8389, %v8393, %v8371
  %v8398 = vsel %vm8390, %v8394, %v8378
  %vm8399 = vcmp.ne.s32.totalorder %v8395, 0
  %vm8400 = vcmp.ne.s32.totalorder %v8396, 0
  %vm8401 = vcmp.ne.s32.totalorder %v8397, 0
  %vm8402 = vcmp.ne.s32.totalorder %v8398, 0
  %vm8403 = vcmp.ne.s32.totalorder %v8395, 3
  %vm8404 = vcmp.ne.s32.totalorder %v8396, 3
  %vm8405 = vcmp.ne.s32.totalorder %v8397, 3
  %vm8406 = vcmp.ne.s32.totalorder %v8398, 3
  %v8407 = vld [vmem:[#allocation4] sm:$0xff]
  %v8408 = vld [vmem:[#allocation4 + $0x8] sm:$0xff]
  %v8409 = vld [vmem:[#allocation4 + $0x20] sm:$0xff]
  %v8410 = vld [vmem:[#allocation4 + $0x28] sm:$0xff]
  %v8411 = vsel %vm8399, %v8407, 0.0
  %v8412 = vsel %vm8400, %v8408, 0.0
  %v8413 = vsel %vm8401, %v8409, 0.0
  %v8414 = vsel %vm8402, %v8410, 0.0
  %v8415 = vld [vmem:[%s5] sm:$0xff]
  %v8416 = vld [vmem:[%s5 + $0x8] sm:$0xff]
  %v8417 = vld [vmem:[%s5 + $0x10] sm:$0xff]
  %v8418 = vld [vmem:[%s5 + $0x18] sm:$0xff]
  %v8419 = vld [vmem:[%s5 + $0x20] sm:$0xff]
  %v8420 = vld [vmem:[%s5 + $0x28] sm:$0xff]
  %v8421 = vld [vmem:[%s5 + $0x30] sm:$0xff]
  %v8422 = vld [vmem:[%s5 + $0x38] sm:$0xff]
  %v8423 = vld [vmem:[%s5 + $0x40] sm:$0xff]
  %v8424 = vld [vmem:[%s5 + $0x48] sm:$0xff]
  %v8425 = vld [vmem:[%s5 + $0x50] sm:$0xff]
  %v8426 = vld [vmem:[%s5 + $0x58] sm:$0xff]
  %v8427 = vld [vmem:[%s5 + $0x60] sm:$0xff]
  %v8428 = vld [vmem:[%s5 + $0x68] sm:$0xff]
  %v8429 = vld [vmem:[%s5 + $0x70] sm:$0xff]
  %v8430 = vld [vmem:[%s5 + $0x78] sm:$0xff]
  %v8431 = vld [vmem:[#allocation4 + $0x1] sm:$0xff]
  %v8432 = vld [vmem:[#allocation4 + $0x9] sm:$0xff]
  %v8433 = vld [vmem:[#allocation4 + $0x21] sm:$0xff]
  %v8434 = vld [vmem:[#allocation4 + $0x29] sm:$0xff]
  %s8435 = scalar_lea.vmem %s5, 128
  %v8436 = vld [vmem:[%s8435] sm:$0xff]
  %v8437 = vld [vmem:[%s8435 + $0x8] sm:$0xff]
  %v8438 = vld [vmem:[%s8435 + $0x10] sm:$0xff]
  %v8439 = vld [vmem:[%s8435 + $0x18] sm:$0xff]
  %v8440 = vld [vmem:[%s8435 + $0x20] sm:$0xff]
  %v8441 = vld [vmem:[%s8435 + $0x28] sm:$0xff]
  %v8442 = vld [vmem:[%s8435 + $0x30] sm:$0xff]
  %v8443 = vld [vmem:[%s8435 + $0x38] sm:$0xff]
  %v8444 = vld [vmem:[%s8435 + $0x40] sm:$0xff]
  %v8445 = vld [vmem:[%s8435 + $0x48] sm:$0xff]
  %v8446 = vld [vmem:[%s8435 + $0x50] sm:$0xff]
  %v8447 = vld [vmem:[%s8435 + $0x58] sm:$0xff]
  %v8448 = vld [vmem:[%s8435 + $0x60] sm:$0xff]
  %v8449 = vld [vmem:[%s8435 + $0x68] sm:$0xff]
  %v8450 = vld [vmem:[%s8435 + $0x70] sm:$0xff]
  %v8451 = vld [vmem:[%s8435 + $0x78] sm:$0xff]
  %8452 = vmatpush.msra.mxu0 %v8451
  %8453 = vmatpush.msra.mxu0 %v8450
  %8454 = vmatpush.msra.mxu0 %v8449
  %8455 = vmatpush.msra.mxu0 %v8448
  %8456 = vmatpush.msra.mxu0 %v8447
  %8457 = vmatpush.msra.mxu0 %v8446
  %8458 = vmatpush.msra.mxu0 %v8445
  %8459 = vmatpush.msra.mxu0 %v8444
  %8460 = vmatpush.msra.mxu0 %v8443
  %8461 = vmatpush.msra.mxu0 %v8442
  %8462 = vmatpush.msra.mxu0 %v8441
  %8463 = vmatpush.msra.mxu0 %v8440
  %8464 = vmatpush.msra.mxu0 %v8439
  %8465 = vmatpush.msra.mxu0 %v8438
  %8466 = vmatpush.msra.mxu0 %v8437
  %8467 = vmatpush.msra.mxu0 %v8436
  %8468 = vmatmul.f32.gmra.mxu0 %v8431
  %v8469 = vpop.f32.mrf.mxu0
  %v8470 = vadd.f32 0.0, %v8469
  %8471 = vmatmul.f32.gmra.mxu0 %v8432
  %v8472 = vpop.f32.mrf.mxu0
  %v8473 = vadd.f32 0.0, %v8472
  %8474 = vmatmul.f32.gmra.mxu0 %v8433
  %v8475 = vpop.f32.mrf.mxu0
  %v8476 = vadd.f32 0.0, %v8475
  %8477 = vmatmul.f32.gmra.mxu0 %v8434
  %v8478 = vpop.f32.mrf.mxu0
  %v8479 = vadd.f32 0.0, %v8478
  %8480 = vdwg.mxu0
  %8481 = vmatpush.msra.mxu0 %v8430
  %8482 = vmatpush.msra.mxu0 %v8429
  %8483 = vmatpush.msra.mxu0 %v8428
  %8484 = vmatpush.msra.mxu0 %v8427
  %8485 = vmatpush.msra.mxu0 %v8426
  %8486 = vmatpush.msra.mxu0 %v8425
  %8487 = vmatpush.msra.mxu0 %v8424
  %8488 = vmatpush.msra.mxu0 %v8423
  %8489 = vmatpush.msra.mxu0 %v8422
  %8490 = vmatpush.msra.mxu0 %v8421
  %8491 = vmatpush.msra.mxu0 %v8420
  %8492 = vmatpush.msra.mxu0 %v8419
  %8493 = vmatpush.msra.mxu0 %v8418
  %8494 = vmatpush.msra.mxu0 %v8417
  %8495 = vmatpush.msra.mxu0 %v8416
  %8496 = vmatpush.msra.mxu0 %v8415
  %8497 = vmatmul.f32.gmra.mxu0 %v8411
  %v8498 = vpop.f32.mrf.mxu0
  %v8499 = vadd.f32 %v8470, %v8498
  %8500 = vmatmul.f32.gmra.mxu0 %v8412
  %v8501 = vpop.f32.mrf.mxu0
  %v8502 = vadd.f32 %v8473, %v8501
  %8503 = vmatmul.f32.gmra.mxu0 %v8413
  %v8504 = vpop.f32.mrf.mxu0
  %v8505 = vadd.f32 %v8476, %v8504
  %8506 = vmatmul.f32.gmra.mxu0 %v8414
  %v8507 = vpop.f32.mrf.mxu0
  %v8508 = vadd.f32 %v8479, %v8507
  %8509 = vdwg.mxu0
  %v8510 = vld [vmem:[#allocation4 + $0x2] sm:$0xff]
  %v8511 = vld [vmem:[#allocation4 + $0xa] sm:$0xff]
  %v8512 = vld [vmem:[#allocation4 + $0x22] sm:$0xff]
  %v8513 = vld [vmem:[#allocation4 + $0x2a] sm:$0xff]
  %v8514 = vsel %vm8403, %v8510, 0.0
  %v8515 = vsel %vm8404, %v8511, 0.0
  %v8516 = vsel %vm8405, %v8512, 0.0
  %v8517 = vsel %vm8406, %v8513, 0.0
  %s8518 = scalar_lea.vmem %s5, 256
  %v8519 = vld [vmem:[%s8518] sm:$0xff]
  %v8520 = vld [vmem:[%s8518 + $0x8] sm:$0xff]
  %v8521 = vld [vmem:[%s8518 + $0x10] sm:$0xff]
  %v8522 = vld [vmem:[%s8518 + $0x18] sm:$0xff]
  %v8523 = vld [vmem:[%s8518 + $0x20] sm:$0xff]
  %v8524 = vld [vmem:[%s8518 + $0x28] sm:$0xff]
  %v8525 = vld [vmem:[%s8518 + $0x30] sm:$0xff]
  %v8526 = vld [vmem:[%s8518 + $0x38] sm:$0xff]
  %v8527 = vld [vmem:[%s8518 + $0x40] sm:$0xff]
  %v8528 = vld [vmem:[%s8518 + $0x48] sm:$0xff]
  %v8529 = vld [vmem:[%s8518 + $0x50] sm:$0xff]
  %v8530 = vld [vmem:[%s8518 + $0x58] sm:$0xff]
  %v8531 = vld [vmem:[%s8518 + $0x60] sm:$0xff]
  %v8532 = vld [vmem:[%s8518 + $0x68] sm:$0xff]
  %v8533 = vld [vmem:[%s8518 + $0x70] sm:$0xff]
  %v8534 = vld [vmem:[%s8518 + $0x78] sm:$0xff]
  %8535 = vmatpush.msra.mxu0 %v8534
  %8536 = vmatpush.msra.mxu0 %v8533
  %8537 = vmatpush.msra.mxu0 %v8532
  %8538 = vmatpush.msra.mxu0 %v8531
  %8539 = vmatpush.msra.mxu0 %v8530
  %8540 = vmatpush.msra.mxu0 %v8529
  %8541 = vmatpush.msra.mxu0 %v8528
  %8542 = vmatpush.msra.mxu0 %v8527
  %8543 = vmatpush.msra.mxu0 %v8526
  %8544 = vmatpush.msra.mxu0 %v8525
  %8545 = vmatpush.msra.mxu0 %v8524
  %8546 = vmatpush.msra.mxu0 %v8523
  %8547 = vmatpush.msra.mxu0 %v8522
  %8548 = vmatpush.msra.mxu0 %v8521
  %8549 = vmatpush.msra.mxu0 %v8520
  %8550 = vmatpush.msra.mxu0 %v8519
  %8551 = vmatmul.f32.gmra.mxu0 %v8514
  %v8552 = vpop.f32.mrf.mxu0
  %v8553 = vadd.f32 0.0, %v8552
  %8554 = vmatmul.f32.gmra.mxu0 %v8515
  %v8555 = vpop.f32.mrf.mxu0
  %v8556 = vadd.f32 0.0, %v8555
  %8557 = vmatmul.f32.gmra.mxu0 %v8516
  %v8558 = vpop.f32.mrf.mxu0
  %v8559 = vadd.f32 0.0, %v8558
  %8560 = vmatmul.f32.gmra.mxu0 %v8517
  %v8561 = vpop.f32.mrf.mxu0
  %v8562 = vadd.f32 0.0, %v8561
  %8563 = vdwg.mxu0
  %v8564 = vadd.f32 %v8499, %v8553
  %v8565 = vadd.f32 %v8502, %v8556
  %v8566 = vadd.f32 %v8505, %v8559
  %v8567 = vadd.f32 %v8508, %v8562
  %v8568 = vld [vmem:[#allocation4 + $0x4] sm:$0xff]
  %v8569 = vld [vmem:[#allocation4 + $0xc] sm:$0xff]
  %v8570 = vld [vmem:[#allocation4 + $0x24] sm:$0xff]
  %v8571 = vld [vmem:[#allocation4 + $0x2c] sm:$0xff]
  %v8572 = vsel %vm8399, %v8568, 0.0
  %v8573 = vsel %vm8400, %v8569, 0.0
  %v8574 = vsel %vm8401, %v8570, 0.0
  %v8575 = vsel %vm8402, %v8571, 0.0
  %s8576 = scalar_lea.vmem %s5, 384
  %v8577 = vld [vmem:[%s8576] sm:$0xff]
  %v8578 = vld [vmem:[%s8576 + $0x8] sm:$0xff]
  %v8579 = vld [vmem:[%s8576 + $0x10] sm:$0xff]
  %v8580 = vld [vmem:[%s8576 + $0x18] sm:$0xff]
  %v8581 = vld [vmem:[%s8576 + $0x20] sm:$0xff]
  %v8582 = vld [vmem:[%s8576 + $0x28] sm:$0xff]
  %v8583 = vld [vmem:[%s8576 + $0x30] sm:$0xff]
  %v8584 = vld [vmem:[%s8576 + $0x38] sm:$0xff]
  %v8585 = vld [vmem:[%s8576 + $0x40] sm:$0xff]
  %v8586 = vld [vmem:[%s8576 + $0x48] sm:$0xff]
  %v8587 = vld [vmem:[%s8576 + $0x50] sm:$0xff]
  %v8588 = vld [vmem:[%s8576 + $0x58] sm:$0xff]
  %v8589 = vld [vmem:[%s8576 + $0x60] sm:$0xff]
  %v8590 = vld [vmem:[%s8576 + $0x68] sm:$0xff]
  %v8591 = vld [vmem:[%s8576 + $0x70] sm:$0xff]
  %v8592 = vld [vmem:[%s8576 + $0x78] sm:$0xff]
  %8593 = vmatpush.msra.mxu0 %v8592
  %8594 = vmatpush.msra.mxu0 %v8591
  %8595 = vmatpush.msra.mxu0 %v8590
  %8596 = vmatpush.msra.mxu0 %v8589
  %8597 = vmatpush.msra.mxu0 %v8588
  %8598 = vmatpush.msra.mxu0 %v8587
  %8599 = vmatpush.msra.mxu0 %v8586
  %8600 = vmatpush.msra.mxu0 %v8585
  %8601 = vmatpush.msra.mxu0 %v8584
  %8602 = vmatpush.msra.mxu0 %v8583
  %8603 = vmatpush.msra.mxu0 %v8582
  %8604 = vmatpush.msra.mxu0 %v8581
  %8605 = vmatpush.msra.mxu0 %v8580
  %8606 = vmatpush.msra.mxu0 %v8579
  %8607 = vmatpush.msra.mxu0 %v8578
  %8608 = vmatpush.msra.mxu0 %v8577
  %8609 = vmatmul.f32.gmra.mxu0 %v8572
  %v8610 = vpop.f32.mrf.mxu0
  %v8611 = vadd.f32 0.0, %v8610
  %8612 = vmatmul.f32.gmra.mxu0 %v8573
  %v8613 = vpop.f32.mrf.mxu0
  %v8614 = vadd.f32 0.0, %v8613
  %8615 = vmatmul.f32.gmra.mxu0 %v8574
  %v8616 = vpop.f32.mrf.mxu0
  %v8617 = vadd.f32 0.0, %v8616
  %8618 = vmatmul.f32.gmra.mxu0 %v8575
  %v8619 = vpop.f32.mrf.mxu0
  %v8620 = vadd.f32 0.0, %v8619
  %8621 = vdwg.mxu0
  %v8622 = vadd.f32 %v8564, %v8611
  %v8623 = vadd.f32 %v8565, %v8614
  %v8624 = vadd.f32 %v8566, %v8617
  %v8625 = vadd.f32 %v8567, %v8620
  %v8626 = vld [vmem:[#allocation4 + $0x5] sm:$0xff]
  %v8627 = vld [vmem:[#allocation4 + $0xd] sm:$0xff]
  %v8628 = vld [vmem:[#allocation4 + $0x25] sm:$0xff]
  %v8629 = vld [vmem:[#allocation4 + $0x2d] sm:$0xff]
  %s8630 = scalar_lea.vmem %s5, 512
  %v8631 = vld [vmem:[%s8630] sm:$0xff]
  %v8632 = vld [vmem:[%s8630 + $0x8] sm:$0xff]
  %v8633 = vld [vmem:[%s8630 + $0x10] sm:$0xff]
  %v8634 = vld [vmem:[%s8630 + $0x18] sm:$0xff]
  %v8635 = vld [vmem:[%s8630 + $0x20] sm:$0xff]
  %v8636 = vld [vmem:[%s8630 + $0x28] sm:$0xff]
  %v8637 = vld [vmem:[%s8630 + $0x30] sm:$0xff]
  %v8638 = vld [vmem:[%s8630 + $0x38] sm:$0xff]
  %v8639 = vld [vmem:[%s8630 + $0x40] sm:$0xff]
  %v8640 = vld [vmem:[%s8630 + $0x48] sm:$0xff]
  %v8641 = vld [vmem:[%s8630 + $0x50] sm:$0xff]
  %v8642 = vld [vmem:[%s8630 + $0x58] sm:$0xff]
  %v8643 = vld [vmem:[%s8630 + $0x60] sm:$0xff]
  %v8644 = vld [vmem:[%s8630 + $0x68] sm:$0xff]
  %v8645 = vld [vmem:[%s8630 + $0x70] sm:$0xff]
  %v8646 = vld [vmem:[%s8630 + $0x78] sm:$0xff]
  %8647 = vmatpush.msra.mxu0 %v8646
  %8648 = vmatpush.msra.mxu0 %v8645
  %8649 = vmatpush.msra.mxu0 %v8644
  %8650 = vmatpush.msra.mxu0 %v8643
  %8651 = vmatpush.msra.mxu0 %v8642
  %8652 = vmatpush.msra.mxu0 %v8641
  %8653 = vmatpush.msra.mxu0 %v8640
  %8654 = vmatpush.msra.mxu0 %v8639
  %8655 = vmatpush.msra.mxu0 %v8638
  %8656 = vmatpush.msra.mxu0 %v8637
  %8657 = vmatpush.msra.mxu0 %v8636
  %8658 = vmatpush.msra.mxu0 %v8635
  %8659 = vmatpush.msra.mxu0 %v8634
  %8660 = vmatpush.msra.mxu0 %v8633
  %8661 = vmatpush.msra.mxu0 %v8632
  %8662 = vmatpush.msra.mxu0 %v8631
  %8663 = vmatmul.f32.gmra.mxu0 %v8626
  %v8664 = vpop.f32.mrf.mxu0
  %v8665 = vadd.f32 0.0, %v8664
  %8666 = vmatmul.f32.gmra.mxu0 %v8627
  %v8667 = vpop.f32.mrf.mxu0
  %v8668 = vadd.f32 0.0, %v8667
  %8669 = vmatmul.f32.gmra.mxu0 %v8628
  %v8670 = vpop.f32.mrf.mxu0
  %v8671 = vadd.f32 0.0, %v8670
  %8672 = vmatmul.f32.gmra.mxu0 %v8629
  %v8673 = vpop.f32.mrf.mxu0
  %v8674 = vadd.f32 0.0, %v8673
  %8675 = vdwg.mxu0
  %v8676 = vadd.f32 %v8622, %v8665
  %v8677 = vadd.f32 %v8623, %v8668
  %v8678 = vadd.f32 %v8624, %v8671
  %v8679 = vadd.f32 %v8625, %v8674
  %v8680 = vld [vmem:[#allocation4 + $0x6] sm:$0xff]
  %v8681 = vld [vmem:[#allocation4 + $0xe] sm:$0xff]
  %v8682 = vld [vmem:[#allocation4 + $0x26] sm:$0xff]
  %v8683 = vld [vmem:[#allocation4 + $0x2e] sm:$0xff]
  %v8684 = vsel %vm8403, %v8680, 0.0
  %v8685 = vsel %vm8404, %v8681, 0.0
  %v8686 = vsel %vm8405, %v8682, 0.0
  %v8687 = vsel %vm8406, %v8683, 0.0
  %s8688 = scalar_lea.vmem %s5, 640
  %v8689 = vld [vmem:[%s8688] sm:$0xff]
  %v8690 = vld [vmem:[%s8688 + $0x8] sm:$0xff]
  %v8691 = vld [vmem:[%s8688 + $0x10] sm:$0xff]
  %v8692 = vld [vmem:[%s8688 + $0x18] sm:$0xff]
  %v8693 = vld [vmem:[%s8688 + $0x20] sm:$0xff]
  %v8694 = vld [vmem:[%s8688 + $0x28] sm:$0xff]
  %v8695 = vld [vmem:[%s8688 + $0x30] sm:$0xff]
  %v8696 = vld [vmem:[%s8688 + $0x38] sm:$0xff]
  %v8697 = vld [vmem:[%s8688 + $0x40] sm:$0xff]
  %v8698 = vld [vmem:[%s8688 + $0x48] sm:$0xff]
  %v8699 = vld [vmem:[%s8688 + $0x50] sm:$0xff]
  %v8700 = vld [vmem:[%s8688 + $0x58] sm:$0xff]
  %v8701 = vld [vmem:[%s8688 + $0x60] sm:$0xff]
  %v8702 = vld [vmem:[%s8688 + $0x68] sm:$0xff]
  %v8703 = vld [vmem:[%s8688 + $0x70] sm:$0xff]
  %v8704 = vld [vmem:[%s8688 + $0x78] sm:$0xff]
  %8705 = vmatpush.msra.mxu0 %v8704
  %8706 = vmatpush.msra.mxu0 %v8703
  %8707 = vmatpush.msra.mxu0 %v8702
  %8708 = vmatpush.msra.mxu0 %v8701
  %8709 = vmatpush.msra.mxu0 %v8700
  %8710 = vmatpush.msra.mxu0 %v8699
  %8711 = vmatpush.msra.mxu0 %v8698
  %8712 = vmatpush.msra.mxu0 %v8697
  %8713 = vmatpush.msra.mxu0 %v8696
  %8714 = vmatpush.msra.mxu0 %v8695
  %8715 = vmatpush.msra.mxu0 %v8694
  %8716 = vmatpush.msra.mxu0 %v8693
  %8717 = vmatpush.msra.mxu0 %v8692
  %8718 = vmatpush.msra.mxu0 %v8691
  %8719 = vmatpush.msra.mxu0 %v8690
  %8720 = vmatpush.msra.mxu0 %v8689
  %8721 = vmatmul.f32.gmra.mxu0 %v8684
  %v8722 = vpop.f32.mrf.mxu0
  %v8723 = vadd.f32 0.0, %v8722
  %8724 = vmatmul.f32.gmra.mxu0 %v8685
  %v8725 = vpop.f32.mrf.mxu0
  %v8726 = vadd.f32 0.0, %v8725
  %8727 = vmatmul.f32.gmra.mxu0 %v8686
  %v8728 = vpop.f32.mrf.mxu0
  %v8729 = vadd.f32 0.0, %v8728
  %8730 = vmatmul.f32.gmra.mxu0 %v8687
  %v8731 = vpop.f32.mrf.mxu0
  %v8732 = vadd.f32 0.0, %v8731
  %8733 = vdwg.mxu0
  %v8734 = vadd.f32 %v8676, %v8723
  %v8735 = vadd.f32 %v8677, %v8726
  %v8736 = vadd.f32 %v8678, %v8729
  %v8737 = vadd.f32 %v8679, %v8732
  %v8738 = vld [vmem:[#allocation4 + $0x8] sm:$0xff]
  %v8739 = vld [vmem:[#allocation4 + $0x10] sm:$0xff]
  %v8740 = vld [vmem:[#allocation4 + $0x28] sm:$0xff]
  %v8741 = vld [vmem:[#allocation4 + $0x30] sm:$0xff]
  %v8742 = vsel %vm8399, %v8738, 0.0
  %v8743 = vsel %vm8400, %v8739, 0.0
  %v8744 = vsel %vm8401, %v8740, 0.0
  %v8745 = vsel %vm8402, %v8741, 0.0
  %s8746 = scalar_lea.vmem %s5, 768
  %v8747 = vld [vmem:[%s8746] sm:$0xff]
  %v8748 = vld [vmem:[%s8746 + $0x8] sm:$0xff]
  %v8749 = vld [vmem:[%s8746 + $0x10] sm:$0xff]
  %v8750 = vld [vmem:[%s8746 + $0x18] sm:$0xff]
  %v8751 = vld [vmem:[%s8746 + $0x20] sm:$0xff]
  %v8752 = vld [vmem:[%s8746 + $0x28] sm:$0xff]
  %v8753 = vld [vmem:[%s8746 + $0x30] sm:$0xff]
  %v8754 = vld [vmem:[%s8746 + $0x38] sm:$0xff]
  %v8755 = vld [vmem:[%s8746 + $0x40] sm:$0xff]
  %v8756 = vld [vmem:[%s8746 + $0x48] sm:$0xff]
  %v8757 = vld [vmem:[%s8746 + $0x50] sm:$0xff]
  %v8758 = vld [vmem:[%s8746 + $0x58] sm:$0xff]
  %v8759 = vld [vmem:[%s8746 + $0x60] sm:$0xff]
  %v8760 = vld [vmem:[%s8746 + $0x68] sm:$0xff]
  %v8761 = vld [vmem:[%s8746 + $0x70] sm:$0xff]
  %v8762 = vld [vmem:[%s8746 + $0x78] sm:$0xff]
  %8763 = vmatpush.msra.mxu0 %v8762
  %8764 = vmatpush.msra.mxu0 %v8761
  %8765 = vmatpush.msra.mxu0 %v8760
  %8766 = vmatpush.msra.mxu0 %v8759
  %8767 = vmatpush.msra.mxu0 %v8758
  %8768 = vmatpush.msra.mxu0 %v8757
  %8769 = vmatpush.msra.mxu0 %v8756
  %8770 = vmatpush.msra.mxu0 %v8755
  %8771 = vmatpush.msra.mxu0 %v8754
  %8772 = vmatpush.msra.mxu0 %v8753
  %8773 = vmatpush.msra.mxu0 %v8752
  %8774 = vmatpush.msra.mxu0 %v8751
  %8775 = vmatpush.msra.mxu0 %v8750
  %8776 = vmatpush.msra.mxu0 %v8749
  %8777 = vmatpush.msra.mxu0 %v8748
  %8778 = vmatpush.msra.mxu0 %v8747
  %8779 = vmatmul.f32.gmra.mxu0 %v8742
  %v8780 = vpop.f32.mrf.mxu0
  %v8781 = vadd.f32 0.0, %v8780
  %8782 = vmatmul.f32.gmra.mxu0 %v8743
  %v8783 = vpop.f32.mrf.mxu0
  %v8784 = vadd.f32 0.0, %v8783
  %8785 = vmatmul.f32.gmra.mxu0 %v8744
  %v8786 = vpop.f32.mrf.mxu0
  %v8787 = vadd.f32 0.0, %v8786
  %8788 = vmatmul.f32.gmra.mxu0 %v8745
  %v8789 = vpop.f32.mrf.mxu0
  %v8790 = vadd.f32 0.0, %v8789
  %8791 = vdwg.mxu0
  %v8792 = vadd.f32 %v8734, %v8781
  %v8793 = vadd.f32 %v8735, %v8784
  %v8794 = vadd.f32 %v8736, %v8787
  %v8795 = vadd.f32 %v8737, %v8790
  %v8796 = vld [vmem:[#allocation4 + $0x9] sm:$0xff]
  %v8797 = vld [vmem:[#allocation4 + $0x11] sm:$0xff]
  %v8798 = vld [vmem:[#allocation4 + $0x29] sm:$0xff]
  %v8799 = vld [vmem:[#allocation4 + $0x31] sm:$0xff]
  %s8800 = scalar_lea.vmem %s5, 896
  %v8801 = vld [vmem:[%s8800] sm:$0xff]
  %v8802 = vld [vmem:[%s8800 + $0x8] sm:$0xff]
  %v8803 = vld [vmem:[%s8800 + $0x10] sm:$0xff]
  %v8804 = vld [vmem:[%s8800 + $0x18] sm:$0xff]
  %v8805 = vld [vmem:[%s8800 + $0x20] sm:$0xff]
  %v8806 = vld [vmem:[%s8800 + $0x28] sm:$0xff]
  %v8807 = vld [vmem:[%s8800 + $0x30] sm:$0xff]
  %v8808 = vld [vmem:[%s8800 + $0x38] sm:$0xff]
  %v8809 = vld [vmem:[%s8800 + $0x40] sm:$0xff]
  %v8810 = vld [vmem:[%s8800 + $0x48] sm:$0xff]
  %v8811 = vld [vmem:[%s8800 + $0x50] sm:$0xff]
  %v8812 = vld [vmem:[%s8800 + $0x58] sm:$0xff]
  %v8813 = vld [vmem:[%s8800 + $0x60] sm:$0xff]
  %v8814 = vld [vmem:[%s8800 + $0x68] sm:$0xff]
  %v8815 = vld [vmem:[%s8800 + $0x70] sm:$0xff]
  %v8816 = vld [vmem:[%s8800 + $0x78] sm:$0xff]
  %8817 = vmatpush.msra.mxu0 %v8816
  %8818 = vmatpush.msra.mxu0 %v8815
  %8819 = vmatpush.msra.mxu0 %v8814
  %8820 = vmatpush.msra.mxu0 %v8813
  %8821 = vmatpush.msra.mxu0 %v8812
  %8822 = vmatpush.msra.mxu0 %v8811
  %8823 = vmatpush.msra.mxu0 %v8810
  %8824 = vmatpush.msra.mxu0 %v8809
  %8825 = vmatpush.msra.mxu0 %v8808
  %8826 = vmatpush.msra.mxu0 %v8807
  %8827 = vmatpush.msra.mxu0 %v8806
  %8828 = vmatpush.msra.mxu0 %v8805
  %8829 = vmatpush.msra.mxu0 %v8804
  %8830 = vmatpush.msra.mxu0 %v8803
  %8831 = vmatpush.msra.mxu0 %v8802
  %8832 = vmatpush.msra.mxu0 %v8801
  %8833 = vmatmul.f32.gmra.mxu0 %v8796
  %v8834 = vpop.f32.mrf.mxu0
  %v8835 = vadd.f32 0.0, %v8834
  %8836 = vmatmul.f32.gmra.mxu0 %v8797
  %v8837 = vpop.f32.mrf.mxu0
  %v8838 = vadd.f32 0.0, %v8837
  %8839 = vmatmul.f32.gmra.mxu0 %v8798
  %v8840 = vpop.f32.mrf.mxu0
  %v8841 = vadd.f32 0.0, %v8840
  %8842 = vmatmul.f32.gmra.mxu0 %v8799
  %v8843 = vpop.f32.mrf.mxu0
  %v8844 = vadd.f32 0.0, %v8843
  %8845 = vdwg.mxu0
  %v8846 = vadd.f32 %v8792, %v8835
  %v8847 = vadd.f32 %v8793, %v8838
  %v8848 = vadd.f32 %v8794, %v8841
  %v8849 = vadd.f32 %v8795, %v8844
  %v8850 = vld [vmem:[#allocation4 + $0xa] sm:$0xff]
  %v8851 = vld [vmem:[#allocation4 + $0x12] sm:$0xff]
  %v8852 = vld [vmem:[#allocation4 + $0x2a] sm:$0xff]
  %v8853 = vld [vmem:[#allocation4 + $0x32] sm:$0xff]
  %v8854 = vsel %vm8403, %v8850, 0.0
  %v8855 = vsel %vm8404, %v8851, 0.0
  %v8856 = vsel %vm8405, %v8852, 0.0
  %v8857 = vsel %vm8406, %v8853, 0.0
  %s8858 = scalar_lea.vmem %s5, 1024
  %v8859 = vld [vmem:[%s8858] sm:$0xff]
  %v8860 = vld [vmem:[%s8858 + $0x8] sm:$0xff]
  %v8861 = vld [vmem:[%s8858 + $0x10] sm:$0xff]
  %v8862 = vld [vmem:[%s8858 + $0x18] sm:$0xff]
  %v8863 = vld [vmem:[%s8858 + $0x20] sm:$0xff]
  %v8864 = vld [vmem:[%s8858 + $0x28] sm:$0xff]
  %v8865 = vld [vmem:[%s8858 + $0x30] sm:$0xff]
  %v8866 = vld [vmem:[%s8858 + $0x38] sm:$0xff]
  %v8867 = vld [vmem:[%s8858 + $0x40] sm:$0xff]
  %v8868 = vld [vmem:[%s8858 + $0x48] sm:$0xff]
  %v8869 = vld [vmem:[%s8858 + $0x50] sm:$0xff]
  %v8870 = vld [vmem:[%s8858 + $0x58] sm:$0xff]
  %v8871 = vld [vmem:[%s8858 + $0x60] sm:$0xff]
  %v8872 = vld [vmem:[%s8858 + $0x68] sm:$0xff]
  %v8873 = vld [vmem:[%s8858 + $0x70] sm:$0xff]
  %v8874 = vld [vmem:[%s8858 + $0x78] sm:$0xff]
  %8875 = vmatpush.msra.mxu0 %v8874
  %8876 = vmatpush.msra.mxu0 %v8873
  %8877 = vmatpush.msra.mxu0 %v8872
  %8878 = vmatpush.msra.mxu0 %v8871
  %8879 = vmatpush.msra.mxu0 %v8870
  %8880 = vmatpush.msra.mxu0 %v8869
  %8881 = vmatpush.msra.mxu0 %v8868
  %8882 = vmatpush.msra.mxu0 %v8867
  %8883 = vmatpush.msra.mxu0 %v8866
  %8884 = vmatpush.msra.mxu0 %v8865
  %8885 = vmatpush.msra.mxu0 %v8864
  %8886 = vmatpush.msra.mxu0 %v8863
  %8887 = vmatpush.msra.mxu0 %v8862
  %8888 = vmatpush.msra.mxu0 %v8861
  %8889 = vmatpush.msra.mxu0 %v8860
  %8890 = vmatpush.msra.mxu0 %v8859
  %8891 = vmatmul.f32.gmra.mxu0 %v8854
  %v8892 = vpop.f32.mrf.mxu0
  %v8893 = vadd.f32 0.0, %v8892
  %8894 = vmatmul.f32.gmra.mxu0 %v8855
  %v8895 = vpop.f32.mrf.mxu0
  %v8896 = vadd.f32 0.0, %v8895
  %8897 = vmatmul.f32.gmra.mxu0 %v8856
  %v8898 = vpop.f32.mrf.mxu0
  %v8899 = vadd.f32 0.0, %v8898
  %8900 = vmatmul.f32.gmra.mxu0 %v8857
  %v8901 = vpop.f32.mrf.mxu0
  %v8902 = vadd.f32 0.0, %v8901
  %8903 = vdwg.mxu0
  %v8904 = vadd.f32 %v8846, %v8893
  %v8905 = vadd.f32 %v8847, %v8896
  %v8906 = vadd.f32 %v8848, %v8899
  %v8907 = vadd.f32 %v8849, %v8902
  %v8908 = vld [vmem:[%s6] sm:$0x1]
  %v8910 = vperm.slane %v8908, 0
  %v8912 = vadd.f32 %v8904, %v8910
  %v8913 = vadd.f32 %v8905, %v8910
  %v8914 = vadd.f32 %v8906, %v8910
  %v8915 = vadd.f32 %v8907, %v8910
  %vm8916 = vcmp.gt.f32.partialorder %v8912, 0.0
  %vm8917 = vcmp.gt.f32.partialorder %v8913, 0.0
  %vm8918 = vcmp.gt.f32.partialorder %v8914, 0.0
  %vm8919 = vcmp.gt.f32.partialorder %v8915, 0.0
  %v8920 = vmul.f32 %v8912, 0.2
  %v8921 = vmul.f32 %v8913, 0.2
  %v8922 = vmul.f32 %v8914, 0.2
  %v8923 = vmul.f32 %v8915, 0.2
  %v8924 = vsel %vm8916, %v8912, %v8920
  %v8925 = vsel %vm8917, %v8913, %v8921
  %v8926 = vsel %vm8918, %v8914, %v8922
  %v8927 = vsel %vm8919, %v8915, %v8923
  %v8932 = vrot.slane %v8924, 4
  %v8933 = vrot.slane %v8925, 4
  %v8934 = vrot.slane %v8926, 4
  %v8935 = vrot.slane %v8927, 4
  %v8940 = vmax.f32 %v8924, %v8932
  %v8941 = vmax.f32 %v8925, %v8933
  %v8942 = vmax.f32 %v8926, %v8934
  %v8943 = vmax.f32 %v8927, %v8935
  %8948 = vst [vmem:[#allocation1] ss:$2 sm:$0xff] %v8940
  %s8949 = scalar_lea.vmem [#allocation1], 1
  %8950 = vst [vmem:[%s8949] ss:$2 sm:$0xff] %v8941
  %s8951 = scalar_lea.vmem [#allocation1], 16
  %8952 = vst [vmem:[%s8951] ss:$2 sm:$0xff] %v8942
  %s8953 = scalar_lea.vmem [#allocation1], 17
  %8954 = vst [vmem:[%s8953] ss:$2 sm:$0xff] %v8943
  %v8955 = vld.sshfl [vmem:[#allocation1] sm:$0xff pattern:$0x75316420]
  %v8956 = vld.sshfl [vmem:[#allocation1 + $0x10] sm:$0xff pattern:$0x75316420]
  %8959 = vst.msk [vmem:[#allocation8] sm:$0xff] %vm46, %v8955
  %8960 = vst.msk [vmem:[#allocation8 + $0x8] sm:$0xff] %vm46, %v8956
  %v8961 = vld [vmem:[#allocation8] ss:$2 sm:$0xff]
  %s8962 = scalar_lea.vmem [#allocation8], 1
  %v8963 = vld [vmem:[%s8962] ss:$2 sm:$0xff]
  %v8964 = vmax.f32 %v8961, %v8963
  %v8966 = vrot.slane %v8964, 4
  %vm8968 = vcmask 257024
  %8969 = vst.msk [vmem:[#allocation5 + $0x3] sm:$0xf] %vm8968, %v8964
  %8970 = vst.msk [vmem:[#allocation5 + $0x13] sm:$0xf] %vm8968, %v8966
  %vm8971 = vcmp.lt.s32.totalorder %v194, 0
  %v8972 = vsub.s32 0, %v194
  %v8973 = vsel %vm8971, %v8972, %v194
  %v8974 = vshrl.u32 %v8973, 1
  %v8975 = vand.u32 %v8973, 1
  %v8976 = vsub.s32 0, %v8975
  %v8977 = vsel %vm8971, %v8976, %v8975
  %vm8978 = vcmp.ne.s32.totalorder %v8977, 0
  %vm8979 = vcmp.lt.s32.totalorder %v8977, 0
  %vm8980 = vmand %vm8979, %vm8978
  %v8981 = vadd.s32 %v8977, 2
  %v8982 = vsel %vm8980, %v8981, %v8977
  %vm8983 = vcmp.ne.s32.totalorder %v8982, 0
  %vm8984 = vcmp.ne.s32.totalorder %v8982, 1
  %v8985 = vld [vmem:[#allocation5] sm:$0xf]
  %v8986 = vld [vmem:[#allocation5 + $0x10] sm:$0xf]
  %8989 = vst [vmem:[#allocation1] ss:$2 sm:$0xff] %v8985
  %s8990 = scalar_lea.vmem [#allocation1], 1
  %8991 = vst [vmem:[%s8990] ss:$2 sm:$0xff] %v8986
  %v8992 = vld.sshfl [vmem:[#allocation1] sm:$0xff pattern:$0x75316420]
  %v8994 = vsel %vm8983, %v8992, 0.0
  %v8995 = vld [vmem:[%s7] sm:$0xff]
  %v8996 = vld [vmem:[%s7 + $0x8] sm:$0xff]
  %v8997 = vld [vmem:[%s7 + $0x10] sm:$0xff]
  %v8998 = vld [vmem:[%s7 + $0x18] sm:$0xff]
  %v8999 = vld [vmem:[#allocation5 + $0x1] sm:$0xf]
  %v9000 = vld [vmem:[#allocation5 + $0x11] sm:$0xf]
  %s9001 = scalar_lea.vmem %s7, 32
  %v9002 = vld [vmem:[%s9001] sm:$0xff]
  %v9003 = vld [vmem:[%s9001 + $0x8] sm:$0xff]
  %v9004 = vld [vmem:[%s9001 + $0x10] sm:$0xff]
  %v9005 = vld [vmem:[%s9001 + $0x18] sm:$0xff]
  %9008 = vst [vmem:[#allocation1] ss:$2 sm:$0xff] %v8999
  %s9009 = scalar_lea.vmem [#allocation1], 1
  %9010 = vst [vmem:[%s9009] ss:$2 sm:$0xff] %v9000
  %v9011 = vld.sshfl [vmem:[#allocation1] sm:$0xff pattern:$0x75316420]
  %v9012 = vsel %vm46, %v9011, 0
  %9014 = vmatpush.msra.mxu0 0.0
  %9015 = vmatpush.msra.mxu0 0.0
  %9016 = vmatpush.msra.mxu0 0.0
  %9017 = vmatpush.msra.mxu0 0.0
  %9018 = vmatpush.msra.mxu0 0.0
  %9019 = vmatpush.msra.mxu0 0.0
  %9020 = vmatpush.msra.mxu0 0.0
  %9021 = vmatpush.msra.mxu0 0.0
  %9022 = vmatpush.msra.mxu0 0.0
  %9023 = vmatpush.msra.mxu0 0.0
  %9024 = vmatpush.msra.mxu0 0.0
  %9025 = vmatpush.msra.mxu0 0.0
  %9026 = vmatpush.msra.mxu0 %v9005
  %9027 = vmatpush.msra.mxu0 %v9004
  %9028 = vmatpush.msra.mxu0 %v9003
  %9029 = vmatpush.msra.mxu0 %v9002
  %9030 = vmatmul.f32.gmra.mxu0 %v9012
  %v9031 = vpop.f32.mrf.mxu0
  %v9032 = vadd.f32 0.0, %v9031
  %9033 = vdwg.mxu0
  %v9035 = vsel %vm46, %v8994, 0
  %9037 = vmatpush.msra.mxu0 0.0
  %9038 = vmatpush.msra.mxu0 0.0
  %9039 = vmatpush.msra.mxu0 0.0
  %9040 = vmatpush.msra.mxu0 0.0
  %9041 = vmatpush.msra.mxu0 0.0
  %9042 = vmatpush.msra.mxu0 0.0
  %9043 = vmatpush.msra.mxu0 0.0
  %9044 = vmatpush.msra.mxu0 0.0
  %9045 = vmatpush.msra.mxu0 0.0
  %9046 = vmatpush.msra.mxu0 0.0
  %9047 = vmatpush.msra.mxu0 0.0
  %9048 = vmatpush.msra.mxu0 0.0
  %9049 = vmatpush.msra.mxu0 %v8998
  %9050 = vmatpush.msra.mxu0 %v8997
  %9051 = vmatpush.msra.mxu0 %v8996
  %9052 = vmatpush.msra.mxu0 %v8995
  %9053 = vmatmul.f32.gmra.mxu0 %v9035
  %v9054 = vpop.f32.mrf.mxu0
  %v9055 = vadd.f32 %v9032, %v9054
  %9056 = vdwg.mxu0
  %v9057 = vld [vmem:[#allocation5 + $0x2] sm:$0xf]
  %v9058 = vld [vmem:[#allocation5 + $0x12] sm:$0xf]
  %9061 = vst [vmem:[#allocation1] ss:$2 sm:$0xff] %v9057
  %s9062 = scalar_lea.vmem [#allocation1], 1
  %9063 = vst [vmem:[%s9062] ss:$2 sm:$0xff] %v9058
  %v9064 = vld.sshfl [vmem:[#allocation1] sm:$0xff pattern:$0x75316420]
  %v9066 = vsel %vm8984, %v9064, 0.0
  %s9067 = scalar_lea.vmem %s7, 64
  %v9068 = vld [vmem:[%s9067] sm:$0xff]
  %v9069 = vld [vmem:[%s9067 + $0x8] sm:$0xff]
  %v9070 = vld [vmem:[%s9067 + $0x10] sm:$0xff]
  %v9071 = vld [vmem:[%s9067 + $0x18] sm:$0xff]
  %v9073 = vsel %vm46, %v9066, 0
  %9075 = vmatpush.msra.mxu0 0.0
  %9076 = vmatpush.msra.mxu0 0.0
  %9077 = vmatpush.msra.mxu0 0.0
  %9078 = vmatpush.msra.mxu0 0.0
  %9079 = vmatpush.msra.mxu0 0.0
  %9080 = vmatpush.msra.mxu0 0.0
  %9081 = vmatpush.msra.mxu0 0.0
  %9082 = vmatpush.msra.mxu0 0.0
  %9083 = vmatpush.msra.mxu0 0.0
  %9084 = vmatpush.msra.mxu0 0.0
  %9085 = vmatpush.msra.mxu0 0.0
  %9086 = vmatpush.msra.mxu0 0.0
  %9087 = vmatpush.msra.mxu0 %v9071
  %9088 = vmatpush.msra.mxu0 %v9070
  %9089 = vmatpush.msra.mxu0 %v9069
  %9090 = vmatpush.msra.mxu0 %v9068
  %9091 = vmatmul.f32.gmra.mxu0 %v9073
  %v9092 = vpop.f32.mrf.mxu0
  %v9093 = vadd.f32 0.0, %v9092
  %9094 = vdwg.mxu0
  %v9095 = vadd.f32 %v9055, %v9093
  %9096 = vst [vmem:[#allocation1] ss:$2 sm:$0xff] %v9057
  %s9097 = scalar_lea.vmem [#allocation1], 1
  %9098 = vst [vmem:[%s9097] ss:$2 sm:$0xff] %v9058
  %v9099 = vld.sshfl [vmem:[#allocation1] sm:$0xff pattern:$0x75316420]
  %v9101 = vsel %vm8983, %v9099, 0.0
  %s9102 = scalar_lea.vmem %s7, 96
  %v9103 = vld [vmem:[%s9102] sm:$0xff]
  %v9104 = vld [vmem:[%s9102 + $0x8] sm:$0xff]
  %v9105 = vld [vmem:[%s9102 + $0x10] sm:$0xff]
  %v9106 = vld [vmem:[%s9102 + $0x18] sm:$0xff]
  %v9108 = vsel %vm46, %v9101, 0
  %9110 = vmatpush.msra.mxu0 0.0
  %9111 = vmatpush.msra.mxu0 0.0
  %9112 = vmatpush.msra.mxu0 0.0
  %9113 = vmatpush.msra.mxu0 0.0
  %9114 = vmatpush.msra.mxu0 0.0
  %9115 = vmatpush.msra.mxu0 0.0
  %9116 = vmatpush.msra.mxu0 0.0
  %9117 = vmatpush.msra.mxu0 0.0
  %9118 = vmatpush.msra.mxu0 0.0
  %9119 = vmatpush.msra.mxu0 0.0
  %9120 = vmatpush.msra.mxu0 0.0
  %9121 = vmatpush.msra.mxu0 0.0
  %9122 = vmatpush.msra.mxu0 %v9106
  %9123 = vmatpush.msra.mxu0 %v9105
  %9124 = vmatpush.msra.mxu0 %v9104
  %9125 = vmatpush.msra.mxu0 %v9103
  %9126 = vmatmul.f32.gmra.mxu0 %v9108
  %v9127 = vpop.f32.mrf.mxu0
  %v9128 = vadd.f32 0.0, %v9127
  %9129 = vdwg.mxu0
  %v9130 = vadd.f32 %v9095, %v9128
  %v9131 = vld [vmem:[#allocation5 + $0x3] sm:$0xf]
  %v9132 = vld [vmem:[#allocation5 + $0x13] sm:$0xf]
  %s9133 = scalar_lea.vmem %s7, 128
  %v9134 = vld [vmem:[%s9133] sm:$0xff]
  %v9135 = vld [vmem:[%s9133 + $0x8] sm:$0xff]
  %v9136 = vld [vmem:[%s9133 + $0x10] sm:$0xff]
  %v9137 = vld [vmem:[%s9133 + $0x18] sm:$0xff]
  %9140 = vst [vmem:[#allocation1] ss:$2 sm:$0xff] %v9131
  %s9141 = scalar_lea.vmem [#allocation1], 1
  %9142 = vst [vmem:[%s9141] ss:$2 sm:$0xff] %v9132
  %v9143 = vld.sshfl [vmem:[#allocation1] sm:$0xff pattern:$0x75316420]
  %v9144 = vsel %vm46, %v9143, 0
  %9146 = vmatpush.msra.mxu0 0.0
  %9147 = vmatpush.msra.mxu0 0.0
  %9148 = vmatpush.msra.mxu0 0.0
  %9149 = vmatpush.msra.mxu0 0.0
  %9150 = vmatpush.msra.mxu0 0.0
  %9151 = vmatpush.msra.mxu0 0.0
  %9152 = vmatpush.msra.mxu0 0.0
  %9153 = vmatpush.msra.mxu0 0.0
  %9154 = vmatpush.msra.mxu0 0.0
  %9155 = vmatpush.msra.mxu0 0.0
  %9156 = vmatpush.msra.mxu0 0.0
  %9157 = vmatpush.msra.mxu0 0.0
  %9158 = vmatpush.msra.mxu0 %v9137
  %9159 = vmatpush.msra.mxu0 %v9136
  %9160 = vmatpush.msra.mxu0 %v9135
  %9161 = vmatpush.msra.mxu0 %v9134
  %9162 = vmatmul.f32.gmra.mxu0 %v9144
  %v9163 = vpop.f32.mrf.mxu0
  %v9164 = vadd.f32 0.0, %v9163
  %9165 = vdwg.mxu0
  %v9166 = vadd.f32 %v9130, %v9164
  %v9167 = vld [vmem:[#allocation5 + $0x4] sm:$0xf]
  %v9168 = vld [vmem:[#allocation5 + $0x14] sm:$0xf]
  %9171 = vst [vmem:[#allocation1] ss:$2 sm:$0xff] %v9167
  %s9172 = scalar_lea.vmem [#allocation1], 1
  %9173 = vst [vmem:[%s9172] ss:$2 sm:$0xff] %v9168
  %v9174 = vld.sshfl [vmem:[#allocation1] sm:$0xff pattern:$0x75316420]
  %v9176 = vsel %vm8984, %v9174, 0.0
  %s9177 = scalar_lea.vmem %s7, 160
  %v9178 = vld [vmem:[%s9177] sm:$0xff]
  %v9179 = vld [vmem:[%s9177 + $0x8] sm:$0xff]
  %v9180 = vld [vmem:[%s9177 + $0x10] sm:$0xff]
  %v9181 = vld [vmem:[%s9177 + $0x18] sm:$0xff]
  %v9183 = vsel %vm46, %v9176, 0
  %9185 = vmatpush.msra.mxu0 0.0
  %9186 = vmatpush.msra.mxu0 0.0
  %9187 = vmatpush.msra.mxu0 0.0
  %9188 = vmatpush.msra.mxu0 0.0
  %9189 = vmatpush.msra.mxu0 0.0
  %9190 = vmatpush.msra.mxu0 0.0
  %9191 = vmatpush.msra.mxu0 0.0
  %9192 = vmatpush.msra.mxu0 0.0
  %9193 = vmatpush.msra.mxu0 0.0
  %9194 = vmatpush.msra.mxu0 0.0
  %9195 = vmatpush.msra.mxu0 0.0
  %9196 = vmatpush.msra.mxu0 0.0
  %9197 = vmatpush.msra.mxu0 %v9181
  %9198 = vmatpush.msra.mxu0 %v9180
  %9199 = vmatpush.msra.mxu0 %v9179
  %9200 = vmatpush.msra.mxu0 %v9178
  %9201 = vmatmul.f32.gmra.mxu0 %v9183
  %v9202 = vpop.f32.mrf.mxu0
  %v9203 = vadd.f32 0.0, %v9202
  %9204 = vdwg.mxu0
  %v9205 = vadd.f32 %v9166, %v9203
  %9206 = vst [vmem:[#allocation1] ss:$2 sm:$0xff] %v9167
  %s9207 = scalar_lea.vmem [#allocation1], 1
  %9208 = vst [vmem:[%s9207] ss:$2 sm:$0xff] %v9168
  %v9209 = vld.sshfl [vmem:[#allocation1] sm:$0xff pattern:$0x75316420]
  %v9211 = vsel %vm8983, %v9209, 0.0
  %s9212 = scalar_lea.vmem %s7, 192
  %v9213 = vld [vmem:[%s9212] sm:$0xff]
  %v9214 = vld [vmem:[%s9212 + $0x8] sm:$0xff]
  %v9215 = vld [vmem:[%s9212 + $0x10] sm:$0xff]
  %v9216 = vld [vmem:[%s9212 + $0x18] sm:$0xff]
  %v9218 = vsel %vm46, %v9211, 0
  %9220 = vmatpush.msra.mxu0 0.0
  %9221 = vmatpush.msra.mxu0 0.0
  %9222 = vmatpush.msra.mxu0 0.0
  %9223 = vmatpush.msra.mxu0 0.0
  %9224 = vmatpush.msra.mxu0 0.0
  %9225 = vmatpush.msra.mxu0 0.0
  %9226 = vmatpush.msra.mxu0 0.0
  %9227 = vmatpush.msra.mxu0 0.0
  %9228 = vmatpush.msra.mxu0 0.0
  %9229 = vmatpush.msra.mxu0 0.0
  %9230 = vmatpush.msra.mxu0 0.0
  %9231 = vmatpush.msra.mxu0 0.0
  %9232 = vmatpush.msra.mxu0 %v9216
  %9233 = vmatpush.msra.mxu0 %v9215
  %9234 = vmatpush.msra.mxu0 %v9214
  %9235 = vmatpush.msra.mxu0 %v9213
  %9236 = vmatmul.f32.gmra.mxu0 %v9218
  %v9237 = vpop.f32.mrf.mxu0
  %v9238 = vadd.f32 0.0, %v9237
  %9239 = vdwg.mxu0
  %v9240 = vadd.f32 %v9205, %v9238
  %v9241 = vld [vmem:[#allocation5 + $0x5] sm:$0xf]
  %v9242 = vld [vmem:[#allocation5 + $0x15] sm:$0xf]
  %s9243 = scalar_lea.vmem %s7, 224
  %v9244 = vld [vmem:[%s9243] sm:$0xff]
  %v9245 = vld [vmem:[%s9243 + $0x8] sm:$0xff]
  %v9246 = vld [vmem:[%s9243 + $0x10] sm:$0xff]
  %v9247 = vld [vmem:[%s9243 + $0x18] sm:$0xff]
  %9250 = vst [vmem:[#allocation1] ss:$2 sm:$0xff] %v9241
  %s9251 = scalar_lea.vmem [#allocation1], 1
  %9252 = vst [vmem:[%s9251] ss:$2 sm:$0xff] %v9242
  %v9253 = vld.sshfl [vmem:[#allocation1] sm:$0xff pattern:$0x75316420]
  %v9254 = vsel %vm46, %v9253, 0
  %9256 = vmatpush.msra.mxu0 0.0
  %9257 = vmatpush.msra.mxu0 0.0
  %9258 = vmatpush.msra.mxu0 0.0
  %9259 = vmatpush.msra.mxu0 0.0
  %9260 = vmatpush.msra.mxu0 0.0
  %9261 = vmatpush.msra.mxu0 0.0
  %9262 = vmatpush.msra.mxu0 0.0
  %9263 = vmatpush.msra.mxu0 0.0
  %9264 = vmatpush.msra.mxu0 0.0
  %9265 = vmatpush.msra.mxu0 0.0
  %9266 = vmatpush.msra.mxu0 0.0
  %9267 = vmatpush.msra.mxu0 0.0
  %9268 = vmatpush.msra.mxu0 %v9247
  %9269 = vmatpush.msra.mxu0 %v9246
  %9270 = vmatpush.msra.mxu0 %v9245
  %9271 = vmatpush.msra.mxu0 %v9244
  %9272 = vmatmul.f32.gmra.mxu0 %v9254
  %v9273 = vpop.f32.mrf.mxu0
  %v9274 = vadd.f32 0.0, %v9273
  %9275 = vdwg.mxu0
  %v9276 = vadd.f32 %v9240, %v9274
  %v9277 = vld [vmem:[#allocation5 + $0x6] sm:$0xf]
  %v9278 = vld [vmem:[#allocation5 + $0x16] sm:$0xf]
  %9281 = vst [vmem:[#allocation1] ss:$2 sm:$0xff] %v9277
  %s9282 = scalar_lea.vmem [#allocation1], 1
  %9283 = vst [vmem:[%s9282] ss:$2 sm:$0xff] %v9278
  %v9284 = vld.sshfl [vmem:[#allocation1] sm:$0xff pattern:$0x75316420]
  %v9286 = vsel %vm8984, %v9284, 0.0
  %s9287 = scalar_lea.vmem %s7, 256
  %v9288 = vld [vmem:[%s9287] sm:$0xff]
  %v9289 = vld [vmem:[%s9287 + $0x8] sm:$0xff]
  %v9290 = vld [vmem:[%s9287 + $0x10] sm:$0xff]
  %v9291 = vld [vmem:[%s9287 + $0x18] sm:$0xff]
  %v9293 = vsel %vm46, %v9286, 0
  %9295 = vmatpush.msra.mxu0 0.0
  %9296 = vmatpush.msra.mxu0 0.0
  %9297 = vmatpush.msra.mxu0 0.0
  %9298 = vmatpush.msra.mxu0 0.0
  %9299 = vmatpush.msra.mxu0 0.0
  %9300 = vmatpush.msra.mxu0 0.0
  %9301 = vmatpush.msra.mxu0 0.0
  %9302 = vmatpush.msra.mxu0 0.0
  %9303 = vmatpush.msra.mxu0 0.0
  %9304 = vmatpush.msra.mxu0 0.0
  %9305 = vmatpush.msra.mxu0 0.0
  %9306 = vmatpush.msra.mxu0 0.0
  %9307 = vmatpush.msra.mxu0 %v9291
  %9308 = vmatpush.msra.mxu0 %v9290
  %9309 = vmatpush.msra.mxu0 %v9289
  %9310 = vmatpush.msra.mxu0 %v9288
  %9311 = vmatmul.f32.gmra.mxu0 %v9293
  %v9312 = vpop.f32.mrf.mxu0
  %v9313 = vadd.f32 0.0, %v9312
  %9314 = vdwg.mxu0
  %v9315 = vadd.f32 %v9276, %v9313
  %v9316 = vld [vmem:[%s8] sm:$0x1]
  %v9318 = vperm.slane %v9316, 0
  %v9320 = vadd.f32 %v9315, %v9318
  %vm9321 = vcmask 1043456
  %v9322 = vsel %vm9321, %v9320, 0.0
  %v9323 = vrot.slane %v9322, 4
  %v9324 = vadd.f32 %v9322, %v9323
  %v9325 = vrot.slane %v9324, 2
  %v9326 = vadd.f32 %v9324, %v9325
  %v9327 = vrot.slane %v9326, 1
  %v9328 = vadd.f32 %v9326, %v9327
  %v9329 = vrcp.pop 4.0
  %v9330 = vmul.f32 4.0, %v9329
  %v9331 = vsub.f32 1.0, %v9330
  %v9332 = vmul.f32 %v9329, %v9331
  %v9333 = vadd.f32 %v9329, %v9332
  %vm9334 = vweird.f32 %v9329
  %v9335 = vsel %vm9334, %v9329, %v9333
  %v9336 = vmul.f32 %v9328, %v9335
  %9337 = vst [vmem:[%s9] sm:$0x1] %v9336
  %v9339 = vrot.slane %v9320, 4
  %v9341 = vsel %vm9321, %v9339, 0.0
  %v9342 = vrot.slane %v9341, 4
  %v9343 = vadd.f32 %v9341, %v9342
  %v9344 = vrot.slane %v9343, 2
  %v9345 = vadd.f32 %v9343, %v9344
  %v9346 = vrot.slane %v9345, 1
  %v9347 = vadd.f32 %v9345, %v9346
  %v9348 = vmul.f32 %v9347, %v9335
  %9349 = vst [vmem:[%s9 + $0x1] sm:$0x1] %v9348
  // Predicated region
  $region38: #{conv_encoder_forward.1} parent=0 // pred_check
    _
  $region39: #{conv_encoder_forward.1} parent=0 // pred_check_branch
    %9351 = sbr.rel (0) target = $region41
  $region40: #{conv_encoder_forward.1} parent=0 // pred_region
    _
  $region41: #{conv_encoder_forward.1} parent=0 // pred_fallthru
    _
  // Predicated region
  $region42: #{conv_encoder_forward.1} parent=0 // pred_check
    _
  $region43: #{conv_encoder_forward.1} parent=0 // pred_check_branch
    %9353 = sbr.rel (0) target = $region45
  $region44: #{conv_encoder_forward.1} parent=0 // pred_region
    _
  $region45: #{conv_encoder_forward.1} parent=0 // pred_fallthru
    _

</llo_original>
